<compile_context>
chip_gen: v7x
topology: tpu7x:2x2x1
jax: 0.10.0
libtpu: 0.0.40
codegen_flags: <defaults>
</compile_context>

<pallas_src>
import math
import functools

import jax
import jax.numpy as jnp
from jax import lax
from jax.experimental import pallas as pl
from jax.experimental.pallas import tpu as pltpu

# ----------------------------- model config ---------------------------------
D_MODEL = 32
D_FF = 64
N_HEADS = 4
N_LAYERS = 2
SRC_VOCAB = 16
TGT_VOCAB = 16
EPS = 1e-6
LANES = 128
NEG_INF = -1e9
MATMUL_DTYPE = jnp.bfloat16   # set to jnp.float32 for exact f32 matmul numerics


# ----------------------------- slab packing ----------------------------------
class _Slab:
    """Packs many small 2-D tensors into one lane-dense [rows, 128] slab."""

    def __init__(self, lanes=LANES):
        self.lanes = lanes
        self.parts = []
        self.index = {}          # name -> (row_offset, rows, cols)
        self.off = 0

    def add(self, name, arr):
        arr = jnp.asarray(arr, jnp.float32)
        r, c = arr.shape
        assert c <= self.lanes, (name, arr.shape)
        if c < self.lanes:
            arr = jnp.concatenate(
                [arr, jnp.zeros((r, self.lanes - c), jnp.float32)], axis=1)
        self.parts.append(arr)
        self.index[name] = (self.off, r, c)
        self.off += r

    def build(self, dtype):
        return jnp.concatenate(self.parts, axis=0).astype(dtype)


def _build_slabs(params):
    """Repack the nested nn.Module-style params into one bf16 weight slab and one
    f32 LayerNorm/bias slab, plus Python offset registries for in-kernel slicing."""
    wslab, pslab = _Slab(), _Slab()

    def add_attn(prefix, ap):
        # q|k|v|o packed along lanes -> one [D, 128] lane-dense column block.
        wslab.add(prefix + "wqkvo",
                  jnp.concatenate([ap["wq"], ap["wk"], ap["wv"], ap["wo"]], axis=1))
        pslab.add(prefix + "b_qkvo",
                  jnp.concatenate([ap["bq"], ap["bk"], ap["bv"], ap["bo"]], axis=1))

    def add_ffn(prefix, fp):
        d_ff, d_model = fp["w2"].shape
        assert d_ff <= LANES
        wslab.add(prefix + "w1", fp["w1"])                              # [D, d_ff] -> 128 lanes
        w2p = jnp.zeros((LANES, d_model), jnp.float32).at[:d_ff, :].set(fp["w2"])
        wslab.add(prefix + "w2", w2p)                                   # [128, D] -> 128 lanes
        pslab.add(prefix + "b1", fp["b1"])
        pslab.add(prefix + "b2", fp["b2"])

    def add_ln(name, lp):
        pslab.add(name + "_a", lp["a"])
        pslab.add(name + "_b", lp["b"])

    for l, lp in enumerate(params["encoder"]["layers"]):
        p = f"enc{l}_"
        add_ln(p + "ln1", lp["ln1"])
        add_attn(p, lp["attn"])
        add_ln(p + "ln2", lp["ln2"])
        add_ffn(p, lp["ff"])
    add_ln("enc_ln", params["encoder"]["ln"])

    for l, lp in enumerate(params["decoder"]["layers"]):
        p = f"dec{l}_"
        add_ln(p + "ln1", lp["ln1"])
        add_attn(p + "self_", lp["self_attn"])
        add_ln(p + "ln2", lp["ln2"])
        add_attn(p + "src_", lp["src_attn"])
        add_ln(p + "ln3", lp["ln3"])
        add_ffn(p, lp["ff"])
    add_ln("dec_ln", params["decoder"]["ln"])

    return wslab.build(MATMUL_DTYPE), wslab.index, pslab.build(jnp.float32), pslab.index


def _merged_attn_bias(mask, s_q, s_k):
    """Additive attention bias [B*Sq, B*Sk] for the row-stacked batch:
    0 where attention is allowed, -1e9 where masked OR cross-batch."""
    b = mask.shape[0]
    m = jnp.broadcast_to(mask.astype(jnp.float32), (b, s_q, s_k))
    in_batch = jnp.where(m > 0.0, 0.0, NEG_INF)                        # [B, Sq, Sk]
    full = jnp.full((b * s_q, b * s_k), NEG_INF, jnp.float32)
    for bi in range(b):                                                # static B, glue
        full = full.at[bi * s_q:(bi + 1) * s_q, bi * s_k:(bi + 1) * s_k].set(in_batch[bi])
    return full


# ------------------------------ fused kernel ---------------------------------
def _fused_forward_kernel(xsrc_ref, xtgt_ref, bias_es_ref, bias_ds_ref, bias_x_ref,
                          wslab_ref, pslab_ref, out_ref, *,
                          widx, pidx, num_heads, n_layers, d_model, eps):
    D = d_model

    # ---- slab accessors (all offsets static Python ints) ----
    def wfull(name):
        off, r, _ = widx[name]
        return wslab_ref[off:off + r, :]                    # [r, 128] MATMUL_DTYPE

    def prow(name):
        off, r, c = pidx[name]
        return pslab_ref[off:off + r, :c]                   # [1, c]  f32

    def prow128(name):
        off, r, _ = pidx[name]
        return pslab_ref[off:off + r, :]                    # [1, 128] f32 (zero-padded)

    def mm(a, b):
        return jnp.dot(a.astype(MATMUL_DTYPE), b, preferred_element_type=jnp.float32)

    # ---- building blocks ----
    def layernorm(x, a, b):
        # Annotated-Transformer LayerNorm: a * (x - mean) / (std + eps) + b
        # torch .std() default is unbiased (N-1 divisor) -- intentional, keep it.
        d = x.shape[-1]
        mean = jnp.mean(x, axis=-1, keepdims=True)
        var = jnp.sum((x - mean) ** 2, axis=-1, keepdims=True) * (1.0 / (d - 1))
        inv = pl.reciprocal(jnp.sqrt(var) + eps, approx=True)
        return a * (x - mean) * inv + b

    def mha(x_q, x_kv, bias, wqkvo, b_qkvo):
        """Multi-head attention over row-stacked batches.
        x_q: [Rq, D], x_kv: [Rk, D], bias: [Rq, Rk] additive (block-diag batch mask).
        wqkvo: [D, 128] packed q|k|v|o, b_qkvo: [1, 128] packed biases."""
        dk = D // num_heads
        scale = 1.0 / math.sqrt(dk)
        proj_q = mm(x_q, wqkvo) + b_qkvo                    # [Rq, 128] lane-dense
        proj_kv = proj_q if x_kv is x_q else mm(x_kv, wqkvo) + b_qkvo
        q_all = proj_q[:, 0:D]
        k_all = proj_kv[:, D:2 * D]
        v_all = proj_kv[:, 2 * D:3 * D]

        heads = []
        for hh in range(num_heads):
            sl = slice(hh * dk, (hh + 1) * dk)
            s = lax.dot_general(q_all[:, sl].astype(MATMUL_DTYPE),
                                k_all[:, sl].astype(MATMUL_DTYPE),
                                (((1,), (1,)), ((), ())),
                                preferred_element_type=jnp.float32)
            s = s * scale + bias
            s = s - jnp.max(s, axis=-1, keepdims=True)
            p = jnp.exp(s)
            p = p * pl.reciprocal(jnp.sum(p, axis=-1, keepdims=True), approx=True)
            heads.append(mm(p, v_all[:, sl].astype(MATMUL_DTYPE)))     # [Rq, dk]
        ctx = jnp.concatenate(heads, axis=1)                           # [Rq, D]
        wo = wqkvo[:, 3 * D:4 * D]
        bo = b_qkvo[:, 3 * D:4 * D]
        return mm(ctx, wo) + bo                                        # single Wo matmul

    def ffn(x, w1, b1, w2, b2):
        # Position-wise FFN; hidden kept 128-lane dense (zero-padded columns).
        h = jnp.maximum(mm(x, w1) + b1, 0.0)                           # [R, 128]
        return (mm(h, w2) + b2)[:, :D]                                 # [R, D]

    # ---- forward ----
    x = xsrc_ref[...]            # [B*S_src, D]
    y = xtgt_ref[...]            # [B*S_tgt, D]
    bias_es = bias_es_ref[...]
    bias_ds = bias_ds_ref[...]
    bias_x = bias_x_ref[...]

    # Encoder
    for l in range(n_layers):
        p = f"enc{l}_"
        xn = layernorm(x, prow(p + "ln1_a"), prow(p + "ln1_b"))
        x = x + mha(xn, xn, bias_es, wfull(p + "wqkvo"), prow128(p + "b_qkvo"))
        xn = layernorm(x, prow(p + "ln2_a"), prow(p + "ln2_b"))
        x = x + ffn(xn, wfull(p + "w1"), prow128(p + "b1"),
                    wfull(p + "w2"), prow128(p + "b2"))
    memory = layernorm(x, prow("enc_ln_a"), prow("enc_ln_b"))

    # Decoder
    for l in range(n_layers):
        p = f"dec{l}_"
        yn = layernorm(y, prow(p + "ln1_a"), prow(p + "ln1_b"))
        y = y + mha(yn, yn, bias_ds, wfull(p + "self_wqkvo"), prow128(p + "self_b_qkvo"))
        yn = layernorm(y, prow(p + "ln2_a"), prow(p + "ln2_b"))
        y = y + mha(yn, memory, bias_x, wfull(p + "src_wqkvo"), prow128(p + "src_b_qkvo"))
        yn = layernorm(y, prow(p + "ln3_a"), prow(p + "ln3_b"))
        y = y + ffn(yn, wfull(p + "w1"), prow128(p + "b1"),
                    wfull(p + "w2"), prow128(p + "b2"))

    out_ref[...] = layernorm(y, prow("dec_ln_a"), prow("dec_ln_b"))


# --------------------------------- forward -----------------------------------
def encoder_decoder_forward(params, src, tgt, src_mask, tgt_mask):
    d_model = params["d_model"]
    h = params["h"]
    n_layers = len(params["encoder"]["layers"])
    B, s_src = src.shape
    s_tgt = tgt.shape[1]

    # Embeddings.forward: lut(x) * sqrt(d_model)  (token gather stays in JAX glue).
    # Batch stacked along rows so the kernel runs grid-less on [B*S, D] activations.
    src_x = (jnp.take(params["src_emb"], src, axis=0)
             * math.sqrt(d_model)).reshape(B * s_src, d_model)
    tgt_x = (jnp.take(params["tgt_emb"], tgt, axis=0)
             * math.sqrt(d_model)).reshape(B * s_tgt, d_model)

    # Additive attention biases (block-diagonal over the merged batch), precomputed.
    src_m = src_mask.astype(jnp.float32).reshape(B, -1, s_src)
    tgt_m = tgt_mask.astype(jnp.float32).reshape(B, -1, s_tgt)
    bias_enc_self = _merged_attn_bias(src_m, s_src, s_src)
    bias_dec_self = _merged_attn_bias(tgt_m, s_tgt, s_tgt)
    bias_cross = _merged_attn_bias(src_m, s_tgt, s_src)

    wslab, widx, pslab, pidx = _build_slabs(params)

    kernel = functools.partial(
        _fused_forward_kernel,
        widx=widx, pidx=pidx, num_heads=h, n_layers=n_layers,
        d_model=d_model, eps=EPS)

    vmem = pl.BlockSpec(memory_space=pltpu.MemorySpace.VMEM)   # whole array in VMEM
    out = pl.pallas_call(
        kernel,
        out_shape=jax.ShapeDtypeStruct((B * s_tgt, d_model), jnp.float32),
        in_specs=[vmem] * 7,
        out_specs=vmem,
    )(src_x, tgt_x, bias_enc_self, bias_dec_self, bias_cross, wslab, pslab)
    return out.reshape(B, s_tgt, d_model)


# ------------------------------ parameter init --------------------------------
def init_params(key):
    keys = iter(jax.random.split(key, 128))

    def w(shape):
        return jax.random.normal(next(keys), shape, jnp.float32) * 0.02

    def attn_params(d):
        p = {}
        for name in ("q", "k", "v", "o"):
            p["w" + name] = w((d, d))
            p["b" + name] = jnp.zeros((1, d), jnp.float32)
        return p

    def ff_params(d, d_ff):
        return {
            "w1": w((d, d_ff)), "b1": jnp.zeros((1, d_ff), jnp.float32),
            "w2": w((d_ff, d)), "b2": jnp.zeros((1, d), jnp.float32),
        }

    def ln_params(d):
        return {"a": jnp.ones((1, d), jnp.float32), "b": jnp.zeros((1, d), jnp.float32)}

    enc_layers = [
        {"attn": attn_params(D_MODEL), "ff": ff_params(D_MODEL, D_FF),
         "ln1": ln_params(D_MODEL), "ln2": ln_params(D_MODEL)}
        for _ in range(N_LAYERS)
    ]
    dec_layers = [
        {"self_attn": attn_params(D_MODEL), "src_attn": attn_params(D_MODEL),
         "ff": ff_params(D_MODEL, D_FF),
         "ln1": ln_params(D_MODEL), "ln2": ln_params(D_MODEL), "ln3": ln_params(D_MODEL)}
        for _ in range(N_LAYERS)
    ]

    return {
        "d_model": D_MODEL,
        "h": N_HEADS,
        "src_emb": w((SRC_VOCAB, D_MODEL)),
        "tgt_emb": w((TGT_VOCAB, D_MODEL)),
        "encoder": {"layers": enc_layers, "ln": ln_params(D_MODEL)},
        "decoder": {"layers": dec_layers, "ln": ln_params(D_MODEL)},
        # Generator (Linear d_model -> tgt_vocab + log_softmax) is part of __init__
        # but is not applied by forward(); initialized here for completeness only.
        "generator": {"w": w((D_MODEL, TGT_VOCAB)),
                      "b": jnp.zeros((1, TGT_VOCAB), jnp.float32)},
    }


# ----------------------------------- main --------------------------------------
if __name__ == "__main__":
    B, S = 2, 8
    root = jax.random.PRNGKey(0)
    k_params, k_src, k_tgt = jax.random.split(root, 3)

    params = init_params(k_params)
    src = jax.random.randint(k_src, (B, S), 0, SRC_VOCAB, dtype=jnp.int32)
    tgt = jax.random.randint(k_tgt, (B, S), 0, TGT_VOCAB, dtype=jnp.int32)
    src_mask = jnp.ones((B, 1, S), jnp.float32)                        # [B, 1, S_src]
    tgt_mask = jnp.broadcast_to(                                       # [B, S_tgt, S_tgt]
        jnp.tril(jnp.ones((S, S), jnp.float32))[None], (B, S, S)
    )

    out = encoder_decoder_forward(params, src, tgt, src_mask, tgt_mask)
    out = jax.block_until_ready(out)
    assert out.shape == (B, S, D_MODEL) and out.dtype == jnp.float32
    assert bool(jnp.all(jnp.isfinite(out)))
    print("KERNEL_OK")
</pallas_src>

<mosaic_0001>
module attributes {stable_mosaic.version = 11 : i64} {
  func.func @_fused_forward_kernel(%arg0: memref<16x32xf32, #tpu.memory_space<vmem>>, %arg1: memref<16x32xf32, #tpu.memory_space<vmem>>, %arg2: memref<16x16xf32, #tpu.memory_space<vmem>>, %arg3: memref<16x16xf32, #tpu.memory_space<vmem>>, %arg4: memref<16x16xf32, #tpu.memory_space<vmem>>, %arg5: memref<832x128xbf16, #tpu.memory_space<vmem>>, %arg6: memref<38x128xf32, #tpu.memory_space<vmem>>, %arg7: memref<16x32xf32, #tpu.memory_space<vmem>>) attributes {dimension_semantics = [], scalar_prefetch = 0 : i64, scratch_operands = 0 : i64, tpu.core_type = #tpu.core_type<tc>} {
    %c0 = arith.constant 0 : index
    %c0_0 = arith.constant 0 : index
    %0 = vector.load %arg0[%c0, %c0_0] : memref<16x32xf32, #tpu.memory_space<vmem>>, vector<16x32xf32>
    %c0_1 = arith.constant 0 : index
    %c0_2 = arith.constant 0 : index
    %1 = vector.load %arg1[%c0_1, %c0_2] : memref<16x32xf32, #tpu.memory_space<vmem>>, vector<16x32xf32>
    %c0_3 = arith.constant 0 : index
    %c0_4 = arith.constant 0 : index
    %2 = vector.load %arg2[%c0_3, %c0_4] : memref<16x16xf32, #tpu.memory_space<vmem>>, vector<16x16xf32>
    %c0_5 = arith.constant 0 : index
    %c0_6 = arith.constant 0 : index
    %3 = vector.load %arg3[%c0_5, %c0_6] : memref<16x16xf32, #tpu.memory_space<vmem>>, vector<16x16xf32>
    %c0_7 = arith.constant 0 : index
    %c0_8 = arith.constant 0 : index
    %4 = vector.load %arg4[%c0_7, %c0_8] : memref<16x16xf32, #tpu.memory_space<vmem>>, vector<16x16xf32>
    %c0_9 = arith.constant 0 : index
    %c0_10 = arith.constant 0 : index
    %5 = vector.load %arg6[%c0_9, %c0_10] : memref<38x128xf32, #tpu.memory_space<vmem>>, vector<1x32xf32>
    %c1 = arith.constant 1 : index
    %c0_11 = arith.constant 0 : index
    %6 = vector.load %arg6[%c1, %c0_11] : memref<38x128xf32, #tpu.memory_space<vmem>>, vector<1x32xf32>
    %cst = arith.constant dense<0.000000e+00> : vector<16xf32>
    %7 = vector.multi_reduction <add>, %0, %cst [1] : vector<16x32xf32> to vector<16xf32>
    %8 = vector.shape_cast %7 : vector<16xf32> to vector<16x1xf32>
    %cst_12 = arith.constant 3.200000e+01 : f32
    %9 = vector.broadcast %cst_12 : f32 to vector<16x1xf32>
    %10 = arith.divf %8, %9 : vector<16x1xf32>
    %11 = vector.broadcast %10 : vector<16x1xf32> to vector<16x32xf32>
    %12 = arith.subf %0, %11 : vector<16x32xf32>
    %13 = arith.mulf %12, %12 : vector<16x32xf32>
    %cst_13 = arith.constant dense<0.000000e+00> : vector<16xf32>
    %14 = vector.multi_reduction <add>, %13, %cst_13 [1] : vector<16x32xf32> to vector<16xf32>
    %15 = vector.shape_cast %14 : vector<16xf32> to vector<16x1xf32>
    %cst_14 = arith.constant 0.0322580636 : f32
    %16 = vector.broadcast %cst_14 : f32 to vector<16x1xf32>
    %17 = arith.mulf %15, %16 : vector<16x1xf32>
    %18 = math.sqrt %17 : vector<16x1xf32>
    %cst_15 = arith.constant 9.99999997E-7 : f32
    %19 = vector.broadcast %cst_15 : f32 to vector<16x1xf32>
    %20 = arith.addf %18, %19 : vector<16x1xf32>
    %21 = tpu.reciprocal %20 {approx = true} : vector<16x1xf32> -> vector<16x1xf32>
    %22 = vector.broadcast %10 : vector<16x1xf32> to vector<16x32xf32>
    %23 = arith.subf %0, %22 : vector<16x32xf32>
    %24 = vector.broadcast %5 : vector<1x32xf32> to vector<16x32xf32>
    %25 = arith.mulf %24, %23 : vector<16x32xf32>
    %26 = vector.broadcast %21 : vector<16x1xf32> to vector<16x32xf32>
    %27 = arith.mulf %25, %26 : vector<16x32xf32>
    %28 = vector.broadcast %6 : vector<1x32xf32> to vector<16x32xf32>
    %29 = arith.addf %27, %28 : vector<16x32xf32>
    %c0_16 = arith.constant 0 : index
    %c0_17 = arith.constant 0 : index
    %30 = vector.load %arg5[%c0_16, %c0_17] : memref<832x128xbf16, #tpu.memory_space<vmem>>, vector<32x128xbf16>
    %c2 = arith.constant 2 : index
    %c0_18 = arith.constant 0 : index
    %31 = vector.load %arg6[%c2, %c0_18] : memref<38x128xf32, #tpu.memory_space<vmem>>, vector<1x128xf32>
    %32 = arith.truncf %29 : vector<16x32xf32> to vector<16x32xbf16>
    %cst_19 = arith.constant dense<0.000000e+00> : vector<16x128xf32>
    %33 = tpu.matmul %32, %30, %cst_19 {dimension_numbers = #tpu.dot_dimension_numbers<[1], [0], [0], [1], [0, 0, 1, 1], [], []>} : vector<16x32xbf16>, vector<32x128xbf16>, vector<16x128xf32> -> vector<16x128xf32>
    %34 = vector.broadcast %31 : vector<1x128xf32> to vector<16x128xf32>
    %35 = arith.addf %33, %34 : vector<16x128xf32>
    %36 = vector.extract_strided_slice %35 {offsets = [0, 0], sizes = [16, 32], strides = [1, 1]} : vector<16x128xf32> to vector<16x32xf32>
    %37 = vector.extract_strided_slice %35 {offsets = [0, 32], sizes = [16, 32], strides = [1, 1]} : vector<16x128xf32> to vector<16x32xf32>
    %38 = vector.extract_strided_slice %35 {offsets = [0, 64], sizes = [16, 32], strides = [1, 1]} : vector<16x128xf32> to vector<16x32xf32>
    %39 = vector.extract_strided_slice %36 {offsets = [0, 0], sizes = [16, 8], strides = [1, 1]} : vector<16x32xf32> to vector<16x8xf32>
    %40 = arith.truncf %39 : vector<16x8xf32> to vector<16x8xbf16>
    %41 = vector.extract_strided_slice %37 {offsets = [0, 0], sizes = [16, 8], strides = [1, 1]} : vector<16x32xf32> to vector<16x8xf32>
    %42 = arith.truncf %41 : vector<16x8xf32> to vector<16x8xbf16>
    %cst_20 = arith.constant dense<0.000000e+00> : vector<16x16xf32>
    %43 = tpu.matmul %40, %42, %cst_20 {dimension_numbers = #tpu.dot_dimension_numbers<[1], [1], [0], [0], [0, 0, 1, 0], [], []>} : vector<16x8xbf16>, vector<16x8xbf16>, vector<16x16xf32> -> vector<16x16xf32>
    %cst_21 = arith.constant 0.353553385 : f32
    %44 = vector.broadcast %cst_21 : f32 to vector<16x16xf32>
    %45 = arith.mulf %43, %44 : vector<16x16xf32>
    %46 = arith.addf %45, %2 : vector<16x16xf32>
    %cst_22 = arith.constant dense<0xFF800000> : vector<16xf32>
    %47 = vector.multi_reduction <maximumf>, %46, %cst_22 [1] : vector<16x16xf32> to vector<16xf32>
    %48 = vector.shape_cast %47 : vector<16xf32> to vector<16x1xf32>
    %49 = vector.broadcast %48 : vector<16x1xf32> to vector<16x16xf32>
    %50 = arith.subf %46, %49 : vector<16x16xf32>
    %51 = math.exp %50 : vector<16x16xf32>
    %cst_23 = arith.constant dense<0.000000e+00> : vector<16xf32>
    %52 = vector.multi_reduction <add>, %51, %cst_23 [1] : vector<16x16xf32> to vector<16xf32>
    %53 = vector.shape_cast %52 : vector<16xf32> to vector<16x1xf32>
    %54 = tpu.reciprocal %53 {approx = true} : vector<16x1xf32> -> vector<16x1xf32>
    %55 = vector.broadcast %54 : vector<16x1xf32> to vector<16x16xf32>
    %56 = arith.mulf %51, %55 : vector<16x16xf32>
    %57 = vector.extract_strided_slice %38 {offsets = [0, 0], sizes = [16, 8], strides = [1, 1]} : vector<16x32xf32> to vector<16x8xf32>
    %58 = arith.truncf %57 : vector<16x8xf32> to vector<16x8xbf16>
    %59 = arith.truncf %56 : vector<16x16xf32> to vector<16x16xbf16>
    %cst_24 = arith.constant dense<0.000000e+00> : vector<16x8xf32>
    %60 = tpu.matmul %59, %58, %cst_24 {dimension_numbers = #tpu.dot_dimension_numbers<[1], [0], [0], [1], [0, 0, 1, 1], [], []>} : vector<16x16xbf16>, vector<16x8xbf16>, vector<16x8xf32> -> vector<16x8xf32>
    %61 = vector.extract_strided_slice %36 {offsets = [0, 8], sizes = [16, 8], strides = [1, 1]} : vector<16x32xf32> to vector<16x8xf32>
    %62 = arith.truncf %61 : vector<16x8xf32> to vector<16x8xbf16>
    %63 = vector.extract_strided_slice %37 {offsets = [0, 8], sizes = [16, 8], strides = [1, 1]} : vector<16x32xf32> to vector<16x8xf32>
    %64 = arith.truncf %63 : vector<16x8xf32> to vector<16x8xbf16>
    %cst_25 = arith.constant dense<0.000000e+00> : vector<16x16xf32>
    %65 = tpu.matmul %62, %64, %cst_25 {dimension_numbers = #tpu.dot_dimension_numbers<[1], [1], [0], [0], [0, 0, 1, 0], [], []>} : vector<16x8xbf16>, vector<16x8xbf16>, vector<16x16xf32> -> vector<16x16xf32>
    %cst_26 = arith.constant 0.353553385 : f32
    %66 = vector.broadcast %cst_26 : f32 to vector<16x16xf32>
    %67 = arith.mulf %65, %66 : vector<16x16xf32>
    %68 = arith.addf %67, %2 : vector<16x16xf32>
    %cst_27 = arith.constant dense<0xFF800000> : vector<16xf32>
    %69 = vector.multi_reduction <maximumf>, %68, %cst_27 [1] : vector<16x16xf32> to vector<16xf32>
    %70 = vector.shape_cast %69 : vector<16xf32> to vector<16x1xf32>
    %71 = vector.broadcast %70 : vector<16x1xf32> to vector<16x16xf32>
    %72 = arith.subf %68, %71 : vector<16x16xf32>
    %73 = math.exp %72 : vector<16x16xf32>
    %cst_28 = arith.constant dense<0.000000e+00> : vector<16xf32>
    %74 = vector.multi_reduction <add>, %73, %cst_28 [1] : vector<16x16xf32> to vector<16xf32>
    %75 = vector.shape_cast %74 : vector<16xf32> to vector<16x1xf32>
    %76 = tpu.reciprocal %75 {approx = true} : vector<16x1xf32> -> vector<16x1xf32>
    %77 = vector.broadcast %76 : vector<16x1xf32> to vector<16x16xf32>
    %78 = arith.mulf %73, %77 : vector<16x16xf32>
    %79 = vector.extract_strided_slice %38 {offsets = [0, 8], sizes = [16, 8], strides = [1, 1]} : vector<16x32xf32> to vector<16x8xf32>
    %80 = arith.truncf %79 : vector<16x8xf32> to vector<16x8xbf16>
    %81 = arith.truncf %78 : vector<16x16xf32> to vector<16x16xbf16>
    %cst_29 = arith.constant dense<0.000000e+00> : vector<16x8xf32>
    %82 = tpu.matmul %81, %80, %cst_29 {dimension_numbers = #tpu.dot_dimension_numbers<[1], [0], [0], [1], [0, 0, 1, 1], [], []>} : vector<16x16xbf16>, vector<16x8xbf16>, vector<16x8xf32> -> vector<16x8xf32>
    %83 = vector.extract_strided_slice %36 {offsets = [0, 16], sizes = [16, 8], strides = [1, 1]} : vector<16x32xf32> to vector<16x8xf32>
    %84 = arith.truncf %83 : vector<16x8xf32> to vector<16x8xbf16>
    %85 = vector.extract_strided_slice %37 {offsets = [0, 16], sizes = [16, 8], strides = [1, 1]} : vector<16x32xf32> to vector<16x8xf32>
    %86 = arith.truncf %85 : vector<16x8xf32> to vector<16x8xbf16>
    %cst_30 = arith.constant dense<0.000000e+00> : vector<16x16xf32>
    %87 = tpu.matmul %84, %86, %cst_30 {dimension_numbers = #tpu.dot_dimension_numbers<[1], [1], [0], [0], [0, 0, 1, 0], [], []>} : vector<16x8xbf16>, vector<16x8xbf16>, vector<16x16xf32> -> vector<16x16xf32>
    %cst_31 = arith.constant 0.353553385 : f32
    %88 = vector.broadcast %cst_31 : f32 to vector<16x16xf32>
    %89 = arith.mulf %87, %88 : vector<16x16xf32>
    %90 = arith.addf %89, %2 : vector<16x16xf32>
    %cst_32 = arith.constant dense<0xFF800000> : vector<16xf32>
    %91 = vector.multi_reduction <maximumf>, %90, %cst_32 [1] : vector<16x16xf32> to vector<16xf32>
    %92 = vector.shape_cast %91 : vector<16xf32> to vector<16x1xf32>
    %93 = vector.broadcast %92 : vector<16x1xf32> to vector<16x16xf32>
    %94 = arith.subf %90, %93 : vector<16x16xf32>
    %95 = math.exp %94 : vector<16x16xf32>
    %cst_33 = arith.constant dense<0.000000e+00> : vector<16xf32>
    %96 = vector.multi_reduction <add>, %95, %cst_33 [1] : vector<16x16xf32> to vector<16xf32>
    %97 = vector.shape_cast %96 : vector<16xf32> to vector<16x1xf32>
    %98 = tpu.reciprocal %97 {approx = true} : vector<16x1xf32> -> vector<16x1xf32>
    %99 = vector.broadcast %98 : vector<16x1xf32> to vector<16x16xf32>
    %100 = arith.mulf %95, %99 : vector<16x16xf32>
    %101 = vector.extract_strided_slice %38 {offsets = [0, 16], sizes = [16, 8], strides = [1, 1]} : vector<16x32xf32> to vector<16x8xf32>
    %102 = arith.truncf %101 : vector<16x8xf32> to vector<16x8xbf16>
    %103 = arith.truncf %100 : vector<16x16xf32> to vector<16x16xbf16>
    %cst_34 = arith.constant dense<0.000000e+00> : vector<16x8xf32>
    %104 = tpu.matmul %103, %102, %cst_34 {dimension_numbers = #tpu.dot_dimension_numbers<[1], [0], [0], [1], [0, 0, 1, 1], [], []>} : vector<16x16xbf16>, vector<16x8xbf16>, vector<16x8xf32> -> vector<16x8xf32>
    %105 = vector.extract_strided_slice %36 {offsets = [0, 24], sizes = [16, 8], strides = [1, 1]} : vector<16x32xf32> to vector<16x8xf32>
    %106 = arith.truncf %105 : vector<16x8xf32> to vector<16x8xbf16>
    %107 = vector.extract_strided_slice %37 {offsets = [0, 24], sizes = [16, 8], strides = [1, 1]} : vector<16x32xf32> to vector<16x8xf32>
    %108 = arith.truncf %107 : vector<16x8xf32> to vector<16x8xbf16>
    %cst_35 = arith.constant dense<0.000000e+00> : vector<16x16xf32>
    %109 = tpu.matmul %106, %108, %cst_35 {dimension_numbers = #tpu.dot_dimension_numbers<[1], [1], [0], [0], [0, 0, 1, 0], [], []>} : vector<16x8xbf16>, vector<16x8xbf16>, vector<16x16xf32> -> vector<16x16xf32>
    %cst_36 = arith.constant 0.353553385 : f32
    %110 = vector.broadcast %cst_36 : f32 to vector<16x16xf32>
    %111 = arith.mulf %109, %110 : vector<16x16xf32>
    %112 = arith.addf %111, %2 : vector<16x16xf32>
    %cst_37 = arith.constant dense<0xFF800000> : vector<16xf32>
    %113 = vector.multi_reduction <maximumf>, %112, %cst_37 [1] : vector<16x16xf32> to vector<16xf32>
    %114 = vector.shape_cast %113 : vector<16xf32> to vector<16x1xf32>
    %115 = vector.broadcast %114 : vector<16x1xf32> to vector<16x16xf32>
    %116 = arith.subf %112, %115 : vector<16x16xf32>
    %117 = math.exp %116 : vector<16x16xf32>
    %cst_38 = arith.constant dense<0.000000e+00> : vector<16xf32>
    %118 = vector.multi_reduction <add>, %117, %cst_38 [1] : vector<16x16xf32> to vector<16xf32>
    %119 = vector.shape_cast %118 : vector<16xf32> to vector<16x1xf32>
    %120 = tpu.reciprocal %119 {approx = true} : vector<16x1xf32> -> vector<16x1xf32>
    %121 = vector.broadcast %120 : vector<16x1xf32> to vector<16x16xf32>
    %122 = arith.mulf %117, %121 : vector<16x16xf32>
    %123 = vector.extract_strided_slice %38 {offsets = [0, 24], sizes = [16, 8], strides = [1, 1]} : vector<16x32xf32> to vector<16x8xf32>
    %124 = arith.truncf %123 : vector<16x8xf32> to vector<16x8xbf16>
    %125 = arith.truncf %122 : vector<16x16xf32> to vector<16x16xbf16>
    %cst_39 = arith.constant dense<0.000000e+00> : vector<16x8xf32>
    %126 = tpu.matmul %125, %124, %cst_39 {dimension_numbers = #tpu.dot_dimension_numbers<[1], [0], [0], [1], [0, 0, 1, 1], [], []>} : vector<16x16xbf16>, vector<16x8xbf16>, vector<16x8xf32> -> vector<16x8xf32>
    %127 = tpu.concatenate %60, %82, %104, %126 in 1 : vector<16x8xf32>, vector<16x8xf32>, vector<16x8xf32>, vector<16x8xf32> -> vector<16x32xf32>
    %128 = vector.extract_strided_slice %30 {offsets = [0, 96], sizes = [32, 32], strides = [1, 1]} : vector<32x128xbf16> to vector<32x32xbf16>
    %129 = vector.extract_strided_slice %31 {offsets = [0, 96], sizes = [1, 32], strides = [1, 1]} : vector<1x128xf32> to vector<1x32xf32>
    %130 = arith.truncf %127 : vector<16x32xf32> to vector<16x32xbf16>
    %cst_40 = arith.constant dense<0.000000e+00> : vector<16x32xf32>
    %131 = tpu.matmul %130, %128, %cst_40 {dimension_numbers = #tpu.dot_dimension_numbers<[1], [0], [0], [1], [0, 0, 1, 1], [], []>} : vector<16x32xbf16>, vector<32x32xbf16>, vector<16x32xf32> -> vector<16x32xf32>
    %132 = vector.broadcast %129 : vector<1x32xf32> to vector<16x32xf32>
    %133 = arith.addf %131, %132 : vector<16x32xf32>
    %134 = arith.addf %0, %133 : vector<16x32xf32>
    %c3 = arith.constant 3 : index
    %c0_41 = arith.constant 0 : index
    %135 = vector.load %arg6[%c3, %c0_41] : memref<38x128xf32, #tpu.memory_space<vmem>>, vector<1x32xf32>
    %c4 = arith.constant 4 : index
    %c0_42 = arith.constant 0 : index
    %136 = vector.load %arg6[%c4, %c0_42] : memref<38x128xf32, #tpu.memory_space<vmem>>, vector<1x32xf32>
    %cst_43 = arith.constant dense<0.000000e+00> : vector<16xf32>
    %137 = vector.multi_reduction <add>, %134, %cst_43 [1] : vector<16x32xf32> to vector<16xf32>
    %138 = vector.shape_cast %137 : vector<16xf32> to vector<16x1xf32>
    %cst_44 = arith.constant 3.200000e+01 : f32
    %139 = vector.broadcast %cst_44 : f32 to vector<16x1xf32>
    %140 = arith.divf %138, %139 : vector<16x1xf32>
    %141 = vector.broadcast %140 : vector<16x1xf32> to vector<16x32xf32>
    %142 = arith.subf %134, %141 : vector<16x32xf32>
    %143 = arith.mulf %142, %142 : vector<16x32xf32>
    %cst_45 = arith.constant dense<0.000000e+00> : vector<16xf32>
    %144 = vector.multi_reduction <add>, %143, %cst_45 [1] : vector<16x32xf32> to vector<16xf32>
    %145 = vector.shape_cast %144 : vector<16xf32> to vector<16x1xf32>
    %cst_46 = arith.constant 0.0322580636 : f32
    %146 = vector.broadcast %cst_46 : f32 to vector<16x1xf32>
    %147 = arith.mulf %145, %146 : vector<16x1xf32>
    %148 = math.sqrt %147 : vector<16x1xf32>
    %cst_47 = arith.constant 9.99999997E-7 : f32
    %149 = vector.broadcast %cst_47 : f32 to vector<16x1xf32>
    %150 = arith.addf %148, %149 : vector<16x1xf32>
    %151 = tpu.reciprocal %150 {approx = true} : vector<16x1xf32> -> vector<16x1xf32>
    %152 = vector.broadcast %140 : vector<16x1xf32> to vector<16x32xf32>
    %153 = arith.subf %134, %152 : vector<16x32xf32>
    %154 = vector.broadcast %135 : vector<1x32xf32> to vector<16x32xf32>
    %155 = arith.mulf %154, %153 : vector<16x32xf32>
    %156 = vector.broadcast %151 : vector<16x1xf32> to vector<16x32xf32>
    %157 = arith.mulf %155, %156 : vector<16x32xf32>
    %158 = vector.broadcast %136 : vector<1x32xf32> to vector<16x32xf32>
    %159 = arith.addf %157, %158 : vector<16x32xf32>
    %c32 = arith.constant 32 : index
    %c0_48 = arith.constant 0 : index
    %160 = vector.load %arg5[%c32, %c0_48] : memref<832x128xbf16, #tpu.memory_space<vmem>>, vector<32x128xbf16>
    %c5 = arith.constant 5 : index
    %c0_49 = arith.constant 0 : index
    %161 = vector.load %arg6[%c5, %c0_49] : memref<38x128xf32, #tpu.memory_space<vmem>>, vector<1x128xf32>
    %c64 = arith.constant 64 : index
    %c0_50 = arith.constant 0 : index
    %162 = vector.load %arg5[%c64, %c0_50] : memref<832x128xbf16, #tpu.memory_space<vmem>>, vector<128x128xbf16>
    %c6 = arith.constant 6 : index
    %c0_51 = arith.constant 0 : index
    %163 = vector.load %arg6[%c6, %c0_51] : memref<38x128xf32, #tpu.memory_space<vmem>>, vector<1x128xf32>
    %164 = arith.truncf %159 : vector<16x32xf32> to vector<16x32xbf16>
    %cst_52 = arith.constant dense<0.000000e+00> : vector<16x128xf32>
    %165 = tpu.matmul %164, %160, %cst_52 {dimension_numbers = #tpu.dot_dimension_numbers<[1], [0], [0], [1], [0, 0, 1, 1], [], []>} : vector<16x32xbf16>, vector<32x128xbf16>, vector<16x128xf32> -> vector<16x128xf32>
    %166 = vector.broadcast %161 : vector<1x128xf32> to vector<16x128xf32>
    %167 = arith.addf %165, %166 : vector<16x128xf32>
    %cst_53 = arith.constant 0.000000e+00 : f32
    %168 = vector.broadcast %cst_53 : f32 to vector<16x128xf32>
    %169 = arith.maximumf %167, %168 : vector<16x128xf32>
    %170 = arith.truncf %169 : vector<16x128xf32> to vector<16x128xbf16>
    %cst_54 = arith.constant dense<0.000000e+00> : vector<16x128xf32>
    %171 = tpu.matmul %170, %162, %cst_54 {dimension_numbers = #tpu.dot_dimension_numbers<[1], [0], [0], [1], [0, 0, 1, 1], [], []>} : vector<16x128xbf16>, vector<128x128xbf16>, vector<16x128xf32> -> vector<16x128xf32>
    %172 = vector.broadcast %163 : vector<1x128xf32> to vector<16x128xf32>
    %173 = arith.addf %171, %172 : vector<16x128xf32>
    %174 = vector.extract_strided_slice %173 {offsets = [0, 0], sizes = [16, 32], strides = [1, 1]} : vector<16x128xf32> to vector<16x32xf32>
    %175 = arith.addf %134, %174 : vector<16x32xf32>
    %c7 = arith.constant 7 : index
    %c0_55 = arith.constant 0 : index
    %176 = vector.load %arg6[%c7, %c0_55] : memref<38x128xf32, #tpu.memory_space<vmem>>, vector<1x32xf32>
    %c8 = arith.constant 8 : index
    %c0_56 = arith.constant 0 : index
    %177 = vector.load %arg6[%c8, %c0_56] : memref<38x128xf32, #tpu.memory_space<vmem>>, vector<1x32xf32>
    %cst_57 = arith.constant dense<0.000000e+00> : vector<16xf32>
    %178 = vector.multi_reduction <add>, %175, %cst_57 [1] : vector<16x32xf32> to vector<16xf32>
    %179 = vector.shape_cast %178 : vector<16xf32> to vector<16x1xf32>
    %cst_58 = arith.constant 3.200000e+01 : f32
    %180 = vector.broadcast %cst_58 : f32 to vector<16x1xf32>
    %181 = arith.divf %179, %180 : vector<16x1xf32>
    %182 = vector.broadcast %181 : vector<16x1xf32> to vector<16x32xf32>
    %183 = arith.subf %175, %182 : vector<16x32xf32>
    %184 = arith.mulf %183, %183 : vector<16x32xf32>
    %cst_59 = arith.constant dense<0.000000e+00> : vector<16xf32>
    %185 = vector.multi_reduction <add>, %184, %cst_59 [1] : vector<16x32xf32> to vector<16xf32>
    %186 = vector.shape_cast %185 : vector<16xf32> to vector<16x1xf32>
    %cst_60 = arith.constant 0.0322580636 : f32
    %187 = vector.broadcast %cst_60 : f32 to vector<16x1xf32>
    %188 = arith.mulf %186, %187 : vector<16x1xf32>
    %189 = math.sqrt %188 : vector<16x1xf32>
    %cst_61 = arith.constant 9.99999997E-7 : f32
    %190 = vector.broadcast %cst_61 : f32 to vector<16x1xf32>
    %191 = arith.addf %189, %190 : vector<16x1xf32>
    %192 = tpu.reciprocal %191 {approx = true} : vector<16x1xf32> -> vector<16x1xf32>
    %193 = vector.broadcast %181 : vector<16x1xf32> to vector<16x32xf32>
    %194 = arith.subf %175, %193 : vector<16x32xf32>
    %195 = vector.broadcast %176 : vector<1x32xf32> to vector<16x32xf32>
    %196 = arith.mulf %195, %194 : vector<16x32xf32>
    %197 = vector.broadcast %192 : vector<16x1xf32> to vector<16x32xf32>
    %198 = arith.mulf %196, %197 : vector<16x32xf32>
    %199 = vector.broadcast %177 : vector<1x32xf32> to vector<16x32xf32>
    %200 = arith.addf %198, %199 : vector<16x32xf32>
    %c192 = arith.constant 192 : index
    %c0_62 = arith.constant 0 : index
    %201 = vector.load %arg5[%c192, %c0_62] : memref<832x128xbf16, #tpu.memory_space<vmem>>, vector<32x128xbf16>
    %c9 = arith.constant 9 : index
    %c0_63 = arith.constant 0 : index
    %202 = vector.load %arg6[%c9, %c0_63] : memref<38x128xf32, #tpu.memory_space<vmem>>, vector<1x128xf32>
    %203 = arith.truncf %200 : vector<16x32xf32> to vector<16x32xbf16>
    %cst_64 = arith.constant dense<0.000000e+00> : vector<16x128xf32>
    %204 = tpu.matmul %203, %201, %cst_64 {dimension_numbers = #tpu.dot_dimension_numbers<[1], [0], [0], [1], [0, 0, 1, 1], [], []>} : vector<16x32xbf16>, vector<32x128xbf16>, vector<16x128xf32> -> vector<16x128xf32>
    %205 = vector.broadcast %202 : vector<1x128xf32> to vector<16x128xf32>
    %206 = arith.addf %204, %205 : vector<16x128xf32>
    %207 = vector.extract_strided_slice %206 {offsets = [0, 0], sizes = [16, 32], strides = [1, 1]} : vector<16x128xf32> to vector<16x32xf32>
    %208 = vector.extract_strided_slice %206 {offsets = [0, 32], sizes = [16, 32], strides = [1, 1]} : vector<16x128xf32> to vector<16x32xf32>
    %209 = vector.extract_strided_slice %206 {offsets = [0, 64], sizes = [16, 32], strides = [1, 1]} : vector<16x128xf32> to vector<16x32xf32>
    %210 = vector.extract_strided_slice %207 {offsets = [0, 0], sizes = [16, 8], strides = [1, 1]} : vector<16x32xf32> to vector<16x8xf32>
    %211 = arith.truncf %210 : vector<16x8xf32> to vector<16x8xbf16>
    %212 = vector.extract_strided_slice %208 {offsets = [0, 0], sizes = [16, 8], strides = [1, 1]} : vector<16x32xf32> to vector<16x8xf32>
    %213 = arith.truncf %212 : vector<16x8xf32> to vector<16x8xbf16>
    %cst_65 = arith.constant dense<0.000000e+00> : vector<16x16xf32>
    %214 = tpu.matmul %211, %213, %cst_65 {dimension_numbers = #tpu.dot_dimension_numbers<[1], [1], [0], [0], [0, 0, 1, 0], [], []>} : vector<16x8xbf16>, vector<16x8xbf16>, vector<16x16xf32> -> vector<16x16xf32>
    %cst_66 = arith.constant 0.353553385 : f32
    %215 = vector.broadcast %cst_66 : f32 to vector<16x16xf32>
    %216 = arith.mulf %214, %215 : vector<16x16xf32>
    %217 = arith.addf %216, %2 : vector<16x16xf32>
    %cst_67 = arith.constant dense<0xFF800000> : vector<16xf32>
    %218 = vector.multi_reduction <maximumf>, %217, %cst_67 [1] : vector<16x16xf32> to vector<16xf32>
    %219 = vector.shape_cast %218 : vector<16xf32> to vector<16x1xf32>
    %220 = vector.broadcast %219 : vector<16x1xf32> to vector<16x16xf32>
    %221 = arith.subf %217, %220 : vector<16x16xf32>
    %222 = math.exp %221 : vector<16x16xf32>
    %cst_68 = arith.constant dense<0.000000e+00> : vector<16xf32>
    %223 = vector.multi_reduction <add>, %222, %cst_68 [1] : vector<16x16xf32> to vector<16xf32>
    %224 = vector.shape_cast %223 : vector<16xf32> to vector<16x1xf32>
    %225 = tpu.reciprocal %224 {approx = true} : vector<16x1xf32> -> vector<16x1xf32>
    %226 = vector.broadcast %225 : vector<16x1xf32> to vector<16x16xf32>
    %227 = arith.mulf %222, %226 : vector<16x16xf32>
    %228 = vector.extract_strided_slice %209 {offsets = [0, 0], sizes = [16, 8], strides = [1, 1]} : vector<16x32xf32> to vector<16x8xf32>
    %229 = arith.truncf %228 : vector<16x8xf32> to vector<16x8xbf16>
    %230 = arith.truncf %227 : vector<16x16xf32> to vector<16x16xbf16>
    %cst_69 = arith.constant dense<0.000000e+00> : vector<16x8xf32>
    %231 = tpu.matmul %230, %229, %cst_69 {dimension_numbers = #tpu.dot_dimension_numbers<[1], [0], [0], [1], [0, 0, 1, 1], [], []>} : vector<16x16xbf16>, vector<16x8xbf16>, vector<16x8xf32> -> vector<16x8xf32>
    %232 = vector.extract_strided_slice %207 {offsets = [0, 8], sizes = [16, 8], strides = [1, 1]} : vector<16x32xf32> to vector<16x8xf32>
    %233 = arith.truncf %232 : vector<16x8xf32> to vector<16x8xbf16>
    %234 = vector.extract_strided_slice %208 {offsets = [0, 8], sizes = [16, 8], strides = [1, 1]} : vector<16x32xf32> to vector<16x8xf32>
    %235 = arith.truncf %234 : vector<16x8xf32> to vector<16x8xbf16>
    %cst_70 = arith.constant dense<0.000000e+00> : vector<16x16xf32>
    %236 = tpu.matmul %233, %235, %cst_70 {dimension_numbers = #tpu.dot_dimension_numbers<[1], [1], [0], [0], [0, 0, 1, 0], [], []>} : vector<16x8xbf16>, vector<16x8xbf16>, vector<16x16xf32> -> vector<16x16xf32>
    %cst_71 = arith.constant 0.353553385 : f32
    %237 = vector.broadcast %cst_71 : f32 to vector<16x16xf32>
    %238 = arith.mulf %236, %237 : vector<16x16xf32>
    %239 = arith.addf %238, %2 : vector<16x16xf32>
    %cst_72 = arith.constant dense<0xFF800000> : vector<16xf32>
    %240 = vector.multi_reduction <maximumf>, %239, %cst_72 [1] : vector<16x16xf32> to vector<16xf32>
    %241 = vector.shape_cast %240 : vector<16xf32> to vector<16x1xf32>
    %242 = vector.broadcast %241 : vector<16x1xf32> to vector<16x16xf32>
    %243 = arith.subf %239, %242 : vector<16x16xf32>
    %244 = math.exp %243 : vector<16x16xf32>
    %cst_73 = arith.constant dense<0.000000e+00> : vector<16xf32>
    %245 = vector.multi_reduction <add>, %244, %cst_73 [1] : vector<16x16xf32> to vector<16xf32>
    %246 = vector.shape_cast %245 : vector<16xf32> to vector<16x1xf32>
    %247 = tpu.reciprocal %246 {approx = true} : vector<16x1xf32> -> vector<16x1xf32>
    %248 = vector.broadcast %247 : vector<16x1xf32> to vector<16x16xf32>
    %249 = arith.mulf %244, %248 : vector<16x16xf32>
    %250 = vector.extract_strided_slice %209 {offsets = [0, 8], sizes = [16, 8], strides = [1, 1]} : vector<16x32xf32> to vector<16x8xf32>
    %251 = arith.truncf %250 : vector<16x8xf32> to vector<16x8xbf16>
    %252 = arith.truncf %249 : vector<16x16xf32> to vector<16x16xbf16>
    %cst_74 = arith.constant dense<0.000000e+00> : vector<16x8xf32>
    %253 = tpu.matmul %252, %251, %cst_74 {dimension_numbers = #tpu.dot_dimension_numbers<[1], [0], [0], [1], [0, 0, 1, 1], [], []>} : vector<16x16xbf16>, vector<16x8xbf16>, vector<16x8xf32> -> vector<16x8xf32>
    %254 = vector.extract_strided_slice %207 {offsets = [0, 16], sizes = [16, 8], strides = [1, 1]} : vector<16x32xf32> to vector<16x8xf32>
    %255 = arith.truncf %254 : vector<16x8xf32> to vector<16x8xbf16>
    %256 = vector.extract_strided_slice %208 {offsets = [0, 16], sizes = [16, 8], strides = [1, 1]} : vector<16x32xf32> to vector<16x8xf32>
    %257 = arith.truncf %256 : vector<16x8xf32> to vector<16x8xbf16>
    %cst_75 = arith.constant dense<0.000000e+00> : vector<16x16xf32>
    %258 = tpu.matmul %255, %257, %cst_75 {dimension_numbers = #tpu.dot_dimension_numbers<[1], [1], [0], [0], [0, 0, 1, 0], [], []>} : vector<16x8xbf16>, vector<16x8xbf16>, vector<16x16xf32> -> vector<16x16xf32>
    %cst_76 = arith.constant 0.353553385 : f32
    %259 = vector.broadcast %cst_76 : f32 to vector<16x16xf32>
    %260 = arith.mulf %258, %259 : vector<16x16xf32>
    %261 = arith.addf %260, %2 : vector<16x16xf32>
    %cst_77 = arith.constant dense<0xFF800000> : vector<16xf32>
    %262 = vector.multi_reduction <maximumf>, %261, %cst_77 [1] : vector<16x16xf32> to vector<16xf32>
    %263 = vector.shape_cast %262 : vector<16xf32> to vector<16x1xf32>
    %264 = vector.broadcast %263 : vector<16x1xf32> to vector<16x16xf32>
    %265 = arith.subf %261, %264 : vector<16x16xf32>
    %266 = math.exp %265 : vector<16x16xf32>
    %cst_78 = arith.constant dense<0.000000e+00> : vector<16xf32>
    %267 = vector.multi_reduction <add>, %266, %cst_78 [1] : vector<16x16xf32> to vector<16xf32>
    %268 = vector.shape_cast %267 : vector<16xf32> to vector<16x1xf32>
    %269 = tpu.reciprocal %268 {approx = true} : vector<16x1xf32> -> vector<16x1xf32>
    %270 = vector.broadcast %269 : vector<16x1xf32> to vector<16x16xf32>
    %271 = arith.mulf %266, %270 : vector<16x16xf32>
    %272 = vector.extract_strided_slice %209 {offsets = [0, 16], sizes = [16, 8], strides = [1, 1]} : vector<16x32xf32> to vector<16x8xf32>
    %273 = arith.truncf %272 : vector<16x8xf32> to vector<16x8xbf16>
    %274 = arith.truncf %271 : vector<16x16xf32> to vector<16x16xbf16>
    %cst_79 = arith.constant dense<0.000000e+00> : vector<16x8xf32>
    %275 = tpu.matmul %274, %273, %cst_79 {dimension_numbers = #tpu.dot_dimension_numbers<[1], [0], [0], [1], [0, 0, 1, 1], [], []>} : vector<16x16xbf16>, vector<16x8xbf16>, vector<16x8xf32> -> vector<16x8xf32>
    %276 = vector.extract_strided_slice %207 {offsets = [0, 24], sizes = [16, 8], strides = [1, 1]} : vector<16x32xf32> to vector<16x8xf32>
    %277 = arith.truncf %276 : vector<16x8xf32> to vector<16x8xbf16>
    %278 = vector.extract_strided_slice %208 {offsets = [0, 24], sizes = [16, 8], strides = [1, 1]} : vector<16x32xf32> to vector<16x8xf32>
    %279 = arith.truncf %278 : vector<16x8xf32> to vector<16x8xbf16>
    %cst_80 = arith.constant dense<0.000000e+00> : vector<16x16xf32>
    %280 = tpu.matmul %277, %279, %cst_80 {dimension_numbers = #tpu.dot_dimension_numbers<[1], [1], [0], [0], [0, 0, 1, 0], [], []>} : vector<16x8xbf16>, vector<16x8xbf16>, vector<16x16xf32> -> vector<16x16xf32>
    %cst_81 = arith.constant 0.353553385 : f32
    %281 = vector.broadcast %cst_81 : f32 to vector<16x16xf32>
    %282 = arith.mulf %280, %281 : vector<16x16xf32>
    %283 = arith.addf %282, %2 : vector<16x16xf32>
    %cst_82 = arith.constant dense<0xFF800000> : vector<16xf32>
    %284 = vector.multi_reduction <maximumf>, %283, %cst_82 [1] : vector<16x16xf32> to vector<16xf32>
    %285 = vector.shape_cast %284 : vector<16xf32> to vector<16x1xf32>
    %286 = vector.broadcast %285 : vector<16x1xf32> to vector<16x16xf32>
    %287 = arith.subf %283, %286 : vector<16x16xf32>
    %288 = math.exp %287 : vector<16x16xf32>
    %cst_83 = arith.constant dense<0.000000e+00> : vector<16xf32>
    %289 = vector.multi_reduction <add>, %288, %cst_83 [1] : vector<16x16xf32> to vector<16xf32>
    %290 = vector.shape_cast %289 : vector<16xf32> to vector<16x1xf32>
    %291 = tpu.reciprocal %290 {approx = true} : vector<16x1xf32> -> vector<16x1xf32>
    %292 = vector.broadcast %291 : vector<16x1xf32> to vector<16x16xf32>
    %293 = arith.mulf %288, %292 : vector<16x16xf32>
    %294 = vector.extract_strided_slice %209 {offsets = [0, 24], sizes = [16, 8], strides = [1, 1]} : vector<16x32xf32> to vector<16x8xf32>
    %295 = arith.truncf %294 : vector<16x8xf32> to vector<16x8xbf16>
    %296 = arith.truncf %293 : vector<16x16xf32> to vector<16x16xbf16>
    %cst_84 = arith.constant dense<0.000000e+00> : vector<16x8xf32>
    %297 = tpu.matmul %296, %295, %cst_84 {dimension_numbers = #tpu.dot_dimension_numbers<[1], [0], [0], [1], [0, 0, 1, 1], [], []>} : vector<16x16xbf16>, vector<16x8xbf16>, vector<16x8xf32> -> vector<16x8xf32>
    %298 = tpu.concatenate %231, %253, %275, %297 in 1 : vector<16x8xf32>, vector<16x8xf32>, vector<16x8xf32>, vector<16x8xf32> -> vector<16x32xf32>
    %299 = vector.extract_strided_slice %201 {offsets = [0, 96], sizes = [32, 32], strides = [1, 1]} : vector<32x128xbf16> to vector<32x32xbf16>
    %300 = vector.extract_strided_slice %202 {offsets = [0, 96], sizes = [1, 32], strides = [1, 1]} : vector<1x128xf32> to vector<1x32xf32>
    %301 = arith.truncf %298 : vector<16x32xf32> to vector<16x32xbf16>
    %cst_85 = arith.constant dense<0.000000e+00> : vector<16x32xf32>
    %302 = tpu.matmul %301, %299, %cst_85 {dimension_numbers = #tpu.dot_dimension_numbers<[1], [0], [0], [1], [0, 0, 1, 1], [], []>} : vector<16x32xbf16>, vector<32x32xbf16>, vector<16x32xf32> -> vector<16x32xf32>
    %303 = vector.broadcast %300 : vector<1x32xf32> to vector<16x32xf32>
    %304 = arith.addf %302, %303 : vector<16x32xf32>
    %305 = arith.addf %175, %304 : vector<16x32xf32>
    %c10 = arith.constant 10 : index
    %c0_86 = arith.constant 0 : index
    %306 = vector.load %arg6[%c10, %c0_86] : memref<38x128xf32, #tpu.memory_space<vmem>>, vector<1x32xf32>
    %c11 = arith.constant 11 : index
    %c0_87 = arith.constant 0 : index
    %307 = vector.load %arg6[%c11, %c0_87] : memref<38x128xf32, #tpu.memory_space<vmem>>, vector<1x32xf32>
    %cst_88 = arith.constant dense<0.000000e+00> : vector<16xf32>
    %308 = vector.multi_reduction <add>, %305, %cst_88 [1] : vector<16x32xf32> to vector<16xf32>
    %309 = vector.shape_cast %308 : vector<16xf32> to vector<16x1xf32>
    %cst_89 = arith.constant 3.200000e+01 : f32
    %310 = vector.broadcast %cst_89 : f32 to vector<16x1xf32>
    %311 = arith.divf %309, %310 : vector<16x1xf32>
    %312 = vector.broadcast %311 : vector<16x1xf32> to vector<16x32xf32>
    %313 = arith.subf %305, %312 : vector<16x32xf32>
    %314 = arith.mulf %313, %313 : vector<16x32xf32>
    %cst_90 = arith.constant dense<0.000000e+00> : vector<16xf32>
    %315 = vector.multi_reduction <add>, %314, %cst_90 [1] : vector<16x32xf32> to vector<16xf32>
    %316 = vector.shape_cast %315 : vector<16xf32> to vector<16x1xf32>
    %cst_91 = arith.constant 0.0322580636 : f32
    %317 = vector.broadcast %cst_91 : f32 to vector<16x1xf32>
    %318 = arith.mulf %316, %317 : vector<16x1xf32>
    %319 = math.sqrt %318 : vector<16x1xf32>
    %cst_92 = arith.constant 9.99999997E-7 : f32
    %320 = vector.broadcast %cst_92 : f32 to vector<16x1xf32>
    %321 = arith.addf %319, %320 : vector<16x1xf32>
    %322 = tpu.reciprocal %321 {approx = true} : vector<16x1xf32> -> vector<16x1xf32>
    %323 = vector.broadcast %311 : vector<16x1xf32> to vector<16x32xf32>
    %324 = arith.subf %305, %323 : vector<16x32xf32>
    %325 = vector.broadcast %306 : vector<1x32xf32> to vector<16x32xf32>
    %326 = arith.mulf %325, %324 : vector<16x32xf32>
    %327 = vector.broadcast %322 : vector<16x1xf32> to vector<16x32xf32>
    %328 = arith.mulf %326, %327 : vector<16x32xf32>
    %329 = vector.broadcast %307 : vector<1x32xf32> to vector<16x32xf32>
    %330 = arith.addf %328, %329 : vector<16x32xf32>
    %c224 = arith.constant 224 : index
    %c0_93 = arith.constant 0 : index
    %331 = vector.load %arg5[%c224, %c0_93] : memref<832x128xbf16, #tpu.memory_space<vmem>>, vector<32x128xbf16>
    %c12 = arith.constant 12 : index
    %c0_94 = arith.constant 0 : index
    %332 = vector.load %arg6[%c12, %c0_94] : memref<38x128xf32, #tpu.memory_space<vmem>>, vector<1x128xf32>
    %c256 = arith.constant 256 : index
    %c0_95 = arith.constant 0 : index
    %333 = vector.load %arg5[%c256, %c0_95] : memref<832x128xbf16, #tpu.memory_space<vmem>>, vector<128x128xbf16>
    %c13 = arith.constant 13 : index
    %c0_96 = arith.constant 0 : index
    %334 = vector.load %arg6[%c13, %c0_96] : memref<38x128xf32, #tpu.memory_space<vmem>>, vector<1x128xf32>
    %335 = arith.truncf %330 : vector<16x32xf32> to vector<16x32xbf16>
    %cst_97 = arith.constant dense<0.000000e+00> : vector<16x128xf32>
    %336 = tpu.matmul %335, %331, %cst_97 {dimension_numbers = #tpu.dot_dimension_numbers<[1], [0], [0], [1], [0, 0, 1, 1], [], []>} : vector<16x32xbf16>, vector<32x128xbf16>, vector<16x128xf32> -> vector<16x128xf32>
    %337 = vector.broadcast %332 : vector<1x128xf32> to vector<16x128xf32>
    %338 = arith.addf %336, %337 : vector<16x128xf32>
    %cst_98 = arith.constant 0.000000e+00 : f32
    %339 = vector.broadcast %cst_98 : f32 to vector<16x128xf32>
    %340 = arith.maximumf %338, %339 : vector<16x128xf32>
    %341 = arith.truncf %340 : vector<16x128xf32> to vector<16x128xbf16>
    %cst_99 = arith.constant dense<0.000000e+00> : vector<16x128xf32>
    %342 = tpu.matmul %341, %333, %cst_99 {dimension_numbers = #tpu.dot_dimension_numbers<[1], [0], [0], [1], [0, 0, 1, 1], [], []>} : vector<16x128xbf16>, vector<128x128xbf16>, vector<16x128xf32> -> vector<16x128xf32>
    %343 = vector.broadcast %334 : vector<1x128xf32> to vector<16x128xf32>
    %344 = arith.addf %342, %343 : vector<16x128xf32>
    %345 = vector.extract_strided_slice %344 {offsets = [0, 0], sizes = [16, 32], strides = [1, 1]} : vector<16x128xf32> to vector<16x32xf32>
    %346 = arith.addf %305, %345 : vector<16x32xf32>
    %c14 = arith.constant 14 : index
    %c0_100 = arith.constant 0 : index
    %347 = vector.load %arg6[%c14, %c0_100] : memref<38x128xf32, #tpu.memory_space<vmem>>, vector<1x32xf32>
    %c15 = arith.constant 15 : index
    %c0_101 = arith.constant 0 : index
    %348 = vector.load %arg6[%c15, %c0_101] : memref<38x128xf32, #tpu.memory_space<vmem>>, vector<1x32xf32>
    %cst_102 = arith.constant dense<0.000000e+00> : vector<16xf32>
    %349 = vector.multi_reduction <add>, %346, %cst_102 [1] : vector<16x32xf32> to vector<16xf32>
    %350 = vector.shape_cast %349 : vector<16xf32> to vector<16x1xf32>
    %cst_103 = arith.constant 3.200000e+01 : f32
    %351 = vector.broadcast %cst_103 : f32 to vector<16x1xf32>
    %352 = arith.divf %350, %351 : vector<16x1xf32>
    %353 = vector.broadcast %352 : vector<16x1xf32> to vector<16x32xf32>
    %354 = arith.subf %346, %353 : vector<16x32xf32>
    %355 = arith.mulf %354, %354 : vector<16x32xf32>
    %cst_104 = arith.constant dense<0.000000e+00> : vector<16xf32>
    %356 = vector.multi_reduction <add>, %355, %cst_104 [1] : vector<16x32xf32> to vector<16xf32>
    %357 = vector.shape_cast %356 : vector<16xf32> to vector<16x1xf32>
    %cst_105 = arith.constant 0.0322580636 : f32
    %358 = vector.broadcast %cst_105 : f32 to vector<16x1xf32>
    %359 = arith.mulf %357, %358 : vector<16x1xf32>
    %360 = math.sqrt %359 : vector<16x1xf32>
    %cst_106 = arith.constant 9.99999997E-7 : f32
    %361 = vector.broadcast %cst_106 : f32 to vector<16x1xf32>
    %362 = arith.addf %360, %361 : vector<16x1xf32>
    %363 = tpu.reciprocal %362 {approx = true} : vector<16x1xf32> -> vector<16x1xf32>
    %364 = vector.broadcast %352 : vector<16x1xf32> to vector<16x32xf32>
    %365 = arith.subf %346, %364 : vector<16x32xf32>
    %366 = vector.broadcast %347 : vector<1x32xf32> to vector<16x32xf32>
    %367 = arith.mulf %366, %365 : vector<16x32xf32>
    %368 = vector.broadcast %363 : vector<16x1xf32> to vector<16x32xf32>
    %369 = arith.mulf %367, %368 : vector<16x32xf32>
    %370 = vector.broadcast %348 : vector<1x32xf32> to vector<16x32xf32>
    %371 = arith.addf %369, %370 : vector<16x32xf32>
    %c16 = arith.constant 16 : index
    %c0_107 = arith.constant 0 : index
    %372 = vector.load %arg6[%c16, %c0_107] : memref<38x128xf32, #tpu.memory_space<vmem>>, vector<1x32xf32>
    %c17 = arith.constant 17 : index
    %c0_108 = arith.constant 0 : index
    %373 = vector.load %arg6[%c17, %c0_108] : memref<38x128xf32, #tpu.memory_space<vmem>>, vector<1x32xf32>
    %cst_109 = arith.constant dense<0.000000e+00> : vector<16xf32>
    %374 = vector.multi_reduction <add>, %1, %cst_109 [1] : vector<16x32xf32> to vector<16xf32>
    %375 = vector.shape_cast %374 : vector<16xf32> to vector<16x1xf32>
    %cst_110 = arith.constant 3.200000e+01 : f32
    %376 = vector.broadcast %cst_110 : f32 to vector<16x1xf32>
    %377 = arith.divf %375, %376 : vector<16x1xf32>
    %378 = vector.broadcast %377 : vector<16x1xf32> to vector<16x32xf32>
    %379 = arith.subf %1, %378 : vector<16x32xf32>
    %380 = arith.mulf %379, %379 : vector<16x32xf32>
    %cst_111 = arith.constant dense<0.000000e+00> : vector<16xf32>
    %381 = vector.multi_reduction <add>, %380, %cst_111 [1] : vector<16x32xf32> to vector<16xf32>
    %382 = vector.shape_cast %381 : vector<16xf32> to vector<16x1xf32>
    %cst_112 = arith.constant 0.0322580636 : f32
    %383 = vector.broadcast %cst_112 : f32 to vector<16x1xf32>
    %384 = arith.mulf %382, %383 : vector<16x1xf32>
    %385 = math.sqrt %384 : vector<16x1xf32>
    %cst_113 = arith.constant 9.99999997E-7 : f32
    %386 = vector.broadcast %cst_113 : f32 to vector<16x1xf32>
    %387 = arith.addf %385, %386 : vector<16x1xf32>
    %388 = tpu.reciprocal %387 {approx = true} : vector<16x1xf32> -> vector<16x1xf32>
    %389 = vector.broadcast %377 : vector<16x1xf32> to vector<16x32xf32>
    %390 = arith.subf %1, %389 : vector<16x32xf32>
    %391 = vector.broadcast %372 : vector<1x32xf32> to vector<16x32xf32>
    %392 = arith.mulf %391, %390 : vector<16x32xf32>
    %393 = vector.broadcast %388 : vector<16x1xf32> to vector<16x32xf32>
    %394 = arith.mulf %392, %393 : vector<16x32xf32>
    %395 = vector.broadcast %373 : vector<1x32xf32> to vector<16x32xf32>
    %396 = arith.addf %394, %395 : vector<16x32xf32>
    %c384 = arith.constant 384 : index
    %c0_114 = arith.constant 0 : index
    %397 = vector.load %arg5[%c384, %c0_114] : memref<832x128xbf16, #tpu.memory_space<vmem>>, vector<32x128xbf16>
    %c18 = arith.constant 18 : index
    %c0_115 = arith.constant 0 : index
    %398 = vector.load %arg6[%c18, %c0_115] : memref<38x128xf32, #tpu.memory_space<vmem>>, vector<1x128xf32>
    %399 = arith.truncf %396 : vector<16x32xf32> to vector<16x32xbf16>
    %cst_116 = arith.constant dense<0.000000e+00> : vector<16x128xf32>
    %400 = tpu.matmul %399, %397, %cst_116 {dimension_numbers = #tpu.dot_dimension_numbers<[1], [0], [0], [1], [0, 0, 1, 1], [], []>} : vector<16x32xbf16>, vector<32x128xbf16>, vector<16x128xf32> -> vector<16x128xf32>
    %401 = vector.broadcast %398 : vector<1x128xf32> to vector<16x128xf32>
    %402 = arith.addf %400, %401 : vector<16x128xf32>
    %403 = vector.extract_strided_slice %402 {offsets = [0, 0], sizes = [16, 32], strides = [1, 1]} : vector<16x128xf32> to vector<16x32xf32>
    %404 = vector.extract_strided_slice %402 {offsets = [0, 32], sizes = [16, 32], strides = [1, 1]} : vector<16x128xf32> to vector<16x32xf32>
    %405 = vector.extract_strided_slice %402 {offsets = [0, 64], sizes = [16, 32], strides = [1, 1]} : vector<16x128xf32> to vector<16x32xf32>
    %406 = vector.extract_strided_slice %403 {offsets = [0, 0], sizes = [16, 8], strides = [1, 1]} : vector<16x32xf32> to vector<16x8xf32>
    %407 = arith.truncf %406 : vector<16x8xf32> to vector<16x8xbf16>
    %408 = vector.extract_strided_slice %404 {offsets = [0, 0], sizes = [16, 8], strides = [1, 1]} : vector<16x32xf32> to vector<16x8xf32>
    %409 = arith.truncf %408 : vector<16x8xf32> to vector<16x8xbf16>
    %cst_117 = arith.constant dense<0.000000e+00> : vector<16x16xf32>
    %410 = tpu.matmul %407, %409, %cst_117 {dimension_numbers = #tpu.dot_dimension_numbers<[1], [1], [0], [0], [0, 0, 1, 0], [], []>} : vector<16x8xbf16>, vector<16x8xbf16>, vector<16x16xf32> -> vector<16x16xf32>
    %cst_118 = arith.constant 0.353553385 : f32
    %411 = vector.broadcast %cst_118 : f32 to vector<16x16xf32>
    %412 = arith.mulf %410, %411 : vector<16x16xf32>
    %413 = arith.addf %412, %3 : vector<16x16xf32>
    %cst_119 = arith.constant dense<0xFF800000> : vector<16xf32>
    %414 = vector.multi_reduction <maximumf>, %413, %cst_119 [1] : vector<16x16xf32> to vector<16xf32>
    %415 = vector.shape_cast %414 : vector<16xf32> to vector<16x1xf32>
    %416 = vector.broadcast %415 : vector<16x1xf32> to vector<16x16xf32>
    %417 = arith.subf %413, %416 : vector<16x16xf32>
    %418 = math.exp %417 : vector<16x16xf32>
    %cst_120 = arith.constant dense<0.000000e+00> : vector<16xf32>
    %419 = vector.multi_reduction <add>, %418, %cst_120 [1] : vector<16x16xf32> to vector<16xf32>
    %420 = vector.shape_cast %419 : vector<16xf32> to vector<16x1xf32>
    %421 = tpu.reciprocal %420 {approx = true} : vector<16x1xf32> -> vector<16x1xf32>
    %422 = vector.broadcast %421 : vector<16x1xf32> to vector<16x16xf32>
    %423 = arith.mulf %418, %422 : vector<16x16xf32>
    %424 = vector.extract_strided_slice %405 {offsets = [0, 0], sizes = [16, 8], strides = [1, 1]} : vector<16x32xf32> to vector<16x8xf32>
    %425 = arith.truncf %424 : vector<16x8xf32> to vector<16x8xbf16>
    %426 = arith.truncf %423 : vector<16x16xf32> to vector<16x16xbf16>
    %cst_121 = arith.constant dense<0.000000e+00> : vector<16x8xf32>
    %427 = tpu.matmul %426, %425, %cst_121 {dimension_numbers = #tpu.dot_dimension_numbers<[1], [0], [0], [1], [0, 0, 1, 1], [], []>} : vector<16x16xbf16>, vector<16x8xbf16>, vector<16x8xf32> -> vector<16x8xf32>
    %428 = vector.extract_strided_slice %403 {offsets = [0, 8], sizes = [16, 8], strides = [1, 1]} : vector<16x32xf32> to vector<16x8xf32>
    %429 = arith.truncf %428 : vector<16x8xf32> to vector<16x8xbf16>
    %430 = vector.extract_strided_slice %404 {offsets = [0, 8], sizes = [16, 8], strides = [1, 1]} : vector<16x32xf32> to vector<16x8xf32>
    %431 = arith.truncf %430 : vector<16x8xf32> to vector<16x8xbf16>
    %cst_122 = arith.constant dense<0.000000e+00> : vector<16x16xf32>
    %432 = tpu.matmul %429, %431, %cst_122 {dimension_numbers = #tpu.dot_dimension_numbers<[1], [1], [0], [0], [0, 0, 1, 0], [], []>} : vector<16x8xbf16>, vector<16x8xbf16>, vector<16x16xf32> -> vector<16x16xf32>
    %cst_123 = arith.constant 0.353553385 : f32
    %433 = vector.broadcast %cst_123 : f32 to vector<16x16xf32>
    %434 = arith.mulf %432, %433 : vector<16x16xf32>
    %435 = arith.addf %434, %3 : vector<16x16xf32>
    %cst_124 = arith.constant dense<0xFF800000> : vector<16xf32>
    %436 = vector.multi_reduction <maximumf>, %435, %cst_124 [1] : vector<16x16xf32> to vector<16xf32>
    %437 = vector.shape_cast %436 : vector<16xf32> to vector<16x1xf32>
    %438 = vector.broadcast %437 : vector<16x1xf32> to vector<16x16xf32>
    %439 = arith.subf %435, %438 : vector<16x16xf32>
    %440 = math.exp %439 : vector<16x16xf32>
    %cst_125 = arith.constant dense<0.000000e+00> : vector<16xf32>
    %441 = vector.multi_reduction <add>, %440, %cst_125 [1] : vector<16x16xf32> to vector<16xf32>
    %442 = vector.shape_cast %441 : vector<16xf32> to vector<16x1xf32>
    %443 = tpu.reciprocal %442 {approx = true} : vector<16x1xf32> -> vector<16x1xf32>
    %444 = vector.broadcast %443 : vector<16x1xf32> to vector<16x16xf32>
    %445 = arith.mulf %440, %444 : vector<16x16xf32>
    %446 = vector.extract_strided_slice %405 {offsets = [0, 8], sizes = [16, 8], strides = [1, 1]} : vector<16x32xf32> to vector<16x8xf32>
    %447 = arith.truncf %446 : vector<16x8xf32> to vector<16x8xbf16>
    %448 = arith.truncf %445 : vector<16x16xf32> to vector<16x16xbf16>
    %cst_126 = arith.constant dense<0.000000e+00> : vector<16x8xf32>
    %449 = tpu.matmul %448, %447, %cst_126 {dimension_numbers = #tpu.dot_dimension_numbers<[1], [0], [0], [1], [0, 0, 1, 1], [], []>} : vector<16x16xbf16>, vector<16x8xbf16>, vector<16x8xf32> -> vector<16x8xf32>
    %450 = vector.extract_strided_slice %403 {offsets = [0, 16], sizes = [16, 8], strides = [1, 1]} : vector<16x32xf32> to vector<16x8xf32>
    %451 = arith.truncf %450 : vector<16x8xf32> to vector<16x8xbf16>
    %452 = vector.extract_strided_slice %404 {offsets = [0, 16], sizes = [16, 8], strides = [1, 1]} : vector<16x32xf32> to vector<16x8xf32>
    %453 = arith.truncf %452 : vector<16x8xf32> to vector<16x8xbf16>
    %cst_127 = arith.constant dense<0.000000e+00> : vector<16x16xf32>
    %454 = tpu.matmul %451, %453, %cst_127 {dimension_numbers = #tpu.dot_dimension_numbers<[1], [1], [0], [0], [0, 0, 1, 0], [], []>} : vector<16x8xbf16>, vector<16x8xbf16>, vector<16x16xf32> -> vector<16x16xf32>
    %cst_128 = arith.constant 0.353553385 : f32
    %455 = vector.broadcast %cst_128 : f32 to vector<16x16xf32>
    %456 = arith.mulf %454, %455 : vector<16x16xf32>
    %457 = arith.addf %456, %3 : vector<16x16xf32>
    %cst_129 = arith.constant dense<0xFF800000> : vector<16xf32>
    %458 = vector.multi_reduction <maximumf>, %457, %cst_129 [1] : vector<16x16xf32> to vector<16xf32>
    %459 = vector.shape_cast %458 : vector<16xf32> to vector<16x1xf32>
    %460 = vector.broadcast %459 : vector<16x1xf32> to vector<16x16xf32>
    %461 = arith.subf %457, %460 : vector<16x16xf32>
    %462 = math.exp %461 : vector<16x16xf32>
    %cst_130 = arith.constant dense<0.000000e+00> : vector<16xf32>
    %463 = vector.multi_reduction <add>, %462, %cst_130 [1] : vector<16x16xf32> to vector<16xf32>
    %464 = vector.shape_cast %463 : vector<16xf32> to vector<16x1xf32>
    %465 = tpu.reciprocal %464 {approx = true} : vector<16x1xf32> -> vector<16x1xf32>
    %466 = vector.broadcast %465 : vector<16x1xf32> to vector<16x16xf32>
    %467 = arith.mulf %462, %466 : vector<16x16xf32>
    %468 = vector.extract_strided_slice %405 {offsets = [0, 16], sizes = [16, 8], strides = [1, 1]} : vector<16x32xf32> to vector<16x8xf32>
    %469 = arith.truncf %468 : vector<16x8xf32> to vector<16x8xbf16>
    %470 = arith.truncf %467 : vector<16x16xf32> to vector<16x16xbf16>
    %cst_131 = arith.constant dense<0.000000e+00> : vector<16x8xf32>
    %471 = tpu.matmul %470, %469, %cst_131 {dimension_numbers = #tpu.dot_dimension_numbers<[1], [0], [0], [1], [0, 0, 1, 1], [], []>} : vector<16x16xbf16>, vector<16x8xbf16>, vector<16x8xf32> -> vector<16x8xf32>
    %472 = vector.extract_strided_slice %403 {offsets = [0, 24], sizes = [16, 8], strides = [1, 1]} : vector<16x32xf32> to vector<16x8xf32>
    %473 = arith.truncf %472 : vector<16x8xf32> to vector<16x8xbf16>
    %474 = vector.extract_strided_slice %404 {offsets = [0, 24], sizes = [16, 8], strides = [1, 1]} : vector<16x32xf32> to vector<16x8xf32>
    %475 = arith.truncf %474 : vector<16x8xf32> to vector<16x8xbf16>
    %cst_132 = arith.constant dense<0.000000e+00> : vector<16x16xf32>
    %476 = tpu.matmul %473, %475, %cst_132 {dimension_numbers = #tpu.dot_dimension_numbers<[1], [1], [0], [0], [0, 0, 1, 0], [], []>} : vector<16x8xbf16>, vector<16x8xbf16>, vector<16x16xf32> -> vector<16x16xf32>
    %cst_133 = arith.constant 0.353553385 : f32
    %477 = vector.broadcast %cst_133 : f32 to vector<16x16xf32>
    %478 = arith.mulf %476, %477 : vector<16x16xf32>
    %479 = arith.addf %478, %3 : vector<16x16xf32>
    %cst_134 = arith.constant dense<0xFF800000> : vector<16xf32>
    %480 = vector.multi_reduction <maximumf>, %479, %cst_134 [1] : vector<16x16xf32> to vector<16xf32>
    %481 = vector.shape_cast %480 : vector<16xf32> to vector<16x1xf32>
    %482 = vector.broadcast %481 : vector<16x1xf32> to vector<16x16xf32>
    %483 = arith.subf %479, %482 : vector<16x16xf32>
    %484 = math.exp %483 : vector<16x16xf32>
    %cst_135 = arith.constant dense<0.000000e+00> : vector<16xf32>
    %485 = vector.multi_reduction <add>, %484, %cst_135 [1] : vector<16x16xf32> to vector<16xf32>
    %486 = vector.shape_cast %485 : vector<16xf32> to vector<16x1xf32>
    %487 = tpu.reciprocal %486 {approx = true} : vector<16x1xf32> -> vector<16x1xf32>
    %488 = vector.broadcast %487 : vector<16x1xf32> to vector<16x16xf32>
    %489 = arith.mulf %484, %488 : vector<16x16xf32>
    %490 = vector.extract_strided_slice %405 {offsets = [0, 24], sizes = [16, 8], strides = [1, 1]} : vector<16x32xf32> to vector<16x8xf32>
    %491 = arith.truncf %490 : vector<16x8xf32> to vector<16x8xbf16>
    %492 = arith.truncf %489 : vector<16x16xf32> to vector<16x16xbf16>
    %cst_136 = arith.constant dense<0.000000e+00> : vector<16x8xf32>
    %493 = tpu.matmul %492, %491, %cst_136 {dimension_numbers = #tpu.dot_dimension_numbers<[1], [0], [0], [1], [0, 0, 1, 1], [], []>} : vector<16x16xbf16>, vector<16x8xbf16>, vector<16x8xf32> -> vector<16x8xf32>
    %494 = tpu.concatenate %427, %449, %471, %493 in 1 : vector<16x8xf32>, vector<16x8xf32>, vector<16x8xf32>, vector<16x8xf32> -> vector<16x32xf32>
    %495 = vector.extract_strided_slice %397 {offsets = [0, 96], sizes = [32, 32], strides = [1, 1]} : vector<32x128xbf16> to vector<32x32xbf16>
    %496 = vector.extract_strided_slice %398 {offsets = [0, 96], sizes = [1, 32], strides = [1, 1]} : vector<1x128xf32> to vector<1x32xf32>
    %497 = arith.truncf %494 : vector<16x32xf32> to vector<16x32xbf16>
    %cst_137 = arith.constant dense<0.000000e+00> : vector<16x32xf32>
    %498 = tpu.matmul %497, %495, %cst_137 {dimension_numbers = #tpu.dot_dimension_numbers<[1], [0], [0], [1], [0, 0, 1, 1], [], []>} : vector<16x32xbf16>, vector<32x32xbf16>, vector<16x32xf32> -> vector<16x32xf32>
    %499 = vector.broadcast %496 : vector<1x32xf32> to vector<16x32xf32>
    %500 = arith.addf %498, %499 : vector<16x32xf32>
    %501 = arith.addf %1, %500 : vector<16x32xf32>
    %c19 = arith.constant 19 : index
    %c0_138 = arith.constant 0 : index
    %502 = vector.load %arg6[%c19, %c0_138] : memref<38x128xf32, #tpu.memory_space<vmem>>, vector<1x32xf32>
    %c20 = arith.constant 20 : index
    %c0_139 = arith.constant 0 : index
    %503 = vector.load %arg6[%c20, %c0_139] : memref<38x128xf32, #tpu.memory_space<vmem>>, vector<1x32xf32>
    %cst_140 = arith.constant dense<0.000000e+00> : vector<16xf32>
    %504 = vector.multi_reduction <add>, %501, %cst_140 [1] : vector<16x32xf32> to vector<16xf32>
    %505 = vector.shape_cast %504 : vector<16xf32> to vector<16x1xf32>
    %cst_141 = arith.constant 3.200000e+01 : f32
    %506 = vector.broadcast %cst_141 : f32 to vector<16x1xf32>
    %507 = arith.divf %505, %506 : vector<16x1xf32>
    %508 = vector.broadcast %507 : vector<16x1xf32> to vector<16x32xf32>
    %509 = arith.subf %501, %508 : vector<16x32xf32>
    %510 = arith.mulf %509, %509 : vector<16x32xf32>
    %cst_142 = arith.constant dense<0.000000e+00> : vector<16xf32>
    %511 = vector.multi_reduction <add>, %510, %cst_142 [1] : vector<16x32xf32> to vector<16xf32>
    %512 = vector.shape_cast %511 : vector<16xf32> to vector<16x1xf32>
    %cst_143 = arith.constant 0.0322580636 : f32
    %513 = vector.broadcast %cst_143 : f32 to vector<16x1xf32>
    %514 = arith.mulf %512, %513 : vector<16x1xf32>
    %515 = math.sqrt %514 : vector<16x1xf32>
    %cst_144 = arith.constant 9.99999997E-7 : f32
    %516 = vector.broadcast %cst_144 : f32 to vector<16x1xf32>
    %517 = arith.addf %515, %516 : vector<16x1xf32>
    %518 = tpu.reciprocal %517 {approx = true} : vector<16x1xf32> -> vector<16x1xf32>
    %519 = vector.broadcast %507 : vector<16x1xf32> to vector<16x32xf32>
    %520 = arith.subf %501, %519 : vector<16x32xf32>
    %521 = vector.broadcast %502 : vector<1x32xf32> to vector<16x32xf32>
    %522 = arith.mulf %521, %520 : vector<16x32xf32>
    %523 = vector.broadcast %518 : vector<16x1xf32> to vector<16x32xf32>
    %524 = arith.mulf %522, %523 : vector<16x32xf32>
    %525 = vector.broadcast %503 : vector<1x32xf32> to vector<16x32xf32>
    %526 = arith.addf %524, %525 : vector<16x32xf32>
    %c416 = arith.constant 416 : index
    %c0_145 = arith.constant 0 : index
    %527 = vector.load %arg5[%c416, %c0_145] : memref<832x128xbf16, #tpu.memory_space<vmem>>, vector<32x128xbf16>
    %c21 = arith.constant 21 : index
    %c0_146 = arith.constant 0 : index
    %528 = vector.load %arg6[%c21, %c0_146] : memref<38x128xf32, #tpu.memory_space<vmem>>, vector<1x128xf32>
    %529 = arith.truncf %526 : vector<16x32xf32> to vector<16x32xbf16>
    %cst_147 = arith.constant dense<0.000000e+00> : vector<16x128xf32>
    %530 = tpu.matmul %529, %527, %cst_147 {dimension_numbers = #tpu.dot_dimension_numbers<[1], [0], [0], [1], [0, 0, 1, 1], [], []>} : vector<16x32xbf16>, vector<32x128xbf16>, vector<16x128xf32> -> vector<16x128xf32>
    %531 = vector.broadcast %528 : vector<1x128xf32> to vector<16x128xf32>
    %532 = arith.addf %530, %531 : vector<16x128xf32>
    %533 = arith.truncf %371 : vector<16x32xf32> to vector<16x32xbf16>
    %cst_148 = arith.constant dense<0.000000e+00> : vector<16x128xf32>
    %534 = tpu.matmul %533, %527, %cst_148 {dimension_numbers = #tpu.dot_dimension_numbers<[1], [0], [0], [1], [0, 0, 1, 1], [], []>} : vector<16x32xbf16>, vector<32x128xbf16>, vector<16x128xf32> -> vector<16x128xf32>
    %535 = vector.broadcast %528 : vector<1x128xf32> to vector<16x128xf32>
    %536 = arith.addf %534, %535 : vector<16x128xf32>
    %537 = vector.extract_strided_slice %532 {offsets = [0, 0], sizes = [16, 32], strides = [1, 1]} : vector<16x128xf32> to vector<16x32xf32>
    %538 = vector.extract_strided_slice %536 {offsets = [0, 32], sizes = [16, 32], strides = [1, 1]} : vector<16x128xf32> to vector<16x32xf32>
    %539 = vector.extract_strided_slice %536 {offsets = [0, 64], sizes = [16, 32], strides = [1, 1]} : vector<16x128xf32> to vector<16x32xf32>
    %540 = vector.extract_strided_slice %537 {offsets = [0, 0], sizes = [16, 8], strides = [1, 1]} : vector<16x32xf32> to vector<16x8xf32>
    %541 = arith.truncf %540 : vector<16x8xf32> to vector<16x8xbf16>
    %542 = vector.extract_strided_slice %538 {offsets = [0, 0], sizes = [16, 8], strides = [1, 1]} : vector<16x32xf32> to vector<16x8xf32>
    %543 = arith.truncf %542 : vector<16x8xf32> to vector<16x8xbf16>
    %cst_149 = arith.constant dense<0.000000e+00> : vector<16x16xf32>
    %544 = tpu.matmul %541, %543, %cst_149 {dimension_numbers = #tpu.dot_dimension_numbers<[1], [1], [0], [0], [0, 0, 1, 0], [], []>} : vector<16x8xbf16>, vector<16x8xbf16>, vector<16x16xf32> -> vector<16x16xf32>
    %cst_150 = arith.constant 0.353553385 : f32
    %545 = vector.broadcast %cst_150 : f32 to vector<16x16xf32>
    %546 = arith.mulf %544, %545 : vector<16x16xf32>
    %547 = arith.addf %546, %4 : vector<16x16xf32>
    %cst_151 = arith.constant dense<0xFF800000> : vector<16xf32>
    %548 = vector.multi_reduction <maximumf>, %547, %cst_151 [1] : vector<16x16xf32> to vector<16xf32>
    %549 = vector.shape_cast %548 : vector<16xf32> to vector<16x1xf32>
    %550 = vector.broadcast %549 : vector<16x1xf32> to vector<16x16xf32>
    %551 = arith.subf %547, %550 : vector<16x16xf32>
    %552 = math.exp %551 : vector<16x16xf32>
    %cst_152 = arith.constant dense<0.000000e+00> : vector<16xf32>
    %553 = vector.multi_reduction <add>, %552, %cst_152 [1] : vector<16x16xf32> to vector<16xf32>
    %554 = vector.shape_cast %553 : vector<16xf32> to vector<16x1xf32>
    %555 = tpu.reciprocal %554 {approx = true} : vector<16x1xf32> -> vector<16x1xf32>
    %556 = vector.broadcast %555 : vector<16x1xf32> to vector<16x16xf32>
    %557 = arith.mulf %552, %556 : vector<16x16xf32>
    %558 = vector.extract_strided_slice %539 {offsets = [0, 0], sizes = [16, 8], strides = [1, 1]} : vector<16x32xf32> to vector<16x8xf32>
    %559 = arith.truncf %558 : vector<16x8xf32> to vector<16x8xbf16>
    %560 = arith.truncf %557 : vector<16x16xf32> to vector<16x16xbf16>
    %cst_153 = arith.constant dense<0.000000e+00> : vector<16x8xf32>
    %561 = tpu.matmul %560, %559, %cst_153 {dimension_numbers = #tpu.dot_dimension_numbers<[1], [0], [0], [1], [0, 0, 1, 1], [], []>} : vector<16x16xbf16>, vector<16x8xbf16>, vector<16x8xf32> -> vector<16x8xf32>
    %562 = vector.extract_strided_slice %537 {offsets = [0, 8], sizes = [16, 8], strides = [1, 1]} : vector<16x32xf32> to vector<16x8xf32>
    %563 = arith.truncf %562 : vector<16x8xf32> to vector<16x8xbf16>
    %564 = vector.extract_strided_slice %538 {offsets = [0, 8], sizes = [16, 8], strides = [1, 1]} : vector<16x32xf32> to vector<16x8xf32>
    %565 = arith.truncf %564 : vector<16x8xf32> to vector<16x8xbf16>
    %cst_154 = arith.constant dense<0.000000e+00> : vector<16x16xf32>
    %566 = tpu.matmul %563, %565, %cst_154 {dimension_numbers = #tpu.dot_dimension_numbers<[1], [1], [0], [0], [0, 0, 1, 0], [], []>} : vector<16x8xbf16>, vector<16x8xbf16>, vector<16x16xf32> -> vector<16x16xf32>
    %cst_155 = arith.constant 0.353553385 : f32
    %567 = vector.broadcast %cst_155 : f32 to vector<16x16xf32>
    %568 = arith.mulf %566, %567 : vector<16x16xf32>
    %569 = arith.addf %568, %4 : vector<16x16xf32>
    %cst_156 = arith.constant dense<0xFF800000> : vector<16xf32>
    %570 = vector.multi_reduction <maximumf>, %569, %cst_156 [1] : vector<16x16xf32> to vector<16xf32>
    %571 = vector.shape_cast %570 : vector<16xf32> to vector<16x1xf32>
    %572 = vector.broadcast %571 : vector<16x1xf32> to vector<16x16xf32>
    %573 = arith.subf %569, %572 : vector<16x16xf32>
    %574 = math.exp %573 : vector<16x16xf32>
    %cst_157 = arith.constant dense<0.000000e+00> : vector<16xf32>
    %575 = vector.multi_reduction <add>, %574, %cst_157 [1] : vector<16x16xf32> to vector<16xf32>
    %576 = vector.shape_cast %575 : vector<16xf32> to vector<16x1xf32>
    %577 = tpu.reciprocal %576 {approx = true} : vector<16x1xf32> -> vector<16x1xf32>
    %578 = vector.broadcast %577 : vector<16x1xf32> to vector<16x16xf32>
    %579 = arith.mulf %574, %578 : vector<16x16xf32>
    %580 = vector.extract_strided_slice %539 {offsets = [0, 8], sizes = [16, 8], strides = [1, 1]} : vector<16x32xf32> to vector<16x8xf32>
    %581 = arith.truncf %580 : vector<16x8xf32> to vector<16x8xbf16>
    %582 = arith.truncf %579 : vector<16x16xf32> to vector<16x16xbf16>
    %cst_158 = arith.constant dense<0.000000e+00> : vector<16x8xf32>
    %583 = tpu.matmul %582, %581, %cst_158 {dimension_numbers = #tpu.dot_dimension_numbers<[1], [0], [0], [1], [0, 0, 1, 1], [], []>} : vector<16x16xbf16>, vector<16x8xbf16>, vector<16x8xf32> -> vector<16x8xf32>
    %584 = vector.extract_strided_slice %537 {offsets = [0, 16], sizes = [16, 8], strides = [1, 1]} : vector<16x32xf32> to vector<16x8xf32>
    %585 = arith.truncf %584 : vector<16x8xf32> to vector<16x8xbf16>
    %586 = vector.extract_strided_slice %538 {offsets = [0, 16], sizes = [16, 8], strides = [1, 1]} : vector<16x32xf32> to vector<16x8xf32>
    %587 = arith.truncf %586 : vector<16x8xf32> to vector<16x8xbf16>
    %cst_159 = arith.constant dense<0.000000e+00> : vector<16x16xf32>
    %588 = tpu.matmul %585, %587, %cst_159 {dimension_numbers = #tpu.dot_dimension_numbers<[1], [1], [0], [0], [0, 0, 1, 0], [], []>} : vector<16x8xbf16>, vector<16x8xbf16>, vector<16x16xf32> -> vector<16x16xf32>
    %cst_160 = arith.constant 0.353553385 : f32
    %589 = vector.broadcast %cst_160 : f32 to vector<16x16xf32>
    %590 = arith.mulf %588, %589 : vector<16x16xf32>
    %591 = arith.addf %590, %4 : vector<16x16xf32>
    %cst_161 = arith.constant dense<0xFF800000> : vector<16xf32>
    %592 = vector.multi_reduction <maximumf>, %591, %cst_161 [1] : vector<16x16xf32> to vector<16xf32>
    %593 = vector.shape_cast %592 : vector<16xf32> to vector<16x1xf32>
    %594 = vector.broadcast %593 : vector<16x1xf32> to vector<16x16xf32>
    %595 = arith.subf %591, %594 : vector<16x16xf32>
    %596 = math.exp %595 : vector<16x16xf32>
    %cst_162 = arith.constant dense<0.000000e+00> : vector<16xf32>
    %597 = vector.multi_reduction <add>, %596, %cst_162 [1] : vector<16x16xf32> to vector<16xf32>
    %598 = vector.shape_cast %597 : vector<16xf32> to vector<16x1xf32>
    %599 = tpu.reciprocal %598 {approx = true} : vector<16x1xf32> -> vector<16x1xf32>
    %600 = vector.broadcast %599 : vector<16x1xf32> to vector<16x16xf32>
    %601 = arith.mulf %596, %600 : vector<16x16xf32>
    %602 = vector.extract_strided_slice %539 {offsets = [0, 16], sizes = [16, 8], strides = [1, 1]} : vector<16x32xf32> to vector<16x8xf32>
    %603 = arith.truncf %602 : vector<16x8xf32> to vector<16x8xbf16>
    %604 = arith.truncf %601 : vector<16x16xf32> to vector<16x16xbf16>
    %cst_163 = arith.constant dense<0.000000e+00> : vector<16x8xf32>
    %605 = tpu.matmul %604, %603, %cst_163 {dimension_numbers = #tpu.dot_dimension_numbers<[1], [0], [0], [1], [0, 0, 1, 1], [], []>} : vector<16x16xbf16>, vector<16x8xbf16>, vector<16x8xf32> -> vector<16x8xf32>
    %606 = vector.extract_strided_slice %537 {offsets = [0, 24], sizes = [16, 8], strides = [1, 1]} : vector<16x32xf32> to vector<16x8xf32>
    %607 = arith.truncf %606 : vector<16x8xf32> to vector<16x8xbf16>
    %608 = vector.extract_strided_slice %538 {offsets = [0, 24], sizes = [16, 8], strides = [1, 1]} : vector<16x32xf32> to vector<16x8xf32>
    %609 = arith.truncf %608 : vector<16x8xf32> to vector<16x8xbf16>
    %cst_164 = arith.constant dense<0.000000e+00> : vector<16x16xf32>
    %610 = tpu.matmul %607, %609, %cst_164 {dimension_numbers = #tpu.dot_dimension_numbers<[1], [1], [0], [0], [0, 0, 1, 0], [], []>} : vector<16x8xbf16>, vector<16x8xbf16>, vector<16x16xf32> -> vector<16x16xf32>
    %cst_165 = arith.constant 0.353553385 : f32
    %611 = vector.broadcast %cst_165 : f32 to vector<16x16xf32>
    %612 = arith.mulf %610, %611 : vector<16x16xf32>
    %613 = arith.addf %612, %4 : vector<16x16xf32>
    %cst_166 = arith.constant dense<0xFF800000> : vector<16xf32>
    %614 = vector.multi_reduction <maximumf>, %613, %cst_166 [1] : vector<16x16xf32> to vector<16xf32>
    %615 = vector.shape_cast %614 : vector<16xf32> to vector<16x1xf32>
    %616 = vector.broadcast %615 : vector<16x1xf32> to vector<16x16xf32>
    %617 = arith.subf %613, %616 : vector<16x16xf32>
    %618 = math.exp %617 : vector<16x16xf32>
    %cst_167 = arith.constant dense<0.000000e+00> : vector<16xf32>
    %619 = vector.multi_reduction <add>, %618, %cst_167 [1] : vector<16x16xf32> to vector<16xf32>
    %620 = vector.shape_cast %619 : vector<16xf32> to vector<16x1xf32>
    %621 = tpu.reciprocal %620 {approx = true} : vector<16x1xf32> -> vector<16x1xf32>
    %622 = vector.broadcast %621 : vector<16x1xf32> to vector<16x16xf32>
    %623 = arith.mulf %618, %622 : vector<16x16xf32>
    %624 = vector.extract_strided_slice %539 {offsets = [0, 24], sizes = [16, 8], strides = [1, 1]} : vector<16x32xf32> to vector<16x8xf32>
    %625 = arith.truncf %624 : vector<16x8xf32> to vector<16x8xbf16>
    %626 = arith.truncf %623 : vector<16x16xf32> to vector<16x16xbf16>
    %cst_168 = arith.constant dense<0.000000e+00> : vector<16x8xf32>
    %627 = tpu.matmul %626, %625, %cst_168 {dimension_numbers = #tpu.dot_dimension_numbers<[1], [0], [0], [1], [0, 0, 1, 1], [], []>} : vector<16x16xbf16>, vector<16x8xbf16>, vector<16x8xf32> -> vector<16x8xf32>
    %628 = tpu.concatenate %561, %583, %605, %627 in 1 : vector<16x8xf32>, vector<16x8xf32>, vector<16x8xf32>, vector<16x8xf32> -> vector<16x32xf32>
    %629 = vector.extract_strided_slice %527 {offsets = [0, 96], sizes = [32, 32], strides = [1, 1]} : vector<32x128xbf16> to vector<32x32xbf16>
    %630 = vector.extract_strided_slice %528 {offsets = [0, 96], sizes = [1, 32], strides = [1, 1]} : vector<1x128xf32> to vector<1x32xf32>
    %631 = arith.truncf %628 : vector<16x32xf32> to vector<16x32xbf16>
    %cst_169 = arith.constant dense<0.000000e+00> : vector<16x32xf32>
    %632 = tpu.matmul %631, %629, %cst_169 {dimension_numbers = #tpu.dot_dimension_numbers<[1], [0], [0], [1], [0, 0, 1, 1], [], []>} : vector<16x32xbf16>, vector<32x32xbf16>, vector<16x32xf32> -> vector<16x32xf32>
    %633 = vector.broadcast %630 : vector<1x32xf32> to vector<16x32xf32>
    %634 = arith.addf %632, %633 : vector<16x32xf32>
    %635 = arith.addf %501, %634 : vector<16x32xf32>
    %c22 = arith.constant 22 : index
    %c0_170 = arith.constant 0 : index
    %636 = vector.load %arg6[%c22, %c0_170] : memref<38x128xf32, #tpu.memory_space<vmem>>, vector<1x32xf32>
    %c23 = arith.constant 23 : index
    %c0_171 = arith.constant 0 : index
    %637 = vector.load %arg6[%c23, %c0_171] : memref<38x128xf32, #tpu.memory_space<vmem>>, vector<1x32xf32>
    %cst_172 = arith.constant dense<0.000000e+00> : vector<16xf32>
    %638 = vector.multi_reduction <add>, %635, %cst_172 [1] : vector<16x32xf32> to vector<16xf32>
    %639 = vector.shape_cast %638 : vector<16xf32> to vector<16x1xf32>
    %cst_173 = arith.constant 3.200000e+01 : f32
    %640 = vector.broadcast %cst_173 : f32 to vector<16x1xf32>
    %641 = arith.divf %639, %640 : vector<16x1xf32>
    %642 = vector.broadcast %641 : vector<16x1xf32> to vector<16x32xf32>
    %643 = arith.subf %635, %642 : vector<16x32xf32>
    %644 = arith.mulf %643, %643 : vector<16x32xf32>
    %cst_174 = arith.constant dense<0.000000e+00> : vector<16xf32>
    %645 = vector.multi_reduction <add>, %644, %cst_174 [1] : vector<16x32xf32> to vector<16xf32>
    %646 = vector.shape_cast %645 : vector<16xf32> to vector<16x1xf32>
    %cst_175 = arith.constant 0.0322580636 : f32
    %647 = vector.broadcast %cst_175 : f32 to vector<16x1xf32>
    %648 = arith.mulf %646, %647 : vector<16x1xf32>
    %649 = math.sqrt %648 : vector<16x1xf32>
    %cst_176 = arith.constant 9.99999997E-7 : f32
    %650 = vector.broadcast %cst_176 : f32 to vector<16x1xf32>
    %651 = arith.addf %649, %650 : vector<16x1xf32>
    %652 = tpu.reciprocal %651 {approx = true} : vector<16x1xf32> -> vector<16x1xf32>
    %653 = vector.broadcast %641 : vector<16x1xf32> to vector<16x32xf32>
    %654 = arith.subf %635, %653 : vector<16x32xf32>
    %655 = vector.broadcast %636 : vector<1x32xf32> to vector<16x32xf32>
    %656 = arith.mulf %655, %654 : vector<16x32xf32>
    %657 = vector.broadcast %652 : vector<16x1xf32> to vector<16x32xf32>
    %658 = arith.mulf %656, %657 : vector<16x32xf32>
    %659 = vector.broadcast %637 : vector<1x32xf32> to vector<16x32xf32>
    %660 = arith.addf %658, %659 : vector<16x32xf32>
    %c448 = arith.constant 448 : index
    %c0_177 = arith.constant 0 : index
    %661 = vector.load %arg5[%c448, %c0_177] : memref<832x128xbf16, #tpu.memory_space<vmem>>, vector<32x128xbf16>
    %c24 = arith.constant 24 : index
    %c0_178 = arith.constant 0 : index
    %662 = vector.load %arg6[%c24, %c0_178] : memref<38x128xf32, #tpu.memory_space<vmem>>, vector<1x128xf32>
    %c480 = arith.constant 480 : index
    %c0_179 = arith.constant 0 : index
    %663 = vector.load %arg5[%c480, %c0_179] : memref<832x128xbf16, #tpu.memory_space<vmem>>, vector<128x128xbf16>
    %c25 = arith.constant 25 : index
    %c0_180 = arith.constant 0 : index
    %664 = vector.load %arg6[%c25, %c0_180] : memref<38x128xf32, #tpu.memory_space<vmem>>, vector<1x128xf32>
    %665 = arith.truncf %660 : vector<16x32xf32> to vector<16x32xbf16>
    %cst_181 = arith.constant dense<0.000000e+00> : vector<16x128xf32>
    %666 = tpu.matmul %665, %661, %cst_181 {dimension_numbers = #tpu.dot_dimension_numbers<[1], [0], [0], [1], [0, 0, 1, 1], [], []>} : vector<16x32xbf16>, vector<32x128xbf16>, vector<16x128xf32> -> vector<16x128xf32>
    %667 = vector.broadcast %662 : vector<1x128xf32> to vector<16x128xf32>
    %668 = arith.addf %666, %667 : vector<16x128xf32>
    %cst_182 = arith.constant 0.000000e+00 : f32
    %669 = vector.broadcast %cst_182 : f32 to vector<16x128xf32>
    %670 = arith.maximumf %668, %669 : vector<16x128xf32>
    %671 = arith.truncf %670 : vector<16x128xf32> to vector<16x128xbf16>
    %cst_183 = arith.constant dense<0.000000e+00> : vector<16x128xf32>
    %672 = tpu.matmul %671, %663, %cst_183 {dimension_numbers = #tpu.dot_dimension_numbers<[1], [0], [0], [1], [0, 0, 1, 1], [], []>} : vector<16x128xbf16>, vector<128x128xbf16>, vector<16x128xf32> -> vector<16x128xf32>
    %673 = vector.broadcast %664 : vector<1x128xf32> to vector<16x128xf32>
    %674 = arith.addf %672, %673 : vector<16x128xf32>
    %675 = vector.extract_strided_slice %674 {offsets = [0, 0], sizes = [16, 32], strides = [1, 1]} : vector<16x128xf32> to vector<16x32xf32>
    %676 = arith.addf %635, %675 : vector<16x32xf32>
    %c26 = arith.constant 26 : index
    %c0_184 = arith.constant 0 : index
    %677 = vector.load %arg6[%c26, %c0_184] : memref<38x128xf32, #tpu.memory_space<vmem>>, vector<1x32xf32>
    %c27 = arith.constant 27 : index
    %c0_185 = arith.constant 0 : index
    %678 = vector.load %arg6[%c27, %c0_185] : memref<38x128xf32, #tpu.memory_space<vmem>>, vector<1x32xf32>
    %cst_186 = arith.constant dense<0.000000e+00> : vector<16xf32>
    %679 = vector.multi_reduction <add>, %676, %cst_186 [1] : vector<16x32xf32> to vector<16xf32>
    %680 = vector.shape_cast %679 : vector<16xf32> to vector<16x1xf32>
    %cst_187 = arith.constant 3.200000e+01 : f32
    %681 = vector.broadcast %cst_187 : f32 to vector<16x1xf32>
    %682 = arith.divf %680, %681 : vector<16x1xf32>
    %683 = vector.broadcast %682 : vector<16x1xf32> to vector<16x32xf32>
    %684 = arith.subf %676, %683 : vector<16x32xf32>
    %685 = arith.mulf %684, %684 : vector<16x32xf32>
    %cst_188 = arith.constant dense<0.000000e+00> : vector<16xf32>
    %686 = vector.multi_reduction <add>, %685, %cst_188 [1] : vector<16x32xf32> to vector<16xf32>
    %687 = vector.shape_cast %686 : vector<16xf32> to vector<16x1xf32>
    %cst_189 = arith.constant 0.0322580636 : f32
    %688 = vector.broadcast %cst_189 : f32 to vector<16x1xf32>
    %689 = arith.mulf %687, %688 : vector<16x1xf32>
    %690 = math.sqrt %689 : vector<16x1xf32>
    %cst_190 = arith.constant 9.99999997E-7 : f32
    %691 = vector.broadcast %cst_190 : f32 to vector<16x1xf32>
    %692 = arith.addf %690, %691 : vector<16x1xf32>
    %693 = tpu.reciprocal %692 {approx = true} : vector<16x1xf32> -> vector<16x1xf32>
    %694 = vector.broadcast %682 : vector<16x1xf32> to vector<16x32xf32>
    %695 = arith.subf %676, %694 : vector<16x32xf32>
    %696 = vector.broadcast %677 : vector<1x32xf32> to vector<16x32xf32>
    %697 = arith.mulf %696, %695 : vector<16x32xf32>
    %698 = vector.broadcast %693 : vector<16x1xf32> to vector<16x32xf32>
    %699 = arith.mulf %697, %698 : vector<16x32xf32>
    %700 = vector.broadcast %678 : vector<1x32xf32> to vector<16x32xf32>
    %701 = arith.addf %699, %700 : vector<16x32xf32>
    %c608 = arith.constant 608 : index
    %c0_191 = arith.constant 0 : index
    %702 = vector.load %arg5[%c608, %c0_191] : memref<832x128xbf16, #tpu.memory_space<vmem>>, vector<32x128xbf16>
    %c28 = arith.constant 28 : index
    %c0_192 = arith.constant 0 : index
    %703 = vector.load %arg6[%c28, %c0_192] : memref<38x128xf32, #tpu.memory_space<vmem>>, vector<1x128xf32>
    %704 = arith.truncf %701 : vector<16x32xf32> to vector<16x32xbf16>
    %cst_193 = arith.constant dense<0.000000e+00> : vector<16x128xf32>
    %705 = tpu.matmul %704, %702, %cst_193 {dimension_numbers = #tpu.dot_dimension_numbers<[1], [0], [0], [1], [0, 0, 1, 1], [], []>} : vector<16x32xbf16>, vector<32x128xbf16>, vector<16x128xf32> -> vector<16x128xf32>
    %706 = vector.broadcast %703 : vector<1x128xf32> to vector<16x128xf32>
    %707 = arith.addf %705, %706 : vector<16x128xf32>
    %708 = vector.extract_strided_slice %707 {offsets = [0, 0], sizes = [16, 32], strides = [1, 1]} : vector<16x128xf32> to vector<16x32xf32>
    %709 = vector.extract_strided_slice %707 {offsets = [0, 32], sizes = [16, 32], strides = [1, 1]} : vector<16x128xf32> to vector<16x32xf32>
    %710 = vector.extract_strided_slice %707 {offsets = [0, 64], sizes = [16, 32], strides = [1, 1]} : vector<16x128xf32> to vector<16x32xf32>
    %711 = vector.extract_strided_slice %708 {offsets = [0, 0], sizes = [16, 8], strides = [1, 1]} : vector<16x32xf32> to vector<16x8xf32>
    %712 = arith.truncf %711 : vector<16x8xf32> to vector<16x8xbf16>
    %713 = vector.extract_strided_slice %709 {offsets = [0, 0], sizes = [16, 8], strides = [1, 1]} : vector<16x32xf32> to vector<16x8xf32>
    %714 = arith.truncf %713 : vector<16x8xf32> to vector<16x8xbf16>
    %cst_194 = arith.constant dense<0.000000e+00> : vector<16x16xf32>
    %715 = tpu.matmul %712, %714, %cst_194 {dimension_numbers = #tpu.dot_dimension_numbers<[1], [1], [0], [0], [0, 0, 1, 0], [], []>} : vector<16x8xbf16>, vector<16x8xbf16>, vector<16x16xf32> -> vector<16x16xf32>
    %cst_195 = arith.constant 0.353553385 : f32
    %716 = vector.broadcast %cst_195 : f32 to vector<16x16xf32>
    %717 = arith.mulf %715, %716 : vector<16x16xf32>
    %718 = arith.addf %717, %3 : vector<16x16xf32>
    %cst_196 = arith.constant dense<0xFF800000> : vector<16xf32>
    %719 = vector.multi_reduction <maximumf>, %718, %cst_196 [1] : vector<16x16xf32> to vector<16xf32>
    %720 = vector.shape_cast %719 : vector<16xf32> to vector<16x1xf32>
    %721 = vector.broadcast %720 : vector<16x1xf32> to vector<16x16xf32>
    %722 = arith.subf %718, %721 : vector<16x16xf32>
    %723 = math.exp %722 : vector<16x16xf32>
    %cst_197 = arith.constant dense<0.000000e+00> : vector<16xf32>
    %724 = vector.multi_reduction <add>, %723, %cst_197 [1] : vector<16x16xf32> to vector<16xf32>
    %725 = vector.shape_cast %724 : vector<16xf32> to vector<16x1xf32>
    %726 = tpu.reciprocal %725 {approx = true} : vector<16x1xf32> -> vector<16x1xf32>
    %727 = vector.broadcast %726 : vector<16x1xf32> to vector<16x16xf32>
    %728 = arith.mulf %723, %727 : vector<16x16xf32>
    %729 = vector.extract_strided_slice %710 {offsets = [0, 0], sizes = [16, 8], strides = [1, 1]} : vector<16x32xf32> to vector<16x8xf32>
    %730 = arith.truncf %729 : vector<16x8xf32> to vector<16x8xbf16>
    %731 = arith.truncf %728 : vector<16x16xf32> to vector<16x16xbf16>
    %cst_198 = arith.constant dense<0.000000e+00> : vector<16x8xf32>
    %732 = tpu.matmul %731, %730, %cst_198 {dimension_numbers = #tpu.dot_dimension_numbers<[1], [0], [0], [1], [0, 0, 1, 1], [], []>} : vector<16x16xbf16>, vector<16x8xbf16>, vector<16x8xf32> -> vector<16x8xf32>
    %733 = vector.extract_strided_slice %708 {offsets = [0, 8], sizes = [16, 8], strides = [1, 1]} : vector<16x32xf32> to vector<16x8xf32>
    %734 = arith.truncf %733 : vector<16x8xf32> to vector<16x8xbf16>
    %735 = vector.extract_strided_slice %709 {offsets = [0, 8], sizes = [16, 8], strides = [1, 1]} : vector<16x32xf32> to vector<16x8xf32>
    %736 = arith.truncf %735 : vector<16x8xf32> to vector<16x8xbf16>
    %cst_199 = arith.constant dense<0.000000e+00> : vector<16x16xf32>
    %737 = tpu.matmul %734, %736, %cst_199 {dimension_numbers = #tpu.dot_dimension_numbers<[1], [1], [0], [0], [0, 0, 1, 0], [], []>} : vector<16x8xbf16>, vector<16x8xbf16>, vector<16x16xf32> -> vector<16x16xf32>
    %cst_200 = arith.constant 0.353553385 : f32
    %738 = vector.broadcast %cst_200 : f32 to vector<16x16xf32>
    %739 = arith.mulf %737, %738 : vector<16x16xf32>
    %740 = arith.addf %739, %3 : vector<16x16xf32>
    %cst_201 = arith.constant dense<0xFF800000> : vector<16xf32>
    %741 = vector.multi_reduction <maximumf>, %740, %cst_201 [1] : vector<16x16xf32> to vector<16xf32>
    %742 = vector.shape_cast %741 : vector<16xf32> to vector<16x1xf32>
    %743 = vector.broadcast %742 : vector<16x1xf32> to vector<16x16xf32>
    %744 = arith.subf %740, %743 : vector<16x16xf32>
    %745 = math.exp %744 : vector<16x16xf32>
    %cst_202 = arith.constant dense<0.000000e+00> : vector<16xf32>
    %746 = vector.multi_reduction <add>, %745, %cst_202 [1] : vector<16x16xf32> to vector<16xf32>
    %747 = vector.shape_cast %746 : vector<16xf32> to vector<16x1xf32>
    %748 = tpu.reciprocal %747 {approx = true} : vector<16x1xf32> -> vector<16x1xf32>
    %749 = vector.broadcast %748 : vector<16x1xf32> to vector<16x16xf32>
    %750 = arith.mulf %745, %749 : vector<16x16xf32>
    %751 = vector.extract_strided_slice %710 {offsets = [0, 8], sizes = [16, 8], strides = [1, 1]} : vector<16x32xf32> to vector<16x8xf32>
    %752 = arith.truncf %751 : vector<16x8xf32> to vector<16x8xbf16>
    %753 = arith.truncf %750 : vector<16x16xf32> to vector<16x16xbf16>
    %cst_203 = arith.constant dense<0.000000e+00> : vector<16x8xf32>
    %754 = tpu.matmul %753, %752, %cst_203 {dimension_numbers = #tpu.dot_dimension_numbers<[1], [0], [0], [1], [0, 0, 1, 1], [], []>} : vector<16x16xbf16>, vector<16x8xbf16>, vector<16x8xf32> -> vector<16x8xf32>
    %755 = vector.extract_strided_slice %708 {offsets = [0, 16], sizes = [16, 8], strides = [1, 1]} : vector<16x32xf32> to vector<16x8xf32>
    %756 = arith.truncf %755 : vector<16x8xf32> to vector<16x8xbf16>
    %757 = vector.extract_strided_slice %709 {offsets = [0, 16], sizes = [16, 8], strides = [1, 1]} : vector<16x32xf32> to vector<16x8xf32>
    %758 = arith.truncf %757 : vector<16x8xf32> to vector<16x8xbf16>
    %cst_204 = arith.constant dense<0.000000e+00> : vector<16x16xf32>
    %759 = tpu.matmul %756, %758, %cst_204 {dimension_numbers = #tpu.dot_dimension_numbers<[1], [1], [0], [0], [0, 0, 1, 0], [], []>} : vector<16x8xbf16>, vector<16x8xbf16>, vector<16x16xf32> -> vector<16x16xf32>
    %cst_205 = arith.constant 0.353553385 : f32
    %760 = vector.broadcast %cst_205 : f32 to vector<16x16xf32>
    %761 = arith.mulf %759, %760 : vector<16x16xf32>
    %762 = arith.addf %761, %3 : vector<16x16xf32>
    %cst_206 = arith.constant dense<0xFF800000> : vector<16xf32>
    %763 = vector.multi_reduction <maximumf>, %762, %cst_206 [1] : vector<16x16xf32> to vector<16xf32>
    %764 = vector.shape_cast %763 : vector<16xf32> to vector<16x1xf32>
    %765 = vector.broadcast %764 : vector<16x1xf32> to vector<16x16xf32>
    %766 = arith.subf %762, %765 : vector<16x16xf32>
    %767 = math.exp %766 : vector<16x16xf32>
    %cst_207 = arith.constant dense<0.000000e+00> : vector<16xf32>
    %768 = vector.multi_reduction <add>, %767, %cst_207 [1] : vector<16x16xf32> to vector<16xf32>
    %769 = vector.shape_cast %768 : vector<16xf32> to vector<16x1xf32>
    %770 = tpu.reciprocal %769 {approx = true} : vector<16x1xf32> -> vector<16x1xf32>
    %771 = vector.broadcast %770 : vector<16x1xf32> to vector<16x16xf32>
    %772 = arith.mulf %767, %771 : vector<16x16xf32>
    %773 = vector.extract_strided_slice %710 {offsets = [0, 16], sizes = [16, 8], strides = [1, 1]} : vector<16x32xf32> to vector<16x8xf32>
    %774 = arith.truncf %773 : vector<16x8xf32> to vector<16x8xbf16>
    %775 = arith.truncf %772 : vector<16x16xf32> to vector<16x16xbf16>
    %cst_208 = arith.constant dense<0.000000e+00> : vector<16x8xf32>
    %776 = tpu.matmul %775, %774, %cst_208 {dimension_numbers = #tpu.dot_dimension_numbers<[1], [0], [0], [1], [0, 0, 1, 1], [], []>} : vector<16x16xbf16>, vector<16x8xbf16>, vector<16x8xf32> -> vector<16x8xf32>
    %777 = vector.extract_strided_slice %708 {offsets = [0, 24], sizes = [16, 8], strides = [1, 1]} : vector<16x32xf32> to vector<16x8xf32>
    %778 = arith.truncf %777 : vector<16x8xf32> to vector<16x8xbf16>
    %779 = vector.extract_strided_slice %709 {offsets = [0, 24], sizes = [16, 8], strides = [1, 1]} : vector<16x32xf32> to vector<16x8xf32>
    %780 = arith.truncf %779 : vector<16x8xf32> to vector<16x8xbf16>
    %cst_209 = arith.constant dense<0.000000e+00> : vector<16x16xf32>
    %781 = tpu.matmul %778, %780, %cst_209 {dimension_numbers = #tpu.dot_dimension_numbers<[1], [1], [0], [0], [0, 0, 1, 0], [], []>} : vector<16x8xbf16>, vector<16x8xbf16>, vector<16x16xf32> -> vector<16x16xf32>
    %cst_210 = arith.constant 0.353553385 : f32
    %782 = vector.broadcast %cst_210 : f32 to vector<16x16xf32>
    %783 = arith.mulf %781, %782 : vector<16x16xf32>
    %784 = arith.addf %783, %3 : vector<16x16xf32>
    %cst_211 = arith.constant dense<0xFF800000> : vector<16xf32>
    %785 = vector.multi_reduction <maximumf>, %784, %cst_211 [1] : vector<16x16xf32> to vector<16xf32>
    %786 = vector.shape_cast %785 : vector<16xf32> to vector<16x1xf32>
    %787 = vector.broadcast %786 : vector<16x1xf32> to vector<16x16xf32>
    %788 = arith.subf %784, %787 : vector<16x16xf32>
    %789 = math.exp %788 : vector<16x16xf32>
    %cst_212 = arith.constant dense<0.000000e+00> : vector<16xf32>
    %790 = vector.multi_reduction <add>, %789, %cst_212 [1] : vector<16x16xf32> to vector<16xf32>
    %791 = vector.shape_cast %790 : vector<16xf32> to vector<16x1xf32>
    %792 = tpu.reciprocal %791 {approx = true} : vector<16x1xf32> -> vector<16x1xf32>
    %793 = vector.broadcast %792 : vector<16x1xf32> to vector<16x16xf32>
    %794 = arith.mulf %789, %793 : vector<16x16xf32>
    %795 = vector.extract_strided_slice %710 {offsets = [0, 24], sizes = [16, 8], strides = [1, 1]} : vector<16x32xf32> to vector<16x8xf32>
    %796 = arith.truncf %795 : vector<16x8xf32> to vector<16x8xbf16>
    %797 = arith.truncf %794 : vector<16x16xf32> to vector<16x16xbf16>
    %cst_213 = arith.constant dense<0.000000e+00> : vector<16x8xf32>
    %798 = tpu.matmul %797, %796, %cst_213 {dimension_numbers = #tpu.dot_dimension_numbers<[1], [0], [0], [1], [0, 0, 1, 1], [], []>} : vector<16x16xbf16>, vector<16x8xbf16>, vector<16x8xf32> -> vector<16x8xf32>
    %799 = tpu.concatenate %732, %754, %776, %798 in 1 : vector<16x8xf32>, vector<16x8xf32>, vector<16x8xf32>, vector<16x8xf32> -> vector<16x32xf32>
    %800 = vector.extract_strided_slice %702 {offsets = [0, 96], sizes = [32, 32], strides = [1, 1]} : vector<32x128xbf16> to vector<32x32xbf16>
    %801 = vector.extract_strided_slice %703 {offsets = [0, 96], sizes = [1, 32], strides = [1, 1]} : vector<1x128xf32> to vector<1x32xf32>
    %802 = arith.truncf %799 : vector<16x32xf32> to vector<16x32xbf16>
    %cst_214 = arith.constant dense<0.000000e+00> : vector<16x32xf32>
    %803 = tpu.matmul %802, %800, %cst_214 {dimension_numbers = #tpu.dot_dimension_numbers<[1], [0], [0], [1], [0, 0, 1, 1], [], []>} : vector<16x32xbf16>, vector<32x32xbf16>, vector<16x32xf32> -> vector<16x32xf32>
    %804 = vector.broadcast %801 : vector<1x32xf32> to vector<16x32xf32>
    %805 = arith.addf %803, %804 : vector<16x32xf32>
    %806 = arith.addf %676, %805 : vector<16x32xf32>
    %c29 = arith.constant 29 : index
    %c0_215 = arith.constant 0 : index
    %807 = vector.load %arg6[%c29, %c0_215] : memref<38x128xf32, #tpu.memory_space<vmem>>, vector<1x32xf32>
    %c30 = arith.constant 30 : index
    %c0_216 = arith.constant 0 : index
    %808 = vector.load %arg6[%c30, %c0_216] : memref<38x128xf32, #tpu.memory_space<vmem>>, vector<1x32xf32>
    %cst_217 = arith.constant dense<0.000000e+00> : vector<16xf32>
    %809 = vector.multi_reduction <add>, %806, %cst_217 [1] : vector<16x32xf32> to vector<16xf32>
    %810 = vector.shape_cast %809 : vector<16xf32> to vector<16x1xf32>
    %cst_218 = arith.constant 3.200000e+01 : f32
    %811 = vector.broadcast %cst_218 : f32 to vector<16x1xf32>
    %812 = arith.divf %810, %811 : vector<16x1xf32>
    %813 = vector.broadcast %812 : vector<16x1xf32> to vector<16x32xf32>
    %814 = arith.subf %806, %813 : vector<16x32xf32>
    %815 = arith.mulf %814, %814 : vector<16x32xf32>
    %cst_219 = arith.constant dense<0.000000e+00> : vector<16xf32>
    %816 = vector.multi_reduction <add>, %815, %cst_219 [1] : vector<16x32xf32> to vector<16xf32>
    %817 = vector.shape_cast %816 : vector<16xf32> to vector<16x1xf32>
    %cst_220 = arith.constant 0.0322580636 : f32
    %818 = vector.broadcast %cst_220 : f32 to vector<16x1xf32>
    %819 = arith.mulf %817, %818 : vector<16x1xf32>
    %820 = math.sqrt %819 : vector<16x1xf32>
    %cst_221 = arith.constant 9.99999997E-7 : f32
    %821 = vector.broadcast %cst_221 : f32 to vector<16x1xf32>
    %822 = arith.addf %820, %821 : vector<16x1xf32>
    %823 = tpu.reciprocal %822 {approx = true} : vector<16x1xf32> -> vector<16x1xf32>
    %824 = vector.broadcast %812 : vector<16x1xf32> to vector<16x32xf32>
    %825 = arith.subf %806, %824 : vector<16x32xf32>
    %826 = vector.broadcast %807 : vector<1x32xf32> to vector<16x32xf32>
    %827 = arith.mulf %826, %825 : vector<16x32xf32>
    %828 = vector.broadcast %823 : vector<16x1xf32> to vector<16x32xf32>
    %829 = arith.mulf %827, %828 : vector<16x32xf32>
    %830 = vector.broadcast %808 : vector<1x32xf32> to vector<16x32xf32>
    %831 = arith.addf %829, %830 : vector<16x32xf32>
    %c640 = arith.constant 640 : index
    %c0_222 = arith.constant 0 : index
    %832 = vector.load %arg5[%c640, %c0_222] : memref<832x128xbf16, #tpu.memory_space<vmem>>, vector<32x128xbf16>
    %c31 = arith.constant 31 : index
    %c0_223 = arith.constant 0 : index
    %833 = vector.load %arg6[%c31, %c0_223] : memref<38x128xf32, #tpu.memory_space<vmem>>, vector<1x128xf32>
    %834 = arith.truncf %831 : vector<16x32xf32> to vector<16x32xbf16>
    %cst_224 = arith.constant dense<0.000000e+00> : vector<16x128xf32>
    %835 = tpu.matmul %834, %832, %cst_224 {dimension_numbers = #tpu.dot_dimension_numbers<[1], [0], [0], [1], [0, 0, 1, 1], [], []>} : vector<16x32xbf16>, vector<32x128xbf16>, vector<16x128xf32> -> vector<16x128xf32>
    %836 = vector.broadcast %833 : vector<1x128xf32> to vector<16x128xf32>
    %837 = arith.addf %835, %836 : vector<16x128xf32>
    %838 = arith.truncf %371 : vector<16x32xf32> to vector<16x32xbf16>
    %cst_225 = arith.constant dense<0.000000e+00> : vector<16x128xf32>
    %839 = tpu.matmul %838, %832, %cst_225 {dimension_numbers = #tpu.dot_dimension_numbers<[1], [0], [0], [1], [0, 0, 1, 1], [], []>} : vector<16x32xbf16>, vector<32x128xbf16>, vector<16x128xf32> -> vector<16x128xf32>
    %840 = vector.broadcast %833 : vector<1x128xf32> to vector<16x128xf32>
    %841 = arith.addf %839, %840 : vector<16x128xf32>
    %842 = vector.extract_strided_slice %837 {offsets = [0, 0], sizes = [16, 32], strides = [1, 1]} : vector<16x128xf32> to vector<16x32xf32>
    %843 = vector.extract_strided_slice %841 {offsets = [0, 32], sizes = [16, 32], strides = [1, 1]} : vector<16x128xf32> to vector<16x32xf32>
    %844 = vector.extract_strided_slice %841 {offsets = [0, 64], sizes = [16, 32], strides = [1, 1]} : vector<16x128xf32> to vector<16x32xf32>
    %845 = vector.extract_strided_slice %842 {offsets = [0, 0], sizes = [16, 8], strides = [1, 1]} : vector<16x32xf32> to vector<16x8xf32>
    %846 = arith.truncf %845 : vector<16x8xf32> to vector<16x8xbf16>
    %847 = vector.extract_strided_slice %843 {offsets = [0, 0], sizes = [16, 8], strides = [1, 1]} : vector<16x32xf32> to vector<16x8xf32>
    %848 = arith.truncf %847 : vector<16x8xf32> to vector<16x8xbf16>
    %cst_226 = arith.constant dense<0.000000e+00> : vector<16x16xf32>
    %849 = tpu.matmul %846, %848, %cst_226 {dimension_numbers = #tpu.dot_dimension_numbers<[1], [1], [0], [0], [0, 0, 1, 0], [], []>} : vector<16x8xbf16>, vector<16x8xbf16>, vector<16x16xf32> -> vector<16x16xf32>
    %cst_227 = arith.constant 0.353553385 : f32
    %850 = vector.broadcast %cst_227 : f32 to vector<16x16xf32>
    %851 = arith.mulf %849, %850 : vector<16x16xf32>
    %852 = arith.addf %851, %4 : vector<16x16xf32>
    %cst_228 = arith.constant dense<0xFF800000> : vector<16xf32>
    %853 = vector.multi_reduction <maximumf>, %852, %cst_228 [1] : vector<16x16xf32> to vector<16xf32>
    %854 = vector.shape_cast %853 : vector<16xf32> to vector<16x1xf32>
    %855 = vector.broadcast %854 : vector<16x1xf32> to vector<16x16xf32>
    %856 = arith.subf %852, %855 : vector<16x16xf32>
    %857 = math.exp %856 : vector<16x16xf32>
    %cst_229 = arith.constant dense<0.000000e+00> : vector<16xf32>
    %858 = vector.multi_reduction <add>, %857, %cst_229 [1] : vector<16x16xf32> to vector<16xf32>
    %859 = vector.shape_cast %858 : vector<16xf32> to vector<16x1xf32>
    %860 = tpu.reciprocal %859 {approx = true} : vector<16x1xf32> -> vector<16x1xf32>
    %861 = vector.broadcast %860 : vector<16x1xf32> to vector<16x16xf32>
    %862 = arith.mulf %857, %861 : vector<16x16xf32>
    %863 = vector.extract_strided_slice %844 {offsets = [0, 0], sizes = [16, 8], strides = [1, 1]} : vector<16x32xf32> to vector<16x8xf32>
    %864 = arith.truncf %863 : vector<16x8xf32> to vector<16x8xbf16>
    %865 = arith.truncf %862 : vector<16x16xf32> to vector<16x16xbf16>
    %cst_230 = arith.constant dense<0.000000e+00> : vector<16x8xf32>
    %866 = tpu.matmul %865, %864, %cst_230 {dimension_numbers = #tpu.dot_dimension_numbers<[1], [0], [0], [1], [0, 0, 1, 1], [], []>} : vector<16x16xbf16>, vector<16x8xbf16>, vector<16x8xf32> -> vector<16x8xf32>
    %867 = vector.extract_strided_slice %842 {offsets = [0, 8], sizes = [16, 8], strides = [1, 1]} : vector<16x32xf32> to vector<16x8xf32>
    %868 = arith.truncf %867 : vector<16x8xf32> to vector<16x8xbf16>
    %869 = vector.extract_strided_slice %843 {offsets = [0, 8], sizes = [16, 8], strides = [1, 1]} : vector<16x32xf32> to vector<16x8xf32>
    %870 = arith.truncf %869 : vector<16x8xf32> to vector<16x8xbf16>
    %cst_231 = arith.constant dense<0.000000e+00> : vector<16x16xf32>
    %871 = tpu.matmul %868, %870, %cst_231 {dimension_numbers = #tpu.dot_dimension_numbers<[1], [1], [0], [0], [0, 0, 1, 0], [], []>} : vector<16x8xbf16>, vector<16x8xbf16>, vector<16x16xf32> -> vector<16x16xf32>
    %cst_232 = arith.constant 0.353553385 : f32
    %872 = vector.broadcast %cst_232 : f32 to vector<16x16xf32>
    %873 = arith.mulf %871, %872 : vector<16x16xf32>
    %874 = arith.addf %873, %4 : vector<16x16xf32>
    %cst_233 = arith.constant dense<0xFF800000> : vector<16xf32>
    %875 = vector.multi_reduction <maximumf>, %874, %cst_233 [1] : vector<16x16xf32> to vector<16xf32>
    %876 = vector.shape_cast %875 : vector<16xf32> to vector<16x1xf32>
    %877 = vector.broadcast %876 : vector<16x1xf32> to vector<16x16xf32>
    %878 = arith.subf %874, %877 : vector<16x16xf32>
    %879 = math.exp %878 : vector<16x16xf32>
    %cst_234 = arith.constant dense<0.000000e+00> : vector<16xf32>
    %880 = vector.multi_reduction <add>, %879, %cst_234 [1] : vector<16x16xf32> to vector<16xf32>
    %881 = vector.shape_cast %880 : vector<16xf32> to vector<16x1xf32>
    %882 = tpu.reciprocal %881 {approx = true} : vector<16x1xf32> -> vector<16x1xf32>
    %883 = vector.broadcast %882 : vector<16x1xf32> to vector<16x16xf32>
    %884 = arith.mulf %879, %883 : vector<16x16xf32>
    %885 = vector.extract_strided_slice %844 {offsets = [0, 8], sizes = [16, 8], strides = [1, 1]} : vector<16x32xf32> to vector<16x8xf32>
    %886 = arith.truncf %885 : vector<16x8xf32> to vector<16x8xbf16>
    %887 = arith.truncf %884 : vector<16x16xf32> to vector<16x16xbf16>
    %cst_235 = arith.constant dense<0.000000e+00> : vector<16x8xf32>
    %888 = tpu.matmul %887, %886, %cst_235 {dimension_numbers = #tpu.dot_dimension_numbers<[1], [0], [0], [1], [0, 0, 1, 1], [], []>} : vector<16x16xbf16>, vector<16x8xbf16>, vector<16x8xf32> -> vector<16x8xf32>
    %889 = vector.extract_strided_slice %842 {offsets = [0, 16], sizes = [16, 8], strides = [1, 1]} : vector<16x32xf32> to vector<16x8xf32>
    %890 = arith.truncf %889 : vector<16x8xf32> to vector<16x8xbf16>
    %891 = vector.extract_strided_slice %843 {offsets = [0, 16], sizes = [16, 8], strides = [1, 1]} : vector<16x32xf32> to vector<16x8xf32>
    %892 = arith.truncf %891 : vector<16x8xf32> to vector<16x8xbf16>
    %cst_236 = arith.constant dense<0.000000e+00> : vector<16x16xf32>
    %893 = tpu.matmul %890, %892, %cst_236 {dimension_numbers = #tpu.dot_dimension_numbers<[1], [1], [0], [0], [0, 0, 1, 0], [], []>} : vector<16x8xbf16>, vector<16x8xbf16>, vector<16x16xf32> -> vector<16x16xf32>
    %cst_237 = arith.constant 0.353553385 : f32
    %894 = vector.broadcast %cst_237 : f32 to vector<16x16xf32>
    %895 = arith.mulf %893, %894 : vector<16x16xf32>
    %896 = arith.addf %895, %4 : vector<16x16xf32>
    %cst_238 = arith.constant dense<0xFF800000> : vector<16xf32>
    %897 = vector.multi_reduction <maximumf>, %896, %cst_238 [1] : vector<16x16xf32> to vector<16xf32>
    %898 = vector.shape_cast %897 : vector<16xf32> to vector<16x1xf32>
    %899 = vector.broadcast %898 : vector<16x1xf32> to vector<16x16xf32>
    %900 = arith.subf %896, %899 : vector<16x16xf32>
    %901 = math.exp %900 : vector<16x16xf32>
    %cst_239 = arith.constant dense<0.000000e+00> : vector<16xf32>
    %902 = vector.multi_reduction <add>, %901, %cst_239 [1] : vector<16x16xf32> to vector<16xf32>
    %903 = vector.shape_cast %902 : vector<16xf32> to vector<16x1xf32>
    %904 = tpu.reciprocal %903 {approx = true} : vector<16x1xf32> -> vector<16x1xf32>
    %905 = vector.broadcast %904 : vector<16x1xf32> to vector<16x16xf32>
    %906 = arith.mulf %901, %905 : vector<16x16xf32>
    %907 = vector.extract_strided_slice %844 {offsets = [0, 16], sizes = [16, 8], strides = [1, 1]} : vector<16x32xf32> to vector<16x8xf32>
    %908 = arith.truncf %907 : vector<16x8xf32> to vector<16x8xbf16>
    %909 = arith.truncf %906 : vector<16x16xf32> to vector<16x16xbf16>
    %cst_240 = arith.constant dense<0.000000e+00> : vector<16x8xf32>
    %910 = tpu.matmul %909, %908, %cst_240 {dimension_numbers = #tpu.dot_dimension_numbers<[1], [0], [0], [1], [0, 0, 1, 1], [], []>} : vector<16x16xbf16>, vector<16x8xbf16>, vector<16x8xf32> -> vector<16x8xf32>
    %911 = vector.extract_strided_slice %842 {offsets = [0, 24], sizes = [16, 8], strides = [1, 1]} : vector<16x32xf32> to vector<16x8xf32>
    %912 = arith.truncf %911 : vector<16x8xf32> to vector<16x8xbf16>
    %913 = vector.extract_strided_slice %843 {offsets = [0, 24], sizes = [16, 8], strides = [1, 1]} : vector<16x32xf32> to vector<16x8xf32>
    %914 = arith.truncf %913 : vector<16x8xf32> to vector<16x8xbf16>
    %cst_241 = arith.constant dense<0.000000e+00> : vector<16x16xf32>
    %915 = tpu.matmul %912, %914, %cst_241 {dimension_numbers = #tpu.dot_dimension_numbers<[1], [1], [0], [0], [0, 0, 1, 0], [], []>} : vector<16x8xbf16>, vector<16x8xbf16>, vector<16x16xf32> -> vector<16x16xf32>
    %cst_242 = arith.constant 0.353553385 : f32
    %916 = vector.broadcast %cst_242 : f32 to vector<16x16xf32>
    %917 = arith.mulf %915, %916 : vector<16x16xf32>
    %918 = arith.addf %917, %4 : vector<16x16xf32>
    %cst_243 = arith.constant dense<0xFF800000> : vector<16xf32>
    %919 = vector.multi_reduction <maximumf>, %918, %cst_243 [1] : vector<16x16xf32> to vector<16xf32>
    %920 = vector.shape_cast %919 : vector<16xf32> to vector<16x1xf32>
    %921 = vector.broadcast %920 : vector<16x1xf32> to vector<16x16xf32>
    %922 = arith.subf %918, %921 : vector<16x16xf32>
    %923 = math.exp %922 : vector<16x16xf32>
    %cst_244 = arith.constant dense<0.000000e+00> : vector<16xf32>
    %924 = vector.multi_reduction <add>, %923, %cst_244 [1] : vector<16x16xf32> to vector<16xf32>
    %925 = vector.shape_cast %924 : vector<16xf32> to vector<16x1xf32>
    %926 = tpu.reciprocal %925 {approx = true} : vector<16x1xf32> -> vector<16x1xf32>
    %927 = vector.broadcast %926 : vector<16x1xf32> to vector<16x16xf32>
    %928 = arith.mulf %923, %927 : vector<16x16xf32>
    %929 = vector.extract_strided_slice %844 {offsets = [0, 24], sizes = [16, 8], strides = [1, 1]} : vector<16x32xf32> to vector<16x8xf32>
    %930 = arith.truncf %929 : vector<16x8xf32> to vector<16x8xbf16>
    %931 = arith.truncf %928 : vector<16x16xf32> to vector<16x16xbf16>
    %cst_245 = arith.constant dense<0.000000e+00> : vector<16x8xf32>
    %932 = tpu.matmul %931, %930, %cst_245 {dimension_numbers = #tpu.dot_dimension_numbers<[1], [0], [0], [1], [0, 0, 1, 1], [], []>} : vector<16x16xbf16>, vector<16x8xbf16>, vector<16x8xf32> -> vector<16x8xf32>
    %933 = tpu.concatenate %866, %888, %910, %932 in 1 : vector<16x8xf32>, vector<16x8xf32>, vector<16x8xf32>, vector<16x8xf32> -> vector<16x32xf32>
    %934 = vector.extract_strided_slice %832 {offsets = [0, 96], sizes = [32, 32], strides = [1, 1]} : vector<32x128xbf16> to vector<32x32xbf16>
    %935 = vector.extract_strided_slice %833 {offsets = [0, 96], sizes = [1, 32], strides = [1, 1]} : vector<1x128xf32> to vector<1x32xf32>
    %936 = arith.truncf %933 : vector<16x32xf32> to vector<16x32xbf16>
    %cst_246 = arith.constant dense<0.000000e+00> : vector<16x32xf32>
    %937 = tpu.matmul %936, %934, %cst_246 {dimension_numbers = #tpu.dot_dimension_numbers<[1], [0], [0], [1], [0, 0, 1, 1], [], []>} : vector<16x32xbf16>, vector<32x32xbf16>, vector<16x32xf32> -> vector<16x32xf32>
    %938 = vector.broadcast %935 : vector<1x32xf32> to vector<16x32xf32>
    %939 = arith.addf %937, %938 : vector<16x32xf32>
    %940 = arith.addf %806, %939 : vector<16x32xf32>
    %c32_247 = arith.constant 32 : index
    %c0_248 = arith.constant 0 : index
    %941 = vector.load %arg6[%c32_247, %c0_248] : memref<38x128xf32, #tpu.memory_space<vmem>>, vector<1x32xf32>
    %c33 = arith.constant 33 : index
    %c0_249 = arith.constant 0 : index
    %942 = vector.load %arg6[%c33, %c0_249] : memref<38x128xf32, #tpu.memory_space<vmem>>, vector<1x32xf32>
    %cst_250 = arith.constant dense<0.000000e+00> : vector<16xf32>
    %943 = vector.multi_reduction <add>, %940, %cst_250 [1] : vector<16x32xf32> to vector<16xf32>
    %944 = vector.shape_cast %943 : vector<16xf32> to vector<16x1xf32>
    %cst_251 = arith.constant 3.200000e+01 : f32
    %945 = vector.broadcast %cst_251 : f32 to vector<16x1xf32>
    %946 = arith.divf %944, %945 : vector<16x1xf32>
    %947 = vector.broadcast %946 : vector<16x1xf32> to vector<16x32xf32>
    %948 = arith.subf %940, %947 : vector<16x32xf32>
    %949 = arith.mulf %948, %948 : vector<16x32xf32>
    %cst_252 = arith.constant dense<0.000000e+00> : vector<16xf32>
    %950 = vector.multi_reduction <add>, %949, %cst_252 [1] : vector<16x32xf32> to vector<16xf32>
    %951 = vector.shape_cast %950 : vector<16xf32> to vector<16x1xf32>
    %cst_253 = arith.constant 0.0322580636 : f32
    %952 = vector.broadcast %cst_253 : f32 to vector<16x1xf32>
    %953 = arith.mulf %951, %952 : vector<16x1xf32>
    %954 = math.sqrt %953 : vector<16x1xf32>
    %cst_254 = arith.constant 9.99999997E-7 : f32
    %955 = vector.broadcast %cst_254 : f32 to vector<16x1xf32>
    %956 = arith.addf %954, %955 : vector<16x1xf32>
    %957 = tpu.reciprocal %956 {approx = true} : vector<16x1xf32> -> vector<16x1xf32>
    %958 = vector.broadcast %946 : vector<16x1xf32> to vector<16x32xf32>
    %959 = arith.subf %940, %958 : vector<16x32xf32>
    %960 = vector.broadcast %941 : vector<1x32xf32> to vector<16x32xf32>
    %961 = arith.mulf %960, %959 : vector<16x32xf32>
    %962 = vector.broadcast %957 : vector<16x1xf32> to vector<16x32xf32>
    %963 = arith.mulf %961, %962 : vector<16x32xf32>
    %964 = vector.broadcast %942 : vector<1x32xf32> to vector<16x32xf32>
    %965 = arith.addf %963, %964 : vector<16x32xf32>
    %c672 = arith.constant 672 : index
    %c0_255 = arith.constant 0 : index
    %966 = vector.load %arg5[%c672, %c0_255] : memref<832x128xbf16, #tpu.memory_space<vmem>>, vector<32x128xbf16>
    %c34 = arith.constant 34 : index
    %c0_256 = arith.constant 0 : index
    %967 = vector.load %arg6[%c34, %c0_256] : memref<38x128xf32, #tpu.memory_space<vmem>>, vector<1x128xf32>
    %c704 = arith.constant 704 : index
    %c0_257 = arith.constant 0 : index
    %968 = vector.load %arg5[%c704, %c0_257] : memref<832x128xbf16, #tpu.memory_space<vmem>>, vector<128x128xbf16>
    %c35 = arith.constant 35 : index
    %c0_258 = arith.constant 0 : index
    %969 = vector.load %arg6[%c35, %c0_258] : memref<38x128xf32, #tpu.memory_space<vmem>>, vector<1x128xf32>
    %970 = arith.truncf %965 : vector<16x32xf32> to vector<16x32xbf16>
    %cst_259 = arith.constant dense<0.000000e+00> : vector<16x128xf32>
    %971 = tpu.matmul %970, %966, %cst_259 {dimension_numbers = #tpu.dot_dimension_numbers<[1], [0], [0], [1], [0, 0, 1, 1], [], []>} : vector<16x32xbf16>, vector<32x128xbf16>, vector<16x128xf32> -> vector<16x128xf32>
    %972 = vector.broadcast %967 : vector<1x128xf32> to vector<16x128xf32>
    %973 = arith.addf %971, %972 : vector<16x128xf32>
    %cst_260 = arith.constant 0.000000e+00 : f32
    %974 = vector.broadcast %cst_260 : f32 to vector<16x128xf32>
    %975 = arith.maximumf %973, %974 : vector<16x128xf32>
    %976 = arith.truncf %975 : vector<16x128xf32> to vector<16x128xbf16>
    %cst_261 = arith.constant dense<0.000000e+00> : vector<16x128xf32>
    %977 = tpu.matmul %976, %968, %cst_261 {dimension_numbers = #tpu.dot_dimension_numbers<[1], [0], [0], [1], [0, 0, 1, 1], [], []>} : vector<16x128xbf16>, vector<128x128xbf16>, vector<16x128xf32> -> vector<16x128xf32>
    %978 = vector.broadcast %969 : vector<1x128xf32> to vector<16x128xf32>
    %979 = arith.addf %977, %978 : vector<16x128xf32>
    %980 = vector.extract_strided_slice %979 {offsets = [0, 0], sizes = [16, 32], strides = [1, 1]} : vector<16x128xf32> to vector<16x32xf32>
    %981 = arith.addf %940, %980 : vector<16x32xf32>
    %c36 = arith.constant 36 : index
    %c0_262 = arith.constant 0 : index
    %982 = vector.load %arg6[%c36, %c0_262] : memref<38x128xf32, #tpu.memory_space<vmem>>, vector<1x32xf32>
    %c37 = arith.constant 37 : index
    %c0_263 = arith.constant 0 : index
    %983 = vector.load %arg6[%c37, %c0_263] : memref<38x128xf32, #tpu.memory_space<vmem>>, vector<1x32xf32>
    %cst_264 = arith.constant dense<0.000000e+00> : vector<16xf32>
    %984 = vector.multi_reduction <add>, %981, %cst_264 [1] : vector<16x32xf32> to vector<16xf32>
    %985 = vector.shape_cast %984 : vector<16xf32> to vector<16x1xf32>
    %cst_265 = arith.constant 3.200000e+01 : f32
    %986 = vector.broadcast %cst_265 : f32 to vector<16x1xf32>
    %987 = arith.divf %985, %986 : vector<16x1xf32>
    %988 = vector.broadcast %987 : vector<16x1xf32> to vector<16x32xf32>
    %989 = arith.subf %981, %988 : vector<16x32xf32>
    %990 = arith.mulf %989, %989 : vector<16x32xf32>
    %cst_266 = arith.constant dense<0.000000e+00> : vector<16xf32>
    %991 = vector.multi_reduction <add>, %990, %cst_266 [1] : vector<16x32xf32> to vector<16xf32>
    %992 = vector.shape_cast %991 : vector<16xf32> to vector<16x1xf32>
    %cst_267 = arith.constant 0.0322580636 : f32
    %993 = vector.broadcast %cst_267 : f32 to vector<16x1xf32>
    %994 = arith.mulf %992, %993 : vector<16x1xf32>
    %995 = math.sqrt %994 : vector<16x1xf32>
    %cst_268 = arith.constant 9.99999997E-7 : f32
    %996 = vector.broadcast %cst_268 : f32 to vector<16x1xf32>
    %997 = arith.addf %995, %996 : vector<16x1xf32>
    %998 = tpu.reciprocal %997 {approx = true} : vector<16x1xf32> -> vector<16x1xf32>
    %999 = vector.broadcast %987 : vector<16x1xf32> to vector<16x32xf32>
    %1000 = arith.subf %981, %999 : vector<16x32xf32>
    %1001 = vector.broadcast %982 : vector<1x32xf32> to vector<16x32xf32>
    %1002 = arith.mulf %1001, %1000 : vector<16x32xf32>
    %1003 = vector.broadcast %998 : vector<16x1xf32> to vector<16x32xf32>
    %1004 = arith.mulf %1002, %1003 : vector<16x32xf32>
    %1005 = vector.broadcast %983 : vector<1x32xf32> to vector<16x32xf32>
    %1006 = arith.addf %1004, %1005 : vector<16x32xf32>
    %c0_269 = arith.constant 0 : index
    %c0_270 = arith.constant 0 : index
    %1007 = vector.load %arg7[%c0_269, %c0_270] : memref<16x32xf32, #tpu.memory_space<vmem>>, vector<16x32xf32>
    tpu.vector_store %arg7[%c0_269, %c0_270], %1006 {strides = array<i32>} : memref<16x32xf32, #tpu.memory_space<vmem>>, vector<16x32xf32>,
    return
  }
}

</mosaic_0001>

<llo_original>
// kernel: tpu_custom_call.1
$region0: #{tpu_custom_call.1}
  #allocation0 [shape = 'u32[]', space=smem, size = 0x4, offset = 0x4, fixed_abs, tag = 'smem constant byte address 0x4 - core index']
  #allocation1 [shape = 'u32[144,128]{1,0:T(1,128)}', space=vmem, size = 0x12000, scoped, tag = 'internal scratch']
  %s0 = inlined_call_operand.hbm [shape: f32[16,32], index: 0, kind: input, shape index: {}]
  %s1 = inlined_call_operand.hbm [shape: f32[16,32], index: 1, kind: input, shape index: {}]
  %s2 = inlined_call_operand.hbm [shape: f32[16,16], index: 2, kind: input, shape index: {}]
  %s3 = inlined_call_operand.hbm [shape: f32[16,16], index: 3, kind: input, shape index: {}]
  %s4 = inlined_call_operand.hbm [shape: f32[16,16], index: 4, kind: input, shape index: {}]
  %s5 = inlined_call_operand.hbm [shape: bf16[832,128], index: 5, kind: input, shape index: {}]
  %s6 = inlined_call_operand.hbm [shape: f32[38,128], index: 6, kind: input, shape index: {}]
  %s7 = inlined_call_operand.hbm [shape: f32[16,32], index: 7, kind: output, shape index: {}]
  %s8 = sld [smem:[#allocation0]]
  $region66: #{tpu_custom_call.1} parent=0
    _
  %s10 = ssub.s32 1, %s8
  %s11 = scalar_select 0, %s10, %s8
  $region1: #{tpu_custom_call.1} parent=0
    #allocation2 [shape = 'u8[8192]{0}', space=vmem, size = 0x2000, scoped, tag = 'input window, operand 0, single buffered']
    #allocation3 [shape = 's32[1]{0}', space=sflag, size = 0x4, scoped, tag = 'scoped memory for tpu_custom_call.1']
    #allocation4 [shape = 's32[1]{0}', space=sflag, size = 0x4, scoped, tag = 'scoped memory for tpu_custom_call.1']
    #allocation5 [shape = 'u8[8192]{0}', space=vmem, size = 0x2000, scoped, tag = 'input window, operand 1, single buffered']
    #allocation6 [shape = 's32[1]{0}', space=sflag, size = 0x4, scoped, tag = 'scoped memory for tpu_custom_call.1']
    #allocation7 [shape = 'u8[8192]{0}', space=vmem, size = 0x2000, scoped, tag = 'input window, operand 2, single buffered']
    #allocation8 [shape = 'u8[8192]{0}', space=vmem, size = 0x2000, scoped, tag = 'input window, operand 3, single buffered']
    #allocation9 [shape = 's32[1]{0}', space=sflag, size = 0x4, scoped, tag = 'scoped memory for tpu_custom_call.1']
    #allocation10 [shape = 'u8[8192]{0}', space=vmem, size = 0x2000, scoped, tag = 'input window, operand 4, single buffered']
    #allocation11 [shape = 'u8[212992]{0}', space=vmem, size = 0x34000, scoped, tag = 'input window, operand 5, single buffered']
    #allocation12 [shape = 's32[1]{0}', space=sflag, size = 0x4, scoped, tag = 'scoped memory for tpu_custom_call.1']
    #allocation13 [shape = 'u8[20480]{0}', space=vmem, size = 0x5000, scoped, tag = 'input window, operand 6, single buffered']
    #allocation14 [shape = 'u8[8192]{0}', space=vmem, size = 0x2000, scoped, tag = 'output window, operand 0, single buffered']
    %12 = vsyncpa [#allocation3], 0
    %13 = vsyncpa [#allocation6], 0
    %14 = vsyncpa [#allocation9], 0
    %15 = vsyncpa [#allocation12], 0
    %16 = vsyncpa [#allocation4], 0
    // Predicated region
    $region2: #{tpu_custom_call.1} parent=1 // pred_check
      _
    $region3: #{tpu_custom_call.1} parent=1 // pred_check_branch
      %18 = sbr.rel (0) target = $region5
    $region4: #{tpu_custom_call.1} parent=1 // pred_region
      %s20 = ssub.s32 256, 256
      %21 = vsyncadd [#allocation3], %s20
      %s22 = sshll.u32 [#allocation2], 4
      %s23 = int_to_ptr.vmem [resolvable:$true] %s22
      %28 = dma.hbm_to_vmem [thread:$0]  %s0, 256, %s23, [#allocation3], 128, 128, 8
    $region5: #{tpu_custom_call.1} parent=1 // pred_fallthru
      _
    // Predicated region
    $region6: #{tpu_custom_call.1} parent=1 // pred_check
      _
    $region7: #{tpu_custom_call.1} parent=1 // pred_check_branch
      %30 = sbr.rel (0) target = $region9
    $region8: #{tpu_custom_call.1} parent=1 // pred_region
      %s32 = ssub.s32 256, 256
      %33 = vsyncadd [#allocation6], %s32
      %s34 = sshll.u32 [#allocation5], 4
      %s35 = int_to_ptr.vmem [resolvable:$true] %s34
      %40 = dma.hbm_to_vmem [thread:$0]  %s1, 256, %s35, [#allocation6], 128, 128, 8
    $region9: #{tpu_custom_call.1} parent=1 // pred_fallthru
      _
    // Predicated region
    $region10: #{tpu_custom_call.1} parent=1 // pred_check
      _
    $region11: #{tpu_custom_call.1} parent=1 // pred_check_branch
      %42 = sbr.rel (0) target = $region13
    $region12: #{tpu_custom_call.1} parent=1 // pred_region
      %s44 = ssub.s32 256, 256
      %45 = vsyncadd [#allocation6], %s44
      %s46 = sshll.u32 [#allocation7], 4
      %s47 = int_to_ptr.vmem [resolvable:$true] %s46
      %52 = dma.hbm_to_vmem [thread:$0]  %s2, 256, %s47, [#allocation6], 128, 128, 8
    $region13: #{tpu_custom_call.1} parent=1 // pred_fallthru
      _
    // Predicated region
    $region14: #{tpu_custom_call.1} parent=1 // pred_check
      _
    $region15: #{tpu_custom_call.1} parent=1 // pred_check_branch
      %54 = sbr.rel (0) target = $region17
    $region16: #{tpu_custom_call.1} parent=1 // pred_region
      %s56 = ssub.s32 256, 256
      %57 = vsyncadd [#allocation9], %s56
      %s58 = sshll.u32 [#allocation8], 4
      %s59 = int_to_ptr.vmem [resolvable:$true] %s58
      %64 = dma.hbm_to_vmem [thread:$0]  %s3, 256, %s59, [#allocation9], 128, 128, 8
    $region17: #{tpu_custom_call.1} parent=1 // pred_fallthru
      _
    // Predicated region
    $region18: #{tpu_custom_call.1} parent=1 // pred_check
      _
    $region19: #{tpu_custom_call.1} parent=1 // pred_check_branch
      %66 = sbr.rel (0) target = $region21
    $region20: #{tpu_custom_call.1} parent=1 // pred_region
      %s68 = ssub.s32 256, 256
      %69 = vsyncadd [#allocation9], %s68
      %s70 = sshll.u32 [#allocation10], 4
      %s71 = int_to_ptr.vmem [resolvable:$true] %s70
      %76 = dma.hbm_to_vmem [thread:$0]  %s4, 256, %s71, [#allocation9], 128, 128, 8
    $region21: #{tpu_custom_call.1} parent=1 // pred_fallthru
      _
    // Predicated region
    $region22: #{tpu_custom_call.1} parent=1 // pred_check
      _
    $region23: #{tpu_custom_call.1} parent=1 // pred_check_branch
      %78 = sbr.rel (0) target = $region25
    $region24: #{tpu_custom_call.1} parent=1 // pred_region
      %s80 = ssub.s32 6656, 6656
      %81 = vsyncadd [#allocation12], %s80
      %s82 = sshll.u32 [#allocation11], 4
      %s83 = int_to_ptr.vmem [resolvable:$true] %s82
      %88 = dma.hbm_to_vmem [thread:$0]  %s5, 6656, %s83, [#allocation12], 64, 64, 4
    $region25: #{tpu_custom_call.1} parent=1 // pred_fallthru
      _
    // Predicated region
    $region26: #{tpu_custom_call.1} parent=1 // pred_check
      _
    $region27: #{tpu_custom_call.1} parent=1 // pred_check_branch
      %90 = sbr.rel (0) target = $region29
    $region28: #{tpu_custom_call.1} parent=1 // pred_region
      %s92 = ssub.s32 640, 640
      %93 = vsyncadd [#allocation12], %s92
      %s94 = sshll.u32 [#allocation13], 4
      %s95 = int_to_ptr.vmem [resolvable:$true] %s94
      %100 = dma.hbm_to_vmem [thread:$0]  %s6, 640, %s95, [#allocation12], 128, 128, 8
    $region29: #{tpu_custom_call.1} parent=1 // pred_fallthru
      _
    // Predicated region
    $region30: #{tpu_custom_call.1} parent=1 // pred_check
      _
    $region31: #{tpu_custom_call.1} parent=1 // pred_check_branch
      %102 = sbr.rel (0) target = $region33
    $region32: #{tpu_custom_call.1} parent=1 // pred_region
      %103 = dma.done [#allocation3], 256
    $region33: #{tpu_custom_call.1} parent=1 // pred_fallthru
      _
    // Predicated region
    $region34: #{tpu_custom_call.1} parent=1 // pred_check
      _
    $region35: #{tpu_custom_call.1} parent=1 // pred_check_branch
      %105 = sbr.rel (0) target = $region37
    $region36: #{tpu_custom_call.1} parent=1 // pred_region
      %106 = dma.done [#allocation6], 256
    $region37: #{tpu_custom_call.1} parent=1 // pred_fallthru
      _
    // Predicated region
    $region38: #{tpu_custom_call.1} parent=1 // pred_check
      _
    $region39: #{tpu_custom_call.1} parent=1 // pred_check_branch
      %108 = sbr.rel (0) target = $region41
    $region40: #{tpu_custom_call.1} parent=1 // pred_region
      %109 = dma.done [#allocation6], 256
    $region41: #{tpu_custom_call.1} parent=1 // pred_fallthru
      _
    // Predicated region
    $region42: #{tpu_custom_call.1} parent=1 // pred_check
      _
    $region43: #{tpu_custom_call.1} parent=1 // pred_check_branch
      %111 = sbr.rel (0) target = $region45
    $region44: #{tpu_custom_call.1} parent=1 // pred_region
      %112 = dma.done [#allocation9], 256
    $region45: #{tpu_custom_call.1} parent=1 // pred_fallthru
      _
    // Predicated region
    $region46: #{tpu_custom_call.1} parent=1 // pred_check
      _
    $region47: #{tpu_custom_call.1} parent=1 // pred_check_branch
      %114 = sbr.rel (0) target = $region49
    $region48: #{tpu_custom_call.1} parent=1 // pred_region
      %115 = dma.done [#allocation9], 256
    $region49: #{tpu_custom_call.1} parent=1 // pred_fallthru
      _
    // Predicated region
    $region50: #{tpu_custom_call.1} parent=1 // pred_check
      _
    $region51: #{tpu_custom_call.1} parent=1 // pred_check_branch
      %117 = sbr.rel (0) target = $region53
    $region52: #{tpu_custom_call.1} parent=1 // pred_region
      %118 = dma.done [#allocation12], 6656
    $region53: #{tpu_custom_call.1} parent=1 // pred_fallthru
      _
    // Predicated region
    $region54: #{tpu_custom_call.1} parent=1 // pred_check
      _
    $region55: #{tpu_custom_call.1} parent=1 // pred_check_branch
      %120 = sbr.rel (0) target = $region57
    $region56: #{tpu_custom_call.1} parent=1 // pred_region
      %121 = dma.done [#allocation12], 640
    $region57: #{tpu_custom_call.1} parent=1 // pred_fallthru
      _
    %v123 = vld [vmem:[#allocation2] sm:$0xff]
    %v124 = vld [vmem:[#allocation2 + $0x8] sm:$0xff]
    %v125 = vld [vmem:[#allocation5] sm:$0xff]
    %v126 = vld [vmem:[#allocation5 + $0x8] sm:$0xff]
    %v127 = vld [vmem:[#allocation7] sm:$0xff]
    %v128 = vld [vmem:[#allocation7 + $0x8] sm:$0xff]
    %v129 = vld [vmem:[#allocation8] sm:$0xff]
    %v130 = vld [vmem:[#allocation8 + $0x8] sm:$0xff]
    %v131 = vld [vmem:[#allocation10] sm:$0xff]
    %v132 = vld [vmem:[#allocation10 + $0x8] sm:$0xff]
    %v133 = vld [vmem:[#allocation13] sm:$0x1]
    %v134 = vld [vmem:[#allocation13 + $0x1] sm:$0x1]
    %vm135 = vcmask 261120
    %v136 = vsel %vm135, %v123, 0.0
    %137 = vadd.xlane.f32.xlu0 %v136
    %v138 = vpop.xlane.xlu0 %137
    %v139 = vsel %vm135, %v124, 0.0
    %140 = vadd.xlane.f32.xlu0 %v139
    %v141 = vpop.xlane.xlu0 %140
    %v142 = vrcp.pop 32.0
    %v143 = vmul.f32 %v138, %v142
    %v144 = vmul.f32 %v141, %v142
    %v145 = vsub.f32 %v123, %v143
    %v146 = vsub.f32 %v124, %v144
    %v147 = vmul.f32 %v145, %v145
    %v148 = vmul.f32 %v146, %v146
    %v149 = vsel %vm135, %v147, 0.0
    %150 = vadd.xlane.f32.xlu0 %v149
    %v151 = vpop.xlane.xlu0 %150
    %v152 = vsel %vm135, %v148, 0.0
    %153 = vadd.xlane.f32.xlu0 %v152
    %v154 = vpop.xlane.xlu0 %153
    %v155 = vmul.f32 %v151, 0.032258064
    %v156 = vmul.f32 %v154, 0.032258064
    %v157 = vrsqrt.pop %v155
    %v158 = vmul.f32 %v155, %v157
    %vm159 = vcmp.eq.f32.partialorder %v155, inf
    %v160 = vsel %vm159, %v155, %v158
    %vm161 = vcmp.eq.f32.partialorder %v155, 0.0
    %v162 = vand.u32 %v155, 2147483648
    %v163 = vsel %vm161, %v162, %v160
    %v164 = vrsqrt.pop %v156
    %v165 = vmul.f32 %v156, %v164
    %vm166 = vcmp.eq.f32.partialorder %v156, inf
    %v167 = vsel %vm166, %v156, %v165
    %vm168 = vcmp.eq.f32.partialorder %v156, 0.0
    %v169 = vand.u32 %v156, 2147483648
    %v170 = vsel %vm168, %v169, %v167
    %v171 = vadd.f32 %v163, 1e-06
    %v172 = vadd.f32 %v170, 1e-06
    %v173 = vrcp.pop %v171
    %v174 = vrcp.pop %v172
    %v175 = vlaneseq
    %v176 = vshrl.u32 %v175, 7
    %v177 = vsub.s32 0, %v176
    %v178 = vrot.slane %v133, %v177
    %v179 = vmul.f32 %v178, %v145
    %v180 = vmul.f32 %v178, %v146
    %v181 = vmul.f32 %v179, %v173
    %v182 = vmul.f32 %v180, %v174
    %v183 = vlaneseq
    %v184 = vshrl.u32 %v183, 7
    %v185 = vsub.s32 0, %v184
    %v186 = vrot.slane %v134, %v185
    %v187 = vadd.f32 %v181, %v186
    %v188 = vadd.f32 %v182, %v186
    %v189 = vld [vmem:[#allocation11] sm:$0xf]
    %v190 = vld [vmem:[#allocation11 + $0x4] sm:$0xf]
    %v191 = vld [vmem:[#allocation11 + $0x8] sm:$0xf]
    %v192 = vld [vmem:[#allocation11 + $0xc] sm:$0xf]
    %v193 = vld [vmem:[#allocation13 + $0x2] sm:$0x1]
    %v194 = vpack.c.bf16 %v188, %v187
    %v195 = vlaneseq
    %v196 = vshrl.u32 %v195, 7
    %v197 = vsub.s32 0, %v196
    %v198 = vrot.slane %v193, %v197
    %v203 = vunpack.c.l.b16 %v189
    %v204 = vunpack.c.l.b16 %v190
    %v205 = vunpack.c.l.b16 %v191
    %v206 = vunpack.c.l.b16 %v192
    %v207 = vpack.c.b16 %v204, %v203
    %v208 = vpack.c.b16 %v206, %v205
    %v212 = vsel %vm135, %v194, 0
    %214 = vmatprep.subr.bf16.mxu0 0
    %215 = vmatpush1.bf16.msra.mxu0 %v207
    %216 = vmatprep.subr.bf16.mxu0 0
    %217 = vmatpush1.bf16.msra.mxu0 %v208
    %218 = vmatprep.subr.bf16.mxu0 0
    %219 = vmatpush1.bf16.msra.mxu0 0
    %220 = vmatprep.subr.bf16.mxu0 0
    %221 = vmatpush1.bf16.msra.mxu0 0
    %222 = vmatprep.subr.bf16.mxu0 0
    %223 = vmatpush1.bf16.msra.mxu0 0
    %224 = vmatprep.subr.bf16.mxu0 0
    %225 = vmatpush1.bf16.msra.mxu0 0
    %226 = vmatprep.subr.bf16.mxu0 0
    %227 = vmatpush1.bf16.msra.mxu0 0
    %228 = vmatprep.subr.bf16.mxu0 0
    %229 = vmatpush1.bf16.msra.mxu0 0
    %230 = vmatprep.subr.bf16.mxu0 0
    %231 = vmatpush1.bf16.msra.mxu0 0
    %232 = vmatprep.subr.bf16.mxu0 0
    %233 = vmatpush1.bf16.msra.mxu0 0
    %234 = vmatprep.subr.bf16.mxu0 0
    %235 = vmatpush1.bf16.msra.mxu0 0
    %236 = vmatprep.subr.bf16.mxu0 0
    %237 = vmatpush1.bf16.msra.mxu0 0
    %238 = vmatprep.subr.bf16.mxu0 0
    %239 = vmatpush1.bf16.msra.mxu0 0
    %240 = vmatprep.subr.bf16.mxu0 0
    %241 = vmatpush1.bf16.msra.mxu0 0
    %242 = vmatprep.subr.bf16.mxu0 0
    %243 = vmatpush1.bf16.msra.mxu0 0
    %244 = vmatprep.subr.bf16.mxu0 0
    %245 = vmatpush1.bf16.msra.mxu0 0
    %246 = vmatprep.mubr.bf16.mxu0 0
    %247 = vmatmul.mubr.bf16.gmra.mrb[0].mxu0 %v212
    %v248 = vpop.f32.mrb[0].mxu0
    %v249 = vadd.f32 %v198, %v248
    %v250 = vpop.f32.mrb[0].mxu0
    %v251 = vpop.f32.mrb[0].mxu0
    %v252 = vadd.f32 %v198, %v251
    %v253 = vpop.f32.mrb[0].mxu0
    %254 = vdwg.mxu0
    %v255 = vpack.c.bf16 %v252, %v249
    %257 = vrot.lane.b32.xlu0 %v255, 96
    %v258 = vpop.permute.xlu0 %257
    %vm259 = vcmask 64512
    %v261 = vsel %vm259, %v255, 0
    %v264 = vsel %vm259, %v258, 0
    %266 = vmatprep.subr.bf16.mxu0 0
    %267 = vmatpush1.bf16.xpose.msra.mxu0 %v264
    %268 = vmatprep.subr.bf16.mxu0 0
    %269 = vmatpush1.bf16.xpose.msra.mxu0 0
    %270 = vmatprep.subr.bf16.mxu0 0
    %271 = vmatpush1.bf16.xpose.msra.mxu0 0
    %272 = vmatprep.subr.bf16.mxu0 0
    %273 = vmatpush1.bf16.xpose.msra.mxu0 0
    %274 = vmatprep.subr.bf16.mxu0 0
    %275 = vmatpush1.bf16.xpose.msra.mxu0 0
    %276 = vmatprep.subr.bf16.mxu0 0
    %277 = vmatpush1.bf16.xpose.msra.mxu0 0
    %278 = vmatprep.subr.bf16.mxu0 0
    %279 = vmatpush1.bf16.xpose.msra.mxu0 0
    %280 = vmatprep.subr.bf16.mxu0 0
    %281 = vmatpush1.bf16.xpose.msra.mxu0 0
    %282 = vmatprep.subr.bf16.mxu0 0
    %283 = vmatpush1.bf16.xpose.msra.mxu0 0
    %284 = vmatprep.subr.bf16.mxu0 0
    %285 = vmatpush1.bf16.xpose.msra.mxu0 0
    %286 = vmatprep.subr.bf16.mxu0 0
    %287 = vmatpush1.bf16.xpose.msra.mxu0 0
    %288 = vmatprep.subr.bf16.mxu0 0
    %289 = vmatpush1.bf16.xpose.msra.mxu0 0
    %290 = vmatprep.subr.bf16.mxu0 0
    %291 = vmatpush1.bf16.xpose.msra.mxu0 0
    %292 = vmatprep.subr.bf16.mxu0 0
    %293 = vmatpush1.bf16.xpose.msra.mxu0 0
    %294 = vmatprep.subr.bf16.mxu0 0
    %295 = vmatpush1.bf16.xpose.msra.mxu0 0
    %296 = vmatprep.subr.bf16.mxu0 0
    %297 = vmatpush1.bf16.xpose.msra.mxu0 0
    %298 = vmatprep.mubr.bf16.mxu0 0
    %299 = vmatmul.mubr.bf16.gmra.mrb[0].mxu0 %v261
    %v300 = vpop.f32.mrb[0].mxu0
    %v301 = vadd.f32 0.0, %v300
    %v302 = vpop.f32.mrb[0].mxu0
    %v303 = vpop.f32.mrb[0].mxu0
    %v304 = vadd.f32 0.0, %v303
    %v305 = vpop.f32.mrb[0].mxu0
    %306 = vdwg.mxu0
    %v307 = vmul.f32 %v301, 0.35355338
    %v308 = vmul.f32 %v304, 0.35355338
    %v309 = vadd.f32 %v307, %v127
    %v310 = vadd.f32 %v308, %v128
    %vm311 = vcmask 130048
    %v312 = vsel %vm311, %v309, -inf
    %313 = vmax.xlane.f32.xlu0 %v312
    %v314 = vpop.xlane.xlu0 %313
    %v315 = vsel %vm311, %v310, -inf
    %316 = vmax.xlane.f32.xlu0 %v315
    %v317 = vpop.xlane.xlu0 %316
    %v318 = vsub.f32 %v309, %v314
    %v319 = vsub.f32 %v310, %v317
    %v320 = vmul.f32 %v318, 1.442695
    %v321 = vpow.pop %v320
    %v322 = vmul.f32 %v319, 1.442695
    %v323 = vpow.pop %v322
    %v324 = vsel %vm311, %v321, 0.0
    %325 = vadd.xlane.f32.xlu0 %v324
    %v326 = vpop.xlane.xlu0 %325
    %v327 = vsel %vm311, %v323, 0.0
    %328 = vadd.xlane.f32.xlu0 %v327
    %v329 = vpop.xlane.xlu0 %328
    %v330 = vrcp.pop %v326
    %v331 = vrcp.pop %v329
    %v332 = vmul.f32 %v321, %v330
    %v333 = vmul.f32 %v323, %v331
    %v334 = vpack.c.bf16 %v333, %v332
    %335 = vrot.lane.b32.xlu0 %v255, 64
    %v336 = vpop.permute.xlu0 %335
    %v339 = vsel %vm311, %v334, 0
    %341 = vmatprep.subr.bf16.mxu0 0
    %342 = vmatpush1.bf16.msra.mxu0 %v336
    %343 = vmatprep.subr.bf16.mxu0 0
    %344 = vmatpush1.bf16.msra.mxu0 0
    %345 = vmatprep.subr.bf16.mxu0 0
    %346 = vmatpush1.bf16.msra.mxu0 0
    %347 = vmatprep.subr.bf16.mxu0 0
    %348 = vmatpush1.bf16.msra.mxu0 0
    %349 = vmatprep.subr.bf16.mxu0 0
    %350 = vmatpush1.bf16.msra.mxu0 0
    %351 = vmatprep.subr.bf16.mxu0 0
    %352 = vmatpush1.bf16.msra.mxu0 0
    %353 = vmatprep.subr.bf16.mxu0 0
    %354 = vmatpush1.bf16.msra.mxu0 0
    %355 = vmatprep.subr.bf16.mxu0 0
    %356 = vmatpush1.bf16.msra.mxu0 0
    %357 = vmatprep.subr.bf16.mxu0 0
    %358 = vmatpush1.bf16.msra.mxu0 0
    %359 = vmatprep.subr.bf16.mxu0 0
    %360 = vmatpush1.bf16.msra.mxu0 0
    %361 = vmatprep.subr.bf16.mxu0 0
    %362 = vmatpush1.bf16.msra.mxu0 0
    %363 = vmatprep.subr.bf16.mxu0 0
    %364 = vmatpush1.bf16.msra.mxu0 0
    %365 = vmatprep.subr.bf16.mxu0 0
    %366 = vmatpush1.bf16.msra.mxu0 0
    %367 = vmatprep.subr.bf16.mxu0 0
    %368 = vmatpush1.bf16.msra.mxu0 0
    %369 = vmatprep.subr.bf16.mxu0 0
    %370 = vmatpush1.bf16.msra.mxu0 0
    %371 = vmatprep.subr.bf16.mxu0 0
    %372 = vmatpush1.bf16.msra.mxu0 0
    %373 = vmatprep.mubr.bf16.mxu0 0
    %374 = vmatmul.mubr.bf16.gmra.mrb[0].mxu0 %v339
    %v375 = vpop.f32.mrb[0].mxu0
    %v376 = vadd.f32 0.0, %v375
    %v377 = vpop.f32.mrb[0].mxu0
    %v378 = vpop.f32.mrb[0].mxu0
    %v379 = vadd.f32 0.0, %v378
    %v380 = vpop.f32.mrb[0].mxu0
    %381 = vdwg.mxu0
    %382 = vrot.lane.b32.xlu0 %v255, 120
    %v383 = vpop.permute.xlu0 %382
    %384 = vrot.lane.b32.xlu0 %v255, 88
    %v385 = vpop.permute.xlu0 %384
    %v387 = vsel %vm259, %v383, 0
    %v390 = vsel %vm259, %v385, 0
    %392 = vmatprep.subr.bf16.mxu0 0
    %393 = vmatpush1.bf16.xpose.msra.mxu0 %v390
    %394 = vmatprep.subr.bf16.mxu0 0
    %395 = vmatpush1.bf16.xpose.msra.mxu0 0
    %396 = vmatprep.subr.bf16.mxu0 0
    %397 = vmatpush1.bf16.xpose.msra.mxu0 0
    %398 = vmatprep.subr.bf16.mxu0 0
    %399 = vmatpush1.bf16.xpose.msra.mxu0 0
    %400 = vmatprep.subr.bf16.mxu0 0
    %401 = vmatpush1.bf16.xpose.msra.mxu0 0
    %402 = vmatprep.subr.bf16.mxu0 0
    %403 = vmatpush1.bf16.xpose.msra.mxu0 0
    %404 = vmatprep.subr.bf16.mxu0 0
    %405 = vmatpush1.bf16.xpose.msra.mxu0 0
    %406 = vmatprep.subr.bf16.mxu0 0
    %407 = vmatpush1.bf16.xpose.msra.mxu0 0
    %408 = vmatprep.subr.bf16.mxu0 0
    %409 = vmatpush1.bf16.xpose.msra.mxu0 0
    %410 = vmatprep.subr.bf16.mxu0 0
    %411 = vmatpush1.bf16.xpose.msra.mxu0 0
    %412 = vmatprep.subr.bf16.mxu0 0
    %413 = vmatpush1.bf16.xpose.msra.mxu0 0
    %414 = vmatprep.subr.bf16.mxu0 0
    %415 = vmatpush1.bf16.xpose.msra.mxu0 0
    %416 = vmatprep.subr.bf16.mxu0 0
    %417 = vmatpush1.bf16.xpose.msra.mxu0 0
    %418 = vmatprep.subr.bf16.mxu0 0
    %419 = vmatpush1.bf16.xpose.msra.mxu0 0
    %420 = vmatprep.subr.bf16.mxu0 0
    %421 = vmatpush1.bf16.xpose.msra.mxu0 0
    %422 = vmatprep.subr.bf16.mxu0 0
    %423 = vmatpush1.bf16.xpose.msra.mxu0 0
    %424 = vmatprep.mubr.bf16.mxu0 0
    %425 = vmatmul.mubr.bf16.gmra.mrb[0].mxu0 %v387
    %v426 = vpop.f32.mrb[0].mxu0
    %v427 = vadd.f32 0.0, %v426
    %v428 = vpop.f32.mrb[0].mxu0
    %v429 = vpop.f32.mrb[0].mxu0
    %v430 = vadd.f32 0.0, %v429
    %v431 = vpop.f32.mrb[0].mxu0
    %432 = vdwg.mxu0
    %v433 = vmul.f32 %v427, 0.35355338
    %v434 = vmul.f32 %v430, 0.35355338
    %v435 = vadd.f32 %v433, %v127
    %v436 = vadd.f32 %v434, %v128
    %v437 = vsel %vm311, %v435, -inf
    %438 = vmax.xlane.f32.xlu0 %v437
    %v439 = vpop.xlane.xlu0 %438
    %v440 = vsel %vm311, %v436, -inf
    %441 = vmax.xlane.f32.xlu0 %v440
    %v442 = vpop.xlane.xlu0 %441
    %v443 = vsub.f32 %v435, %v439
    %v444 = vsub.f32 %v436, %v442
    %v445 = vmul.f32 %v443, 1.442695
    %v446 = vpow.pop %v445
    %v447 = vmul.f32 %v444, 1.442695
    %v448 = vpow.pop %v447
    %v449 = vsel %vm311, %v446, 0.0
    %450 = vadd.xlane.f32.xlu0 %v449
    %v451 = vpop.xlane.xlu0 %450
    %v452 = vsel %vm311, %v448, 0.0
    %453 = vadd.xlane.f32.xlu0 %v452
    %v454 = vpop.xlane.xlu0 %453
    %v455 = vrcp.pop %v451
    %v456 = vrcp.pop %v454
    %v457 = vmul.f32 %v446, %v455
    %v458 = vmul.f32 %v448, %v456
    %v459 = vpack.c.bf16 %v458, %v457
    %460 = vrot.lane.b32.xlu0 %v255, 56
    %v461 = vpop.permute.xlu0 %460
    %v464 = vsel %vm311, %v459, 0
    %466 = vmatprep.subr.bf16.mxu0 0
    %467 = vmatpush1.bf16.msra.mxu0 %v461
    %468 = vmatprep.subr.bf16.mxu0 0
    %469 = vmatpush1.bf16.msra.mxu0 0
    %470 = vmatprep.subr.bf16.mxu0 0
    %471 = vmatpush1.bf16.msra.mxu0 0
    %472 = vmatprep.subr.bf16.mxu0 0
    %473 = vmatpush1.bf16.msra.mxu0 0
    %474 = vmatprep.subr.bf16.mxu0 0
    %475 = vmatpush1.bf16.msra.mxu0 0
    %476 = vmatprep.subr.bf16.mxu0 0
    %477 = vmatpush1.bf16.msra.mxu0 0
    %478 = vmatprep.subr.bf16.mxu0 0
    %479 = vmatpush1.bf16.msra.mxu0 0
    %480 = vmatprep.subr.bf16.mxu0 0
    %481 = vmatpush1.bf16.msra.mxu0 0
    %482 = vmatprep.subr.bf16.mxu0 0
    %483 = vmatpush1.bf16.msra.mxu0 0
    %484 = vmatprep.subr.bf16.mxu0 0
    %485 = vmatpush1.bf16.msra.mxu0 0
    %486 = vmatprep.subr.bf16.mxu0 0
    %487 = vmatpush1.bf16.msra.mxu0 0
    %488 = vmatprep.subr.bf16.mxu0 0
    %489 = vmatpush1.bf16.msra.mxu0 0
    %490 = vmatprep.subr.bf16.mxu0 0
    %491 = vmatpush1.bf16.msra.mxu0 0
    %492 = vmatprep.subr.bf16.mxu0 0
    %493 = vmatpush1.bf16.msra.mxu0 0
    %494 = vmatprep.subr.bf16.mxu0 0
    %495 = vmatpush1.bf16.msra.mxu0 0
    %496 = vmatprep.subr.bf16.mxu0 0
    %497 = vmatpush1.bf16.msra.mxu0 0
    %498 = vmatprep.mubr.bf16.mxu0 0
    %499 = vmatmul.mubr.bf16.gmra.mrb[0].mxu0 %v464
    %v500 = vpop.f32.mrb[0].mxu0
    %v501 = vadd.f32 0.0, %v500
    %v502 = vpop.f32.mrb[0].mxu0
    %v503 = vpop.f32.mrb[0].mxu0
    %v504 = vadd.f32 0.0, %v503
    %v505 = vpop.f32.mrb[0].mxu0
    %506 = vdwg.mxu0
    %507 = vrot.lane.b32.xlu0 %v255, 112
    %v508 = vpop.permute.xlu0 %507
    %509 = vrot.lane.b32.xlu0 %v255, 80
    %v510 = vpop.permute.xlu0 %509
    %v512 = vsel %vm259, %v508, 0
    %v515 = vsel %vm259, %v510, 0
    %517 = vmatprep.subr.bf16.mxu0 0
    %518 = vmatpush1.bf16.xpose.msra.mxu0 %v515
    %519 = vmatprep.subr.bf16.mxu0 0
    %520 = vmatpush1.bf16.xpose.msra.mxu0 0
    %521 = vmatprep.subr.bf16.mxu0 0
    %522 = vmatpush1.bf16.xpose.msra.mxu0 0
    %523 = vmatprep.subr.bf16.mxu0 0
    %524 = vmatpush1.bf16.xpose.msra.mxu0 0
    %525 = vmatprep.subr.bf16.mxu0 0
    %526 = vmatpush1.bf16.xpose.msra.mxu0 0
    %527 = vmatprep.subr.bf16.mxu0 0
    %528 = vmatpush1.bf16.xpose.msra.mxu0 0
    %529 = vmatprep.subr.bf16.mxu0 0
    %530 = vmatpush1.bf16.xpose.msra.mxu0 0
    %531 = vmatprep.subr.bf16.mxu0 0
    %532 = vmatpush1.bf16.xpose.msra.mxu0 0
    %533 = vmatprep.subr.bf16.mxu0 0
    %534 = vmatpush1.bf16.xpose.msra.mxu0 0
    %535 = vmatprep.subr.bf16.mxu0 0
    %536 = vmatpush1.bf16.xpose.msra.mxu0 0
    %537 = vmatprep.subr.bf16.mxu0 0
    %538 = vmatpush1.bf16.xpose.msra.mxu0 0
    %539 = vmatprep.subr.bf16.mxu0 0
    %540 = vmatpush1.bf16.xpose.msra.mxu0 0
    %541 = vmatprep.subr.bf16.mxu0 0
    %542 = vmatpush1.bf16.xpose.msra.mxu0 0
    %543 = vmatprep.subr.bf16.mxu0 0
    %544 = vmatpush1.bf16.xpose.msra.mxu0 0
    %545 = vmatprep.subr.bf16.mxu0 0
    %546 = vmatpush1.bf16.xpose.msra.mxu0 0
    %547 = vmatprep.subr.bf16.mxu0 0
    %548 = vmatpush1.bf16.xpose.msra.mxu0 0
    %549 = vmatprep.mubr.bf16.mxu0 0
    %550 = vmatmul.mubr.bf16.gmra.mrb[0].mxu0 %v512
    %v551 = vpop.f32.mrb[0].mxu0
    %v552 = vadd.f32 0.0, %v551
    %v553 = vpop.f32.mrb[0].mxu0
    %v554 = vpop.f32.mrb[0].mxu0
    %v555 = vadd.f32 0.0, %v554
    %v556 = vpop.f32.mrb[0].mxu0
    %557 = vdwg.mxu0
    %v558 = vmul.f32 %v552, 0.35355338
    %v559 = vmul.f32 %v555, 0.35355338
    %v560 = vadd.f32 %v558, %v127
    %v561 = vadd.f32 %v559, %v128
    %v562 = vsel %vm311, %v560, -inf
    %563 = vmax.xlane.f32.xlu0 %v562
    %v564 = vpop.xlane.xlu0 %563
    %v565 = vsel %vm311, %v561, -inf
    %566 = vmax.xlane.f32.xlu0 %v565
    %v567 = vpop.xlane.xlu0 %566
    %v568 = vsub.f32 %v560, %v564
    %v569 = vsub.f32 %v561, %v567
    %v570 = vmul.f32 %v568, 1.442695
    %v571 = vpow.pop %v570
    %v572 = vmul.f32 %v569, 1.442695
    %v573 = vpow.pop %v572
    %v574 = vsel %vm311, %v571, 0.0
    %575 = vadd.xlane.f32.xlu0 %v574
    %v576 = vpop.xlane.xlu0 %575
    %v577 = vsel %vm311, %v573, 0.0
    %578 = vadd.xlane.f32.xlu0 %v577
    %v579 = vpop.xlane.xlu0 %578
    %v580 = vrcp.pop %v576
    %v581 = vrcp.pop %v579
    %v582 = vmul.f32 %v571, %v580
    %v583 = vmul.f32 %v573, %v581
    %v584 = vpack.c.bf16 %v583, %v582
    %585 = vrot.lane.b32.xlu0 %v255, 48
    %v586 = vpop.permute.xlu0 %585
    %v589 = vsel %vm311, %v584, 0
    %591 = vmatprep.subr.bf16.mxu0 0
    %592 = vmatpush1.bf16.msra.mxu0 %v586
    %593 = vmatprep.subr.bf16.mxu0 0
    %594 = vmatpush1.bf16.msra.mxu0 0
    %595 = vmatprep.subr.bf16.mxu0 0
    %596 = vmatpush1.bf16.msra.mxu0 0
    %597 = vmatprep.subr.bf16.mxu0 0
    %598 = vmatpush1.bf16.msra.mxu0 0
    %599 = vmatprep.subr.bf16.mxu0 0
    %600 = vmatpush1.bf16.msra.mxu0 0
    %601 = vmatprep.subr.bf16.mxu0 0
    %602 = vmatpush1.bf16.msra.mxu0 0
    %603 = vmatprep.subr.bf16.mxu0 0
    %604 = vmatpush1.bf16.msra.mxu0 0
    %605 = vmatprep.subr.bf16.mxu0 0
    %606 = vmatpush1.bf16.msra.mxu0 0
    %607 = vmatprep.subr.bf16.mxu0 0
    %608 = vmatpush1.bf16.msra.mxu0 0
    %609 = vmatprep.subr.bf16.mxu0 0
    %610 = vmatpush1.bf16.msra.mxu0 0
    %611 = vmatprep.subr.bf16.mxu0 0
    %612 = vmatpush1.bf16.msra.mxu0 0
    %613 = vmatprep.subr.bf16.mxu0 0
    %614 = vmatpush1.bf16.msra.mxu0 0
    %615 = vmatprep.subr.bf16.mxu0 0
    %616 = vmatpush1.bf16.msra.mxu0 0
    %617 = vmatprep.subr.bf16.mxu0 0
    %618 = vmatpush1.bf16.msra.mxu0 0
    %619 = vmatprep.subr.bf16.mxu0 0
    %620 = vmatpush1.bf16.msra.mxu0 0
    %621 = vmatprep.subr.bf16.mxu0 0
    %622 = vmatpush1.bf16.msra.mxu0 0
    %623 = vmatprep.mubr.bf16.mxu0 0
    %624 = vmatmul.mubr.bf16.gmra.mrb[0].mxu0 %v589
    %v625 = vpop.f32.mrb[0].mxu0
    %v626 = vadd.f32 0.0, %v625
    %v627 = vpop.f32.mrb[0].mxu0
    %v628 = vpop.f32.mrb[0].mxu0
    %v629 = vadd.f32 0.0, %v628
    %v630 = vpop.f32.mrb[0].mxu0
    %631 = vdwg.mxu0
    %632 = vrot.lane.b32.xlu0 %v255, 104
    %v633 = vpop.permute.xlu0 %632
    %634 = vrot.lane.b32.xlu0 %v255, 72
    %v635 = vpop.permute.xlu0 %634
    %v637 = vsel %vm259, %v633, 0
    %v640 = vsel %vm259, %v635, 0
    %642 = vmatprep.subr.bf16.mxu0 0
    %643 = vmatpush1.bf16.xpose.msra.mxu0 %v640
    %644 = vmatprep.subr.bf16.mxu0 0
    %645 = vmatpush1.bf16.xpose.msra.mxu0 0
    %646 = vmatprep.subr.bf16.mxu0 0
    %647 = vmatpush1.bf16.xpose.msra.mxu0 0
    %648 = vmatprep.subr.bf16.mxu0 0
    %649 = vmatpush1.bf16.xpose.msra.mxu0 0
    %650 = vmatprep.subr.bf16.mxu0 0
    %651 = vmatpush1.bf16.xpose.msra.mxu0 0
    %652 = vmatprep.subr.bf16.mxu0 0
    %653 = vmatpush1.bf16.xpose.msra.mxu0 0
    %654 = vmatprep.subr.bf16.mxu0 0
    %655 = vmatpush1.bf16.xpose.msra.mxu0 0
    %656 = vmatprep.subr.bf16.mxu0 0
    %657 = vmatpush1.bf16.xpose.msra.mxu0 0
    %658 = vmatprep.subr.bf16.mxu0 0
    %659 = vmatpush1.bf16.xpose.msra.mxu0 0
    %660 = vmatprep.subr.bf16.mxu0 0
    %661 = vmatpush1.bf16.xpose.msra.mxu0 0
    %662 = vmatprep.subr.bf16.mxu0 0
    %663 = vmatpush1.bf16.xpose.msra.mxu0 0
    %664 = vmatprep.subr.bf16.mxu0 0
    %665 = vmatpush1.bf16.xpose.msra.mxu0 0
    %666 = vmatprep.subr.bf16.mxu0 0
    %667 = vmatpush1.bf16.xpose.msra.mxu0 0
    %668 = vmatprep.subr.bf16.mxu0 0
    %669 = vmatpush1.bf16.xpose.msra.mxu0 0
    %670 = vmatprep.subr.bf16.mxu0 0
    %671 = vmatpush1.bf16.xpose.msra.mxu0 0
    %672 = vmatprep.subr.bf16.mxu0 0
    %673 = vmatpush1.bf16.xpose.msra.mxu0 0
    %674 = vmatprep.mubr.bf16.mxu0 0
    %675 = vmatmul.mubr.bf16.gmra.mrb[0].mxu0 %v637
    %v676 = vpop.f32.mrb[0].mxu0
    %v677 = vadd.f32 0.0, %v676
    %v678 = vpop.f32.mrb[0].mxu0
    %v679 = vpop.f32.mrb[0].mxu0
    %v680 = vadd.f32 0.0, %v679
    %v681 = vpop.f32.mrb[0].mxu0
    %682 = vdwg.mxu0
    %v683 = vmul.f32 %v677, 0.35355338
    %v684 = vmul.f32 %v680, 0.35355338
    %v685 = vadd.f32 %v683, %v127
    %v686 = vadd.f32 %v684, %v128
    %v687 = vsel %vm311, %v685, -inf
    %688 = vmax.xlane.f32.xlu0 %v687
    %v689 = vpop.xlane.xlu0 %688
    %v690 = vsel %vm311, %v686, -inf
    %691 = vmax.xlane.f32.xlu0 %v690
    %v692 = vpop.xlane.xlu0 %691
    %v693 = vsub.f32 %v685, %v689
    %v694 = vsub.f32 %v686, %v692
    %v695 = vmul.f32 %v693, 1.442695
    %v696 = vpow.pop %v695
    %v697 = vmul.f32 %v694, 1.442695
    %v698 = vpow.pop %v697
    %v699 = vsel %vm311, %v696, 0.0
    %700 = vadd.xlane.f32.xlu0 %v699
    %v701 = vpop.xlane.xlu0 %700
    %v702 = vsel %vm311, %v698, 0.0
    %703 = vadd.xlane.f32.xlu0 %v702
    %v704 = vpop.xlane.xlu0 %703
    %v705 = vrcp.pop %v701
    %v706 = vrcp.pop %v704
    %v707 = vmul.f32 %v696, %v705
    %v708 = vmul.f32 %v698, %v706
    %v709 = vpack.c.bf16 %v708, %v707
    %710 = vrot.lane.b32.xlu0 %v255, 40
    %v711 = vpop.permute.xlu0 %710
    %v714 = vsel %vm311, %v709, 0
    %716 = vmatprep.subr.bf16.mxu0 0
    %717 = vmatpush1.bf16.msra.mxu0 %v711
    %718 = vmatprep.subr.bf16.mxu0 0
    %719 = vmatpush1.bf16.msra.mxu0 0
    %720 = vmatprep.subr.bf16.mxu0 0
    %721 = vmatpush1.bf16.msra.mxu0 0
    %722 = vmatprep.subr.bf16.mxu0 0
    %723 = vmatpush1.bf16.msra.mxu0 0
    %724 = vmatprep.subr.bf16.mxu0 0
    %725 = vmatpush1.bf16.msra.mxu0 0
    %726 = vmatprep.subr.bf16.mxu0 0
    %727 = vmatpush1.bf16.msra.mxu0 0
    %728 = vmatprep.subr.bf16.mxu0 0
    %729 = vmatpush1.bf16.msra.mxu0 0
    %730 = vmatprep.subr.bf16.mxu0 0
    %731 = vmatpush1.bf16.msra.mxu0 0
    %732 = vmatprep.subr.bf16.mxu0 0
    %733 = vmatpush1.bf16.msra.mxu0 0
    %734 = vmatprep.subr.bf16.mxu0 0
    %735 = vmatpush1.bf16.msra.mxu0 0
    %736 = vmatprep.subr.bf16.mxu0 0
    %737 = vmatpush1.bf16.msra.mxu0 0
    %738 = vmatprep.subr.bf16.mxu0 0
    %739 = vmatpush1.bf16.msra.mxu0 0
    %740 = vmatprep.subr.bf16.mxu0 0
    %741 = vmatpush1.bf16.msra.mxu0 0
    %742 = vmatprep.subr.bf16.mxu0 0
    %743 = vmatpush1.bf16.msra.mxu0 0
    %744 = vmatprep.subr.bf16.mxu0 0
    %745 = vmatpush1.bf16.msra.mxu0 0
    %746 = vmatprep.subr.bf16.mxu0 0
    %747 = vmatpush1.bf16.msra.mxu0 0
    %748 = vmatprep.mubr.bf16.mxu0 0
    %749 = vmatmul.mubr.bf16.gmra.mrb[0].mxu0 %v714
    %v750 = vpop.f32.mrb[0].mxu0
    %v751 = vadd.f32 0.0, %v750
    %v752 = vpop.f32.mrb[0].mxu0
    %v753 = vpop.f32.mrb[0].mxu0
    %v754 = vadd.f32 0.0, %v753
    %v755 = vpop.f32.mrb[0].mxu0
    %756 = vdwg.mxu0
    %759 = vrot.lane.b32.xlu0 %v501, 8
    %v760 = vpop.permute.xlu0 %759
    %761 = vrot.lane.b32.xlu0 %v504, 8
    %v762 = vpop.permute.xlu0 %761
    %767 = vrot.lane.b32.xlu0 %v626, 16
    %v768 = vpop.permute.xlu0 %767
    %769 = vrot.lane.b32.xlu0 %v629, 16
    %v770 = vpop.permute.xlu0 %769
    %775 = vrot.lane.b32.xlu0 %v751, 24
    %v776 = vpop.permute.xlu0 %775
    %777 = vrot.lane.b32.xlu0 %v754, 24
    %v778 = vpop.permute.xlu0 %777
    %v781 = vsel %vm259, %v376, %v760
    %v782 = vsel %vm259, %v379, %v762
    %v783 = vsel %vm311, %v781, %v768
    %v784 = vsel %vm311, %v782, %v770
    %vm785 = vcmask 195584
    %v786 = vsel %vm785, %v783, %v776
    %v787 = vsel %vm785, %v784, %v778
    %v788 = vpack.c.bf16 %v787, %v786
    %789 = vrot.lane.b32.xlu0 %v207, 32
    %v790 = vpop.permute.xlu0 %789
    %791 = vrot.lane.b32.xlu0 %v208, 32
    %v792 = vpop.permute.xlu0 %791
    %796 = vrot.lane.b32.xlu0 %v198, 32
    %v797 = vpop.permute.xlu0 %796
    %v800 = vsel %vm135, %v788, 0
    %802 = vmatprep.subr.bf16.mxu0 0
    %803 = vmatpush1.bf16.msra.mxu0 %v790
    %804 = vmatprep.subr.bf16.mxu0 0
    %805 = vmatpush1.bf16.msra.mxu0 %v792
    %806 = vmatprep.subr.bf16.mxu0 0
    %807 = vmatpush1.bf16.msra.mxu0 0
    %808 = vmatprep.subr.bf16.mxu0 0
    %809 = vmatpush1.bf16.msra.mxu0 0
    %810 = vmatprep.subr.bf16.mxu0 0
    %811 = vmatpush1.bf16.msra.mxu0 0
    %812 = vmatprep.subr.bf16.mxu0 0
    %813 = vmatpush1.bf16.msra.mxu0 0
    %814 = vmatprep.subr.bf16.mxu0 0
    %815 = vmatpush1.bf16.msra.mxu0 0
    %816 = vmatprep.subr.bf16.mxu0 0
    %817 = vmatpush1.bf16.msra.mxu0 0
    %818 = vmatprep.subr.bf16.mxu0 0
    %819 = vmatpush1.bf16.msra.mxu0 0
    %820 = vmatprep.subr.bf16.mxu0 0
    %821 = vmatpush1.bf16.msra.mxu0 0
    %822 = vmatprep.subr.bf16.mxu0 0
    %823 = vmatpush1.bf16.msra.mxu0 0
    %824 = vmatprep.subr.bf16.mxu0 0
    %825 = vmatpush1.bf16.msra.mxu0 0
    %826 = vmatprep.subr.bf16.mxu0 0
    %827 = vmatpush1.bf16.msra.mxu0 0
    %828 = vmatprep.subr.bf16.mxu0 0
    %829 = vmatpush1.bf16.msra.mxu0 0
    %830 = vmatprep.subr.bf16.mxu0 0
    %831 = vmatpush1.bf16.msra.mxu0 0
    %832 = vmatprep.subr.bf16.mxu0 0
    %833 = vmatpush1.bf16.msra.mxu0 0
    %834 = vmatprep.mubr.bf16.mxu0 0
    %835 = vmatmul.mubr.bf16.gmra.mrb[0].mxu0 %v800
    %v836 = vpop.f32.mrb[0].mxu0
    %v837 = vadd.f32 %v797, %v836
    %v838 = vpop.f32.mrb[0].mxu0
    %v839 = vpop.f32.mrb[0].mxu0
    %v840 = vadd.f32 %v797, %v839
    %v841 = vpop.f32.mrb[0].mxu0
    %842 = vdwg.mxu0
    %v843 = vadd.f32 %v123, %v837
    %v844 = vadd.f32 %v124, %v840
    %v845 = vld [vmem:[#allocation13 + $0x3] sm:$0x1]
    %v846 = vld [vmem:[#allocation13 + $0x4] sm:$0x1]
    %v847 = vsel %vm135, %v843, 0.0
    %848 = vadd.xlane.f32.xlu0 %v847
    %v849 = vpop.xlane.xlu0 %848
    %v850 = vsel %vm135, %v844, 0.0
    %851 = vadd.xlane.f32.xlu0 %v850
    %v852 = vpop.xlane.xlu0 %851
    %v853 = vmul.f32 %v849, %v142
    %v854 = vmul.f32 %v852, %v142
    %v855 = vsub.f32 %v843, %v853
    %v856 = vsub.f32 %v844, %v854
    %v857 = vmul.f32 %v855, %v855
    %v858 = vmul.f32 %v856, %v856
    %v859 = vsel %vm135, %v857, 0.0
    %860 = vadd.xlane.f32.xlu0 %v859
    %v861 = vpop.xlane.xlu0 %860
    %v862 = vsel %vm135, %v858, 0.0
    %863 = vadd.xlane.f32.xlu0 %v862
    %v864 = vpop.xlane.xlu0 %863
    %v865 = vmul.f32 %v861, 0.032258064
    %v866 = vmul.f32 %v864, 0.032258064
    %v867 = vrsqrt.pop %v865
    %v868 = vmul.f32 %v865, %v867
    %vm869 = vcmp.eq.f32.partialorder %v865, inf
    %v870 = vsel %vm869, %v865, %v868
    %vm871 = vcmp.eq.f32.partialorder %v865, 0.0
    %v872 = vand.u32 %v865, 2147483648
    %v873 = vsel %vm871, %v872, %v870
    %v874 = vrsqrt.pop %v866
    %v875 = vmul.f32 %v866, %v874
    %vm876 = vcmp.eq.f32.partialorder %v866, inf
    %v877 = vsel %vm876, %v866, %v875
    %vm878 = vcmp.eq.f32.partialorder %v866, 0.0
    %v879 = vand.u32 %v866, 2147483648
    %v880 = vsel %vm878, %v879, %v877
    %v881 = vadd.f32 %v873, 1e-06
    %v882 = vadd.f32 %v880, 1e-06
    %v883 = vrcp.pop %v881
    %v884 = vrcp.pop %v882
    %v885 = vlaneseq
    %v886 = vshrl.u32 %v885, 7
    %v887 = vsub.s32 0, %v886
    %v888 = vrot.slane %v845, %v887
    %v889 = vmul.f32 %v888, %v855
    %v890 = vmul.f32 %v888, %v856
    %v891 = vmul.f32 %v889, %v883
    %v892 = vmul.f32 %v890, %v884
    %v893 = vlaneseq
    %v894 = vshrl.u32 %v893, 7
    %v895 = vsub.s32 0, %v894
    %v896 = vrot.slane %v846, %v895
    %v897 = vadd.f32 %v891, %v896
    %v898 = vadd.f32 %v892, %v896
    %v899 = vld [vmem:[#allocation11 + $0x10] sm:$0xf]
    %v900 = vld [vmem:[#allocation11 + $0x14] sm:$0xf]
    %v901 = vld [vmem:[#allocation11 + $0x18] sm:$0xf]
    %v902 = vld [vmem:[#allocation11 + $0x1c] sm:$0xf]
    %v903 = vld [vmem:[#allocation13 + $0x5] sm:$0x1]
    %v904 = vld [vmem:[#allocation11 + $0x20] sm:$0xf]
    %v905 = vld [vmem:[#allocation11 + $0x24] sm:$0xf]
    %v906 = vld [vmem:[#allocation11 + $0x28] sm:$0xf]
    %v907 = vld [vmem:[#allocation11 + $0x2c] sm:$0xf]
    %v908 = vld [vmem:[#allocation11 + $0x30] sm:$0xf]
    %v909 = vld [vmem:[#allocation11 + $0x34] sm:$0xf]
    %v910 = vld [vmem:[#allocation11 + $0x38] sm:$0xf]
    %v911 = vld [vmem:[#allocation11 + $0x3c] sm:$0xf]
    %v912 = vld [vmem:[#allocation11 + $0x40] sm:$0xf]
    %v913 = vld [vmem:[#allocation11 + $0x44] sm:$0xf]
    %v914 = vld [vmem:[#allocation11 + $0x48] sm:$0xf]
    %v915 = vld [vmem:[#allocation11 + $0x4c] sm:$0xf]
    %v916 = vld [vmem:[#allocation11 + $0x50] sm:$0xf]
    %v917 = vld [vmem:[#allocation11 + $0x54] sm:$0xf]
    %v918 = vld [vmem:[#allocation11 + $0x58] sm:$0xf]
    %v919 = vld [vmem:[#allocation11 + $0x5c] sm:$0xf]
    %v920 = vld [vmem:[#allocation13 + $0x6] sm:$0x1]
    %v921 = vpack.c.bf16 %v898, %v897
    %v922 = vlaneseq
    %v923 = vshrl.u32 %v922, 7
    %v924 = vsub.s32 0, %v923
    %v925 = vrot.slane %v903, %v924
    %v930 = vunpack.c.l.b16 %v899
    %v931 = vunpack.c.l.b16 %v900
    %v932 = vunpack.c.l.b16 %v901
    %v933 = vunpack.c.l.b16 %v902
    %v934 = vpack.c.b16 %v931, %v930
    %v935 = vpack.c.b16 %v933, %v932
    %v939 = vsel %vm135, %v921, 0
    %941 = vmatprep.subr.bf16.mxu0 0
    %942 = vmatpush1.bf16.msra.mxu0 %v934
    %943 = vmatprep.subr.bf16.mxu0 0
    %944 = vmatpush1.bf16.msra.mxu0 %v935
    %945 = vmatprep.subr.bf16.mxu0 0
    %946 = vmatpush1.bf16.msra.mxu0 0
    %947 = vmatprep.subr.bf16.mxu0 0
    %948 = vmatpush1.bf16.msra.mxu0 0
    %949 = vmatprep.subr.bf16.mxu0 0
    %950 = vmatpush1.bf16.msra.mxu0 0
    %951 = vmatprep.subr.bf16.mxu0 0
    %952 = vmatpush1.bf16.msra.mxu0 0
    %953 = vmatprep.subr.bf16.mxu0 0
    %954 = vmatpush1.bf16.msra.mxu0 0
    %955 = vmatprep.subr.bf16.mxu0 0
    %956 = vmatpush1.bf16.msra.mxu0 0
    %957 = vmatprep.subr.bf16.mxu0 0
    %958 = vmatpush1.bf16.msra.mxu0 0
    %959 = vmatprep.subr.bf16.mxu0 0
    %960 = vmatpush1.bf16.msra.mxu0 0
    %961 = vmatprep.subr.bf16.mxu0 0
    %962 = vmatpush1.bf16.msra.mxu0 0
    %963 = vmatprep.subr.bf16.mxu0 0
    %964 = vmatpush1.bf16.msra.mxu0 0
    %965 = vmatprep.subr.bf16.mxu0 0
    %966 = vmatpush1.bf16.msra.mxu0 0
    %967 = vmatprep.subr.bf16.mxu0 0
    %968 = vmatpush1.bf16.msra.mxu0 0
    %969 = vmatprep.subr.bf16.mxu0 0
    %970 = vmatpush1.bf16.msra.mxu0 0
    %971 = vmatprep.subr.bf16.mxu0 0
    %972 = vmatpush1.bf16.msra.mxu0 0
    %973 = vmatprep.mubr.bf16.mxu0 0
    %974 = vmatmul.mubr.bf16.gmra.mrb[0].mxu0 %v939
    %v975 = vpop.f32.mrb[0].mxu0
    %v976 = vadd.f32 %v925, %v975
    %v977 = vpop.f32.mrb[0].mxu0
    %v978 = vpop.f32.mrb[0].mxu0
    %v979 = vadd.f32 %v925, %v978
    %v980 = vpop.f32.mrb[0].mxu0
    %981 = vdwg.mxu0
    %v982 = vmax.f32 %v976, 0.0
    %v983 = vmax.f32 %v979, 0.0
    %v984 = vpack.c.bf16 %v983, %v982
    %v985 = vlaneseq
    %v986 = vshrl.u32 %v985, 7
    %v987 = vsub.s32 0, %v986
    %v988 = vrot.slane %v920, %v987
    %v1005 = vunpack.c.l.b16 %v904
    %v1006 = vunpack.c.l.b16 %v905
    %v1007 = vunpack.c.l.b16 %v906
    %v1008 = vunpack.c.l.b16 %v907
    %v1009 = vunpack.c.l.b16 %v908
    %v1010 = vunpack.c.l.b16 %v909
    %v1011 = vunpack.c.l.b16 %v910
    %v1012 = vunpack.c.l.b16 %v911
    %v1013 = vunpack.c.l.b16 %v912
    %v1014 = vunpack.c.l.b16 %v913
    %v1015 = vunpack.c.l.b16 %v914
    %v1016 = vunpack.c.l.b16 %v915
    %v1017 = vunpack.c.l.b16 %v916
    %v1018 = vunpack.c.l.b16 %v917
    %v1019 = vunpack.c.l.b16 %v918
    %v1020 = vunpack.c.l.b16 %v919
    %v1021 = vpack.c.b16 %v1006, %v1005
    %v1022 = vpack.c.b16 %v1008, %v1007
    %v1023 = vpack.c.b16 %v1010, %v1009
    %v1024 = vpack.c.b16 %v1012, %v1011
    %v1025 = vpack.c.b16 %v1014, %v1013
    %v1026 = vpack.c.b16 %v1016, %v1015
    %v1027 = vpack.c.b16 %v1018, %v1017
    %v1028 = vpack.c.b16 %v1020, %v1019
    %1037 = vmatprep.subr.bf16.mxu0 0
    %1038 = vmatpush1.bf16.msra.mxu0 %v1021
    %1039 = vmatprep.subr.bf16.mxu0 0
    %1040 = vmatpush1.bf16.msra.mxu0 %v1022
    %1041 = vmatprep.subr.bf16.mxu0 0
    %1042 = vmatpush1.bf16.msra.mxu0 %v1023
    %1043 = vmatprep.subr.bf16.mxu0 0
    %1044 = vmatpush1.bf16.msra.mxu0 %v1024
    %1045 = vmatprep.subr.bf16.mxu0 0
    %1046 = vmatpush1.bf16.msra.mxu0 %v1025
    %1047 = vmatprep.subr.bf16.mxu0 0
    %1048 = vmatpush1.bf16.msra.mxu0 %v1026
    %1049 = vmatprep.subr.bf16.mxu0 0
    %1050 = vmatpush1.bf16.msra.mxu0 %v1027
    %1051 = vmatprep.subr.bf16.mxu0 0
    %1052 = vmatpush1.bf16.msra.mxu0 %v1028
    %1053 = vmatprep.subr.bf16.mxu0 0
    %1054 = vmatpush1.bf16.msra.mxu0 0
    %1055 = vmatprep.subr.bf16.mxu0 0
    %1056 = vmatpush1.bf16.msra.mxu0 0
    %1057 = vmatprep.subr.bf16.mxu0 0
    %1058 = vmatpush1.bf16.msra.mxu0 0
    %1059 = vmatprep.subr.bf16.mxu0 0
    %1060 = vmatpush1.bf16.msra.mxu0 0
    %1061 = vmatprep.subr.bf16.mxu0 0
    %1062 = vmatpush1.bf16.msra.mxu0 0
    %1063 = vmatprep.subr.bf16.mxu0 0
    %1064 = vmatpush1.bf16.msra.mxu0 0
    %1065 = vmatprep.subr.bf16.mxu0 0
    %1066 = vmatpush1.bf16.msra.mxu0 0
    %1067 = vmatprep.subr.bf16.mxu0 0
    %1068 = vmatpush1.bf16.msra.mxu0 0
    %1069 = vmatprep.mubr.bf16.mxu0 0
    %1070 = vmatmul.mubr.bf16.gmra.mrb[0].mxu0 %v984
    %v1071 = vpop.f32.mrb[0].mxu0
    %v1072 = vadd.f32 %v988, %v1071
    %v1073 = vpop.f32.mrb[0].mxu0
    %v1074 = vpop.f32.mrb[0].mxu0
    %v1075 = vadd.f32 %v988, %v1074
    %v1076 = vpop.f32.mrb[0].mxu0
    %1077 = vdwg.mxu0
    %v1078 = vadd.f32 %v843, %v1072
    %v1079 = vadd.f32 %v844, %v1075
    %v1080 = vld [vmem:[#allocation13 + $0x7] sm:$0x1]
    %v1081 = vld [vmem:[#allocation13 + $0x8] sm:$0x1]
    %v1082 = vsel %vm135, %v1078, 0.0
    %1083 = vadd.xlane.f32.xlu0 %v1082
    %v1084 = vpop.xlane.xlu0 %1083
    %v1085 = vsel %vm135, %v1079, 0.0
    %1086 = vadd.xlane.f32.xlu0 %v1085
    %v1087 = vpop.xlane.xlu0 %1086
    %v1088 = vmul.f32 %v1084, %v142
    %v1089 = vmul.f32 %v1087, %v142
    %v1090 = vsub.f32 %v1078, %v1088
    %v1091 = vsub.f32 %v1079, %v1089
    %v1092 = vmul.f32 %v1090, %v1090
    %v1093 = vmul.f32 %v1091, %v1091
    %v1094 = vsel %vm135, %v1092, 0.0
    %1095 = vadd.xlane.f32.xlu0 %v1094
    %v1096 = vpop.xlane.xlu0 %1095
    %v1097 = vsel %vm135, %v1093, 0.0
    %1098 = vadd.xlane.f32.xlu0 %v1097
    %v1099 = vpop.xlane.xlu0 %1098
    %v1100 = vmul.f32 %v1096, 0.032258064
    %v1101 = vmul.f32 %v1099, 0.032258064
    %v1102 = vrsqrt.pop %v1100
    %v1103 = vmul.f32 %v1100, %v1102
    %vm1104 = vcmp.eq.f32.partialorder %v1100, inf
    %v1105 = vsel %vm1104, %v1100, %v1103
    %vm1106 = vcmp.eq.f32.partialorder %v1100, 0.0
    %v1107 = vand.u32 %v1100, 2147483648
    %v1108 = vsel %vm1106, %v1107, %v1105
    %v1109 = vrsqrt.pop %v1101
    %v1110 = vmul.f32 %v1101, %v1109
    %vm1111 = vcmp.eq.f32.partialorder %v1101, inf
    %v1112 = vsel %vm1111, %v1101, %v1110
    %vm1113 = vcmp.eq.f32.partialorder %v1101, 0.0
    %v1114 = vand.u32 %v1101, 2147483648
    %v1115 = vsel %vm1113, %v1114, %v1112
    %v1116 = vadd.f32 %v1108, 1e-06
    %v1117 = vadd.f32 %v1115, 1e-06
    %v1118 = vrcp.pop %v1116
    %v1119 = vrcp.pop %v1117
    %v1120 = vlaneseq
    %v1121 = vshrl.u32 %v1120, 7
    %v1122 = vsub.s32 0, %v1121
    %v1123 = vrot.slane %v1080, %v1122
    %v1124 = vmul.f32 %v1123, %v1090
    %v1125 = vmul.f32 %v1123, %v1091
    %v1126 = vmul.f32 %v1124, %v1118
    %v1127 = vmul.f32 %v1125, %v1119
    %v1128 = vlaneseq
    %v1129 = vshrl.u32 %v1128, 7
    %v1130 = vsub.s32 0, %v1129
    %v1131 = vrot.slane %v1081, %v1130
    %v1132 = vadd.f32 %v1126, %v1131
    %v1133 = vadd.f32 %v1127, %v1131
    %v1134 = vld [vmem:[#allocation11 + $0x60] sm:$0xf]
    %v1135 = vld [vmem:[#allocation11 + $0x64] sm:$0xf]
    %v1136 = vld [vmem:[#allocation11 + $0x68] sm:$0xf]
    %v1137 = vld [vmem:[#allocation11 + $0x6c] sm:$0xf]
    %v1138 = vld [vmem:[#allocation13 + $0x9] sm:$0x1]
    %v1139 = vpack.c.bf16 %v1133, %v1132
    %v1140 = vlaneseq
    %v1141 = vshrl.u32 %v1140, 7
    %v1142 = vsub.s32 0, %v1141
    %v1143 = vrot.slane %v1138, %v1142
    %v1148 = vunpack.c.l.b16 %v1134
    %v1149 = vunpack.c.l.b16 %v1135
    %v1150 = vunpack.c.l.b16 %v1136
    %v1151 = vunpack.c.l.b16 %v1137
    %v1152 = vpack.c.b16 %v1149, %v1148
    %v1153 = vpack.c.b16 %v1151, %v1150
    %v1157 = vsel %vm135, %v1139, 0
    %1159 = vmatprep.subr.bf16.mxu0 0
    %1160 = vmatpush1.bf16.msra.mxu0 %v1152
    %1161 = vmatprep.subr.bf16.mxu0 0
    %1162 = vmatpush1.bf16.msra.mxu0 %v1153
    %1163 = vmatprep.subr.bf16.mxu0 0
    %1164 = vmatpush1.bf16.msra.mxu0 0
    %1165 = vmatprep.subr.bf16.mxu0 0
    %1166 = vmatpush1.bf16.msra.mxu0 0
    %1167 = vmatprep.subr.bf16.mxu0 0
    %1168 = vmatpush1.bf16.msra.mxu0 0
    %1169 = vmatprep.subr.bf16.mxu0 0
    %1170 = vmatpush1.bf16.msra.mxu0 0
    %1171 = vmatprep.subr.bf16.mxu0 0
    %1172 = vmatpush1.bf16.msra.mxu0 0
    %1173 = vmatprep.subr.bf16.mxu0 0
    %1174 = vmatpush1.bf16.msra.mxu0 0
    %1175 = vmatprep.subr.bf16.mxu0 0
    %1176 = vmatpush1.bf16.msra.mxu0 0
    %1177 = vmatprep.subr.bf16.mxu0 0
    %1178 = vmatpush1.bf16.msra.mxu0 0
    %1179 = vmatprep.subr.bf16.mxu0 0
    %1180 = vmatpush1.bf16.msra.mxu0 0
    %1181 = vmatprep.subr.bf16.mxu0 0
    %1182 = vmatpush1.bf16.msra.mxu0 0
    %1183 = vmatprep.subr.bf16.mxu0 0
    %1184 = vmatpush1.bf16.msra.mxu0 0
    %1185 = vmatprep.subr.bf16.mxu0 0
    %1186 = vmatpush1.bf16.msra.mxu0 0
    %1187 = vmatprep.subr.bf16.mxu0 0
    %1188 = vmatpush1.bf16.msra.mxu0 0
    %1189 = vmatprep.subr.bf16.mxu0 0
    %1190 = vmatpush1.bf16.msra.mxu0 0
    %1191 = vmatprep.mubr.bf16.mxu0 0
    %1192 = vmatmul.mubr.bf16.gmra.mrb[0].mxu0 %v1157
    %v1193 = vpop.f32.mrb[0].mxu0
    %v1194 = vadd.f32 %v1143, %v1193
    %v1195 = vpop.f32.mrb[0].mxu0
    %v1196 = vpop.f32.mrb[0].mxu0
    %v1197 = vadd.f32 %v1143, %v1196
    %v1198 = vpop.f32.mrb[0].mxu0
    %1199 = vdwg.mxu0
    %v1200 = vpack.c.bf16 %v1197, %v1194
    %1202 = vrot.lane.b32.xlu0 %v1200, 96
    %v1203 = vpop.permute.xlu0 %1202
    %v1205 = vsel %vm259, %v1200, 0
    %v1208 = vsel %vm259, %v1203, 0
    %1210 = vmatprep.subr.bf16.mxu0 0
    %1211 = vmatpush1.bf16.xpose.msra.mxu0 %v1208
    %1212 = vmatprep.subr.bf16.mxu0 0
    %1213 = vmatpush1.bf16.xpose.msra.mxu0 0
    %1214 = vmatprep.subr.bf16.mxu0 0
    %1215 = vmatpush1.bf16.xpose.msra.mxu0 0
    %1216 = vmatprep.subr.bf16.mxu0 0
    %1217 = vmatpush1.bf16.xpose.msra.mxu0 0
    %1218 = vmatprep.subr.bf16.mxu0 0
    %1219 = vmatpush1.bf16.xpose.msra.mxu0 0
    %1220 = vmatprep.subr.bf16.mxu0 0
    %1221 = vmatpush1.bf16.xpose.msra.mxu0 0
    %1222 = vmatprep.subr.bf16.mxu0 0
    %1223 = vmatpush1.bf16.xpose.msra.mxu0 0
    %1224 = vmatprep.subr.bf16.mxu0 0
    %1225 = vmatpush1.bf16.xpose.msra.mxu0 0
    %1226 = vmatprep.subr.bf16.mxu0 0
    %1227 = vmatpush1.bf16.xpose.msra.mxu0 0
    %1228 = vmatprep.subr.bf16.mxu0 0
    %1229 = vmatpush1.bf16.xpose.msra.mxu0 0
    %1230 = vmatprep.subr.bf16.mxu0 0
    %1231 = vmatpush1.bf16.xpose.msra.mxu0 0
    %1232 = vmatprep.subr.bf16.mxu0 0
    %1233 = vmatpush1.bf16.xpose.msra.mxu0 0
    %1234 = vmatprep.subr.bf16.mxu0 0
    %1235 = vmatpush1.bf16.xpose.msra.mxu0 0
    %1236 = vmatprep.subr.bf16.mxu0 0
    %1237 = vmatpush1.bf16.xpose.msra.mxu0 0
    %1238 = vmatprep.subr.bf16.mxu0 0
    %1239 = vmatpush1.bf16.xpose.msra.mxu0 0
    %1240 = vmatprep.subr.bf16.mxu0 0
    %1241 = vmatpush1.bf16.xpose.msra.mxu0 0
    %1242 = vmatprep.mubr.bf16.mxu0 0
    %1243 = vmatmul.mubr.bf16.gmra.mrb[0].mxu0 %v1205
    %v1244 = vpop.f32.mrb[0].mxu0
    %v1245 = vadd.f32 0.0, %v1244
    %v1246 = vpop.f32.mrb[0].mxu0
    %v1247 = vpop.f32.mrb[0].mxu0
    %v1248 = vadd.f32 0.0, %v1247
    %v1249 = vpop.f32.mrb[0].mxu0
    %1250 = vdwg.mxu0
    %v1251 = vmul.f32 %v1245, 0.35355338
    %v1252 = vmul.f32 %v1248, 0.35355338
    %v1253 = vadd.f32 %v1251, %v127
    %v1254 = vadd.f32 %v1252, %v128
    %v1255 = vsel %vm311, %v1253, -inf
    %1256 = vmax.xlane.f32.xlu0 %v1255
    %v1257 = vpop.xlane.xlu0 %1256
    %v1258 = vsel %vm311, %v1254, -inf
    %1259 = vmax.xlane.f32.xlu0 %v1258
    %v1260 = vpop.xlane.xlu0 %1259
    %v1261 = vsub.f32 %v1253, %v1257
    %v1262 = vsub.f32 %v1254, %v1260
    %v1263 = vmul.f32 %v1261, 1.442695
    %v1264 = vpow.pop %v1263
    %v1265 = vmul.f32 %v1262, 1.442695
    %v1266 = vpow.pop %v1265
    %v1267 = vsel %vm311, %v1264, 0.0
    %1268 = vadd.xlane.f32.xlu0 %v1267
    %v1269 = vpop.xlane.xlu0 %1268
    %v1270 = vsel %vm311, %v1266, 0.0
    %1271 = vadd.xlane.f32.xlu0 %v1270
    %v1272 = vpop.xlane.xlu0 %1271
    %v1273 = vrcp.pop %v1269
    %v1274 = vrcp.pop %v1272
    %v1275 = vmul.f32 %v1264, %v1273
    %v1276 = vmul.f32 %v1266, %v1274
    %v1277 = vpack.c.bf16 %v1276, %v1275
    %1278 = vrot.lane.b32.xlu0 %v1200, 64
    %v1279 = vpop.permute.xlu0 %1278
    %v1282 = vsel %vm311, %v1277, 0
    %1284 = vmatprep.subr.bf16.mxu0 0
    %1285 = vmatpush1.bf16.msra.mxu0 %v1279
    %1286 = vmatprep.subr.bf16.mxu0 0
    %1287 = vmatpush1.bf16.msra.mxu0 0
    %1288 = vmatprep.subr.bf16.mxu0 0
    %1289 = vmatpush1.bf16.msra.mxu0 0
    %1290 = vmatprep.subr.bf16.mxu0 0
    %1291 = vmatpush1.bf16.msra.mxu0 0
    %1292 = vmatprep.subr.bf16.mxu0 0
    %1293 = vmatpush1.bf16.msra.mxu0 0
    %1294 = vmatprep.subr.bf16.mxu0 0
    %1295 = vmatpush1.bf16.msra.mxu0 0
    %1296 = vmatprep.subr.bf16.mxu0 0
    %1297 = vmatpush1.bf16.msra.mxu0 0
    %1298 = vmatprep.subr.bf16.mxu0 0
    %1299 = vmatpush1.bf16.msra.mxu0 0
    %1300 = vmatprep.subr.bf16.mxu0 0
    %1301 = vmatpush1.bf16.msra.mxu0 0
    %1302 = vmatprep.subr.bf16.mxu0 0
    %1303 = vmatpush1.bf16.msra.mxu0 0
    %1304 = vmatprep.subr.bf16.mxu0 0
    %1305 = vmatpush1.bf16.msra.mxu0 0
    %1306 = vmatprep.subr.bf16.mxu0 0
    %1307 = vmatpush1.bf16.msra.mxu0 0
    %1308 = vmatprep.subr.bf16.mxu0 0
    %1309 = vmatpush1.bf16.msra.mxu0 0
    %1310 = vmatprep.subr.bf16.mxu0 0
    %1311 = vmatpush1.bf16.msra.mxu0 0
    %1312 = vmatprep.subr.bf16.mxu0 0
    %1313 = vmatpush1.bf16.msra.mxu0 0
    %1314 = vmatprep.subr.bf16.mxu0 0
    %1315 = vmatpush1.bf16.msra.mxu0 0
    %1316 = vmatprep.mubr.bf16.mxu0 0
    %1317 = vmatmul.mubr.bf16.gmra.mrb[0].mxu0 %v1282
    %v1318 = vpop.f32.mrb[0].mxu0
    %v1319 = vadd.f32 0.0, %v1318
    %v1320 = vpop.f32.mrb[0].mxu0
    %v1321 = vpop.f32.mrb[0].mxu0
    %v1322 = vadd.f32 0.0, %v1321
    %v1323 = vpop.f32.mrb[0].mxu0
    %1324 = vdwg.mxu0
    %1325 = vrot.lane.b32.xlu0 %v1200, 120
    %v1326 = vpop.permute.xlu0 %1325
    %1327 = vrot.lane.b32.xlu0 %v1200, 88
    %v1328 = vpop.permute.xlu0 %1327
    %v1330 = vsel %vm259, %v1326, 0
    %v1333 = vsel %vm259, %v1328, 0
    %1335 = vmatprep.subr.bf16.mxu0 0
    %1336 = vmatpush1.bf16.xpose.msra.mxu0 %v1333
    %1337 = vmatprep.subr.bf16.mxu0 0
    %1338 = vmatpush1.bf16.xpose.msra.mxu0 0
    %1339 = vmatprep.subr.bf16.mxu0 0
    %1340 = vmatpush1.bf16.xpose.msra.mxu0 0
    %1341 = vmatprep.subr.bf16.mxu0 0
    %1342 = vmatpush1.bf16.xpose.msra.mxu0 0
    %1343 = vmatprep.subr.bf16.mxu0 0
    %1344 = vmatpush1.bf16.xpose.msra.mxu0 0
    %1345 = vmatprep.subr.bf16.mxu0 0
    %1346 = vmatpush1.bf16.xpose.msra.mxu0 0
    %1347 = vmatprep.subr.bf16.mxu0 0
    %1348 = vmatpush1.bf16.xpose.msra.mxu0 0
    %1349 = vmatprep.subr.bf16.mxu0 0
    %1350 = vmatpush1.bf16.xpose.msra.mxu0 0
    %1351 = vmatprep.subr.bf16.mxu0 0
    %1352 = vmatpush1.bf16.xpose.msra.mxu0 0
    %1353 = vmatprep.subr.bf16.mxu0 0
    %1354 = vmatpush1.bf16.xpose.msra.mxu0 0
    %1355 = vmatprep.subr.bf16.mxu0 0
    %1356 = vmatpush1.bf16.xpose.msra.mxu0 0
    %1357 = vmatprep.subr.bf16.mxu0 0
    %1358 = vmatpush1.bf16.xpose.msra.mxu0 0
    %1359 = vmatprep.subr.bf16.mxu0 0
    %1360 = vmatpush1.bf16.xpose.msra.mxu0 0
    %1361 = vmatprep.subr.bf16.mxu0 0
    %1362 = vmatpush1.bf16.xpose.msra.mxu0 0
    %1363 = vmatprep.subr.bf16.mxu0 0
    %1364 = vmatpush1.bf16.xpose.msra.mxu0 0
    %1365 = vmatprep.subr.bf16.mxu0 0
    %1366 = vmatpush1.bf16.xpose.msra.mxu0 0
    %1367 = vmatprep.mubr.bf16.mxu0 0
    %1368 = vmatmul.mubr.bf16.gmra.mrb[0].mxu0 %v1330
    %v1369 = vpop.f32.mrb[0].mxu0
    %v1370 = vadd.f32 0.0, %v1369
    %v1371 = vpop.f32.mrb[0].mxu0
    %v1372 = vpop.f32.mrb[0].mxu0
    %v1373 = vadd.f32 0.0, %v1372
    %v1374 = vpop.f32.mrb[0].mxu0
    %1375 = vdwg.mxu0
    %v1376 = vmul.f32 %v1370, 0.35355338
    %v1377 = vmul.f32 %v1373, 0.35355338
    %v1378 = vadd.f32 %v1376, %v127
    %v1379 = vadd.f32 %v1377, %v128
    %v1380 = vsel %vm311, %v1378, -inf
    %1381 = vmax.xlane.f32.xlu0 %v1380
    %v1382 = vpop.xlane.xlu0 %1381
    %v1383 = vsel %vm311, %v1379, -inf
    %1384 = vmax.xlane.f32.xlu0 %v1383
    %v1385 = vpop.xlane.xlu0 %1384
    %v1386 = vsub.f32 %v1378, %v1382
    %v1387 = vsub.f32 %v1379, %v1385
    %v1388 = vmul.f32 %v1386, 1.442695
    %v1389 = vpow.pop %v1388
    %v1390 = vmul.f32 %v1387, 1.442695
    %v1391 = vpow.pop %v1390
    %v1392 = vsel %vm311, %v1389, 0.0
    %1393 = vadd.xlane.f32.xlu0 %v1392
    %v1394 = vpop.xlane.xlu0 %1393
    %v1395 = vsel %vm311, %v1391, 0.0
    %1396 = vadd.xlane.f32.xlu0 %v1395
    %v1397 = vpop.xlane.xlu0 %1396
    %v1398 = vrcp.pop %v1394
    %v1399 = vrcp.pop %v1397
    %v1400 = vmul.f32 %v1389, %v1398
    %v1401 = vmul.f32 %v1391, %v1399
    %v1402 = vpack.c.bf16 %v1401, %v1400
    %1403 = vrot.lane.b32.xlu0 %v1200, 56
    %v1404 = vpop.permute.xlu0 %1403
    %v1407 = vsel %vm311, %v1402, 0
    %1409 = vmatprep.subr.bf16.mxu0 0
    %1410 = vmatpush1.bf16.msra.mxu0 %v1404
    %1411 = vmatprep.subr.bf16.mxu0 0
    %1412 = vmatpush1.bf16.msra.mxu0 0
    %1413 = vmatprep.subr.bf16.mxu0 0
    %1414 = vmatpush1.bf16.msra.mxu0 0
    %1415 = vmatprep.subr.bf16.mxu0 0
    %1416 = vmatpush1.bf16.msra.mxu0 0
    %1417 = vmatprep.subr.bf16.mxu0 0
    %1418 = vmatpush1.bf16.msra.mxu0 0
    %1419 = vmatprep.subr.bf16.mxu0 0
    %1420 = vmatpush1.bf16.msra.mxu0 0
    %1421 = vmatprep.subr.bf16.mxu0 0
    %1422 = vmatpush1.bf16.msra.mxu0 0
    %1423 = vmatprep.subr.bf16.mxu0 0
    %1424 = vmatpush1.bf16.msra.mxu0 0
    %1425 = vmatprep.subr.bf16.mxu0 0
    %1426 = vmatpush1.bf16.msra.mxu0 0
    %1427 = vmatprep.subr.bf16.mxu0 0
    %1428 = vmatpush1.bf16.msra.mxu0 0
    %1429 = vmatprep.subr.bf16.mxu0 0
    %1430 = vmatpush1.bf16.msra.mxu0 0
    %1431 = vmatprep.subr.bf16.mxu0 0
    %1432 = vmatpush1.bf16.msra.mxu0 0
    %1433 = vmatprep.subr.bf16.mxu0 0
    %1434 = vmatpush1.bf16.msra.mxu0 0
    %1435 = vmatprep.subr.bf16.mxu0 0
    %1436 = vmatpush1.bf16.msra.mxu0 0
    %1437 = vmatprep.subr.bf16.mxu0 0
    %1438 = vmatpush1.bf16.msra.mxu0 0
    %1439 = vmatprep.subr.bf16.mxu0 0
    %1440 = vmatpush1.bf16.msra.mxu0 0
    %1441 = vmatprep.mubr.bf16.mxu0 0
    %1442 = vmatmul.mubr.bf16.gmra.mrb[0].mxu0 %v1407
    %v1443 = vpop.f32.mrb[0].mxu0
    %v1444 = vadd.f32 0.0, %v1443
    %v1445 = vpop.f32.mrb[0].mxu0
    %v1446 = vpop.f32.mrb[0].mxu0
    %v1447 = vadd.f32 0.0, %v1446
    %v1448 = vpop.f32.mrb[0].mxu0
    %1449 = vdwg.mxu0
    %1450 = vrot.lane.b32.xlu0 %v1200, 112
    %v1451 = vpop.permute.xlu0 %1450
    %1452 = vrot.lane.b32.xlu0 %v1200, 80
    %v1453 = vpop.permute.xlu0 %1452
    %v1455 = vsel %vm259, %v1451, 0
    %v1458 = vsel %vm259, %v1453, 0
    %1460 = vmatprep.subr.bf16.mxu0 0
    %1461 = vmatpush1.bf16.xpose.msra.mxu0 %v1458
    %1462 = vmatprep.subr.bf16.mxu0 0
    %1463 = vmatpush1.bf16.xpose.msra.mxu0 0
    %1464 = vmatprep.subr.bf16.mxu0 0
    %1465 = vmatpush1.bf16.xpose.msra.mxu0 0
    %1466 = vmatprep.subr.bf16.mxu0 0
    %1467 = vmatpush1.bf16.xpose.msra.mxu0 0
    %1468 = vmatprep.subr.bf16.mxu0 0
    %1469 = vmatpush1.bf16.xpose.msra.mxu0 0
    %1470 = vmatprep.subr.bf16.mxu0 0
    %1471 = vmatpush1.bf16.xpose.msra.mxu0 0
    %1472 = vmatprep.subr.bf16.mxu0 0
    %1473 = vmatpush1.bf16.xpose.msra.mxu0 0
    %1474 = vmatprep.subr.bf16.mxu0 0
    %1475 = vmatpush1.bf16.xpose.msra.mxu0 0
    %1476 = vmatprep.subr.bf16.mxu0 0
    %1477 = vmatpush1.bf16.xpose.msra.mxu0 0
    %1478 = vmatprep.subr.bf16.mxu0 0
    %1479 = vmatpush1.bf16.xpose.msra.mxu0 0
    %1480 = vmatprep.subr.bf16.mxu0 0
    %1481 = vmatpush1.bf16.xpose.msra.mxu0 0
    %1482 = vmatprep.subr.bf16.mxu0 0
    %1483 = vmatpush1.bf16.xpose.msra.mxu0 0
    %1484 = vmatprep.subr.bf16.mxu0 0
    %1485 = vmatpush1.bf16.xpose.msra.mxu0 0
    %1486 = vmatprep.subr.bf16.mxu0 0
    %1487 = vmatpush1.bf16.xpose.msra.mxu0 0
    %1488 = vmatprep.subr.bf16.mxu0 0
    %1489 = vmatpush1.bf16.xpose.msra.mxu0 0
    %1490 = vmatprep.subr.bf16.mxu0 0
    %1491 = vmatpush1.bf16.xpose.msra.mxu0 0
    %1492 = vmatprep.mubr.bf16.mxu0 0
    %1493 = vmatmul.mubr.bf16.gmra.mrb[0].mxu0 %v1455
    %v1494 = vpop.f32.mrb[0].mxu0
    %v1495 = vadd.f32 0.0, %v1494
    %v1496 = vpop.f32.mrb[0].mxu0
    %v1497 = vpop.f32.mrb[0].mxu0
    %v1498 = vadd.f32 0.0, %v1497
    %v1499 = vpop.f32.mrb[0].mxu0
    %1500 = vdwg.mxu0
    %v1501 = vmul.f32 %v1495, 0.35355338
    %v1502 = vmul.f32 %v1498, 0.35355338
    %v1503 = vadd.f32 %v1501, %v127
    %v1504 = vadd.f32 %v1502, %v128
    %v1505 = vsel %vm311, %v1503, -inf
    %1506 = vmax.xlane.f32.xlu0 %v1505
    %v1507 = vpop.xlane.xlu0 %1506
    %v1508 = vsel %vm311, %v1504, -inf
    %1509 = vmax.xlane.f32.xlu0 %v1508
    %v1510 = vpop.xlane.xlu0 %1509
    %v1511 = vsub.f32 %v1503, %v1507
    %v1512 = vsub.f32 %v1504, %v1510
    %v1513 = vmul.f32 %v1511, 1.442695
    %v1514 = vpow.pop %v1513
    %v1515 = vmul.f32 %v1512, 1.442695
    %v1516 = vpow.pop %v1515
    %v1517 = vsel %vm311, %v1514, 0.0
    %1518 = vadd.xlane.f32.xlu0 %v1517
    %v1519 = vpop.xlane.xlu0 %1518
    %v1520 = vsel %vm311, %v1516, 0.0
    %1521 = vadd.xlane.f32.xlu0 %v1520
    %v1522 = vpop.xlane.xlu0 %1521
    %v1523 = vrcp.pop %v1519
    %v1524 = vrcp.pop %v1522
    %v1525 = vmul.f32 %v1514, %v1523
    %v1526 = vmul.f32 %v1516, %v1524
    %v1527 = vpack.c.bf16 %v1526, %v1525
    %1528 = vrot.lane.b32.xlu0 %v1200, 48
    %v1529 = vpop.permute.xlu0 %1528
    %v1532 = vsel %vm311, %v1527, 0
    %1534 = vmatprep.subr.bf16.mxu0 0
    %1535 = vmatpush1.bf16.msra.mxu0 %v1529
    %1536 = vmatprep.subr.bf16.mxu0 0
    %1537 = vmatpush1.bf16.msra.mxu0 0
    %1538 = vmatprep.subr.bf16.mxu0 0
    %1539 = vmatpush1.bf16.msra.mxu0 0
    %1540 = vmatprep.subr.bf16.mxu0 0
    %1541 = vmatpush1.bf16.msra.mxu0 0
    %1542 = vmatprep.subr.bf16.mxu0 0
    %1543 = vmatpush1.bf16.msra.mxu0 0
    %1544 = vmatprep.subr.bf16.mxu0 0
    %1545 = vmatpush1.bf16.msra.mxu0 0
    %1546 = vmatprep.subr.bf16.mxu0 0
    %1547 = vmatpush1.bf16.msra.mxu0 0
    %1548 = vmatprep.subr.bf16.mxu0 0
    %1549 = vmatpush1.bf16.msra.mxu0 0
    %1550 = vmatprep.subr.bf16.mxu0 0
    %1551 = vmatpush1.bf16.msra.mxu0 0
    %1552 = vmatprep.subr.bf16.mxu0 0
    %1553 = vmatpush1.bf16.msra.mxu0 0
    %1554 = vmatprep.subr.bf16.mxu0 0
    %1555 = vmatpush1.bf16.msra.mxu0 0
    %1556 = vmatprep.subr.bf16.mxu0 0
    %1557 = vmatpush1.bf16.msra.mxu0 0
    %1558 = vmatprep.subr.bf16.mxu0 0
    %1559 = vmatpush1.bf16.msra.mxu0 0
    %1560 = vmatprep.subr.bf16.mxu0 0
    %1561 = vmatpush1.bf16.msra.mxu0 0
    %1562 = vmatprep.subr.bf16.mxu0 0
    %1563 = vmatpush1.bf16.msra.mxu0 0
    %1564 = vmatprep.subr.bf16.mxu0 0
    %1565 = vmatpush1.bf16.msra.mxu0 0
    %1566 = vmatprep.mubr.bf16.mxu0 0
    %1567 = vmatmul.mubr.bf16.gmra.mrb[0].mxu0 %v1532
    %v1568 = vpop.f32.mrb[0].mxu0
    %v1569 = vadd.f32 0.0, %v1568
    %v1570 = vpop.f32.mrb[0].mxu0
    %v1571 = vpop.f32.mrb[0].mxu0
    %v1572 = vadd.f32 0.0, %v1571
    %v1573 = vpop.f32.mrb[0].mxu0
    %1574 = vdwg.mxu0
    %1575 = vrot.lane.b32.xlu0 %v1200, 104
    %v1576 = vpop.permute.xlu0 %1575
    %1577 = vrot.lane.b32.xlu0 %v1200, 72
    %v1578 = vpop.permute.xlu0 %1577
    %v1580 = vsel %vm259, %v1576, 0
    %v1583 = vsel %vm259, %v1578, 0
    %1585 = vmatprep.subr.bf16.mxu0 0
    %1586 = vmatpush1.bf16.xpose.msra.mxu0 %v1583
    %1587 = vmatprep.subr.bf16.mxu0 0
    %1588 = vmatpush1.bf16.xpose.msra.mxu0 0
    %1589 = vmatprep.subr.bf16.mxu0 0
    %1590 = vmatpush1.bf16.xpose.msra.mxu0 0
    %1591 = vmatprep.subr.bf16.mxu0 0
    %1592 = vmatpush1.bf16.xpose.msra.mxu0 0
    %1593 = vmatprep.subr.bf16.mxu0 0
    %1594 = vmatpush1.bf16.xpose.msra.mxu0 0
    %1595 = vmatprep.subr.bf16.mxu0 0
    %1596 = vmatpush1.bf16.xpose.msra.mxu0 0
    %1597 = vmatprep.subr.bf16.mxu0 0
    %1598 = vmatpush1.bf16.xpose.msra.mxu0 0
    %1599 = vmatprep.subr.bf16.mxu0 0
    %1600 = vmatpush1.bf16.xpose.msra.mxu0 0
    %1601 = vmatprep.subr.bf16.mxu0 0
    %1602 = vmatpush1.bf16.xpose.msra.mxu0 0
    %1603 = vmatprep.subr.bf16.mxu0 0
    %1604 = vmatpush1.bf16.xpose.msra.mxu0 0
    %1605 = vmatprep.subr.bf16.mxu0 0
    %1606 = vmatpush1.bf16.xpose.msra.mxu0 0
    %1607 = vmatprep.subr.bf16.mxu0 0
    %1608 = vmatpush1.bf16.xpose.msra.mxu0 0
    %1609 = vmatprep.subr.bf16.mxu0 0
    %1610 = vmatpush1.bf16.xpose.msra.mxu0 0
    %1611 = vmatprep.subr.bf16.mxu0 0
    %1612 = vmatpush1.bf16.xpose.msra.mxu0 0
    %1613 = vmatprep.subr.bf16.mxu0 0
    %1614 = vmatpush1.bf16.xpose.msra.mxu0 0
    %1615 = vmatprep.subr.bf16.mxu0 0
    %1616 = vmatpush1.bf16.xpose.msra.mxu0 0
    %1617 = vmatprep.mubr.bf16.mxu0 0
    %1618 = vmatmul.mubr.bf16.gmra.mrb[0].mxu0 %v1580
    %v1619 = vpop.f32.mrb[0].mxu0
    %v1620 = vadd.f32 0.0, %v1619
    %v1621 = vpop.f32.mrb[0].mxu0
    %v1622 = vpop.f32.mrb[0].mxu0
    %v1623 = vadd.f32 0.0, %v1622
    %v1624 = vpop.f32.mrb[0].mxu0
    %1625 = vdwg.mxu0
    %v1626 = vmul.f32 %v1620, 0.35355338
    %v1627 = vmul.f32 %v1623, 0.35355338
    %v1628 = vadd.f32 %v1626, %v127
    %v1629 = vadd.f32 %v1627, %v128
    %v1630 = vsel %vm311, %v1628, -inf
    %1631 = vmax.xlane.f32.xlu0 %v1630
    %v1632 = vpop.xlane.xlu0 %1631
    %v1633 = vsel %vm311, %v1629, -inf
    %1634 = vmax.xlane.f32.xlu0 %v1633
    %v1635 = vpop.xlane.xlu0 %1634
    %v1636 = vsub.f32 %v1628, %v1632
    %v1637 = vsub.f32 %v1629, %v1635
    %v1638 = vmul.f32 %v1636, 1.442695
    %v1639 = vpow.pop %v1638
    %v1640 = vmul.f32 %v1637, 1.442695
    %v1641 = vpow.pop %v1640
    %v1642 = vsel %vm311, %v1639, 0.0
    %1643 = vadd.xlane.f32.xlu0 %v1642
    %v1644 = vpop.xlane.xlu0 %1643
    %v1645 = vsel %vm311, %v1641, 0.0
    %1646 = vadd.xlane.f32.xlu0 %v1645
    %v1647 = vpop.xlane.xlu0 %1646
    %v1648 = vrcp.pop %v1644
    %v1649 = vrcp.pop %v1647
    %v1650 = vmul.f32 %v1639, %v1648
    %v1651 = vmul.f32 %v1641, %v1649
    %v1652 = vpack.c.bf16 %v1651, %v1650
    %1653 = vrot.lane.b32.xlu0 %v1200, 40
    %v1654 = vpop.permute.xlu0 %1653
    %v1657 = vsel %vm311, %v1652, 0
    %1659 = vmatprep.subr.bf16.mxu0 0
    %1660 = vmatpush1.bf16.msra.mxu0 %v1654
    %1661 = vmatprep.subr.bf16.mxu0 0
    %1662 = vmatpush1.bf16.msra.mxu0 0
    %1663 = vmatprep.subr.bf16.mxu0 0
    %1664 = vmatpush1.bf16.msra.mxu0 0
    %1665 = vmatprep.subr.bf16.mxu0 0
    %1666 = vmatpush1.bf16.msra.mxu0 0
    %1667 = vmatprep.subr.bf16.mxu0 0
    %1668 = vmatpush1.bf16.msra.mxu0 0
    %1669 = vmatprep.subr.bf16.mxu0 0
    %1670 = vmatpush1.bf16.msra.mxu0 0
    %1671 = vmatprep.subr.bf16.mxu0 0
    %1672 = vmatpush1.bf16.msra.mxu0 0
    %1673 = vmatprep.subr.bf16.mxu0 0
    %1674 = vmatpush1.bf16.msra.mxu0 0
    %1675 = vmatprep.subr.bf16.mxu0 0
    %1676 = vmatpush1.bf16.msra.mxu0 0
    %1677 = vmatprep.subr.bf16.mxu0 0
    %1678 = vmatpush1.bf16.msra.mxu0 0
    %1679 = vmatprep.subr.bf16.mxu0 0
    %1680 = vmatpush1.bf16.msra.mxu0 0
    %1681 = vmatprep.subr.bf16.mxu0 0
    %1682 = vmatpush1.bf16.msra.mxu0 0
    %1683 = vmatprep.subr.bf16.mxu0 0
    %1684 = vmatpush1.bf16.msra.mxu0 0
    %1685 = vmatprep.subr.bf16.mxu0 0
    %1686 = vmatpush1.bf16.msra.mxu0 0
    %1687 = vmatprep.subr.bf16.mxu0 0
    %1688 = vmatpush1.bf16.msra.mxu0 0
    %1689 = vmatprep.subr.bf16.mxu0 0
    %1690 = vmatpush1.bf16.msra.mxu0 0
    %1691 = vmatprep.mubr.bf16.mxu0 0
    %1692 = vmatmul.mubr.bf16.gmra.mrb[0].mxu0 %v1657
    %v1693 = vpop.f32.mrb[0].mxu0
    %v1694 = vadd.f32 0.0, %v1693
    %v1695 = vpop.f32.mrb[0].mxu0
    %v1696 = vpop.f32.mrb[0].mxu0
    %v1697 = vadd.f32 0.0, %v1696
    %v1698 = vpop.f32.mrb[0].mxu0
    %1699 = vdwg.mxu0
    %1702 = vrot.lane.b32.xlu0 %v1444, 8
    %v1703 = vpop.permute.xlu0 %1702
    %1704 = vrot.lane.b32.xlu0 %v1447, 8
    %v1705 = vpop.permute.xlu0 %1704
    %1710 = vrot.lane.b32.xlu0 %v1569, 16
    %v1711 = vpop.permute.xlu0 %1710
    %1712 = vrot.lane.b32.xlu0 %v1572, 16
    %v1713 = vpop.permute.xlu0 %1712
    %1718 = vrot.lane.b32.xlu0 %v1694, 24
    %v1719 = vpop.permute.xlu0 %1718
    %1720 = vrot.lane.b32.xlu0 %v1697, 24
    %v1721 = vpop.permute.xlu0 %1720
    %v1724 = vsel %vm259, %v1319, %v1703
    %v1725 = vsel %vm259, %v1322, %v1705
    %v1726 = vsel %vm311, %v1724, %v1711
    %v1727 = vsel %vm311, %v1725, %v1713
    %v1728 = vsel %vm785, %v1726, %v1719
    %v1729 = vsel %vm785, %v1727, %v1721
    %v1730 = vpack.c.bf16 %v1729, %v1728
    %1731 = vrot.lane.b32.xlu0 %v1152, 32
    %v1732 = vpop.permute.xlu0 %1731
    %1733 = vrot.lane.b32.xlu0 %v1153, 32
    %v1734 = vpop.permute.xlu0 %1733
    %1738 = vrot.lane.b32.xlu0 %v1143, 32
    %v1739 = vpop.permute.xlu0 %1738
    %v1742 = vsel %vm135, %v1730, 0
    %1744 = vmatprep.subr.bf16.mxu0 0
    %1745 = vmatpush1.bf16.msra.mxu0 %v1732
    %1746 = vmatprep.subr.bf16.mxu0 0
    %1747 = vmatpush1.bf16.msra.mxu0 %v1734
    %1748 = vmatprep.subr.bf16.mxu0 0
    %1749 = vmatpush1.bf16.msra.mxu0 0
    %1750 = vmatprep.subr.bf16.mxu0 0
    %1751 = vmatpush1.bf16.msra.mxu0 0
    %1752 = vmatprep.subr.bf16.mxu0 0
    %1753 = vmatpush1.bf16.msra.mxu0 0
    %1754 = vmatprep.subr.bf16.mxu0 0
    %1755 = vmatpush1.bf16.msra.mxu0 0
    %1756 = vmatprep.subr.bf16.mxu0 0
    %1757 = vmatpush1.bf16.msra.mxu0 0
    %1758 = vmatprep.subr.bf16.mxu0 0
    %1759 = vmatpush1.bf16.msra.mxu0 0
    %1760 = vmatprep.subr.bf16.mxu0 0
    %1761 = vmatpush1.bf16.msra.mxu0 0
    %1762 = vmatprep.subr.bf16.mxu0 0
    %1763 = vmatpush1.bf16.msra.mxu0 0
    %1764 = vmatprep.subr.bf16.mxu0 0
    %1765 = vmatpush1.bf16.msra.mxu0 0
    %1766 = vmatprep.subr.bf16.mxu0 0
    %1767 = vmatpush1.bf16.msra.mxu0 0
    %1768 = vmatprep.subr.bf16.mxu0 0
    %1769 = vmatpush1.bf16.msra.mxu0 0
    %1770 = vmatprep.subr.bf16.mxu0 0
    %1771 = vmatpush1.bf16.msra.mxu0 0
    %1772 = vmatprep.subr.bf16.mxu0 0
    %1773 = vmatpush1.bf16.msra.mxu0 0
    %1774 = vmatprep.subr.bf16.mxu0 0
    %1775 = vmatpush1.bf16.msra.mxu0 0
    %1776 = vmatprep.mubr.bf16.mxu0 0
    %1777 = vmatmul.mubr.bf16.gmra.mrb[0].mxu0 %v1742
    %v1778 = vpop.f32.mrb[0].mxu0
    %v1779 = vadd.f32 %v1739, %v1778
    %v1780 = vpop.f32.mrb[0].mxu0
    %v1781 = vpop.f32.mrb[0].mxu0
    %v1782 = vadd.f32 %v1739, %v1781
    %v1783 = vpop.f32.mrb[0].mxu0
    %1784 = vdwg.mxu0
    %v1785 = vadd.f32 %v1078, %v1779
    %v1786 = vadd.f32 %v1079, %v1782
    %v1787 = vld [vmem:[#allocation13 + $0xa] sm:$0x1]
    %v1788 = vld [vmem:[#allocation13 + $0xb] sm:$0x1]
    %v1789 = vsel %vm135, %v1785, 0.0
    %1790 = vadd.xlane.f32.xlu0 %v1789
    %v1791 = vpop.xlane.xlu0 %1790
    %v1792 = vsel %vm135, %v1786, 0.0
    %1793 = vadd.xlane.f32.xlu0 %v1792
    %v1794 = vpop.xlane.xlu0 %1793
    %v1795 = vmul.f32 %v1791, %v142
    %v1796 = vmul.f32 %v1794, %v142
    %v1797 = vsub.f32 %v1785, %v1795
    %v1798 = vsub.f32 %v1786, %v1796
    %v1799 = vmul.f32 %v1797, %v1797
    %v1800 = vmul.f32 %v1798, %v1798
    %v1801 = vsel %vm135, %v1799, 0.0
    %1802 = vadd.xlane.f32.xlu0 %v1801
    %v1803 = vpop.xlane.xlu0 %1802
    %v1804 = vsel %vm135, %v1800, 0.0
    %1805 = vadd.xlane.f32.xlu0 %v1804
    %v1806 = vpop.xlane.xlu0 %1805
    %v1807 = vmul.f32 %v1803, 0.032258064
    %v1808 = vmul.f32 %v1806, 0.032258064
    %v1809 = vrsqrt.pop %v1807
    %v1810 = vmul.f32 %v1807, %v1809
    %vm1811 = vcmp.eq.f32.partialorder %v1807, inf
    %v1812 = vsel %vm1811, %v1807, %v1810
    %vm1813 = vcmp.eq.f32.partialorder %v1807, 0.0
    %v1814 = vand.u32 %v1807, 2147483648
    %v1815 = vsel %vm1813, %v1814, %v1812
    %v1816 = vrsqrt.pop %v1808
    %v1817 = vmul.f32 %v1808, %v1816
    %vm1818 = vcmp.eq.f32.partialorder %v1808, inf
    %v1819 = vsel %vm1818, %v1808, %v1817
    %vm1820 = vcmp.eq.f32.partialorder %v1808, 0.0
    %v1821 = vand.u32 %v1808, 2147483648
    %v1822 = vsel %vm1820, %v1821, %v1819
    %v1823 = vadd.f32 %v1815, 1e-06
    %v1824 = vadd.f32 %v1822, 1e-06
    %v1825 = vrcp.pop %v1823
    %v1826 = vrcp.pop %v1824
    %v1827 = vlaneseq
    %v1828 = vshrl.u32 %v1827, 7
    %v1829 = vsub.s32 0, %v1828
    %v1830 = vrot.slane %v1787, %v1829
    %v1831 = vmul.f32 %v1830, %v1797
    %v1832 = vmul.f32 %v1830, %v1798
    %v1833 = vmul.f32 %v1831, %v1825
    %v1834 = vmul.f32 %v1832, %v1826
    %v1835 = vlaneseq
    %v1836 = vshrl.u32 %v1835, 7
    %v1837 = vsub.s32 0, %v1836
    %v1838 = vrot.slane %v1788, %v1837
    %v1839 = vadd.f32 %v1833, %v1838
    %v1840 = vadd.f32 %v1834, %v1838
    %v1841 = vld [vmem:[#allocation11 + $0x70] sm:$0xf]
    %v1842 = vld [vmem:[#allocation11 + $0x74] sm:$0xf]
    %v1843 = vld [vmem:[#allocation11 + $0x78] sm:$0xf]
    %v1844 = vld [vmem:[#allocation11 + $0x7c] sm:$0xf]
    %v1845 = vld [vmem:[#allocation13 + $0xc] sm:$0x1]
    %v1846 = vld [vmem:[#allocation11 + $0x80] sm:$0xf]
    %v1847 = vld [vmem:[#allocation11 + $0x84] sm:$0xf]
    %v1848 = vld [vmem:[#allocation11 + $0x88] sm:$0xf]
    %v1849 = vld [vmem:[#allocation11 + $0x8c] sm:$0xf]
    %v1850 = vld [vmem:[#allocation11 + $0x90] sm:$0xf]
    %v1851 = vld [vmem:[#allocation11 + $0x94] sm:$0xf]
    %v1852 = vld [vmem:[#allocation11 + $0x98] sm:$0xf]
    %v1853 = vld [vmem:[#allocation11 + $0x9c] sm:$0xf]
    %v1854 = vld [vmem:[#allocation11 + $0xa0] sm:$0xf]
    %v1855 = vld [vmem:[#allocation11 + $0xa4] sm:$0xf]
    %v1856 = vld [vmem:[#allocation11 + $0xa8] sm:$0xf]
    %v1857 = vld [vmem:[#allocation11 + $0xac] sm:$0xf]
    %v1858 = vld [vmem:[#allocation11 + $0xb0] sm:$0xf]
    %v1859 = vld [vmem:[#allocation11 + $0xb4] sm:$0xf]
    %v1860 = vld [vmem:[#allocation11 + $0xb8] sm:$0xf]
    %v1861 = vld [vmem:[#allocation11 + $0xbc] sm:$0xf]
    %v1862 = vld [vmem:[#allocation13 + $0xd] sm:$0x1]
    %v1863 = vpack.c.bf16 %v1840, %v1839
    %v1864 = vlaneseq
    %v1865 = vshrl.u32 %v1864, 7
    %v1866 = vsub.s32 0, %v1865
    %v1867 = vrot.slane %v1845, %v1866
    %v1872 = vunpack.c.l.b16 %v1841
    %v1873 = vunpack.c.l.b16 %v1842
    %v1874 = vunpack.c.l.b16 %v1843
    %v1875 = vunpack.c.l.b16 %v1844
    %v1876 = vpack.c.b16 %v1873, %v1872
    %v1877 = vpack.c.b16 %v1875, %v1874
    %v1881 = vsel %vm135, %v1863, 0
    %1883 = vmatprep.subr.bf16.mxu0 0
    %1884 = vmatpush1.bf16.msra.mxu0 %v1876
    %1885 = vmatprep.subr.bf16.mxu0 0
    %1886 = vmatpush1.bf16.msra.mxu0 %v1877
    %1887 = vmatprep.subr.bf16.mxu0 0
    %1888 = vmatpush1.bf16.msra.mxu0 0
    %1889 = vmatprep.subr.bf16.mxu0 0
    %1890 = vmatpush1.bf16.msra.mxu0 0
    %1891 = vmatprep.subr.bf16.mxu0 0
    %1892 = vmatpush1.bf16.msra.mxu0 0
    %1893 = vmatprep.subr.bf16.mxu0 0
    %1894 = vmatpush1.bf16.msra.mxu0 0
    %1895 = vmatprep.subr.bf16.mxu0 0
    %1896 = vmatpush1.bf16.msra.mxu0 0
    %1897 = vmatprep.subr.bf16.mxu0 0
    %1898 = vmatpush1.bf16.msra.mxu0 0
    %1899 = vmatprep.subr.bf16.mxu0 0
    %1900 = vmatpush1.bf16.msra.mxu0 0
    %1901 = vmatprep.subr.bf16.mxu0 0
    %1902 = vmatpush1.bf16.msra.mxu0 0
    %1903 = vmatprep.subr.bf16.mxu0 0
    %1904 = vmatpush1.bf16.msra.mxu0 0
    %1905 = vmatprep.subr.bf16.mxu0 0
    %1906 = vmatpush1.bf16.msra.mxu0 0
    %1907 = vmatprep.subr.bf16.mxu0 0
    %1908 = vmatpush1.bf16.msra.mxu0 0
    %1909 = vmatprep.subr.bf16.mxu0 0
    %1910 = vmatpush1.bf16.msra.mxu0 0
    %1911 = vmatprep.subr.bf16.mxu0 0
    %1912 = vmatpush1.bf16.msra.mxu0 0
    %1913 = vmatprep.subr.bf16.mxu0 0
    %1914 = vmatpush1.bf16.msra.mxu0 0
    %1915 = vmatprep.mubr.bf16.mxu0 0
    %1916 = vmatmul.mubr.bf16.gmra.mrb[0].mxu0 %v1881
    %v1917 = vpop.f32.mrb[0].mxu0
    %v1918 = vadd.f32 %v1867, %v1917
    %v1919 = vpop.f32.mrb[0].mxu0
    %v1920 = vpop.f32.mrb[0].mxu0
    %v1921 = vadd.f32 %v1867, %v1920
    %v1922 = vpop.f32.mrb[0].mxu0
    %1923 = vdwg.mxu0
    %v1924 = vmax.f32 %v1918, 0.0
    %v1925 = vmax.f32 %v1921, 0.0
    %v1926 = vpack.c.bf16 %v1925, %v1924
    %v1927 = vlaneseq
    %v1928 = vshrl.u32 %v1927, 7
    %v1929 = vsub.s32 0, %v1928
    %v1930 = vrot.slane %v1862, %v1929
    %v1947 = vunpack.c.l.b16 %v1846
    %v1948 = vunpack.c.l.b16 %v1847
    %v1949 = vunpack.c.l.b16 %v1848
    %v1950 = vunpack.c.l.b16 %v1849
    %v1951 = vunpack.c.l.b16 %v1850
    %v1952 = vunpack.c.l.b16 %v1851
    %v1953 = vunpack.c.l.b16 %v1852
    %v1954 = vunpack.c.l.b16 %v1853
    %v1955 = vunpack.c.l.b16 %v1854
    %v1956 = vunpack.c.l.b16 %v1855
    %v1957 = vunpack.c.l.b16 %v1856
    %v1958 = vunpack.c.l.b16 %v1857
    %v1959 = vunpack.c.l.b16 %v1858
    %v1960 = vunpack.c.l.b16 %v1859
    %v1961 = vunpack.c.l.b16 %v1860
    %v1962 = vunpack.c.l.b16 %v1861
    %v1963 = vpack.c.b16 %v1948, %v1947
    %v1964 = vpack.c.b16 %v1950, %v1949
    %v1965 = vpack.c.b16 %v1952, %v1951
    %v1966 = vpack.c.b16 %v1954, %v1953
    %v1967 = vpack.c.b16 %v1956, %v1955
    %v1968 = vpack.c.b16 %v1958, %v1957
    %v1969 = vpack.c.b16 %v1960, %v1959
    %v1970 = vpack.c.b16 %v1962, %v1961
    %1979 = vmatprep.subr.bf16.mxu0 0
    %1980 = vmatpush1.bf16.msra.mxu0 %v1963
    %1981 = vmatprep.subr.bf16.mxu0 0
    %1982 = vmatpush1.bf16.msra.mxu0 %v1964
    %1983 = vmatprep.subr.bf16.mxu0 0
    %1984 = vmatpush1.bf16.msra.mxu0 %v1965
    %1985 = vmatprep.subr.bf16.mxu0 0
    %1986 = vmatpush1.bf16.msra.mxu0 %v1966
    %1987 = vmatprep.subr.bf16.mxu0 0
    %1988 = vmatpush1.bf16.msra.mxu0 %v1967
    %1989 = vmatprep.subr.bf16.mxu0 0
    %1990 = vmatpush1.bf16.msra.mxu0 %v1968
    %1991 = vmatprep.subr.bf16.mxu0 0
    %1992 = vmatpush1.bf16.msra.mxu0 %v1969
    %1993 = vmatprep.subr.bf16.mxu0 0
    %1994 = vmatpush1.bf16.msra.mxu0 %v1970
    %1995 = vmatprep.subr.bf16.mxu0 0
    %1996 = vmatpush1.bf16.msra.mxu0 0
    %1997 = vmatprep.subr.bf16.mxu0 0
    %1998 = vmatpush1.bf16.msra.mxu0 0
    %1999 = vmatprep.subr.bf16.mxu0 0
    %2000 = vmatpush1.bf16.msra.mxu0 0
    %2001 = vmatprep.subr.bf16.mxu0 0
    %2002 = vmatpush1.bf16.msra.mxu0 0
    %2003 = vmatprep.subr.bf16.mxu0 0
    %2004 = vmatpush1.bf16.msra.mxu0 0
    %2005 = vmatprep.subr.bf16.mxu0 0
    %2006 = vmatpush1.bf16.msra.mxu0 0
    %2007 = vmatprep.subr.bf16.mxu0 0
    %2008 = vmatpush1.bf16.msra.mxu0 0
    %2009 = vmatprep.subr.bf16.mxu0 0
    %2010 = vmatpush1.bf16.msra.mxu0 0
    %2011 = vmatprep.mubr.bf16.mxu0 0
    %2012 = vmatmul.mubr.bf16.gmra.mrb[0].mxu0 %v1926
    %v2013 = vpop.f32.mrb[0].mxu0
    %v2014 = vadd.f32 %v1930, %v2013
    %v2015 = vpop.f32.mrb[0].mxu0
    %v2016 = vpop.f32.mrb[0].mxu0
    %v2017 = vadd.f32 %v1930, %v2016
    %v2018 = vpop.f32.mrb[0].mxu0
    %2019 = vdwg.mxu0
    %v2020 = vadd.f32 %v1785, %v2014
    %v2021 = vadd.f32 %v1786, %v2017
    %v2022 = vld [vmem:[#allocation13 + $0xe] sm:$0x1]
    %v2023 = vld [vmem:[#allocation13 + $0xf] sm:$0x1]
    %v2024 = vsel %vm135, %v2020, 0.0
    %2025 = vadd.xlane.f32.xlu0 %v2024
    %v2026 = vpop.xlane.xlu0 %2025
    %v2027 = vsel %vm135, %v2021, 0.0
    %2028 = vadd.xlane.f32.xlu0 %v2027
    %v2029 = vpop.xlane.xlu0 %2028
    %v2030 = vmul.f32 %v2026, %v142
    %v2031 = vmul.f32 %v2029, %v142
    %v2032 = vsub.f32 %v2020, %v2030
    %v2033 = vsub.f32 %v2021, %v2031
    %v2034 = vmul.f32 %v2032, %v2032
    %v2035 = vmul.f32 %v2033, %v2033
    %v2036 = vsel %vm135, %v2034, 0.0
    %2037 = vadd.xlane.f32.xlu0 %v2036
    %v2038 = vpop.xlane.xlu0 %2037
    %v2039 = vsel %vm135, %v2035, 0.0
    %2040 = vadd.xlane.f32.xlu0 %v2039
    %v2041 = vpop.xlane.xlu0 %2040
    %v2042 = vmul.f32 %v2038, 0.032258064
    %v2043 = vmul.f32 %v2041, 0.032258064
    %v2044 = vrsqrt.pop %v2042
    %v2045 = vmul.f32 %v2042, %v2044
    %vm2046 = vcmp.eq.f32.partialorder %v2042, inf
    %v2047 = vsel %vm2046, %v2042, %v2045
    %vm2048 = vcmp.eq.f32.partialorder %v2042, 0.0
    %v2049 = vand.u32 %v2042, 2147483648
    %v2050 = vsel %vm2048, %v2049, %v2047
    %v2051 = vrsqrt.pop %v2043
    %v2052 = vmul.f32 %v2043, %v2051
    %vm2053 = vcmp.eq.f32.partialorder %v2043, inf
    %v2054 = vsel %vm2053, %v2043, %v2052
    %vm2055 = vcmp.eq.f32.partialorder %v2043, 0.0
    %v2056 = vand.u32 %v2043, 2147483648
    %v2057 = vsel %vm2055, %v2056, %v2054
    %v2058 = vadd.f32 %v2050, 1e-06
    %v2059 = vadd.f32 %v2057, 1e-06
    %v2060 = vrcp.pop %v2058
    %v2061 = vrcp.pop %v2059
    %v2062 = vlaneseq
    %v2063 = vshrl.u32 %v2062, 7
    %v2064 = vsub.s32 0, %v2063
    %v2065 = vrot.slane %v2022, %v2064
    %v2066 = vmul.f32 %v2065, %v2032
    %v2067 = vmul.f32 %v2065, %v2033
    %v2068 = vmul.f32 %v2066, %v2060
    %v2069 = vmul.f32 %v2067, %v2061
    %v2070 = vlaneseq
    %v2071 = vshrl.u32 %v2070, 7
    %v2072 = vsub.s32 0, %v2071
    %v2073 = vrot.slane %v2023, %v2072
    %v2074 = vadd.f32 %v2068, %v2073
    %v2075 = vadd.f32 %v2069, %v2073
    %v2076 = vld [vmem:[#allocation13 + $0x10] sm:$0x1]
    %v2077 = vld [vmem:[#allocation13 + $0x11] sm:$0x1]
    %v2078 = vsel %vm135, %v125, 0.0
    %2079 = vadd.xlane.f32.xlu0 %v2078
    %v2080 = vpop.xlane.xlu0 %2079
    %v2081 = vsel %vm135, %v126, 0.0
    %2082 = vadd.xlane.f32.xlu0 %v2081
    %v2083 = vpop.xlane.xlu0 %2082
    %v2084 = vmul.f32 %v2080, %v142
    %v2085 = vmul.f32 %v2083, %v142
    %v2086 = vsub.f32 %v125, %v2084
    %v2087 = vsub.f32 %v126, %v2085
    %v2088 = vmul.f32 %v2086, %v2086
    %v2089 = vmul.f32 %v2087, %v2087
    %v2090 = vsel %vm135, %v2088, 0.0
    %2091 = vadd.xlane.f32.xlu0 %v2090
    %v2092 = vpop.xlane.xlu0 %2091
    %v2093 = vsel %vm135, %v2089, 0.0
    %2094 = vadd.xlane.f32.xlu0 %v2093
    %v2095 = vpop.xlane.xlu0 %2094
    %v2096 = vmul.f32 %v2092, 0.032258064
    %v2097 = vmul.f32 %v2095, 0.032258064
    %v2098 = vrsqrt.pop %v2096
    %v2099 = vmul.f32 %v2096, %v2098
    %vm2100 = vcmp.eq.f32.partialorder %v2096, inf
    %v2101 = vsel %vm2100, %v2096, %v2099
    %vm2102 = vcmp.eq.f32.partialorder %v2096, 0.0
    %v2103 = vand.u32 %v2096, 2147483648
    %v2104 = vsel %vm2102, %v2103, %v2101
    %v2105 = vrsqrt.pop %v2097
    %v2106 = vmul.f32 %v2097, %v2105
    %vm2107 = vcmp.eq.f32.partialorder %v2097, inf
    %v2108 = vsel %vm2107, %v2097, %v2106
    %vm2109 = vcmp.eq.f32.partialorder %v2097, 0.0
    %v2110 = vand.u32 %v2097, 2147483648
    %v2111 = vsel %vm2109, %v2110, %v2108
    %v2112 = vadd.f32 %v2104, 1e-06
    %v2113 = vadd.f32 %v2111, 1e-06
    %v2114 = vrcp.pop %v2112
    %v2115 = vrcp.pop %v2113
    %v2116 = vlaneseq
    %v2117 = vshrl.u32 %v2116, 7
    %v2118 = vsub.s32 0, %v2117
    %v2119 = vrot.slane %v2076, %v2118
    %v2120 = vmul.f32 %v2119, %v2086
    %v2121 = vmul.f32 %v2119, %v2087
    %v2122 = vmul.f32 %v2120, %v2114
    %v2123 = vmul.f32 %v2121, %v2115
    %v2124 = vlaneseq
    %v2125 = vshrl.u32 %v2124, 7
    %v2126 = vsub.s32 0, %v2125
    %v2127 = vrot.slane %v2077, %v2126
    %v2128 = vadd.f32 %v2122, %v2127
    %v2129 = vadd.f32 %v2123, %v2127
    %v2130 = vld [vmem:[#allocation11 + $0xc0] sm:$0xf]
    %v2131 = vld [vmem:[#allocation11 + $0xc4] sm:$0xf]
    %v2132 = vld [vmem:[#allocation11 + $0xc8] sm:$0xf]
    %v2133 = vld [vmem:[#allocation11 + $0xcc] sm:$0xf]
    %v2134 = vld [vmem:[#allocation13 + $0x12] sm:$0x1]
    %v2135 = vpack.c.bf16 %v2129, %v2128
    %v2136 = vlaneseq
    %v2137 = vshrl.u32 %v2136, 7
    %v2138 = vsub.s32 0, %v2137
    %v2139 = vrot.slane %v2134, %v2138
    %v2144 = vunpack.c.l.b16 %v2130
    %v2145 = vunpack.c.l.b16 %v2131
    %v2146 = vunpack.c.l.b16 %v2132
    %v2147 = vunpack.c.l.b16 %v2133
    %v2148 = vpack.c.b16 %v2145, %v2144
    %v2149 = vpack.c.b16 %v2147, %v2146
    %v2153 = vsel %vm135, %v2135, 0
    %2155 = vmatprep.subr.bf16.mxu0 0
    %2156 = vmatpush1.bf16.msra.mxu0 %v2148
    %2157 = vmatprep.subr.bf16.mxu0 0
    %2158 = vmatpush1.bf16.msra.mxu0 %v2149
    %2159 = vmatprep.subr.bf16.mxu0 0
    %2160 = vmatpush1.bf16.msra.mxu0 0
    %2161 = vmatprep.subr.bf16.mxu0 0
    %2162 = vmatpush1.bf16.msra.mxu0 0
    %2163 = vmatprep.subr.bf16.mxu0 0
    %2164 = vmatpush1.bf16.msra.mxu0 0
    %2165 = vmatprep.subr.bf16.mxu0 0
    %2166 = vmatpush1.bf16.msra.mxu0 0
    %2167 = vmatprep.subr.bf16.mxu0 0
    %2168 = vmatpush1.bf16.msra.mxu0 0
    %2169 = vmatprep.subr.bf16.mxu0 0
    %2170 = vmatpush1.bf16.msra.mxu0 0
    %2171 = vmatprep.subr.bf16.mxu0 0
    %2172 = vmatpush1.bf16.msra.mxu0 0
    %2173 = vmatprep.subr.bf16.mxu0 0
    %2174 = vmatpush1.bf16.msra.mxu0 0
    %2175 = vmatprep.subr.bf16.mxu0 0
    %2176 = vmatpush1.bf16.msra.mxu0 0
    %2177 = vmatprep.subr.bf16.mxu0 0
    %2178 = vmatpush1.bf16.msra.mxu0 0
    %2179 = vmatprep.subr.bf16.mxu0 0
    %2180 = vmatpush1.bf16.msra.mxu0 0
    %2181 = vmatprep.subr.bf16.mxu0 0
    %2182 = vmatpush1.bf16.msra.mxu0 0
    %2183 = vmatprep.subr.bf16.mxu0 0
    %2184 = vmatpush1.bf16.msra.mxu0 0
    %2185 = vmatprep.subr.bf16.mxu0 0
    %2186 = vmatpush1.bf16.msra.mxu0 0
    %2187 = vmatprep.mubr.bf16.mxu0 0
    %2188 = vmatmul.mubr.bf16.gmra.mrb[0].mxu0 %v2153
    %v2189 = vpop.f32.mrb[0].mxu0
    %v2190 = vadd.f32 %v2139, %v2189
    %v2191 = vpop.f32.mrb[0].mxu0
    %v2192 = vpop.f32.mrb[0].mxu0
    %v2193 = vadd.f32 %v2139, %v2192
    %v2194 = vpop.f32.mrb[0].mxu0
    %2195 = vdwg.mxu0
    %v2196 = vpack.c.bf16 %v2193, %v2190
    %2198 = vrot.lane.b32.xlu0 %v2196, 96
    %v2199 = vpop.permute.xlu0 %2198
    %v2201 = vsel %vm259, %v2196, 0
    %v2204 = vsel %vm259, %v2199, 0
    %2206 = vmatprep.subr.bf16.mxu0 0
    %2207 = vmatpush1.bf16.xpose.msra.mxu0 %v2204
    %2208 = vmatprep.subr.bf16.mxu0 0
    %2209 = vmatpush1.bf16.xpose.msra.mxu0 0
    %2210 = vmatprep.subr.bf16.mxu0 0
    %2211 = vmatpush1.bf16.xpose.msra.mxu0 0
    %2212 = vmatprep.subr.bf16.mxu0 0
    %2213 = vmatpush1.bf16.xpose.msra.mxu0 0
    %2214 = vmatprep.subr.bf16.mxu0 0
    %2215 = vmatpush1.bf16.xpose.msra.mxu0 0
    %2216 = vmatprep.subr.bf16.mxu0 0
    %2217 = vmatpush1.bf16.xpose.msra.mxu0 0
    %2218 = vmatprep.subr.bf16.mxu0 0
    %2219 = vmatpush1.bf16.xpose.msra.mxu0 0
    %2220 = vmatprep.subr.bf16.mxu0 0
    %2221 = vmatpush1.bf16.xpose.msra.mxu0 0
    %2222 = vmatprep.subr.bf16.mxu0 0
    %2223 = vmatpush1.bf16.xpose.msra.mxu0 0
    %2224 = vmatprep.subr.bf16.mxu0 0
    %2225 = vmatpush1.bf16.xpose.msra.mxu0 0
    %2226 = vmatprep.subr.bf16.mxu0 0
    %2227 = vmatpush1.bf16.xpose.msra.mxu0 0
    %2228 = vmatprep.subr.bf16.mxu0 0
    %2229 = vmatpush1.bf16.xpose.msra.mxu0 0
    %2230 = vmatprep.subr.bf16.mxu0 0
    %2231 = vmatpush1.bf16.xpose.msra.mxu0 0
    %2232 = vmatprep.subr.bf16.mxu0 0
    %2233 = vmatpush1.bf16.xpose.msra.mxu0 0
    %2234 = vmatprep.subr.bf16.mxu0 0
    %2235 = vmatpush1.bf16.xpose.msra.mxu0 0
    %2236 = vmatprep.subr.bf16.mxu0 0
    %2237 = vmatpush1.bf16.xpose.msra.mxu0 0
    %2238 = vmatprep.mubr.bf16.mxu0 0
    %2239 = vmatmul.mubr.bf16.gmra.mrb[0].mxu0 %v2201
    %v2240 = vpop.f32.mrb[0].mxu0
    %v2241 = vadd.f32 0.0, %v2240
    %v2242 = vpop.f32.mrb[0].mxu0
    %v2243 = vpop.f32.mrb[0].mxu0
    %v2244 = vadd.f32 0.0, %v2243
    %v2245 = vpop.f32.mrb[0].mxu0
    %2246 = vdwg.mxu0
    %v2247 = vmul.f32 %v2241, 0.35355338
    %v2248 = vmul.f32 %v2244, 0.35355338
    %v2249 = vadd.f32 %v2247, %v129
    %v2250 = vadd.f32 %v2248, %v130
    %v2251 = vsel %vm311, %v2249, -inf
    %2252 = vmax.xlane.f32.xlu0 %v2251
    %v2253 = vpop.xlane.xlu0 %2252
    %v2254 = vsel %vm311, %v2250, -inf
    %2255 = vmax.xlane.f32.xlu0 %v2254
    %v2256 = vpop.xlane.xlu0 %2255
    %v2257 = vsub.f32 %v2249, %v2253
    %v2258 = vsub.f32 %v2250, %v2256
    %v2259 = vmul.f32 %v2257, 1.442695
    %v2260 = vpow.pop %v2259
    %v2261 = vmul.f32 %v2258, 1.442695
    %v2262 = vpow.pop %v2261
    %v2263 = vsel %vm311, %v2260, 0.0
    %2264 = vadd.xlane.f32.xlu0 %v2263
    %v2265 = vpop.xlane.xlu0 %2264
    %v2266 = vsel %vm311, %v2262, 0.0
    %2267 = vadd.xlane.f32.xlu0 %v2266
    %v2268 = vpop.xlane.xlu0 %2267
    %v2269 = vrcp.pop %v2265
    %v2270 = vrcp.pop %v2268
    %v2271 = vmul.f32 %v2260, %v2269
    %v2272 = vmul.f32 %v2262, %v2270
    %v2273 = vpack.c.bf16 %v2272, %v2271
    %2274 = vrot.lane.b32.xlu0 %v2196, 64
    %v2275 = vpop.permute.xlu0 %2274
    %v2278 = vsel %vm311, %v2273, 0
    %2280 = vmatprep.subr.bf16.mxu0 0
    %2281 = vmatpush1.bf16.msra.mxu0 %v2275
    %2282 = vmatprep.subr.bf16.mxu0 0
    %2283 = vmatpush1.bf16.msra.mxu0 0
    %2284 = vmatprep.subr.bf16.mxu0 0
    %2285 = vmatpush1.bf16.msra.mxu0 0
    %2286 = vmatprep.subr.bf16.mxu0 0
    %2287 = vmatpush1.bf16.msra.mxu0 0
    %2288 = vmatprep.subr.bf16.mxu0 0
    %2289 = vmatpush1.bf16.msra.mxu0 0
    %2290 = vmatprep.subr.bf16.mxu0 0
    %2291 = vmatpush1.bf16.msra.mxu0 0
    %2292 = vmatprep.subr.bf16.mxu0 0
    %2293 = vmatpush1.bf16.msra.mxu0 0
    %2294 = vmatprep.subr.bf16.mxu0 0
    %2295 = vmatpush1.bf16.msra.mxu0 0
    %2296 = vmatprep.subr.bf16.mxu0 0
    %2297 = vmatpush1.bf16.msra.mxu0 0
    %2298 = vmatprep.subr.bf16.mxu0 0
    %2299 = vmatpush1.bf16.msra.mxu0 0
    %2300 = vmatprep.subr.bf16.mxu0 0
    %2301 = vmatpush1.bf16.msra.mxu0 0
    %2302 = vmatprep.subr.bf16.mxu0 0
    %2303 = vmatpush1.bf16.msra.mxu0 0
    %2304 = vmatprep.subr.bf16.mxu0 0
    %2305 = vmatpush1.bf16.msra.mxu0 0
    %2306 = vmatprep.subr.bf16.mxu0 0
    %2307 = vmatpush1.bf16.msra.mxu0 0
    %2308 = vmatprep.subr.bf16.mxu0 0
    %2309 = vmatpush1.bf16.msra.mxu0 0
    %2310 = vmatprep.subr.bf16.mxu0 0
    %2311 = vmatpush1.bf16.msra.mxu0 0
    %2312 = vmatprep.mubr.bf16.mxu0 0
    %2313 = vmatmul.mubr.bf16.gmra.mrb[0].mxu0 %v2278
    %v2314 = vpop.f32.mrb[0].mxu0
    %v2315 = vadd.f32 0.0, %v2314
    %v2316 = vpop.f32.mrb[0].mxu0
    %v2317 = vpop.f32.mrb[0].mxu0
    %v2318 = vadd.f32 0.0, %v2317
    %v2319 = vpop.f32.mrb[0].mxu0
    %2320 = vdwg.mxu0
    %2321 = vrot.lane.b32.xlu0 %v2196, 120
    %v2322 = vpop.permute.xlu0 %2321
    %2323 = vrot.lane.b32.xlu0 %v2196, 88
    %v2324 = vpop.permute.xlu0 %2323
    %v2326 = vsel %vm259, %v2322, 0
    %v2329 = vsel %vm259, %v2324, 0
    %2331 = vmatprep.subr.bf16.mxu0 0
    %2332 = vmatpush1.bf16.xpose.msra.mxu0 %v2329
    %2333 = vmatprep.subr.bf16.mxu0 0
    %2334 = vmatpush1.bf16.xpose.msra.mxu0 0
    %2335 = vmatprep.subr.bf16.mxu0 0
    %2336 = vmatpush1.bf16.xpose.msra.mxu0 0
    %2337 = vmatprep.subr.bf16.mxu0 0
    %2338 = vmatpush1.bf16.xpose.msra.mxu0 0
    %2339 = vmatprep.subr.bf16.mxu0 0
    %2340 = vmatpush1.bf16.xpose.msra.mxu0 0
    %2341 = vmatprep.subr.bf16.mxu0 0
    %2342 = vmatpush1.bf16.xpose.msra.mxu0 0
    %2343 = vmatprep.subr.bf16.mxu0 0
    %2344 = vmatpush1.bf16.xpose.msra.mxu0 0
    %2345 = vmatprep.subr.bf16.mxu0 0
    %2346 = vmatpush1.bf16.xpose.msra.mxu0 0
    %2347 = vmatprep.subr.bf16.mxu0 0
    %2348 = vmatpush1.bf16.xpose.msra.mxu0 0
    %2349 = vmatprep.subr.bf16.mxu0 0
    %2350 = vmatpush1.bf16.xpose.msra.mxu0 0
    %2351 = vmatprep.subr.bf16.mxu0 0
    %2352 = vmatpush1.bf16.xpose.msra.mxu0 0
    %2353 = vmatprep.subr.bf16.mxu0 0
    %2354 = vmatpush1.bf16.xpose.msra.mxu0 0
    %2355 = vmatprep.subr.bf16.mxu0 0
    %2356 = vmatpush1.bf16.xpose.msra.mxu0 0
    %2357 = vmatprep.subr.bf16.mxu0 0
    %2358 = vmatpush1.bf16.xpose.msra.mxu0 0
    %2359 = vmatprep.subr.bf16.mxu0 0
    %2360 = vmatpush1.bf16.xpose.msra.mxu0 0
    %2361 = vmatprep.subr.bf16.mxu0 0
    %2362 = vmatpush1.bf16.xpose.msra.mxu0 0
    %2363 = vmatprep.mubr.bf16.mxu0 0
    %2364 = vmatmul.mubr.bf16.gmra.mrb[0].mxu0 %v2326
    %v2365 = vpop.f32.mrb[0].mxu0
    %v2366 = vadd.f32 0.0, %v2365
    %v2367 = vpop.f32.mrb[0].mxu0
    %v2368 = vpop.f32.mrb[0].mxu0
    %v2369 = vadd.f32 0.0, %v2368
    %v2370 = vpop.f32.mrb[0].mxu0
    %2371 = vdwg.mxu0
    %v2372 = vmul.f32 %v2366, 0.35355338
    %v2373 = vmul.f32 %v2369, 0.35355338
    %v2374 = vadd.f32 %v2372, %v129
    %v2375 = vadd.f32 %v2373, %v130
    %v2376 = vsel %vm311, %v2374, -inf
    %2377 = vmax.xlane.f32.xlu0 %v2376
    %v2378 = vpop.xlane.xlu0 %2377
    %v2379 = vsel %vm311, %v2375, -inf
    %2380 = vmax.xlane.f32.xlu0 %v2379
    %v2381 = vpop.xlane.xlu0 %2380
    %v2382 = vsub.f32 %v2374, %v2378
    %v2383 = vsub.f32 %v2375, %v2381
    %v2384 = vmul.f32 %v2382, 1.442695
    %v2385 = vpow.pop %v2384
    %v2386 = vmul.f32 %v2383, 1.442695
    %v2387 = vpow.pop %v2386
    %v2388 = vsel %vm311, %v2385, 0.0
    %2389 = vadd.xlane.f32.xlu0 %v2388
    %v2390 = vpop.xlane.xlu0 %2389
    %v2391 = vsel %vm311, %v2387, 0.0
    %2392 = vadd.xlane.f32.xlu0 %v2391
    %v2393 = vpop.xlane.xlu0 %2392
    %v2394 = vrcp.pop %v2390
    %v2395 = vrcp.pop %v2393
    %v2396 = vmul.f32 %v2385, %v2394
    %v2397 = vmul.f32 %v2387, %v2395
    %v2398 = vpack.c.bf16 %v2397, %v2396
    %2399 = vrot.lane.b32.xlu0 %v2196, 56
    %v2400 = vpop.permute.xlu0 %2399
    %v2403 = vsel %vm311, %v2398, 0
    %2405 = vmatprep.subr.bf16.mxu0 0
    %2406 = vmatpush1.bf16.msra.mxu0 %v2400
    %2407 = vmatprep.subr.bf16.mxu0 0
    %2408 = vmatpush1.bf16.msra.mxu0 0
    %2409 = vmatprep.subr.bf16.mxu0 0
    %2410 = vmatpush1.bf16.msra.mxu0 0
    %2411 = vmatprep.subr.bf16.mxu0 0
    %2412 = vmatpush1.bf16.msra.mxu0 0
    %2413 = vmatprep.subr.bf16.mxu0 0
    %2414 = vmatpush1.bf16.msra.mxu0 0
    %2415 = vmatprep.subr.bf16.mxu0 0
    %2416 = vmatpush1.bf16.msra.mxu0 0
    %2417 = vmatprep.subr.bf16.mxu0 0
    %2418 = vmatpush1.bf16.msra.mxu0 0
    %2419 = vmatprep.subr.bf16.mxu0 0
    %2420 = vmatpush1.bf16.msra.mxu0 0
    %2421 = vmatprep.subr.bf16.mxu0 0
    %2422 = vmatpush1.bf16.msra.mxu0 0
    %2423 = vmatprep.subr.bf16.mxu0 0
    %2424 = vmatpush1.bf16.msra.mxu0 0
    %2425 = vmatprep.subr.bf16.mxu0 0
    %2426 = vmatpush1.bf16.msra.mxu0 0
    %2427 = vmatprep.subr.bf16.mxu0 0
    %2428 = vmatpush1.bf16.msra.mxu0 0
    %2429 = vmatprep.subr.bf16.mxu0 0
    %2430 = vmatpush1.bf16.msra.mxu0 0
    %2431 = vmatprep.subr.bf16.mxu0 0
    %2432 = vmatpush1.bf16.msra.mxu0 0
    %2433 = vmatprep.subr.bf16.mxu0 0
    %2434 = vmatpush1.bf16.msra.mxu0 0
    %2435 = vmatprep.subr.bf16.mxu0 0
    %2436 = vmatpush1.bf16.msra.mxu0 0
    %2437 = vmatprep.mubr.bf16.mxu0 0
    %2438 = vmatmul.mubr.bf16.gmra.mrb[0].mxu0 %v2403
    %v2439 = vpop.f32.mrb[0].mxu0
    %v2440 = vadd.f32 0.0, %v2439
    %v2441 = vpop.f32.mrb[0].mxu0
    %v2442 = vpop.f32.mrb[0].mxu0
    %v2443 = vadd.f32 0.0, %v2442
    %v2444 = vpop.f32.mrb[0].mxu0
    %2445 = vdwg.mxu0
    %2446 = vrot.lane.b32.xlu0 %v2196, 112
    %v2447 = vpop.permute.xlu0 %2446
    %2448 = vrot.lane.b32.xlu0 %v2196, 80
    %v2449 = vpop.permute.xlu0 %2448
    %v2451 = vsel %vm259, %v2447, 0
    %v2454 = vsel %vm259, %v2449, 0
    %2456 = vmatprep.subr.bf16.mxu0 0
    %2457 = vmatpush1.bf16.xpose.msra.mxu0 %v2454
    %2458 = vmatprep.subr.bf16.mxu0 0
    %2459 = vmatpush1.bf16.xpose.msra.mxu0 0
    %2460 = vmatprep.subr.bf16.mxu0 0
    %2461 = vmatpush1.bf16.xpose.msra.mxu0 0
    %2462 = vmatprep.subr.bf16.mxu0 0
    %2463 = vmatpush1.bf16.xpose.msra.mxu0 0
    %2464 = vmatprep.subr.bf16.mxu0 0
    %2465 = vmatpush1.bf16.xpose.msra.mxu0 0
    %2466 = vmatprep.subr.bf16.mxu0 0
    %2467 = vmatpush1.bf16.xpose.msra.mxu0 0
    %2468 = vmatprep.subr.bf16.mxu0 0
    %2469 = vmatpush1.bf16.xpose.msra.mxu0 0
    %2470 = vmatprep.subr.bf16.mxu0 0
    %2471 = vmatpush1.bf16.xpose.msra.mxu0 0
    %2472 = vmatprep.subr.bf16.mxu0 0
    %2473 = vmatpush1.bf16.xpose.msra.mxu0 0
    %2474 = vmatprep.subr.bf16.mxu0 0
    %2475 = vmatpush1.bf16.xpose.msra.mxu0 0
    %2476 = vmatprep.subr.bf16.mxu0 0
    %2477 = vmatpush1.bf16.xpose.msra.mxu0 0
    %2478 = vmatprep.subr.bf16.mxu0 0
    %2479 = vmatpush1.bf16.xpose.msra.mxu0 0
    %2480 = vmatprep.subr.bf16.mxu0 0
    %2481 = vmatpush1.bf16.xpose.msra.mxu0 0
    %2482 = vmatprep.subr.bf16.mxu0 0
    %2483 = vmatpush1.bf16.xpose.msra.mxu0 0
    %2484 = vmatprep.subr.bf16.mxu0 0
    %2485 = vmatpush1.bf16.xpose.msra.mxu0 0
    %2486 = vmatprep.subr.bf16.mxu0 0
    %2487 = vmatpush1.bf16.xpose.msra.mxu0 0
    %2488 = vmatprep.mubr.bf16.mxu0 0
    %2489 = vmatmul.mubr.bf16.gmra.mrb[0].mxu0 %v2451
    %v2490 = vpop.f32.mrb[0].mxu0
    %v2491 = vadd.f32 0.0, %v2490
    %v2492 = vpop.f32.mrb[0].mxu0
    %v2493 = vpop.f32.mrb[0].mxu0
    %v2494 = vadd.f32 0.0, %v2493
    %v2495 = vpop.f32.mrb[0].mxu0
    %2496 = vdwg.mxu0
    %v2497 = vmul.f32 %v2491, 0.35355338
    %v2498 = vmul.f32 %v2494, 0.35355338
    %v2499 = vadd.f32 %v2497, %v129
    %v2500 = vadd.f32 %v2498, %v130
    %v2501 = vsel %vm311, %v2499, -inf
    %2502 = vmax.xlane.f32.xlu0 %v2501
    %v2503 = vpop.xlane.xlu0 %2502
    %v2504 = vsel %vm311, %v2500, -inf
    %2505 = vmax.xlane.f32.xlu0 %v2504
    %v2506 = vpop.xlane.xlu0 %2505
    %v2507 = vsub.f32 %v2499, %v2503
    %v2508 = vsub.f32 %v2500, %v2506
    %v2509 = vmul.f32 %v2507, 1.442695
    %v2510 = vpow.pop %v2509
    %v2511 = vmul.f32 %v2508, 1.442695
    %v2512 = vpow.pop %v2511
    %v2513 = vsel %vm311, %v2510, 0.0
    %2514 = vadd.xlane.f32.xlu0 %v2513
    %v2515 = vpop.xlane.xlu0 %2514
    %v2516 = vsel %vm311, %v2512, 0.0
    %2517 = vadd.xlane.f32.xlu0 %v2516
    %v2518 = vpop.xlane.xlu0 %2517
    %v2519 = vrcp.pop %v2515
    %v2520 = vrcp.pop %v2518
    %v2521 = vmul.f32 %v2510, %v2519
    %v2522 = vmul.f32 %v2512, %v2520
    %v2523 = vpack.c.bf16 %v2522, %v2521
    %2524 = vrot.lane.b32.xlu0 %v2196, 48
    %v2525 = vpop.permute.xlu0 %2524
    %v2528 = vsel %vm311, %v2523, 0
    %2530 = vmatprep.subr.bf16.mxu0 0
    %2531 = vmatpush1.bf16.msra.mxu0 %v2525
    %2532 = vmatprep.subr.bf16.mxu0 0
    %2533 = vmatpush1.bf16.msra.mxu0 0
    %2534 = vmatprep.subr.bf16.mxu0 0
    %2535 = vmatpush1.bf16.msra.mxu0 0
    %2536 = vmatprep.subr.bf16.mxu0 0
    %2537 = vmatpush1.bf16.msra.mxu0 0
    %2538 = vmatprep.subr.bf16.mxu0 0
    %2539 = vmatpush1.bf16.msra.mxu0 0
    %2540 = vmatprep.subr.bf16.mxu0 0
    %2541 = vmatpush1.bf16.msra.mxu0 0
    %2542 = vmatprep.subr.bf16.mxu0 0
    %2543 = vmatpush1.bf16.msra.mxu0 0
    %2544 = vmatprep.subr.bf16.mxu0 0
    %2545 = vmatpush1.bf16.msra.mxu0 0
    %2546 = vmatprep.subr.bf16.mxu0 0
    %2547 = vmatpush1.bf16.msra.mxu0 0
    %2548 = vmatprep.subr.bf16.mxu0 0
    %2549 = vmatpush1.bf16.msra.mxu0 0
    %2550 = vmatprep.subr.bf16.mxu0 0
    %2551 = vmatpush1.bf16.msra.mxu0 0
    %2552 = vmatprep.subr.bf16.mxu0 0
    %2553 = vmatpush1.bf16.msra.mxu0 0
    %2554 = vmatprep.subr.bf16.mxu0 0
    %2555 = vmatpush1.bf16.msra.mxu0 0
    %2556 = vmatprep.subr.bf16.mxu0 0
    %2557 = vmatpush1.bf16.msra.mxu0 0
    %2558 = vmatprep.subr.bf16.mxu0 0
    %2559 = vmatpush1.bf16.msra.mxu0 0
    %2560 = vmatprep.subr.bf16.mxu0 0
    %2561 = vmatpush1.bf16.msra.mxu0 0
    %2562 = vmatprep.mubr.bf16.mxu0 0
    %2563 = vmatmul.mubr.bf16.gmra.mrb[0].mxu0 %v2528
    %v2564 = vpop.f32.mrb[0].mxu0
    %v2565 = vadd.f32 0.0, %v2564
    %v2566 = vpop.f32.mrb[0].mxu0
    %v2567 = vpop.f32.mrb[0].mxu0
    %v2568 = vadd.f32 0.0, %v2567
    %v2569 = vpop.f32.mrb[0].mxu0
    %2570 = vdwg.mxu0
    %2571 = vrot.lane.b32.xlu0 %v2196, 104
    %v2572 = vpop.permute.xlu0 %2571
    %2573 = vrot.lane.b32.xlu0 %v2196, 72
    %v2574 = vpop.permute.xlu0 %2573
    %v2576 = vsel %vm259, %v2572, 0
    %v2579 = vsel %vm259, %v2574, 0
    %2581 = vmatprep.subr.bf16.mxu0 0
    %2582 = vmatpush1.bf16.xpose.msra.mxu0 %v2579
    %2583 = vmatprep.subr.bf16.mxu0 0
    %2584 = vmatpush1.bf16.xpose.msra.mxu0 0
    %2585 = vmatprep.subr.bf16.mxu0 0
    %2586 = vmatpush1.bf16.xpose.msra.mxu0 0
    %2587 = vmatprep.subr.bf16.mxu0 0
    %2588 = vmatpush1.bf16.xpose.msra.mxu0 0
    %2589 = vmatprep.subr.bf16.mxu0 0
    %2590 = vmatpush1.bf16.xpose.msra.mxu0 0
    %2591 = vmatprep.subr.bf16.mxu0 0
    %2592 = vmatpush1.bf16.xpose.msra.mxu0 0
    %2593 = vmatprep.subr.bf16.mxu0 0
    %2594 = vmatpush1.bf16.xpose.msra.mxu0 0
    %2595 = vmatprep.subr.bf16.mxu0 0
    %2596 = vmatpush1.bf16.xpose.msra.mxu0 0
    %2597 = vmatprep.subr.bf16.mxu0 0
    %2598 = vmatpush1.bf16.xpose.msra.mxu0 0
    %2599 = vmatprep.subr.bf16.mxu0 0
    %2600 = vmatpush1.bf16.xpose.msra.mxu0 0
    %2601 = vmatprep.subr.bf16.mxu0 0
    %2602 = vmatpush1.bf16.xpose.msra.mxu0 0
    %2603 = vmatprep.subr.bf16.mxu0 0
    %2604 = vmatpush1.bf16.xpose.msra.mxu0 0
    %2605 = vmatprep.subr.bf16.mxu0 0
    %2606 = vmatpush1.bf16.xpose.msra.mxu0 0
    %2607 = vmatprep.subr.bf16.mxu0 0
    %2608 = vmatpush1.bf16.xpose.msra.mxu0 0
    %2609 = vmatprep.subr.bf16.mxu0 0
    %2610 = vmatpush1.bf16.xpose.msra.mxu0 0
    %2611 = vmatprep.subr.bf16.mxu0 0
    %2612 = vmatpush1.bf16.xpose.msra.mxu0 0
    %2613 = vmatprep.mubr.bf16.mxu0 0
    %2614 = vmatmul.mubr.bf16.gmra.mrb[0].mxu0 %v2576
    %v2615 = vpop.f32.mrb[0].mxu0
    %v2616 = vadd.f32 0.0, %v2615
    %v2617 = vpop.f32.mrb[0].mxu0
    %v2618 = vpop.f32.mrb[0].mxu0
    %v2619 = vadd.f32 0.0, %v2618
    %v2620 = vpop.f32.mrb[0].mxu0
    %2621 = vdwg.mxu0
    %v2622 = vmul.f32 %v2616, 0.35355338
    %v2623 = vmul.f32 %v2619, 0.35355338
    %v2624 = vadd.f32 %v2622, %v129
    %v2625 = vadd.f32 %v2623, %v130
    %v2626 = vsel %vm311, %v2624, -inf
    %2627 = vmax.xlane.f32.xlu0 %v2626
    %v2628 = vpop.xlane.xlu0 %2627
    %v2629 = vsel %vm311, %v2625, -inf
    %2630 = vmax.xlane.f32.xlu0 %v2629
    %v2631 = vpop.xlane.xlu0 %2630
    %v2632 = vsub.f32 %v2624, %v2628
    %v2633 = vsub.f32 %v2625, %v2631
    %v2634 = vmul.f32 %v2632, 1.442695
    %v2635 = vpow.pop %v2634
    %v2636 = vmul.f32 %v2633, 1.442695
    %v2637 = vpow.pop %v2636
    %v2638 = vsel %vm311, %v2635, 0.0
    %2639 = vadd.xlane.f32.xlu0 %v2638
    %v2640 = vpop.xlane.xlu0 %2639
    %v2641 = vsel %vm311, %v2637, 0.0
    %2642 = vadd.xlane.f32.xlu0 %v2641
    %v2643 = vpop.xlane.xlu0 %2642
    %v2644 = vrcp.pop %v2640
    %v2645 = vrcp.pop %v2643
    %v2646 = vmul.f32 %v2635, %v2644
    %v2647 = vmul.f32 %v2637, %v2645
    %v2648 = vpack.c.bf16 %v2647, %v2646
    %2649 = vrot.lane.b32.xlu0 %v2196, 40
    %v2650 = vpop.permute.xlu0 %2649
    %v2653 = vsel %vm311, %v2648, 0
    %2655 = vmatprep.subr.bf16.mxu0 0
    %2656 = vmatpush1.bf16.msra.mxu0 %v2650
    %2657 = vmatprep.subr.bf16.mxu0 0
    %2658 = vmatpush1.bf16.msra.mxu0 0
    %2659 = vmatprep.subr.bf16.mxu0 0
    %2660 = vmatpush1.bf16.msra.mxu0 0
    %2661 = vmatprep.subr.bf16.mxu0 0
    %2662 = vmatpush1.bf16.msra.mxu0 0
    %2663 = vmatprep.subr.bf16.mxu0 0
    %2664 = vmatpush1.bf16.msra.mxu0 0
    %2665 = vmatprep.subr.bf16.mxu0 0
    %2666 = vmatpush1.bf16.msra.mxu0 0
    %2667 = vmatprep.subr.bf16.mxu0 0
    %2668 = vmatpush1.bf16.msra.mxu0 0
    %2669 = vmatprep.subr.bf16.mxu0 0
    %2670 = vmatpush1.bf16.msra.mxu0 0
    %2671 = vmatprep.subr.bf16.mxu0 0
    %2672 = vmatpush1.bf16.msra.mxu0 0
    %2673 = vmatprep.subr.bf16.mxu0 0
    %2674 = vmatpush1.bf16.msra.mxu0 0
    %2675 = vmatprep.subr.bf16.mxu0 0
    %2676 = vmatpush1.bf16.msra.mxu0 0
    %2677 = vmatprep.subr.bf16.mxu0 0
    %2678 = vmatpush1.bf16.msra.mxu0 0
    %2679 = vmatprep.subr.bf16.mxu0 0
    %2680 = vmatpush1.bf16.msra.mxu0 0
    %2681 = vmatprep.subr.bf16.mxu0 0
    %2682 = vmatpush1.bf16.msra.mxu0 0
    %2683 = vmatprep.subr.bf16.mxu0 0
    %2684 = vmatpush1.bf16.msra.mxu0 0
    %2685 = vmatprep.subr.bf16.mxu0 0
    %2686 = vmatpush1.bf16.msra.mxu0 0
    %2687 = vmatprep.mubr.bf16.mxu0 0
    %2688 = vmatmul.mubr.bf16.gmra.mrb[0].mxu0 %v2653
    %v2689 = vpop.f32.mrb[0].mxu0
    %v2690 = vadd.f32 0.0, %v2689
    %v2691 = vpop.f32.mrb[0].mxu0
    %v2692 = vpop.f32.mrb[0].mxu0
    %v2693 = vadd.f32 0.0, %v2692
    %v2694 = vpop.f32.mrb[0].mxu0
    %2695 = vdwg.mxu0
    %2698 = vrot.lane.b32.xlu0 %v2440, 8
    %v2699 = vpop.permute.xlu0 %2698
    %2700 = vrot.lane.b32.xlu0 %v2443, 8
    %v2701 = vpop.permute.xlu0 %2700
    %2706 = vrot.lane.b32.xlu0 %v2565, 16
    %v2707 = vpop.permute.xlu0 %2706
    %2708 = vrot.lane.b32.xlu0 %v2568, 16
    %v2709 = vpop.permute.xlu0 %2708
    %2714 = vrot.lane.b32.xlu0 %v2690, 24
    %v2715 = vpop.permute.xlu0 %2714
    %2716 = vrot.lane.b32.xlu0 %v2693, 24
    %v2717 = vpop.permute.xlu0 %2716
    %v2720 = vsel %vm259, %v2315, %v2699
    %v2721 = vsel %vm259, %v2318, %v2701
    %v2722 = vsel %vm311, %v2720, %v2707
    %v2723 = vsel %vm311, %v2721, %v2709
    %v2724 = vsel %vm785, %v2722, %v2715
    %v2725 = vsel %vm785, %v2723, %v2717
    %v2726 = vpack.c.bf16 %v2725, %v2724
    %2727 = vrot.lane.b32.xlu0 %v2148, 32
    %v2728 = vpop.permute.xlu0 %2727
    %2729 = vrot.lane.b32.xlu0 %v2149, 32
    %v2730 = vpop.permute.xlu0 %2729
    %2734 = vrot.lane.b32.xlu0 %v2139, 32
    %v2735 = vpop.permute.xlu0 %2734
    %v2738 = vsel %vm135, %v2726, 0
    %2740 = vmatprep.subr.bf16.mxu0 0
    %2741 = vmatpush1.bf16.msra.mxu0 %v2728
    %2742 = vmatprep.subr.bf16.mxu0 0
    %2743 = vmatpush1.bf16.msra.mxu0 %v2730
    %2744 = vmatprep.subr.bf16.mxu0 0
    %2745 = vmatpush1.bf16.msra.mxu0 0
    %2746 = vmatprep.subr.bf16.mxu0 0
    %2747 = vmatpush1.bf16.msra.mxu0 0
    %2748 = vmatprep.subr.bf16.mxu0 0
    %2749 = vmatpush1.bf16.msra.mxu0 0
    %2750 = vmatprep.subr.bf16.mxu0 0
    %2751 = vmatpush1.bf16.msra.mxu0 0
    %2752 = vmatprep.subr.bf16.mxu0 0
    %2753 = vmatpush1.bf16.msra.mxu0 0
    %2754 = vmatprep.subr.bf16.mxu0 0
    %2755 = vmatpush1.bf16.msra.mxu0 0
    %2756 = vmatprep.subr.bf16.mxu0 0
    %2757 = vmatpush1.bf16.msra.mxu0 0
    %2758 = vmatprep.subr.bf16.mxu0 0
    %2759 = vmatpush1.bf16.msra.mxu0 0
    %2760 = vmatprep.subr.bf16.mxu0 0
    %2761 = vmatpush1.bf16.msra.mxu0 0
    %2762 = vmatprep.subr.bf16.mxu0 0
    %2763 = vmatpush1.bf16.msra.mxu0 0
    %2764 = vmatprep.subr.bf16.mxu0 0
    %2765 = vmatpush1.bf16.msra.mxu0 0
    %2766 = vmatprep.subr.bf16.mxu0 0
    %2767 = vmatpush1.bf16.msra.mxu0 0
    %2768 = vmatprep.subr.bf16.mxu0 0
    %2769 = vmatpush1.bf16.msra.mxu0 0
    %2770 = vmatprep.subr.bf16.mxu0 0
    %2771 = vmatpush1.bf16.msra.mxu0 0
    %2772 = vmatprep.mubr.bf16.mxu0 0
    %2773 = vmatmul.mubr.bf16.gmra.mrb[0].mxu0 %v2738
    %v2774 = vpop.f32.mrb[0].mxu0
    %v2775 = vadd.f32 %v2735, %v2774
    %v2776 = vpop.f32.mrb[0].mxu0
    %v2777 = vpop.f32.mrb[0].mxu0
    %v2778 = vadd.f32 %v2735, %v2777
    %v2779 = vpop.f32.mrb[0].mxu0
    %2780 = vdwg.mxu0
    %v2781 = vadd.f32 %v125, %v2775
    %v2782 = vadd.f32 %v126, %v2778
    %v2783 = vld [vmem:[#allocation13 + $0x13] sm:$0x1]
    %v2784 = vld [vmem:[#allocation13 + $0x14] sm:$0x1]
    %v2785 = vsel %vm135, %v2781, 0.0
    %2786 = vadd.xlane.f32.xlu0 %v2785
    %v2787 = vpop.xlane.xlu0 %2786
    %v2788 = vsel %vm135, %v2782, 0.0
    %2789 = vadd.xlane.f32.xlu0 %v2788
    %v2790 = vpop.xlane.xlu0 %2789
    %v2791 = vmul.f32 %v2787, %v142
    %v2792 = vmul.f32 %v2790, %v142
    %v2793 = vsub.f32 %v2781, %v2791
    %v2794 = vsub.f32 %v2782, %v2792
    %v2795 = vmul.f32 %v2793, %v2793
    %v2796 = vmul.f32 %v2794, %v2794
    %v2797 = vsel %vm135, %v2795, 0.0
    %2798 = vadd.xlane.f32.xlu0 %v2797
    %v2799 = vpop.xlane.xlu0 %2798
    %v2800 = vsel %vm135, %v2796, 0.0
    %2801 = vadd.xlane.f32.xlu0 %v2800
    %v2802 = vpop.xlane.xlu0 %2801
    %v2803 = vmul.f32 %v2799, 0.032258064
    %v2804 = vmul.f32 %v2802, 0.032258064
    %v2805 = vrsqrt.pop %v2803
    %v2806 = vmul.f32 %v2803, %v2805
    %vm2807 = vcmp.eq.f32.partialorder %v2803, inf
    %v2808 = vsel %vm2807, %v2803, %v2806
    %vm2809 = vcmp.eq.f32.partialorder %v2803, 0.0
    %v2810 = vand.u32 %v2803, 2147483648
    %v2811 = vsel %vm2809, %v2810, %v2808
    %v2812 = vrsqrt.pop %v2804
    %v2813 = vmul.f32 %v2804, %v2812
    %vm2814 = vcmp.eq.f32.partialorder %v2804, inf
    %v2815 = vsel %vm2814, %v2804, %v2813
    %vm2816 = vcmp.eq.f32.partialorder %v2804, 0.0
    %v2817 = vand.u32 %v2804, 2147483648
    %v2818 = vsel %vm2816, %v2817, %v2815
    %v2819 = vadd.f32 %v2811, 1e-06
    %v2820 = vadd.f32 %v2818, 1e-06
    %v2821 = vrcp.pop %v2819
    %v2822 = vrcp.pop %v2820
    %v2823 = vlaneseq
    %v2824 = vshrl.u32 %v2823, 7
    %v2825 = vsub.s32 0, %v2824
    %v2826 = vrot.slane %v2783, %v2825
    %v2827 = vmul.f32 %v2826, %v2793
    %v2828 = vmul.f32 %v2826, %v2794
    %v2829 = vmul.f32 %v2827, %v2821
    %v2830 = vmul.f32 %v2828, %v2822
    %v2831 = vlaneseq
    %v2832 = vshrl.u32 %v2831, 7
    %v2833 = vsub.s32 0, %v2832
    %v2834 = vrot.slane %v2784, %v2833
    %v2835 = vadd.f32 %v2829, %v2834
    %v2836 = vadd.f32 %v2830, %v2834
    %v2837 = vld [vmem:[#allocation11 + $0xd0] sm:$0xf]
    %v2838 = vld [vmem:[#allocation11 + $0xd4] sm:$0xf]
    %v2839 = vld [vmem:[#allocation11 + $0xd8] sm:$0xf]
    %v2840 = vld [vmem:[#allocation11 + $0xdc] sm:$0xf]
    %v2841 = vld [vmem:[#allocation13 + $0x15] sm:$0x1]
    %v2842 = vpack.c.bf16 %v2836, %v2835
    %v2843 = vlaneseq
    %v2844 = vshrl.u32 %v2843, 7
    %v2845 = vsub.s32 0, %v2844
    %v2846 = vrot.slane %v2841, %v2845
    %v2851 = vunpack.c.l.b16 %v2837
    %v2852 = vunpack.c.l.b16 %v2838
    %v2853 = vunpack.c.l.b16 %v2839
    %v2854 = vunpack.c.l.b16 %v2840
    %v2855 = vpack.c.b16 %v2852, %v2851
    %v2856 = vpack.c.b16 %v2854, %v2853
    %v2860 = vsel %vm135, %v2842, 0
    %2862 = vmatprep.subr.bf16.mxu0 0
    %2863 = vmatpush1.bf16.msra.mxu0 %v2855
    %2864 = vmatprep.subr.bf16.mxu0 0
    %2865 = vmatpush1.bf16.msra.mxu0 %v2856
    %2866 = vmatprep.subr.bf16.mxu0 0
    %2867 = vmatpush1.bf16.msra.mxu0 0
    %2868 = vmatprep.subr.bf16.mxu0 0
    %2869 = vmatpush1.bf16.msra.mxu0 0
    %2870 = vmatprep.subr.bf16.mxu0 0
    %2871 = vmatpush1.bf16.msra.mxu0 0
    %2872 = vmatprep.subr.bf16.mxu0 0
    %2873 = vmatpush1.bf16.msra.mxu0 0
    %2874 = vmatprep.subr.bf16.mxu0 0
    %2875 = vmatpush1.bf16.msra.mxu0 0
    %2876 = vmatprep.subr.bf16.mxu0 0
    %2877 = vmatpush1.bf16.msra.mxu0 0
    %2878 = vmatprep.subr.bf16.mxu0 0
    %2879 = vmatpush1.bf16.msra.mxu0 0
    %2880 = vmatprep.subr.bf16.mxu0 0
    %2881 = vmatpush1.bf16.msra.mxu0 0
    %2882 = vmatprep.subr.bf16.mxu0 0
    %2883 = vmatpush1.bf16.msra.mxu0 0
    %2884 = vmatprep.subr.bf16.mxu0 0
    %2885 = vmatpush1.bf16.msra.mxu0 0
    %2886 = vmatprep.subr.bf16.mxu0 0
    %2887 = vmatpush1.bf16.msra.mxu0 0
    %2888 = vmatprep.subr.bf16.mxu0 0
    %2889 = vmatpush1.bf16.msra.mxu0 0
    %2890 = vmatprep.subr.bf16.mxu0 0
    %2891 = vmatpush1.bf16.msra.mxu0 0
    %2892 = vmatprep.subr.bf16.mxu0 0
    %2893 = vmatpush1.bf16.msra.mxu0 0
    %2894 = vmatprep.mubr.bf16.mxu0 0
    %2895 = vmatmul.mubr.bf16.gmra.mrb[0].mxu0 %v2860
    %v2896 = vpop.f32.mrb[0].mxu0
    %v2897 = vadd.f32 %v2846, %v2896
    %v2898 = vpop.f32.mrb[0].mxu0
    %v2899 = vpop.f32.mrb[0].mxu0
    %v2900 = vadd.f32 %v2846, %v2899
    %v2901 = vpop.f32.mrb[0].mxu0
    %2902 = vdwg.mxu0
    %v2903 = vpack.c.bf16 %v2075, %v2074
    %v2905 = vsel %vm135, %v2903, 0
    %2907 = vmatprep.subr.bf16.mxu0 0
    %2908 = vmatpush1.bf16.msra.mxu0 %v2855
    %2909 = vmatprep.subr.bf16.mxu0 0
    %2910 = vmatpush1.bf16.msra.mxu0 %v2856
    %2911 = vmatprep.subr.bf16.mxu0 0
    %2912 = vmatpush1.bf16.msra.mxu0 0
    %2913 = vmatprep.subr.bf16.mxu0 0
    %2914 = vmatpush1.bf16.msra.mxu0 0
    %2915 = vmatprep.subr.bf16.mxu0 0
    %2916 = vmatpush1.bf16.msra.mxu0 0
    %2917 = vmatprep.subr.bf16.mxu0 0
    %2918 = vmatpush1.bf16.msra.mxu0 0
    %2919 = vmatprep.subr.bf16.mxu0 0
    %2920 = vmatpush1.bf16.msra.mxu0 0
    %2921 = vmatprep.subr.bf16.mxu0 0
    %2922 = vmatpush1.bf16.msra.mxu0 0
    %2923 = vmatprep.subr.bf16.mxu0 0
    %2924 = vmatpush1.bf16.msra.mxu0 0
    %2925 = vmatprep.subr.bf16.mxu0 0
    %2926 = vmatpush1.bf16.msra.mxu0 0
    %2927 = vmatprep.subr.bf16.mxu0 0
    %2928 = vmatpush1.bf16.msra.mxu0 0
    %2929 = vmatprep.subr.bf16.mxu0 0
    %2930 = vmatpush1.bf16.msra.mxu0 0
    %2931 = vmatprep.subr.bf16.mxu0 0
    %2932 = vmatpush1.bf16.msra.mxu0 0
    %2933 = vmatprep.subr.bf16.mxu0 0
    %2934 = vmatpush1.bf16.msra.mxu0 0
    %2935 = vmatprep.subr.bf16.mxu0 0
    %2936 = vmatpush1.bf16.msra.mxu0 0
    %2937 = vmatprep.subr.bf16.mxu0 0
    %2938 = vmatpush1.bf16.msra.mxu0 0
    %2939 = vmatprep.mubr.bf16.mxu0 0
    %2940 = vmatmul.mubr.bf16.gmra.mrb[0].mxu0 %v2905
    %v2941 = vpop.f32.mrb[0].mxu0
    %v2942 = vadd.f32 %v2846, %v2941
    %v2943 = vpop.f32.mrb[0].mxu0
    %v2944 = vpop.f32.mrb[0].mxu0
    %v2945 = vadd.f32 %v2846, %v2944
    %v2946 = vpop.f32.mrb[0].mxu0
    %2947 = vdwg.mxu0
    %v2948 = vpack.c.bf16 %v2900, %v2897
    %v2949 = vpack.c.bf16 %v2945, %v2942
    %2951 = vrot.lane.b32.xlu0 %v2949, 96
    %v2952 = vpop.permute.xlu0 %2951
    %v2954 = vsel %vm259, %v2948, 0
    %v2957 = vsel %vm259, %v2952, 0
    %2959 = vmatprep.subr.bf16.mxu0 0
    %2960 = vmatpush1.bf16.xpose.msra.mxu0 %v2957
    %2961 = vmatprep.subr.bf16.mxu0 0
    %2962 = vmatpush1.bf16.xpose.msra.mxu0 0
    %2963 = vmatprep.subr.bf16.mxu0 0
    %2964 = vmatpush1.bf16.xpose.msra.mxu0 0
    %2965 = vmatprep.subr.bf16.mxu0 0
    %2966 = vmatpush1.bf16.xpose.msra.mxu0 0
    %2967 = vmatprep.subr.bf16.mxu0 0
    %2968 = vmatpush1.bf16.xpose.msra.mxu0 0
    %2969 = vmatprep.subr.bf16.mxu0 0
    %2970 = vmatpush1.bf16.xpose.msra.mxu0 0
    %2971 = vmatprep.subr.bf16.mxu0 0
    %2972 = vmatpush1.bf16.xpose.msra.mxu0 0
    %2973 = vmatprep.subr.bf16.mxu0 0
    %2974 = vmatpush1.bf16.xpose.msra.mxu0 0
    %2975 = vmatprep.subr.bf16.mxu0 0
    %2976 = vmatpush1.bf16.xpose.msra.mxu0 0
    %2977 = vmatprep.subr.bf16.mxu0 0
    %2978 = vmatpush1.bf16.xpose.msra.mxu0 0
    %2979 = vmatprep.subr.bf16.mxu0 0
    %2980 = vmatpush1.bf16.xpose.msra.mxu0 0
    %2981 = vmatprep.subr.bf16.mxu0 0
    %2982 = vmatpush1.bf16.xpose.msra.mxu0 0
    %2983 = vmatprep.subr.bf16.mxu0 0
    %2984 = vmatpush1.bf16.xpose.msra.mxu0 0
    %2985 = vmatprep.subr.bf16.mxu0 0
    %2986 = vmatpush1.bf16.xpose.msra.mxu0 0
    %2987 = vmatprep.subr.bf16.mxu0 0
    %2988 = vmatpush1.bf16.xpose.msra.mxu0 0
    %2989 = vmatprep.subr.bf16.mxu0 0
    %2990 = vmatpush1.bf16.xpose.msra.mxu0 0
    %2991 = vmatprep.mubr.bf16.mxu0 0
    %2992 = vmatmul.mubr.bf16.gmra.mrb[0].mxu0 %v2954
    %v2993 = vpop.f32.mrb[0].mxu0
    %v2994 = vadd.f32 0.0, %v2993
    %v2995 = vpop.f32.mrb[0].mxu0
    %v2996 = vpop.f32.mrb[0].mxu0
    %v2997 = vadd.f32 0.0, %v2996
    %v2998 = vpop.f32.mrb[0].mxu0
    %2999 = vdwg.mxu0
    %v3000 = vmul.f32 %v2994, 0.35355338
    %v3001 = vmul.f32 %v2997, 0.35355338
    %v3002 = vadd.f32 %v3000, %v131
    %v3003 = vadd.f32 %v3001, %v132
    %v3004 = vsel %vm311, %v3002, -inf
    %3005 = vmax.xlane.f32.xlu0 %v3004
    %v3006 = vpop.xlane.xlu0 %3005
    %v3007 = vsel %vm311, %v3003, -inf
    %3008 = vmax.xlane.f32.xlu0 %v3007
    %v3009 = vpop.xlane.xlu0 %3008
    %v3010 = vsub.f32 %v3002, %v3006
    %v3011 = vsub.f32 %v3003, %v3009
    %v3012 = vmul.f32 %v3010, 1.442695
    %v3013 = vpow.pop %v3012
    %v3014 = vmul.f32 %v3011, 1.442695
    %v3015 = vpow.pop %v3014
    %v3016 = vsel %vm311, %v3013, 0.0
    %3017 = vadd.xlane.f32.xlu0 %v3016
    %v3018 = vpop.xlane.xlu0 %3017
    %v3019 = vsel %vm311, %v3015, 0.0
    %3020 = vadd.xlane.f32.xlu0 %v3019
    %v3021 = vpop.xlane.xlu0 %3020
    %v3022 = vrcp.pop %v3018
    %v3023 = vrcp.pop %v3021
    %v3024 = vmul.f32 %v3013, %v3022
    %v3025 = vmul.f32 %v3015, %v3023
    %v3026 = vpack.c.bf16 %v3025, %v3024
    %3027 = vrot.lane.b32.xlu0 %v2949, 64
    %v3028 = vpop.permute.xlu0 %3027
    %v3031 = vsel %vm311, %v3026, 0
    %3033 = vmatprep.subr.bf16.mxu0 0
    %3034 = vmatpush1.bf16.msra.mxu0 %v3028
    %3035 = vmatprep.subr.bf16.mxu0 0
    %3036 = vmatpush1.bf16.msra.mxu0 0
    %3037 = vmatprep.subr.bf16.mxu0 0
    %3038 = vmatpush1.bf16.msra.mxu0 0
    %3039 = vmatprep.subr.bf16.mxu0 0
    %3040 = vmatpush1.bf16.msra.mxu0 0
    %3041 = vmatprep.subr.bf16.mxu0 0
    %3042 = vmatpush1.bf16.msra.mxu0 0
    %3043 = vmatprep.subr.bf16.mxu0 0
    %3044 = vmatpush1.bf16.msra.mxu0 0
    %3045 = vmatprep.subr.bf16.mxu0 0
    %3046 = vmatpush1.bf16.msra.mxu0 0
    %3047 = vmatprep.subr.bf16.mxu0 0
    %3048 = vmatpush1.bf16.msra.mxu0 0
    %3049 = vmatprep.subr.bf16.mxu0 0
    %3050 = vmatpush1.bf16.msra.mxu0 0
    %3051 = vmatprep.subr.bf16.mxu0 0
    %3052 = vmatpush1.bf16.msra.mxu0 0
    %3053 = vmatprep.subr.bf16.mxu0 0
    %3054 = vmatpush1.bf16.msra.mxu0 0
    %3055 = vmatprep.subr.bf16.mxu0 0
    %3056 = vmatpush1.bf16.msra.mxu0 0
    %3057 = vmatprep.subr.bf16.mxu0 0
    %3058 = vmatpush1.bf16.msra.mxu0 0
    %3059 = vmatprep.subr.bf16.mxu0 0
    %3060 = vmatpush1.bf16.msra.mxu0 0
    %3061 = vmatprep.subr.bf16.mxu0 0
    %3062 = vmatpush1.bf16.msra.mxu0 0
    %3063 = vmatprep.subr.bf16.mxu0 0
    %3064 = vmatpush1.bf16.msra.mxu0 0
    %3065 = vmatprep.mubr.bf16.mxu0 0
    %3066 = vmatmul.mubr.bf16.gmra.mrb[0].mxu0 %v3031
    %v3067 = vpop.f32.mrb[0].mxu0
    %v3068 = vadd.f32 0.0, %v3067
    %v3069 = vpop.f32.mrb[0].mxu0
    %v3070 = vpop.f32.mrb[0].mxu0
    %v3071 = vadd.f32 0.0, %v3070
    %v3072 = vpop.f32.mrb[0].mxu0
    %3073 = vdwg.mxu0
    %3075 = vrot.lane.b32.xlu0 %v2948, 120
    %v3076 = vpop.permute.xlu0 %3075
    %3077 = vrot.lane.b32.xlu0 %v2949, 88
    %v3078 = vpop.permute.xlu0 %3077
    %v3080 = vsel %vm259, %v3076, 0
    %v3083 = vsel %vm259, %v3078, 0
    %3085 = vmatprep.subr.bf16.mxu0 0
    %3086 = vmatpush1.bf16.xpose.msra.mxu0 %v3083
    %3087 = vmatprep.subr.bf16.mxu0 0
    %3088 = vmatpush1.bf16.xpose.msra.mxu0 0
    %3089 = vmatprep.subr.bf16.mxu0 0
    %3090 = vmatpush1.bf16.xpose.msra.mxu0 0
    %3091 = vmatprep.subr.bf16.mxu0 0
    %3092 = vmatpush1.bf16.xpose.msra.mxu0 0
    %3093 = vmatprep.subr.bf16.mxu0 0
    %3094 = vmatpush1.bf16.xpose.msra.mxu0 0
    %3095 = vmatprep.subr.bf16.mxu0 0
    %3096 = vmatpush1.bf16.xpose.msra.mxu0 0
    %3097 = vmatprep.subr.bf16.mxu0 0
    %3098 = vmatpush1.bf16.xpose.msra.mxu0 0
    %3099 = vmatprep.subr.bf16.mxu0 0
    %3100 = vmatpush1.bf16.xpose.msra.mxu0 0
    %3101 = vmatprep.subr.bf16.mxu0 0
    %3102 = vmatpush1.bf16.xpose.msra.mxu0 0
    %3103 = vmatprep.subr.bf16.mxu0 0
    %3104 = vmatpush1.bf16.xpose.msra.mxu0 0
    %3105 = vmatprep.subr.bf16.mxu0 0
    %3106 = vmatpush1.bf16.xpose.msra.mxu0 0
    %3107 = vmatprep.subr.bf16.mxu0 0
    %3108 = vmatpush1.bf16.xpose.msra.mxu0 0
    %3109 = vmatprep.subr.bf16.mxu0 0
    %3110 = vmatpush1.bf16.xpose.msra.mxu0 0
    %3111 = vmatprep.subr.bf16.mxu0 0
    %3112 = vmatpush1.bf16.xpose.msra.mxu0 0
    %3113 = vmatprep.subr.bf16.mxu0 0
    %3114 = vmatpush1.bf16.xpose.msra.mxu0 0
    %3115 = vmatprep.subr.bf16.mxu0 0
    %3116 = vmatpush1.bf16.xpose.msra.mxu0 0
    %3117 = vmatprep.mubr.bf16.mxu0 0
    %3118 = vmatmul.mubr.bf16.gmra.mrb[0].mxu0 %v3080
    %v3119 = vpop.f32.mrb[0].mxu0
    %v3120 = vadd.f32 0.0, %v3119
    %v3121 = vpop.f32.mrb[0].mxu0
    %v3122 = vpop.f32.mrb[0].mxu0
    %v3123 = vadd.f32 0.0, %v3122
    %v3124 = vpop.f32.mrb[0].mxu0
    %3125 = vdwg.mxu0
    %v3126 = vmul.f32 %v3120, 0.35355338
    %v3127 = vmul.f32 %v3123, 0.35355338
    %v3128 = vadd.f32 %v3126, %v131
    %v3129 = vadd.f32 %v3127, %v132
    %v3130 = vsel %vm311, %v3128, -inf
    %3131 = vmax.xlane.f32.xlu0 %v3130
    %v3132 = vpop.xlane.xlu0 %3131
    %v3133 = vsel %vm311, %v3129, -inf
    %3134 = vmax.xlane.f32.xlu0 %v3133
    %v3135 = vpop.xlane.xlu0 %3134
    %v3136 = vsub.f32 %v3128, %v3132
    %v3137 = vsub.f32 %v3129, %v3135
    %v3138 = vmul.f32 %v3136, 1.442695
    %v3139 = vpow.pop %v3138
    %v3140 = vmul.f32 %v3137, 1.442695
    %v3141 = vpow.pop %v3140
    %v3142 = vsel %vm311, %v3139, 0.0
    %3143 = vadd.xlane.f32.xlu0 %v3142
    %v3144 = vpop.xlane.xlu0 %3143
    %v3145 = vsel %vm311, %v3141, 0.0
    %3146 = vadd.xlane.f32.xlu0 %v3145
    %v3147 = vpop.xlane.xlu0 %3146
    %v3148 = vrcp.pop %v3144
    %v3149 = vrcp.pop %v3147
    %v3150 = vmul.f32 %v3139, %v3148
    %v3151 = vmul.f32 %v3141, %v3149
    %v3152 = vpack.c.bf16 %v3151, %v3150
    %3153 = vrot.lane.b32.xlu0 %v2949, 56
    %v3154 = vpop.permute.xlu0 %3153
    %v3157 = vsel %vm311, %v3152, 0
    %3159 = vmatprep.subr.bf16.mxu0 0
    %3160 = vmatpush1.bf16.msra.mxu0 %v3154
    %3161 = vmatprep.subr.bf16.mxu0 0
    %3162 = vmatpush1.bf16.msra.mxu0 0
    %3163 = vmatprep.subr.bf16.mxu0 0
    %3164 = vmatpush1.bf16.msra.mxu0 0
    %3165 = vmatprep.subr.bf16.mxu0 0
    %3166 = vmatpush1.bf16.msra.mxu0 0
    %3167 = vmatprep.subr.bf16.mxu0 0
    %3168 = vmatpush1.bf16.msra.mxu0 0
    %3169 = vmatprep.subr.bf16.mxu0 0
    %3170 = vmatpush1.bf16.msra.mxu0 0
    %3171 = vmatprep.subr.bf16.mxu0 0
    %3172 = vmatpush1.bf16.msra.mxu0 0
    %3173 = vmatprep.subr.bf16.mxu0 0
    %3174 = vmatpush1.bf16.msra.mxu0 0
    %3175 = vmatprep.subr.bf16.mxu0 0
    %3176 = vmatpush1.bf16.msra.mxu0 0
    %3177 = vmatprep.subr.bf16.mxu0 0
    %3178 = vmatpush1.bf16.msra.mxu0 0
    %3179 = vmatprep.subr.bf16.mxu0 0
    %3180 = vmatpush1.bf16.msra.mxu0 0
    %3181 = vmatprep.subr.bf16.mxu0 0
    %3182 = vmatpush1.bf16.msra.mxu0 0
    %3183 = vmatprep.subr.bf16.mxu0 0
    %3184 = vmatpush1.bf16.msra.mxu0 0
    %3185 = vmatprep.subr.bf16.mxu0 0
    %3186 = vmatpush1.bf16.msra.mxu0 0
    %3187 = vmatprep.subr.bf16.mxu0 0
    %3188 = vmatpush1.bf16.msra.mxu0 0
    %3189 = vmatprep.subr.bf16.mxu0 0
    %3190 = vmatpush1.bf16.msra.mxu0 0
    %3191 = vmatprep.mubr.bf16.mxu0 0
    %3192 = vmatmul.mubr.bf16.gmra.mrb[0].mxu0 %v3157
    %v3193 = vpop.f32.mrb[0].mxu0
    %v3194 = vadd.f32 0.0, %v3193
    %v3195 = vpop.f32.mrb[0].mxu0
    %v3196 = vpop.f32.mrb[0].mxu0
    %v3197 = vadd.f32 0.0, %v3196
    %v3198 = vpop.f32.mrb[0].mxu0
    %3199 = vdwg.mxu0
    %3200 = vrot.lane.b32.xlu0 %v2948, 112
    %v3201 = vpop.permute.xlu0 %3200
    %3202 = vrot.lane.b32.xlu0 %v2949, 80
    %v3203 = vpop.permute.xlu0 %3202
    %v3205 = vsel %vm259, %v3201, 0
    %v3208 = vsel %vm259, %v3203, 0
    %3210 = vmatprep.subr.bf16.mxu0 0
    %3211 = vmatpush1.bf16.xpose.msra.mxu0 %v3208
    %3212 = vmatprep.subr.bf16.mxu0 0
    %3213 = vmatpush1.bf16.xpose.msra.mxu0 0
    %3214 = vmatprep.subr.bf16.mxu0 0
    %3215 = vmatpush1.bf16.xpose.msra.mxu0 0
    %3216 = vmatprep.subr.bf16.mxu0 0
    %3217 = vmatpush1.bf16.xpose.msra.mxu0 0
    %3218 = vmatprep.subr.bf16.mxu0 0
    %3219 = vmatpush1.bf16.xpose.msra.mxu0 0
    %3220 = vmatprep.subr.bf16.mxu0 0
    %3221 = vmatpush1.bf16.xpose.msra.mxu0 0
    %3222 = vmatprep.subr.bf16.mxu0 0
    %3223 = vmatpush1.bf16.xpose.msra.mxu0 0
    %3224 = vmatprep.subr.bf16.mxu0 0
    %3225 = vmatpush1.bf16.xpose.msra.mxu0 0
    %3226 = vmatprep.subr.bf16.mxu0 0
    %3227 = vmatpush1.bf16.xpose.msra.mxu0 0
    %3228 = vmatprep.subr.bf16.mxu0 0
    %3229 = vmatpush1.bf16.xpose.msra.mxu0 0
    %3230 = vmatprep.subr.bf16.mxu0 0
    %3231 = vmatpush1.bf16.xpose.msra.mxu0 0
    %3232 = vmatprep.subr.bf16.mxu0 0
    %3233 = vmatpush1.bf16.xpose.msra.mxu0 0
    %3234 = vmatprep.subr.bf16.mxu0 0
    %3235 = vmatpush1.bf16.xpose.msra.mxu0 0
    %3236 = vmatprep.subr.bf16.mxu0 0
    %3237 = vmatpush1.bf16.xpose.msra.mxu0 0
    %3238 = vmatprep.subr.bf16.mxu0 0
    %3239 = vmatpush1.bf16.xpose.msra.mxu0 0
    %3240 = vmatprep.subr.bf16.mxu0 0
    %3241 = vmatpush1.bf16.xpose.msra.mxu0 0
    %3242 = vmatprep.mubr.bf16.mxu0 0
    %3243 = vmatmul.mubr.bf16.gmra.mrb[0].mxu0 %v3205
    %v3244 = vpop.f32.mrb[0].mxu0
    %v3245 = vadd.f32 0.0, %v3244
    %v3246 = vpop.f32.mrb[0].mxu0
    %v3247 = vpop.f32.mrb[0].mxu0
    %v3248 = vadd.f32 0.0, %v3247
    %v3249 = vpop.f32.mrb[0].mxu0
    %3250 = vdwg.mxu0
    %v3251 = vmul.f32 %v3245, 0.35355338
    %v3252 = vmul.f32 %v3248, 0.35355338
    %v3253 = vadd.f32 %v3251, %v131
    %v3254 = vadd.f32 %v3252, %v132
    %v3255 = vsel %vm311, %v3253, -inf
    %3256 = vmax.xlane.f32.xlu0 %v3255
    %v3257 = vpop.xlane.xlu0 %3256
    %v3258 = vsel %vm311, %v3254, -inf
    %3259 = vmax.xlane.f32.xlu0 %v3258
    %v3260 = vpop.xlane.xlu0 %3259
    %v3261 = vsub.f32 %v3253, %v3257
    %v3262 = vsub.f32 %v3254, %v3260
    %v3263 = vmul.f32 %v3261, 1.442695
    %v3264 = vpow.pop %v3263
    %v3265 = vmul.f32 %v3262, 1.442695
    %v3266 = vpow.pop %v3265
    %v3267 = vsel %vm311, %v3264, 0.0
    %3268 = vadd.xlane.f32.xlu0 %v3267
    %v3269 = vpop.xlane.xlu0 %3268
    %v3270 = vsel %vm311, %v3266, 0.0
    %3271 = vadd.xlane.f32.xlu0 %v3270
    %v3272 = vpop.xlane.xlu0 %3271
    %v3273 = vrcp.pop %v3269
    %v3274 = vrcp.pop %v3272
    %v3275 = vmul.f32 %v3264, %v3273
    %v3276 = vmul.f32 %v3266, %v3274
    %v3277 = vpack.c.bf16 %v3276, %v3275
    %3278 = vrot.lane.b32.xlu0 %v2949, 48
    %v3279 = vpop.permute.xlu0 %3278
    %v3282 = vsel %vm311, %v3277, 0
    %3284 = vmatprep.subr.bf16.mxu0 0
    %3285 = vmatpush1.bf16.msra.mxu0 %v3279
    %3286 = vmatprep.subr.bf16.mxu0 0
    %3287 = vmatpush1.bf16.msra.mxu0 0
    %3288 = vmatprep.subr.bf16.mxu0 0
    %3289 = vmatpush1.bf16.msra.mxu0 0
    %3290 = vmatprep.subr.bf16.mxu0 0
    %3291 = vmatpush1.bf16.msra.mxu0 0
    %3292 = vmatprep.subr.bf16.mxu0 0
    %3293 = vmatpush1.bf16.msra.mxu0 0
    %3294 = vmatprep.subr.bf16.mxu0 0
    %3295 = vmatpush1.bf16.msra.mxu0 0
    %3296 = vmatprep.subr.bf16.mxu0 0
    %3297 = vmatpush1.bf16.msra.mxu0 0
    %3298 = vmatprep.subr.bf16.mxu0 0
    %3299 = vmatpush1.bf16.msra.mxu0 0
    %3300 = vmatprep.subr.bf16.mxu0 0
    %3301 = vmatpush1.bf16.msra.mxu0 0
    %3302 = vmatprep.subr.bf16.mxu0 0
    %3303 = vmatpush1.bf16.msra.mxu0 0
    %3304 = vmatprep.subr.bf16.mxu0 0
    %3305 = vmatpush1.bf16.msra.mxu0 0
    %3306 = vmatprep.subr.bf16.mxu0 0
    %3307 = vmatpush1.bf16.msra.mxu0 0
    %3308 = vmatprep.subr.bf16.mxu0 0
    %3309 = vmatpush1.bf16.msra.mxu0 0
    %3310 = vmatprep.subr.bf16.mxu0 0
    %3311 = vmatpush1.bf16.msra.mxu0 0
    %3312 = vmatprep.subr.bf16.mxu0 0
    %3313 = vmatpush1.bf16.msra.mxu0 0
    %3314 = vmatprep.subr.bf16.mxu0 0
    %3315 = vmatpush1.bf16.msra.mxu0 0
    %3316 = vmatprep.mubr.bf16.mxu0 0
    %3317 = vmatmul.mubr.bf16.gmra.mrb[0].mxu0 %v3282
    %v3318 = vpop.f32.mrb[0].mxu0
    %v3319 = vadd.f32 0.0, %v3318
    %v3320 = vpop.f32.mrb[0].mxu0
    %v3321 = vpop.f32.mrb[0].mxu0
    %v3322 = vadd.f32 0.0, %v3321
    %v3323 = vpop.f32.mrb[0].mxu0
    %3324 = vdwg.mxu0
    %3325 = vrot.lane.b32.xlu0 %v2948, 104
    %v3326 = vpop.permute.xlu0 %3325
    %3327 = vrot.lane.b32.xlu0 %v2949, 72
    %v3328 = vpop.permute.xlu0 %3327
    %v3330 = vsel %vm259, %v3326, 0
    %v3333 = vsel %vm259, %v3328, 0
    %3335 = vmatprep.subr.bf16.mxu0 0
    %3336 = vmatpush1.bf16.xpose.msra.mxu0 %v3333
    %3337 = vmatprep.subr.bf16.mxu0 0
    %3338 = vmatpush1.bf16.xpose.msra.mxu0 0
    %3339 = vmatprep.subr.bf16.mxu0 0
    %3340 = vmatpush1.bf16.xpose.msra.mxu0 0
    %3341 = vmatprep.subr.bf16.mxu0 0
    %3342 = vmatpush1.bf16.xpose.msra.mxu0 0
    %3343 = vmatprep.subr.bf16.mxu0 0
    %3344 = vmatpush1.bf16.xpose.msra.mxu0 0
    %3345 = vmatprep.subr.bf16.mxu0 0
    %3346 = vmatpush1.bf16.xpose.msra.mxu0 0
    %3347 = vmatprep.subr.bf16.mxu0 0
    %3348 = vmatpush1.bf16.xpose.msra.mxu0 0
    %3349 = vmatprep.subr.bf16.mxu0 0
    %3350 = vmatpush1.bf16.xpose.msra.mxu0 0
    %3351 = vmatprep.subr.bf16.mxu0 0
    %3352 = vmatpush1.bf16.xpose.msra.mxu0 0
    %3353 = vmatprep.subr.bf16.mxu0 0
    %3354 = vmatpush1.bf16.xpose.msra.mxu0 0
    %3355 = vmatprep.subr.bf16.mxu0 0
    %3356 = vmatpush1.bf16.xpose.msra.mxu0 0
    %3357 = vmatprep.subr.bf16.mxu0 0
    %3358 = vmatpush1.bf16.xpose.msra.mxu0 0
    %3359 = vmatprep.subr.bf16.mxu0 0
    %3360 = vmatpush1.bf16.xpose.msra.mxu0 0
    %3361 = vmatprep.subr.bf16.mxu0 0
    %3362 = vmatpush1.bf16.xpose.msra.mxu0 0
    %3363 = vmatprep.subr.bf16.mxu0 0
    %3364 = vmatpush1.bf16.xpose.msra.mxu0 0
    %3365 = vmatprep.subr.bf16.mxu0 0
    %3366 = vmatpush1.bf16.xpose.msra.mxu0 0
    %3367 = vmatprep.mubr.bf16.mxu0 0
    %3368 = vmatmul.mubr.bf16.gmra.mrb[0].mxu0 %v3330
    %v3369 = vpop.f32.mrb[0].mxu0
    %v3370 = vadd.f32 0.0, %v3369
    %v3371 = vpop.f32.mrb[0].mxu0
    %v3372 = vpop.f32.mrb[0].mxu0
    %v3373 = vadd.f32 0.0, %v3372
    %v3374 = vpop.f32.mrb[0].mxu0
    %3375 = vdwg.mxu0
    %v3376 = vmul.f32 %v3370, 0.35355338
    %v3377 = vmul.f32 %v3373, 0.35355338
    %v3378 = vadd.f32 %v3376, %v131
    %v3379 = vadd.f32 %v3377, %v132
    %v3380 = vsel %vm311, %v3378, -inf
    %3381 = vmax.xlane.f32.xlu0 %v3380
    %v3382 = vpop.xlane.xlu0 %3381
    %v3383 = vsel %vm311, %v3379, -inf
    %3384 = vmax.xlane.f32.xlu0 %v3383
    %v3385 = vpop.xlane.xlu0 %3384
    %v3386 = vsub.f32 %v3378, %v3382
    %v3387 = vsub.f32 %v3379, %v3385
    %v3388 = vmul.f32 %v3386, 1.442695
    %v3389 = vpow.pop %v3388
    %v3390 = vmul.f32 %v3387, 1.442695
    %v3391 = vpow.pop %v3390
    %v3392 = vsel %vm311, %v3389, 0.0
    %3393 = vadd.xlane.f32.xlu0 %v3392
    %v3394 = vpop.xlane.xlu0 %3393
    %v3395 = vsel %vm311, %v3391, 0.0
    %3396 = vadd.xlane.f32.xlu0 %v3395
    %v3397 = vpop.xlane.xlu0 %3396
    %v3398 = vrcp.pop %v3394
    %v3399 = vrcp.pop %v3397
    %v3400 = vmul.f32 %v3389, %v3398
    %v3401 = vmul.f32 %v3391, %v3399
    %v3402 = vpack.c.bf16 %v3401, %v3400
    %3403 = vrot.lane.b32.xlu0 %v2949, 40
    %v3404 = vpop.permute.xlu0 %3403
    %v3407 = vsel %vm311, %v3402, 0
    %3409 = vmatprep.subr.bf16.mxu0 0
    %3410 = vmatpush1.bf16.msra.mxu0 %v3404
    %3411 = vmatprep.subr.bf16.mxu0 0
    %3412 = vmatpush1.bf16.msra.mxu0 0
    %3413 = vmatprep.subr.bf16.mxu0 0
    %3414 = vmatpush1.bf16.msra.mxu0 0
    %3415 = vmatprep.subr.bf16.mxu0 0
    %3416 = vmatpush1.bf16.msra.mxu0 0
    %3417 = vmatprep.subr.bf16.mxu0 0
    %3418 = vmatpush1.bf16.msra.mxu0 0
    %3419 = vmatprep.subr.bf16.mxu0 0
    %3420 = vmatpush1.bf16.msra.mxu0 0
    %3421 = vmatprep.subr.bf16.mxu0 0
    %3422 = vmatpush1.bf16.msra.mxu0 0
    %3423 = vmatprep.subr.bf16.mxu0 0
    %3424 = vmatpush1.bf16.msra.mxu0 0
    %3425 = vmatprep.subr.bf16.mxu0 0
    %3426 = vmatpush1.bf16.msra.mxu0 0
    %3427 = vmatprep.subr.bf16.mxu0 0
    %3428 = vmatpush1.bf16.msra.mxu0 0
    %3429 = vmatprep.subr.bf16.mxu0 0
    %3430 = vmatpush1.bf16.msra.mxu0 0
    %3431 = vmatprep.subr.bf16.mxu0 0
    %3432 = vmatpush1.bf16.msra.mxu0 0
    %3433 = vmatprep.subr.bf16.mxu0 0
    %3434 = vmatpush1.bf16.msra.mxu0 0
    %3435 = vmatprep.subr.bf16.mxu0 0
    %3436 = vmatpush1.bf16.msra.mxu0 0
    %3437 = vmatprep.subr.bf16.mxu0 0
    %3438 = vmatpush1.bf16.msra.mxu0 0
    %3439 = vmatprep.subr.bf16.mxu0 0
    %3440 = vmatpush1.bf16.msra.mxu0 0
    %3441 = vmatprep.mubr.bf16.mxu0 0
    %3442 = vmatmul.mubr.bf16.gmra.mrb[0].mxu0 %v3407
    %v3443 = vpop.f32.mrb[0].mxu0
    %v3444 = vadd.f32 0.0, %v3443
    %v3445 = vpop.f32.mrb[0].mxu0
    %v3446 = vpop.f32.mrb[0].mxu0
    %v3447 = vadd.f32 0.0, %v3446
    %v3448 = vpop.f32.mrb[0].mxu0
    %3449 = vdwg.mxu0
    %3452 = vrot.lane.b32.xlu0 %v3194, 8
    %v3453 = vpop.permute.xlu0 %3452
    %3454 = vrot.lane.b32.xlu0 %v3197, 8
    %v3455 = vpop.permute.xlu0 %3454
    %3460 = vrot.lane.b32.xlu0 %v3319, 16
    %v3461 = vpop.permute.xlu0 %3460
    %3462 = vrot.lane.b32.xlu0 %v3322, 16
    %v3463 = vpop.permute.xlu0 %3462
    %3468 = vrot.lane.b32.xlu0 %v3444, 24
    %v3469 = vpop.permute.xlu0 %3468
    %3470 = vrot.lane.b32.xlu0 %v3447, 24
    %v3471 = vpop.permute.xlu0 %3470
    %v3474 = vsel %vm259, %v3068, %v3453
    %v3475 = vsel %vm259, %v3071, %v3455
    %v3476 = vsel %vm311, %v3474, %v3461
    %v3477 = vsel %vm311, %v3475, %v3463
    %v3478 = vsel %vm785, %v3476, %v3469
    %v3479 = vsel %vm785, %v3477, %v3471
    %v3480 = vpack.c.bf16 %v3479, %v3478
    %3481 = vrot.lane.b32.xlu0 %v2855, 32
    %v3482 = vpop.permute.xlu0 %3481
    %3483 = vrot.lane.b32.xlu0 %v2856, 32
    %v3484 = vpop.permute.xlu0 %3483
    %3488 = vrot.lane.b32.xlu0 %v2846, 32
    %v3489 = vpop.permute.xlu0 %3488
    %v3492 = vsel %vm135, %v3480, 0
    %3494 = vmatprep.subr.bf16.mxu0 0
    %3495 = vmatpush1.bf16.msra.mxu0 %v3482
    %3496 = vmatprep.subr.bf16.mxu0 0
    %3497 = vmatpush1.bf16.msra.mxu0 %v3484
    %3498 = vmatprep.subr.bf16.mxu0 0
    %3499 = vmatpush1.bf16.msra.mxu0 0
    %3500 = vmatprep.subr.bf16.mxu0 0
    %3501 = vmatpush1.bf16.msra.mxu0 0
    %3502 = vmatprep.subr.bf16.mxu0 0
    %3503 = vmatpush1.bf16.msra.mxu0 0
    %3504 = vmatprep.subr.bf16.mxu0 0
    %3505 = vmatpush1.bf16.msra.mxu0 0
    %3506 = vmatprep.subr.bf16.mxu0 0
    %3507 = vmatpush1.bf16.msra.mxu0 0
    %3508 = vmatprep.subr.bf16.mxu0 0
    %3509 = vmatpush1.bf16.msra.mxu0 0
    %3510 = vmatprep.subr.bf16.mxu0 0
    %3511 = vmatpush1.bf16.msra.mxu0 0
    %3512 = vmatprep.subr.bf16.mxu0 0
    %3513 = vmatpush1.bf16.msra.mxu0 0
    %3514 = vmatprep.subr.bf16.mxu0 0
    %3515 = vmatpush1.bf16.msra.mxu0 0
    %3516 = vmatprep.subr.bf16.mxu0 0
    %3517 = vmatpush1.bf16.msra.mxu0 0
    %3518 = vmatprep.subr.bf16.mxu0 0
    %3519 = vmatpush1.bf16.msra.mxu0 0
    %3520 = vmatprep.subr.bf16.mxu0 0
    %3521 = vmatpush1.bf16.msra.mxu0 0
    %3522 = vmatprep.subr.bf16.mxu0 0
    %3523 = vmatpush1.bf16.msra.mxu0 0
    %3524 = vmatprep.subr.bf16.mxu0 0
    %3525 = vmatpush1.bf16.msra.mxu0 0
    %3526 = vmatprep.mubr.bf16.mxu0 0
    %3527 = vmatmul.mubr.bf16.gmra.mrb[0].mxu0 %v3492
    %v3528 = vpop.f32.mrb[0].mxu0
    %v3529 = vadd.f32 %v3489, %v3528
    %v3530 = vpop.f32.mrb[0].mxu0
    %v3531 = vpop.f32.mrb[0].mxu0
    %v3532 = vadd.f32 %v3489, %v3531
    %v3533 = vpop.f32.mrb[0].mxu0
    %3534 = vdwg.mxu0
    %v3535 = vadd.f32 %v2781, %v3529
    %v3536 = vadd.f32 %v2782, %v3532
    %v3537 = vld [vmem:[#allocation13 + $0x16] sm:$0x1]
    %v3538 = vld [vmem:[#allocation13 + $0x17] sm:$0x1]
    %v3539 = vsel %vm135, %v3535, 0.0
    %3540 = vadd.xlane.f32.xlu0 %v3539
    %v3541 = vpop.xlane.xlu0 %3540
    %v3542 = vsel %vm135, %v3536, 0.0
    %3543 = vadd.xlane.f32.xlu0 %v3542
    %v3544 = vpop.xlane.xlu0 %3543
    %v3545 = vmul.f32 %v3541, %v142
    %v3546 = vmul.f32 %v3544, %v142
    %v3547 = vsub.f32 %v3535, %v3545
    %v3548 = vsub.f32 %v3536, %v3546
    %v3549 = vmul.f32 %v3547, %v3547
    %v3550 = vmul.f32 %v3548, %v3548
    %v3551 = vsel %vm135, %v3549, 0.0
    %3552 = vadd.xlane.f32.xlu0 %v3551
    %v3553 = vpop.xlane.xlu0 %3552
    %v3554 = vsel %vm135, %v3550, 0.0
    %3555 = vadd.xlane.f32.xlu0 %v3554
    %v3556 = vpop.xlane.xlu0 %3555
    %v3557 = vmul.f32 %v3553, 0.032258064
    %v3558 = vmul.f32 %v3556, 0.032258064
    %v3559 = vrsqrt.pop %v3557
    %v3560 = vmul.f32 %v3557, %v3559
    %vm3561 = vcmp.eq.f32.partialorder %v3557, inf
    %v3562 = vsel %vm3561, %v3557, %v3560
    %vm3563 = vcmp.eq.f32.partialorder %v3557, 0.0
    %v3564 = vand.u32 %v3557, 2147483648
    %v3565 = vsel %vm3563, %v3564, %v3562
    %v3566 = vrsqrt.pop %v3558
    %v3567 = vmul.f32 %v3558, %v3566
    %vm3568 = vcmp.eq.f32.partialorder %v3558, inf
    %v3569 = vsel %vm3568, %v3558, %v3567
    %vm3570 = vcmp.eq.f32.partialorder %v3558, 0.0
    %v3571 = vand.u32 %v3558, 2147483648
    %v3572 = vsel %vm3570, %v3571, %v3569
    %v3573 = vadd.f32 %v3565, 1e-06
    %v3574 = vadd.f32 %v3572, 1e-06
    %v3575 = vrcp.pop %v3573
    %v3576 = vrcp.pop %v3574
    %v3577 = vlaneseq
    %v3578 = vshrl.u32 %v3577, 7
    %v3579 = vsub.s32 0, %v3578
    %v3580 = vrot.slane %v3537, %v3579
    %v3581 = vmul.f32 %v3580, %v3547
    %v3582 = vmul.f32 %v3580, %v3548
    %v3583 = vmul.f32 %v3581, %v3575
    %v3584 = vmul.f32 %v3582, %v3576
    %v3585 = vlaneseq
    %v3586 = vshrl.u32 %v3585, 7
    %v3587 = vsub.s32 0, %v3586
    %v3588 = vrot.slane %v3538, %v3587
    %v3589 = vadd.f32 %v3583, %v3588
    %v3590 = vadd.f32 %v3584, %v3588
    %v3591 = vld [vmem:[#allocation11 + $0xe0] sm:$0xf]
    %v3592 = vld [vmem:[#allocation11 + $0xe4] sm:$0xf]
    %v3593 = vld [vmem:[#allocation11 + $0xe8] sm:$0xf]
    %v3594 = vld [vmem:[#allocation11 + $0xec] sm:$0xf]
    %v3595 = vld [vmem:[#allocation13 + $0x18] sm:$0x1]
    %v3596 = vld [vmem:[#allocation11 + $0xf0] sm:$0xf]
    %v3597 = vld [vmem:[#allocation11 + $0xf4] sm:$0xf]
    %v3598 = vld [vmem:[#allocation11 + $0xf8] sm:$0xf]
    %v3599 = vld [vmem:[#allocation11 + $0xfc] sm:$0xf]
    %v3600 = vld [vmem:[#allocation11 + $0x100] sm:$0xf]
    %v3601 = vld [vmem:[#allocation11 + $0x104] sm:$0xf]
    %v3602 = vld [vmem:[#allocation11 + $0x108] sm:$0xf]
    %v3603 = vld [vmem:[#allocation11 + $0x10c] sm:$0xf]
    %v3604 = vld [vmem:[#allocation11 + $0x110] sm:$0xf]
    %v3605 = vld [vmem:[#allocation11 + $0x114] sm:$0xf]
    %v3606 = vld [vmem:[#allocation11 + $0x118] sm:$0xf]
    %v3607 = vld [vmem:[#allocation11 + $0x11c] sm:$0xf]
    %v3608 = vld [vmem:[#allocation11 + $0x120] sm:$0xf]
    %v3609 = vld [vmem:[#allocation11 + $0x124] sm:$0xf]
    %v3610 = vld [vmem:[#allocation11 + $0x128] sm:$0xf]
    %v3611 = vld [vmem:[#allocation11 + $0x12c] sm:$0xf]
    %v3612 = vld [vmem:[#allocation13 + $0x19] sm:$0x1]
    %v3613 = vpack.c.bf16 %v3590, %v3589
    %v3614 = vlaneseq
    %v3615 = vshrl.u32 %v3614, 7
    %v3616 = vsub.s32 0, %v3615
    %v3617 = vrot.slane %v3595, %v3616
    %v3622 = vunpack.c.l.b16 %v3591
    %v3623 = vunpack.c.l.b16 %v3592
    %v3624 = vunpack.c.l.b16 %v3593
    %v3625 = vunpack.c.l.b16 %v3594
    %v3626 = vpack.c.b16 %v3623, %v3622
    %v3627 = vpack.c.b16 %v3625, %v3624
    %v3631 = vsel %vm135, %v3613, 0
    %3633 = vmatprep.subr.bf16.mxu0 0
    %3634 = vmatpush1.bf16.msra.mxu0 %v3626
    %3635 = vmatprep.subr.bf16.mxu0 0
    %3636 = vmatpush1.bf16.msra.mxu0 %v3627
    %3637 = vmatprep.subr.bf16.mxu0 0
    %3638 = vmatpush1.bf16.msra.mxu0 0
    %3639 = vmatprep.subr.bf16.mxu0 0
    %3640 = vmatpush1.bf16.msra.mxu0 0
    %3641 = vmatprep.subr.bf16.mxu0 0
    %3642 = vmatpush1.bf16.msra.mxu0 0
    %3643 = vmatprep.subr.bf16.mxu0 0
    %3644 = vmatpush1.bf16.msra.mxu0 0
    %3645 = vmatprep.subr.bf16.mxu0 0
    %3646 = vmatpush1.bf16.msra.mxu0 0
    %3647 = vmatprep.subr.bf16.mxu0 0
    %3648 = vmatpush1.bf16.msra.mxu0 0
    %3649 = vmatprep.subr.bf16.mxu0 0
    %3650 = vmatpush1.bf16.msra.mxu0 0
    %3651 = vmatprep.subr.bf16.mxu0 0
    %3652 = vmatpush1.bf16.msra.mxu0 0
    %3653 = vmatprep.subr.bf16.mxu0 0
    %3654 = vmatpush1.bf16.msra.mxu0 0
    %3655 = vmatprep.subr.bf16.mxu0 0
    %3656 = vmatpush1.bf16.msra.mxu0 0
    %3657 = vmatprep.subr.bf16.mxu0 0
    %3658 = vmatpush1.bf16.msra.mxu0 0
    %3659 = vmatprep.subr.bf16.mxu0 0
    %3660 = vmatpush1.bf16.msra.mxu0 0
    %3661 = vmatprep.subr.bf16.mxu0 0
    %3662 = vmatpush1.bf16.msra.mxu0 0
    %3663 = vmatprep.subr.bf16.mxu0 0
    %3664 = vmatpush1.bf16.msra.mxu0 0
    %3665 = vmatprep.mubr.bf16.mxu0 0
    %3666 = vmatmul.mubr.bf16.gmra.mrb[0].mxu0 %v3631
    %v3667 = vpop.f32.mrb[0].mxu0
    %v3668 = vadd.f32 %v3617, %v3667
    %v3669 = vpop.f32.mrb[0].mxu0
    %v3670 = vpop.f32.mrb[0].mxu0
    %v3671 = vadd.f32 %v3617, %v3670
    %v3672 = vpop.f32.mrb[0].mxu0
    %3673 = vdwg.mxu0
    %v3674 = vmax.f32 %v3668, 0.0
    %v3675 = vmax.f32 %v3671, 0.0
    %v3676 = vpack.c.bf16 %v3675, %v3674
    %v3677 = vlaneseq
    %v3678 = vshrl.u32 %v3677, 7
    %v3679 = vsub.s32 0, %v3678
    %v3680 = vrot.slane %v3612, %v3679
    %v3697 = vunpack.c.l.b16 %v3596
    %v3698 = vunpack.c.l.b16 %v3597
    %v3699 = vunpack.c.l.b16 %v3598
    %v3700 = vunpack.c.l.b16 %v3599
    %v3701 = vunpack.c.l.b16 %v3600
    %v3702 = vunpack.c.l.b16 %v3601
    %v3703 = vunpack.c.l.b16 %v3602
    %v3704 = vunpack.c.l.b16 %v3603
    %v3705 = vunpack.c.l.b16 %v3604
    %v3706 = vunpack.c.l.b16 %v3605
    %v3707 = vunpack.c.l.b16 %v3606
    %v3708 = vunpack.c.l.b16 %v3607
    %v3709 = vunpack.c.l.b16 %v3608
    %v3710 = vunpack.c.l.b16 %v3609
    %v3711 = vunpack.c.l.b16 %v3610
    %v3712 = vunpack.c.l.b16 %v3611
    %v3713 = vpack.c.b16 %v3698, %v3697
    %v3714 = vpack.c.b16 %v3700, %v3699
    %v3715 = vpack.c.b16 %v3702, %v3701
    %v3716 = vpack.c.b16 %v3704, %v3703
    %v3717 = vpack.c.b16 %v3706, %v3705
    %v3718 = vpack.c.b16 %v3708, %v3707
    %v3719 = vpack.c.b16 %v3710, %v3709
    %v3720 = vpack.c.b16 %v3712, %v3711
    %3729 = vmatprep.subr.bf16.mxu0 0
    %3730 = vmatpush1.bf16.msra.mxu0 %v3713
    %3731 = vmatprep.subr.bf16.mxu0 0
    %3732 = vmatpush1.bf16.msra.mxu0 %v3714
    %3733 = vmatprep.subr.bf16.mxu0 0
    %3734 = vmatpush1.bf16.msra.mxu0 %v3715
    %3735 = vmatprep.subr.bf16.mxu0 0
    %3736 = vmatpush1.bf16.msra.mxu0 %v3716
    %3737 = vmatprep.subr.bf16.mxu0 0
    %3738 = vmatpush1.bf16.msra.mxu0 %v3717
    %3739 = vmatprep.subr.bf16.mxu0 0
    %3740 = vmatpush1.bf16.msra.mxu0 %v3718
    %3741 = vmatprep.subr.bf16.mxu0 0
    %3742 = vmatpush1.bf16.msra.mxu0 %v3719
    %3743 = vmatprep.subr.bf16.mxu0 0
    %3744 = vmatpush1.bf16.msra.mxu0 %v3720
    %3745 = vmatprep.subr.bf16.mxu0 0
    %3746 = vmatpush1.bf16.msra.mxu0 0
    %3747 = vmatprep.subr.bf16.mxu0 0
    %3748 = vmatpush1.bf16.msra.mxu0 0
    %3749 = vmatprep.subr.bf16.mxu0 0
    %3750 = vmatpush1.bf16.msra.mxu0 0
    %3751 = vmatprep.subr.bf16.mxu0 0
    %3752 = vmatpush1.bf16.msra.mxu0 0
    %3753 = vmatprep.subr.bf16.mxu0 0
    %3754 = vmatpush1.bf16.msra.mxu0 0
    %3755 = vmatprep.subr.bf16.mxu0 0
    %3756 = vmatpush1.bf16.msra.mxu0 0
    %3757 = vmatprep.subr.bf16.mxu0 0
    %3758 = vmatpush1.bf16.msra.mxu0 0
    %3759 = vmatprep.subr.bf16.mxu0 0
    %3760 = vmatpush1.bf16.msra.mxu0 0
    %3761 = vmatprep.mubr.bf16.mxu0 0
    %3762 = vmatmul.mubr.bf16.gmra.mrb[0].mxu0 %v3676
    %v3763 = vpop.f32.mrb[0].mxu0
    %v3764 = vadd.f32 %v3680, %v3763
    %v3765 = vpop.f32.mrb[0].mxu0
    %v3766 = vpop.f32.mrb[0].mxu0
    %v3767 = vadd.f32 %v3680, %v3766
    %v3768 = vpop.f32.mrb[0].mxu0
    %3769 = vdwg.mxu0
    %v3770 = vadd.f32 %v3535, %v3764
    %v3771 = vadd.f32 %v3536, %v3767
    %v3772 = vld [vmem:[#allocation13 + $0x1a] sm:$0x1]
    %v3773 = vld [vmem:[#allocation13 + $0x1b] sm:$0x1]
    %v3774 = vsel %vm135, %v3770, 0.0
    %3775 = vadd.xlane.f32.xlu0 %v3774
    %v3776 = vpop.xlane.xlu0 %3775
    %v3777 = vsel %vm135, %v3771, 0.0
    %3778 = vadd.xlane.f32.xlu0 %v3777
    %v3779 = vpop.xlane.xlu0 %3778
    %v3780 = vmul.f32 %v3776, %v142
    %v3781 = vmul.f32 %v3779, %v142
    %v3782 = vsub.f32 %v3770, %v3780
    %v3783 = vsub.f32 %v3771, %v3781
    %v3784 = vmul.f32 %v3782, %v3782
    %v3785 = vmul.f32 %v3783, %v3783
    %v3786 = vsel %vm135, %v3784, 0.0
    %3787 = vadd.xlane.f32.xlu0 %v3786
    %v3788 = vpop.xlane.xlu0 %3787
    %v3789 = vsel %vm135, %v3785, 0.0
    %3790 = vadd.xlane.f32.xlu0 %v3789
    %v3791 = vpop.xlane.xlu0 %3790
    %v3792 = vmul.f32 %v3788, 0.032258064
    %v3793 = vmul.f32 %v3791, 0.032258064
    %v3794 = vrsqrt.pop %v3792
    %v3795 = vmul.f32 %v3792, %v3794
    %vm3796 = vcmp.eq.f32.partialorder %v3792, inf
    %v3797 = vsel %vm3796, %v3792, %v3795
    %vm3798 = vcmp.eq.f32.partialorder %v3792, 0.0
    %v3799 = vand.u32 %v3792, 2147483648
    %v3800 = vsel %vm3798, %v3799, %v3797
    %v3801 = vrsqrt.pop %v3793
    %v3802 = vmul.f32 %v3793, %v3801
    %vm3803 = vcmp.eq.f32.partialorder %v3793, inf
    %v3804 = vsel %vm3803, %v3793, %v3802
    %vm3805 = vcmp.eq.f32.partialorder %v3793, 0.0
    %v3806 = vand.u32 %v3793, 2147483648
    %v3807 = vsel %vm3805, %v3806, %v3804
    %v3808 = vadd.f32 %v3800, 1e-06
    %v3809 = vadd.f32 %v3807, 1e-06
    %v3810 = vrcp.pop %v3808
    %v3811 = vrcp.pop %v3809
    %v3812 = vlaneseq
    %v3813 = vshrl.u32 %v3812, 7
    %v3814 = vsub.s32 0, %v3813
    %v3815 = vrot.slane %v3772, %v3814
    %v3816 = vmul.f32 %v3815, %v3782
    %v3817 = vmul.f32 %v3815, %v3783
    %v3818 = vmul.f32 %v3816, %v3810
    %v3819 = vmul.f32 %v3817, %v3811
    %v3820 = vlaneseq
    %v3821 = vshrl.u32 %v3820, 7
    %v3822 = vsub.s32 0, %v3821
    %v3823 = vrot.slane %v3773, %v3822
    %v3824 = vadd.f32 %v3818, %v3823
    %v3825 = vadd.f32 %v3819, %v3823
    %v3826 = vld [vmem:[#allocation11 + $0x130] sm:$0xf]
    %v3827 = vld [vmem:[#allocation11 + $0x134] sm:$0xf]
    %v3828 = vld [vmem:[#allocation11 + $0x138] sm:$0xf]
    %v3829 = vld [vmem:[#allocation11 + $0x13c] sm:$0xf]
    %v3830 = vld [vmem:[#allocation13 + $0x1c] sm:$0x1]
    %v3831 = vpack.c.bf16 %v3825, %v3824
    %v3832 = vlaneseq
    %v3833 = vshrl.u32 %v3832, 7
    %v3834 = vsub.s32 0, %v3833
    %v3835 = vrot.slane %v3830, %v3834
    %v3840 = vunpack.c.l.b16 %v3826
    %v3841 = vunpack.c.l.b16 %v3827
    %v3842 = vunpack.c.l.b16 %v3828
    %v3843 = vunpack.c.l.b16 %v3829
    %v3844 = vpack.c.b16 %v3841, %v3840
    %v3845 = vpack.c.b16 %v3843, %v3842
    %v3849 = vsel %vm135, %v3831, 0
    %3851 = vmatprep.subr.bf16.mxu0 0
    %3852 = vmatpush1.bf16.msra.mxu0 %v3844
    %3853 = vmatprep.subr.bf16.mxu0 0
    %3854 = vmatpush1.bf16.msra.mxu0 %v3845
    %3855 = vmatprep.subr.bf16.mxu0 0
    %3856 = vmatpush1.bf16.msra.mxu0 0
    %3857 = vmatprep.subr.bf16.mxu0 0
    %3858 = vmatpush1.bf16.msra.mxu0 0
    %3859 = vmatprep.subr.bf16.mxu0 0
    %3860 = vmatpush1.bf16.msra.mxu0 0
    %3861 = vmatprep.subr.bf16.mxu0 0
    %3862 = vmatpush1.bf16.msra.mxu0 0
    %3863 = vmatprep.subr.bf16.mxu0 0
    %3864 = vmatpush1.bf16.msra.mxu0 0
    %3865 = vmatprep.subr.bf16.mxu0 0
    %3866 = vmatpush1.bf16.msra.mxu0 0
    %3867 = vmatprep.subr.bf16.mxu0 0
    %3868 = vmatpush1.bf16.msra.mxu0 0
    %3869 = vmatprep.subr.bf16.mxu0 0
    %3870 = vmatpush1.bf16.msra.mxu0 0
    %3871 = vmatprep.subr.bf16.mxu0 0
    %3872 = vmatpush1.bf16.msra.mxu0 0
    %3873 = vmatprep.subr.bf16.mxu0 0
    %3874 = vmatpush1.bf16.msra.mxu0 0
    %3875 = vmatprep.subr.bf16.mxu0 0
    %3876 = vmatpush1.bf16.msra.mxu0 0
    %3877 = vmatprep.subr.bf16.mxu0 0
    %3878 = vmatpush1.bf16.msra.mxu0 0
    %3879 = vmatprep.subr.bf16.mxu0 0
    %3880 = vmatpush1.bf16.msra.mxu0 0
    %3881 = vmatprep.subr.bf16.mxu0 0
    %3882 = vmatpush1.bf16.msra.mxu0 0
    %3883 = vmatprep.mubr.bf16.mxu0 0
    %3884 = vmatmul.mubr.bf16.gmra.mrb[0].mxu0 %v3849
    %v3885 = vpop.f32.mrb[0].mxu0
    %v3886 = vadd.f32 %v3835, %v3885
    %v3887 = vpop.f32.mrb[0].mxu0
    %v3888 = vpop.f32.mrb[0].mxu0
    %v3889 = vadd.f32 %v3835, %v3888
    %v3890 = vpop.f32.mrb[0].mxu0
    %3891 = vdwg.mxu0
    %v3892 = vpack.c.bf16 %v3889, %v3886
    %3894 = vrot.lane.b32.xlu0 %v3892, 96
    %v3895 = vpop.permute.xlu0 %3894
    %v3897 = vsel %vm259, %v3892, 0
    %v3900 = vsel %vm259, %v3895, 0
    %3902 = vmatprep.subr.bf16.mxu0 0
    %3903 = vmatpush1.bf16.xpose.msra.mxu0 %v3900
    %3904 = vmatprep.subr.bf16.mxu0 0
    %3905 = vmatpush1.bf16.xpose.msra.mxu0 0
    %3906 = vmatprep.subr.bf16.mxu0 0
    %3907 = vmatpush1.bf16.xpose.msra.mxu0 0
    %3908 = vmatprep.subr.bf16.mxu0 0
    %3909 = vmatpush1.bf16.xpose.msra.mxu0 0
    %3910 = vmatprep.subr.bf16.mxu0 0
    %3911 = vmatpush1.bf16.xpose.msra.mxu0 0
    %3912 = vmatprep.subr.bf16.mxu0 0
    %3913 = vmatpush1.bf16.xpose.msra.mxu0 0
    %3914 = vmatprep.subr.bf16.mxu0 0
    %3915 = vmatpush1.bf16.xpose.msra.mxu0 0
    %3916 = vmatprep.subr.bf16.mxu0 0
    %3917 = vmatpush1.bf16.xpose.msra.mxu0 0
    %3918 = vmatprep.subr.bf16.mxu0 0
    %3919 = vmatpush1.bf16.xpose.msra.mxu0 0
    %3920 = vmatprep.subr.bf16.mxu0 0
    %3921 = vmatpush1.bf16.xpose.msra.mxu0 0
    %3922 = vmatprep.subr.bf16.mxu0 0
    %3923 = vmatpush1.bf16.xpose.msra.mxu0 0
    %3924 = vmatprep.subr.bf16.mxu0 0
    %3925 = vmatpush1.bf16.xpose.msra.mxu0 0
    %3926 = vmatprep.subr.bf16.mxu0 0
    %3927 = vmatpush1.bf16.xpose.msra.mxu0 0
    %3928 = vmatprep.subr.bf16.mxu0 0
    %3929 = vmatpush1.bf16.xpose.msra.mxu0 0
    %3930 = vmatprep.subr.bf16.mxu0 0
    %3931 = vmatpush1.bf16.xpose.msra.mxu0 0
    %3932 = vmatprep.subr.bf16.mxu0 0
    %3933 = vmatpush1.bf16.xpose.msra.mxu0 0
    %3934 = vmatprep.mubr.bf16.mxu0 0
    %3935 = vmatmul.mubr.bf16.gmra.mrb[0].mxu0 %v3897
    %v3936 = vpop.f32.mrb[0].mxu0
    %v3937 = vadd.f32 0.0, %v3936
    %v3938 = vpop.f32.mrb[0].mxu0
    %v3939 = vpop.f32.mrb[0].mxu0
    %v3940 = vadd.f32 0.0, %v3939
    %v3941 = vpop.f32.mrb[0].mxu0
    %3942 = vdwg.mxu0
    %v3943 = vmul.f32 %v3937, 0.35355338
    %v3944 = vmul.f32 %v3940, 0.35355338
    %v3945 = vadd.f32 %v3943, %v129
    %v3946 = vadd.f32 %v3944, %v130
    %v3947 = vsel %vm311, %v3945, -inf
    %3948 = vmax.xlane.f32.xlu0 %v3947
    %v3949 = vpop.xlane.xlu0 %3948
    %v3950 = vsel %vm311, %v3946, -inf
    %3951 = vmax.xlane.f32.xlu0 %v3950
    %v3952 = vpop.xlane.xlu0 %3951
    %v3953 = vsub.f32 %v3945, %v3949
    %v3954 = vsub.f32 %v3946, %v3952
    %v3955 = vmul.f32 %v3953, 1.442695
    %v3956 = vpow.pop %v3955
    %v3957 = vmul.f32 %v3954, 1.442695
    %v3958 = vpow.pop %v3957
    %v3959 = vsel %vm311, %v3956, 0.0
    %3960 = vadd.xlane.f32.xlu0 %v3959
    %v3961 = vpop.xlane.xlu0 %3960
    %v3962 = vsel %vm311, %v3958, 0.0
    %3963 = vadd.xlane.f32.xlu0 %v3962
    %v3964 = vpop.xlane.xlu0 %3963
    %v3965 = vrcp.pop %v3961
    %v3966 = vrcp.pop %v3964
    %v3967 = vmul.f32 %v3956, %v3965
    %v3968 = vmul.f32 %v3958, %v3966
    %v3969 = vpack.c.bf16 %v3968, %v3967
    %3970 = vrot.lane.b32.xlu0 %v3892, 64
    %v3971 = vpop.permute.xlu0 %3970
    %v3974 = vsel %vm311, %v3969, 0
    %3976 = vmatprep.subr.bf16.mxu0 0
    %3977 = vmatpush1.bf16.msra.mxu0 %v3971
    %3978 = vmatprep.subr.bf16.mxu0 0
    %3979 = vmatpush1.bf16.msra.mxu0 0
    %3980 = vmatprep.subr.bf16.mxu0 0
    %3981 = vmatpush1.bf16.msra.mxu0 0
    %3982 = vmatprep.subr.bf16.mxu0 0
    %3983 = vmatpush1.bf16.msra.mxu0 0
    %3984 = vmatprep.subr.bf16.mxu0 0
    %3985 = vmatpush1.bf16.msra.mxu0 0
    %3986 = vmatprep.subr.bf16.mxu0 0
    %3987 = vmatpush1.bf16.msra.mxu0 0
    %3988 = vmatprep.subr.bf16.mxu0 0
    %3989 = vmatpush1.bf16.msra.mxu0 0
    %3990 = vmatprep.subr.bf16.mxu0 0
    %3991 = vmatpush1.bf16.msra.mxu0 0
    %3992 = vmatprep.subr.bf16.mxu0 0
    %3993 = vmatpush1.bf16.msra.mxu0 0
    %3994 = vmatprep.subr.bf16.mxu0 0
    %3995 = vmatpush1.bf16.msra.mxu0 0
    %3996 = vmatprep.subr.bf16.mxu0 0
    %3997 = vmatpush1.bf16.msra.mxu0 0
    %3998 = vmatprep.subr.bf16.mxu0 0
    %3999 = vmatpush1.bf16.msra.mxu0 0
    %4000 = vmatprep.subr.bf16.mxu0 0
    %4001 = vmatpush1.bf16.msra.mxu0 0
    %4002 = vmatprep.subr.bf16.mxu0 0
    %4003 = vmatpush1.bf16.msra.mxu0 0
    %4004 = vmatprep.subr.bf16.mxu0 0
    %4005 = vmatpush1.bf16.msra.mxu0 0
    %4006 = vmatprep.subr.bf16.mxu0 0
    %4007 = vmatpush1.bf16.msra.mxu0 0
    %4008 = vmatprep.mubr.bf16.mxu0 0
    %4009 = vmatmul.mubr.bf16.gmra.mrb[0].mxu0 %v3974
    %v4010 = vpop.f32.mrb[0].mxu0
    %v4011 = vadd.f32 0.0, %v4010
    %v4012 = vpop.f32.mrb[0].mxu0
    %v4013 = vpop.f32.mrb[0].mxu0
    %v4014 = vadd.f32 0.0, %v4013
    %v4015 = vpop.f32.mrb[0].mxu0
    %4016 = vdwg.mxu0
    %4017 = vrot.lane.b32.xlu0 %v3892, 120
    %v4018 = vpop.permute.xlu0 %4017
    %4019 = vrot.lane.b32.xlu0 %v3892, 88
    %v4020 = vpop.permute.xlu0 %4019
    %v4022 = vsel %vm259, %v4018, 0
    %v4025 = vsel %vm259, %v4020, 0
    %4027 = vmatprep.subr.bf16.mxu0 0
    %4028 = vmatpush1.bf16.xpose.msra.mxu0 %v4025
    %4029 = vmatprep.subr.bf16.mxu0 0
    %4030 = vmatpush1.bf16.xpose.msra.mxu0 0
    %4031 = vmatprep.subr.bf16.mxu0 0
    %4032 = vmatpush1.bf16.xpose.msra.mxu0 0
    %4033 = vmatprep.subr.bf16.mxu0 0
    %4034 = vmatpush1.bf16.xpose.msra.mxu0 0
    %4035 = vmatprep.subr.bf16.mxu0 0
    %4036 = vmatpush1.bf16.xpose.msra.mxu0 0
    %4037 = vmatprep.subr.bf16.mxu0 0
    %4038 = vmatpush1.bf16.xpose.msra.mxu0 0
    %4039 = vmatprep.subr.bf16.mxu0 0
    %4040 = vmatpush1.bf16.xpose.msra.mxu0 0
    %4041 = vmatprep.subr.bf16.mxu0 0
    %4042 = vmatpush1.bf16.xpose.msra.mxu0 0
    %4043 = vmatprep.subr.bf16.mxu0 0
    %4044 = vmatpush1.bf16.xpose.msra.mxu0 0
    %4045 = vmatprep.subr.bf16.mxu0 0
    %4046 = vmatpush1.bf16.xpose.msra.mxu0 0
    %4047 = vmatprep.subr.bf16.mxu0 0
    %4048 = vmatpush1.bf16.xpose.msra.mxu0 0
    %4049 = vmatprep.subr.bf16.mxu0 0
    %4050 = vmatpush1.bf16.xpose.msra.mxu0 0
    %4051 = vmatprep.subr.bf16.mxu0 0
    %4052 = vmatpush1.bf16.xpose.msra.mxu0 0
    %4053 = vmatprep.subr.bf16.mxu0 0
    %4054 = vmatpush1.bf16.xpose.msra.mxu0 0
    %4055 = vmatprep.subr.bf16.mxu0 0
    %4056 = vmatpush1.bf16.xpose.msra.mxu0 0
    %4057 = vmatprep.subr.bf16.mxu0 0
    %4058 = vmatpush1.bf16.xpose.msra.mxu0 0
    %4059 = vmatprep.mubr.bf16.mxu0 0
    %4060 = vmatmul.mubr.bf16.gmra.mrb[0].mxu0 %v4022
    %v4061 = vpop.f32.mrb[0].mxu0
    %v4062 = vadd.f32 0.0, %v4061
    %v4063 = vpop.f32.mrb[0].mxu0
    %v4064 = vpop.f32.mrb[0].mxu0
    %v4065 = vadd.f32 0.0, %v4064
    %v4066 = vpop.f32.mrb[0].mxu0
    %4067 = vdwg.mxu0
    %v4068 = vmul.f32 %v4062, 0.35355338
    %v4069 = vmul.f32 %v4065, 0.35355338
    %v4070 = vadd.f32 %v4068, %v129
    %v4071 = vadd.f32 %v4069, %v130
    %v4072 = vsel %vm311, %v4070, -inf
    %4073 = vmax.xlane.f32.xlu0 %v4072
    %v4074 = vpop.xlane.xlu0 %4073
    %v4075 = vsel %vm311, %v4071, -inf
    %4076 = vmax.xlane.f32.xlu0 %v4075
    %v4077 = vpop.xlane.xlu0 %4076
    %v4078 = vsub.f32 %v4070, %v4074
    %v4079 = vsub.f32 %v4071, %v4077
    %v4080 = vmul.f32 %v4078, 1.442695
    %v4081 = vpow.pop %v4080
    %v4082 = vmul.f32 %v4079, 1.442695
    %v4083 = vpow.pop %v4082
    %v4084 = vsel %vm311, %v4081, 0.0
    %4085 = vadd.xlane.f32.xlu0 %v4084
    %v4086 = vpop.xlane.xlu0 %4085
    %v4087 = vsel %vm311, %v4083, 0.0
    %4088 = vadd.xlane.f32.xlu0 %v4087
    %v4089 = vpop.xlane.xlu0 %4088
    %v4090 = vrcp.pop %v4086
    %v4091 = vrcp.pop %v4089
    %v4092 = vmul.f32 %v4081, %v4090
    %v4093 = vmul.f32 %v4083, %v4091
    %v4094 = vpack.c.bf16 %v4093, %v4092
    %4095 = vrot.lane.b32.xlu0 %v3892, 56
    %v4096 = vpop.permute.xlu0 %4095
    %v4099 = vsel %vm311, %v4094, 0
    %4101 = vmatprep.subr.bf16.mxu0 0
    %4102 = vmatpush1.bf16.msra.mxu0 %v4096
    %4103 = vmatprep.subr.bf16.mxu0 0
    %4104 = vmatpush1.bf16.msra.mxu0 0
    %4105 = vmatprep.subr.bf16.mxu0 0
    %4106 = vmatpush1.bf16.msra.mxu0 0
    %4107 = vmatprep.subr.bf16.mxu0 0
    %4108 = vmatpush1.bf16.msra.mxu0 0
    %4109 = vmatprep.subr.bf16.mxu0 0
    %4110 = vmatpush1.bf16.msra.mxu0 0
    %4111 = vmatprep.subr.bf16.mxu0 0
    %4112 = vmatpush1.bf16.msra.mxu0 0
    %4113 = vmatprep.subr.bf16.mxu0 0
    %4114 = vmatpush1.bf16.msra.mxu0 0
    %4115 = vmatprep.subr.bf16.mxu0 0
    %4116 = vmatpush1.bf16.msra.mxu0 0
    %4117 = vmatprep.subr.bf16.mxu0 0
    %4118 = vmatpush1.bf16.msra.mxu0 0
    %4119 = vmatprep.subr.bf16.mxu0 0
    %4120 = vmatpush1.bf16.msra.mxu0 0
    %4121 = vmatprep.subr.bf16.mxu0 0
    %4122 = vmatpush1.bf16.msra.mxu0 0
    %4123 = vmatprep.subr.bf16.mxu0 0
    %4124 = vmatpush1.bf16.msra.mxu0 0
    %4125 = vmatprep.subr.bf16.mxu0 0
    %4126 = vmatpush1.bf16.msra.mxu0 0
    %4127 = vmatprep.subr.bf16.mxu0 0
    %4128 = vmatpush1.bf16.msra.mxu0 0
    %4129 = vmatprep.subr.bf16.mxu0 0
    %4130 = vmatpush1.bf16.msra.mxu0 0
    %4131 = vmatprep.subr.bf16.mxu0 0
    %4132 = vmatpush1.bf16.msra.mxu0 0
    %4133 = vmatprep.mubr.bf16.mxu0 0
    %4134 = vmatmul.mubr.bf16.gmra.mrb[0].mxu0 %v4099
    %v4135 = vpop.f32.mrb[0].mxu0
    %v4136 = vadd.f32 0.0, %v4135
    %v4137 = vpop.f32.mrb[0].mxu0
    %v4138 = vpop.f32.mrb[0].mxu0
    %v4139 = vadd.f32 0.0, %v4138
    %v4140 = vpop.f32.mrb[0].mxu0
    %4141 = vdwg.mxu0
    %4142 = vrot.lane.b32.xlu0 %v3892, 112
    %v4143 = vpop.permute.xlu0 %4142
    %4144 = vrot.lane.b32.xlu0 %v3892, 80
    %v4145 = vpop.permute.xlu0 %4144
    %v4147 = vsel %vm259, %v4143, 0
    %v4150 = vsel %vm259, %v4145, 0
    %4152 = vmatprep.subr.bf16.mxu0 0
    %4153 = vmatpush1.bf16.xpose.msra.mxu0 %v4150
    %4154 = vmatprep.subr.bf16.mxu0 0
    %4155 = vmatpush1.bf16.xpose.msra.mxu0 0
    %4156 = vmatprep.subr.bf16.mxu0 0
    %4157 = vmatpush1.bf16.xpose.msra.mxu0 0
    %4158 = vmatprep.subr.bf16.mxu0 0
    %4159 = vmatpush1.bf16.xpose.msra.mxu0 0
    %4160 = vmatprep.subr.bf16.mxu0 0
    %4161 = vmatpush1.bf16.xpose.msra.mxu0 0
    %4162 = vmatprep.subr.bf16.mxu0 0
    %4163 = vmatpush1.bf16.xpose.msra.mxu0 0
    %4164 = vmatprep.subr.bf16.mxu0 0
    %4165 = vmatpush1.bf16.xpose.msra.mxu0 0
    %4166 = vmatprep.subr.bf16.mxu0 0
    %4167 = vmatpush1.bf16.xpose.msra.mxu0 0
    %4168 = vmatprep.subr.bf16.mxu0 0
    %4169 = vmatpush1.bf16.xpose.msra.mxu0 0
    %4170 = vmatprep.subr.bf16.mxu0 0
    %4171 = vmatpush1.bf16.xpose.msra.mxu0 0
    %4172 = vmatprep.subr.bf16.mxu0 0
    %4173 = vmatpush1.bf16.xpose.msra.mxu0 0
    %4174 = vmatprep.subr.bf16.mxu0 0
    %4175 = vmatpush1.bf16.xpose.msra.mxu0 0
    %4176 = vmatprep.subr.bf16.mxu0 0
    %4177 = vmatpush1.bf16.xpose.msra.mxu0 0
    %4178 = vmatprep.subr.bf16.mxu0 0
    %4179 = vmatpush1.bf16.xpose.msra.mxu0 0
    %4180 = vmatprep.subr.bf16.mxu0 0
    %4181 = vmatpush1.bf16.xpose.msra.mxu0 0
    %4182 = vmatprep.subr.bf16.mxu0 0
    %4183 = vmatpush1.bf16.xpose.msra.mxu0 0
    %4184 = vmatprep.mubr.bf16.mxu0 0
    %4185 = vmatmul.mubr.bf16.gmra.mrb[0].mxu0 %v4147
    %v4186 = vpop.f32.mrb[0].mxu0
    %v4187 = vadd.f32 0.0, %v4186
    %v4188 = vpop.f32.mrb[0].mxu0
    %v4189 = vpop.f32.mrb[0].mxu0
    %v4190 = vadd.f32 0.0, %v4189
    %v4191 = vpop.f32.mrb[0].mxu0
    %4192 = vdwg.mxu0
    %v4193 = vmul.f32 %v4187, 0.35355338
    %v4194 = vmul.f32 %v4190, 0.35355338
    %v4195 = vadd.f32 %v4193, %v129
    %v4196 = vadd.f32 %v4194, %v130
    %v4197 = vsel %vm311, %v4195, -inf
    %4198 = vmax.xlane.f32.xlu0 %v4197
    %v4199 = vpop.xlane.xlu0 %4198
    %v4200 = vsel %vm311, %v4196, -inf
    %4201 = vmax.xlane.f32.xlu0 %v4200
    %v4202 = vpop.xlane.xlu0 %4201
    %v4203 = vsub.f32 %v4195, %v4199
    %v4204 = vsub.f32 %v4196, %v4202
    %v4205 = vmul.f32 %v4203, 1.442695
    %v4206 = vpow.pop %v4205
    %v4207 = vmul.f32 %v4204, 1.442695
    %v4208 = vpow.pop %v4207
    %v4209 = vsel %vm311, %v4206, 0.0
    %4210 = vadd.xlane.f32.xlu0 %v4209
    %v4211 = vpop.xlane.xlu0 %4210
    %v4212 = vsel %vm311, %v4208, 0.0
    %4213 = vadd.xlane.f32.xlu0 %v4212
    %v4214 = vpop.xlane.xlu0 %4213
    %v4215 = vrcp.pop %v4211
    %v4216 = vrcp.pop %v4214
    %v4217 = vmul.f32 %v4206, %v4215
    %v4218 = vmul.f32 %v4208, %v4216
    %v4219 = vpack.c.bf16 %v4218, %v4217
    %4220 = vrot.lane.b32.xlu0 %v3892, 48
    %v4221 = vpop.permute.xlu0 %4220
    %v4224 = vsel %vm311, %v4219, 0
    %4226 = vmatprep.subr.bf16.mxu0 0
    %4227 = vmatpush1.bf16.msra.mxu0 %v4221
    %4228 = vmatprep.subr.bf16.mxu0 0
    %4229 = vmatpush1.bf16.msra.mxu0 0
    %4230 = vmatprep.subr.bf16.mxu0 0
    %4231 = vmatpush1.bf16.msra.mxu0 0
    %4232 = vmatprep.subr.bf16.mxu0 0
    %4233 = vmatpush1.bf16.msra.mxu0 0
    %4234 = vmatprep.subr.bf16.mxu0 0
    %4235 = vmatpush1.bf16.msra.mxu0 0
    %4236 = vmatprep.subr.bf16.mxu0 0
    %4237 = vmatpush1.bf16.msra.mxu0 0
    %4238 = vmatprep.subr.bf16.mxu0 0
    %4239 = vmatpush1.bf16.msra.mxu0 0
    %4240 = vmatprep.subr.bf16.mxu0 0
    %4241 = vmatpush1.bf16.msra.mxu0 0
    %4242 = vmatprep.subr.bf16.mxu0 0
    %4243 = vmatpush1.bf16.msra.mxu0 0
    %4244 = vmatprep.subr.bf16.mxu0 0
    %4245 = vmatpush1.bf16.msra.mxu0 0
    %4246 = vmatprep.subr.bf16.mxu0 0
    %4247 = vmatpush1.bf16.msra.mxu0 0
    %4248 = vmatprep.subr.bf16.mxu0 0
    %4249 = vmatpush1.bf16.msra.mxu0 0
    %4250 = vmatprep.subr.bf16.mxu0 0
    %4251 = vmatpush1.bf16.msra.mxu0 0
    %4252 = vmatprep.subr.bf16.mxu0 0
    %4253 = vmatpush1.bf16.msra.mxu0 0
    %4254 = vmatprep.subr.bf16.mxu0 0
    %4255 = vmatpush1.bf16.msra.mxu0 0
    %4256 = vmatprep.subr.bf16.mxu0 0
    %4257 = vmatpush1.bf16.msra.mxu0 0
    %4258 = vmatprep.mubr.bf16.mxu0 0
    %4259 = vmatmul.mubr.bf16.gmra.mrb[0].mxu0 %v4224
    %v4260 = vpop.f32.mrb[0].mxu0
    %v4261 = vadd.f32 0.0, %v4260
    %v4262 = vpop.f32.mrb[0].mxu0
    %v4263 = vpop.f32.mrb[0].mxu0
    %v4264 = vadd.f32 0.0, %v4263
    %v4265 = vpop.f32.mrb[0].mxu0
    %4266 = vdwg.mxu0
    %4267 = vrot.lane.b32.xlu0 %v3892, 104
    %v4268 = vpop.permute.xlu0 %4267
    %4269 = vrot.lane.b32.xlu0 %v3892, 72
    %v4270 = vpop.permute.xlu0 %4269
    %v4272 = vsel %vm259, %v4268, 0
    %v4275 = vsel %vm259, %v4270, 0
    %4277 = vmatprep.subr.bf16.mxu0 0
    %4278 = vmatpush1.bf16.xpose.msra.mxu0 %v4275
    %4279 = vmatprep.subr.bf16.mxu0 0
    %4280 = vmatpush1.bf16.xpose.msra.mxu0 0
    %4281 = vmatprep.subr.bf16.mxu0 0
    %4282 = vmatpush1.bf16.xpose.msra.mxu0 0
    %4283 = vmatprep.subr.bf16.mxu0 0
    %4284 = vmatpush1.bf16.xpose.msra.mxu0 0
    %4285 = vmatprep.subr.bf16.mxu0 0
    %4286 = vmatpush1.bf16.xpose.msra.mxu0 0
    %4287 = vmatprep.subr.bf16.mxu0 0
    %4288 = vmatpush1.bf16.xpose.msra.mxu0 0
    %4289 = vmatprep.subr.bf16.mxu0 0
    %4290 = vmatpush1.bf16.xpose.msra.mxu0 0
    %4291 = vmatprep.subr.bf16.mxu0 0
    %4292 = vmatpush1.bf16.xpose.msra.mxu0 0
    %4293 = vmatprep.subr.bf16.mxu0 0
    %4294 = vmatpush1.bf16.xpose.msra.mxu0 0
    %4295 = vmatprep.subr.bf16.mxu0 0
    %4296 = vmatpush1.bf16.xpose.msra.mxu0 0
    %4297 = vmatprep.subr.bf16.mxu0 0
    %4298 = vmatpush1.bf16.xpose.msra.mxu0 0
    %4299 = vmatprep.subr.bf16.mxu0 0
    %4300 = vmatpush1.bf16.xpose.msra.mxu0 0
    %4301 = vmatprep.subr.bf16.mxu0 0
    %4302 = vmatpush1.bf16.xpose.msra.mxu0 0
    %4303 = vmatprep.subr.bf16.mxu0 0
    %4304 = vmatpush1.bf16.xpose.msra.mxu0 0
    %4305 = vmatprep.subr.bf16.mxu0 0
    %4306 = vmatpush1.bf16.xpose.msra.mxu0 0
    %4307 = vmatprep.subr.bf16.mxu0 0
    %4308 = vmatpush1.bf16.xpose.msra.mxu0 0
    %4309 = vmatprep.mubr.bf16.mxu0 0
    %4310 = vmatmul.mubr.bf16.gmra.mrb[0].mxu0 %v4272
    %v4311 = vpop.f32.mrb[0].mxu0
    %v4312 = vadd.f32 0.0, %v4311
    %v4313 = vpop.f32.mrb[0].mxu0
    %v4314 = vpop.f32.mrb[0].mxu0
    %v4315 = vadd.f32 0.0, %v4314
    %v4316 = vpop.f32.mrb[0].mxu0
    %4317 = vdwg.mxu0
    %v4318 = vmul.f32 %v4312, 0.35355338
    %v4319 = vmul.f32 %v4315, 0.35355338
    %v4320 = vadd.f32 %v4318, %v129
    %v4321 = vadd.f32 %v4319, %v130
    %v4322 = vsel %vm311, %v4320, -inf
    %4323 = vmax.xlane.f32.xlu0 %v4322
    %v4324 = vpop.xlane.xlu0 %4323
    %v4325 = vsel %vm311, %v4321, -inf
    %4326 = vmax.xlane.f32.xlu0 %v4325
    %v4327 = vpop.xlane.xlu0 %4326
    %v4328 = vsub.f32 %v4320, %v4324
    %v4329 = vsub.f32 %v4321, %v4327
    %v4330 = vmul.f32 %v4328, 1.442695
    %v4331 = vpow.pop %v4330
    %v4332 = vmul.f32 %v4329, 1.442695
    %v4333 = vpow.pop %v4332
    %v4334 = vsel %vm311, %v4331, 0.0
    %4335 = vadd.xlane.f32.xlu0 %v4334
    %v4336 = vpop.xlane.xlu0 %4335
    %v4337 = vsel %vm311, %v4333, 0.0
    %4338 = vadd.xlane.f32.xlu0 %v4337
    %v4339 = vpop.xlane.xlu0 %4338
    %v4340 = vrcp.pop %v4336
    %v4341 = vrcp.pop %v4339
    %v4342 = vmul.f32 %v4331, %v4340
    %v4343 = vmul.f32 %v4333, %v4341
    %v4344 = vpack.c.bf16 %v4343, %v4342
    %4345 = vrot.lane.b32.xlu0 %v3892, 40
    %v4346 = vpop.permute.xlu0 %4345
    %v4349 = vsel %vm311, %v4344, 0
    %4351 = vmatprep.subr.bf16.mxu0 0
    %4352 = vmatpush1.bf16.msra.mxu0 %v4346
    %4353 = vmatprep.subr.bf16.mxu0 0
    %4354 = vmatpush1.bf16.msra.mxu0 0
    %4355 = vmatprep.subr.bf16.mxu0 0
    %4356 = vmatpush1.bf16.msra.mxu0 0
    %4357 = vmatprep.subr.bf16.mxu0 0
    %4358 = vmatpush1.bf16.msra.mxu0 0
    %4359 = vmatprep.subr.bf16.mxu0 0
    %4360 = vmatpush1.bf16.msra.mxu0 0
    %4361 = vmatprep.subr.bf16.mxu0 0
    %4362 = vmatpush1.bf16.msra.mxu0 0
    %4363 = vmatprep.subr.bf16.mxu0 0
    %4364 = vmatpush1.bf16.msra.mxu0 0
    %4365 = vmatprep.subr.bf16.mxu0 0
    %4366 = vmatpush1.bf16.msra.mxu0 0
    %4367 = vmatprep.subr.bf16.mxu0 0
    %4368 = vmatpush1.bf16.msra.mxu0 0
    %4369 = vmatprep.subr.bf16.mxu0 0
    %4370 = vmatpush1.bf16.msra.mxu0 0
    %4371 = vmatprep.subr.bf16.mxu0 0
    %4372 = vmatpush1.bf16.msra.mxu0 0
    %4373 = vmatprep.subr.bf16.mxu0 0
    %4374 = vmatpush1.bf16.msra.mxu0 0
    %4375 = vmatprep.subr.bf16.mxu0 0
    %4376 = vmatpush1.bf16.msra.mxu0 0
    %4377 = vmatprep.subr.bf16.mxu0 0
    %4378 = vmatpush1.bf16.msra.mxu0 0
    %4379 = vmatprep.subr.bf16.mxu0 0
    %4380 = vmatpush1.bf16.msra.mxu0 0
    %4381 = vmatprep.subr.bf16.mxu0 0
    %4382 = vmatpush1.bf16.msra.mxu0 0
    %4383 = vmatprep.mubr.bf16.mxu0 0
    %4384 = vmatmul.mubr.bf16.gmra.mrb[0].mxu0 %v4349
    %v4385 = vpop.f32.mrb[0].mxu0
    %v4386 = vadd.f32 0.0, %v4385
    %v4387 = vpop.f32.mrb[0].mxu0
    %v4388 = vpop.f32.mrb[0].mxu0
    %v4389 = vadd.f32 0.0, %v4388
    %v4390 = vpop.f32.mrb[0].mxu0
    %4391 = vdwg.mxu0
    %4394 = vrot.lane.b32.xlu0 %v4136, 8
    %v4395 = vpop.permute.xlu0 %4394
    %4396 = vrot.lane.b32.xlu0 %v4139, 8
    %v4397 = vpop.permute.xlu0 %4396
    %4402 = vrot.lane.b32.xlu0 %v4261, 16
    %v4403 = vpop.permute.xlu0 %4402
    %4404 = vrot.lane.b32.xlu0 %v4264, 16
    %v4405 = vpop.permute.xlu0 %4404
    %4410 = vrot.lane.b32.xlu0 %v4386, 24
    %v4411 = vpop.permute.xlu0 %4410
    %4412 = vrot.lane.b32.xlu0 %v4389, 24
    %v4413 = vpop.permute.xlu0 %4412
    %v4416 = vsel %vm259, %v4011, %v4395
    %v4417 = vsel %vm259, %v4014, %v4397
    %v4418 = vsel %vm311, %v4416, %v4403
    %v4419 = vsel %vm311, %v4417, %v4405
    %v4420 = vsel %vm785, %v4418, %v4411
    %v4421 = vsel %vm785, %v4419, %v4413
    %v4422 = vpack.c.bf16 %v4421, %v4420
    %4423 = vrot.lane.b32.xlu0 %v3844, 32
    %v4424 = vpop.permute.xlu0 %4423
    %4425 = vrot.lane.b32.xlu0 %v3845, 32
    %v4426 = vpop.permute.xlu0 %4425
    %4430 = vrot.lane.b32.xlu0 %v3835, 32
    %v4431 = vpop.permute.xlu0 %4430
    %v4434 = vsel %vm135, %v4422, 0
    %4436 = vmatprep.subr.bf16.mxu0 0
    %4437 = vmatpush1.bf16.msra.mxu0 %v4424
    %4438 = vmatprep.subr.bf16.mxu0 0
    %4439 = vmatpush1.bf16.msra.mxu0 %v4426
    %4440 = vmatprep.subr.bf16.mxu0 0
    %4441 = vmatpush1.bf16.msra.mxu0 0
    %4442 = vmatprep.subr.bf16.mxu0 0
    %4443 = vmatpush1.bf16.msra.mxu0 0
    %4444 = vmatprep.subr.bf16.mxu0 0
    %4445 = vmatpush1.bf16.msra.mxu0 0
    %4446 = vmatprep.subr.bf16.mxu0 0
    %4447 = vmatpush1.bf16.msra.mxu0 0
    %4448 = vmatprep.subr.bf16.mxu0 0
    %4449 = vmatpush1.bf16.msra.mxu0 0
    %4450 = vmatprep.subr.bf16.mxu0 0
    %4451 = vmatpush1.bf16.msra.mxu0 0
    %4452 = vmatprep.subr.bf16.mxu0 0
    %4453 = vmatpush1.bf16.msra.mxu0 0
    %4454 = vmatprep.subr.bf16.mxu0 0
    %4455 = vmatpush1.bf16.msra.mxu0 0
    %4456 = vmatprep.subr.bf16.mxu0 0
    %4457 = vmatpush1.bf16.msra.mxu0 0
    %4458 = vmatprep.subr.bf16.mxu0 0
    %4459 = vmatpush1.bf16.msra.mxu0 0
    %4460 = vmatprep.subr.bf16.mxu0 0
    %4461 = vmatpush1.bf16.msra.mxu0 0
    %4462 = vmatprep.subr.bf16.mxu0 0
    %4463 = vmatpush1.bf16.msra.mxu0 0
    %4464 = vmatprep.subr.bf16.mxu0 0
    %4465 = vmatpush1.bf16.msra.mxu0 0
    %4466 = vmatprep.subr.bf16.mxu0 0
    %4467 = vmatpush1.bf16.msra.mxu0 0
    %4468 = vmatprep.mubr.bf16.mxu0 0
    %4469 = vmatmul.mubr.bf16.gmra.mrb[0].mxu0 %v4434
    %v4470 = vpop.f32.mrb[0].mxu0
    %v4471 = vadd.f32 %v4431, %v4470
    %v4472 = vpop.f32.mrb[0].mxu0
    %v4473 = vpop.f32.mrb[0].mxu0
    %v4474 = vadd.f32 %v4431, %v4473
    %v4475 = vpop.f32.mrb[0].mxu0
    %4476 = vdwg.mxu0
    %v4477 = vadd.f32 %v3770, %v4471
    %v4478 = vadd.f32 %v3771, %v4474
    %v4479 = vld [vmem:[#allocation13 + $0x1d] sm:$0x1]
    %v4480 = vld [vmem:[#allocation13 + $0x1e] sm:$0x1]
    %v4481 = vsel %vm135, %v4477, 0.0
    %4482 = vadd.xlane.f32.xlu0 %v4481
    %v4483 = vpop.xlane.xlu0 %4482
    %v4484 = vsel %vm135, %v4478, 0.0
    %4485 = vadd.xlane.f32.xlu0 %v4484
    %v4486 = vpop.xlane.xlu0 %4485
    %v4487 = vmul.f32 %v4483, %v142
    %v4488 = vmul.f32 %v4486, %v142
    %v4489 = vsub.f32 %v4477, %v4487
    %v4490 = vsub.f32 %v4478, %v4488
    %v4491 = vmul.f32 %v4489, %v4489
    %v4492 = vmul.f32 %v4490, %v4490
    %v4493 = vsel %vm135, %v4491, 0.0
    %4494 = vadd.xlane.f32.xlu0 %v4493
    %v4495 = vpop.xlane.xlu0 %4494
    %v4496 = vsel %vm135, %v4492, 0.0
    %4497 = vadd.xlane.f32.xlu0 %v4496
    %v4498 = vpop.xlane.xlu0 %4497
    %v4499 = vmul.f32 %v4495, 0.032258064
    %v4500 = vmul.f32 %v4498, 0.032258064
    %v4501 = vrsqrt.pop %v4499
    %v4502 = vmul.f32 %v4499, %v4501
    %vm4503 = vcmp.eq.f32.partialorder %v4499, inf
    %v4504 = vsel %vm4503, %v4499, %v4502
    %vm4505 = vcmp.eq.f32.partialorder %v4499, 0.0
    %v4506 = vand.u32 %v4499, 2147483648
    %v4507 = vsel %vm4505, %v4506, %v4504
    %v4508 = vrsqrt.pop %v4500
    %v4509 = vmul.f32 %v4500, %v4508
    %vm4510 = vcmp.eq.f32.partialorder %v4500, inf
    %v4511 = vsel %vm4510, %v4500, %v4509
    %vm4512 = vcmp.eq.f32.partialorder %v4500, 0.0
    %v4513 = vand.u32 %v4500, 2147483648
    %v4514 = vsel %vm4512, %v4513, %v4511
    %v4515 = vadd.f32 %v4507, 1e-06
    %v4516 = vadd.f32 %v4514, 1e-06
    %v4517 = vrcp.pop %v4515
    %v4518 = vrcp.pop %v4516
    %v4519 = vlaneseq
    %v4520 = vshrl.u32 %v4519, 7
    %v4521 = vsub.s32 0, %v4520
    %v4522 = vrot.slane %v4479, %v4521
    %v4523 = vmul.f32 %v4522, %v4489
    %v4524 = vmul.f32 %v4522, %v4490
    %v4525 = vmul.f32 %v4523, %v4517
    %v4526 = vmul.f32 %v4524, %v4518
    %v4527 = vlaneseq
    %v4528 = vshrl.u32 %v4527, 7
    %v4529 = vsub.s32 0, %v4528
    %v4530 = vrot.slane %v4480, %v4529
    %v4531 = vadd.f32 %v4525, %v4530
    %v4532 = vadd.f32 %v4526, %v4530
    %v4533 = vld [vmem:[#allocation11 + $0x140] sm:$0xf]
    %v4534 = vld [vmem:[#allocation11 + $0x144] sm:$0xf]
    %v4535 = vld [vmem:[#allocation11 + $0x148] sm:$0xf]
    %v4536 = vld [vmem:[#allocation11 + $0x14c] sm:$0xf]
    %v4537 = vld [vmem:[#allocation13 + $0x1f] sm:$0x1]
    %v4538 = vpack.c.bf16 %v4532, %v4531
    %v4539 = vlaneseq
    %v4540 = vshrl.u32 %v4539, 7
    %v4541 = vsub.s32 0, %v4540
    %v4542 = vrot.slane %v4537, %v4541
    %v4547 = vunpack.c.l.b16 %v4533
    %v4548 = vunpack.c.l.b16 %v4534
    %v4549 = vunpack.c.l.b16 %v4535
    %v4550 = vunpack.c.l.b16 %v4536
    %v4551 = vpack.c.b16 %v4548, %v4547
    %v4552 = vpack.c.b16 %v4550, %v4549
    %v4556 = vsel %vm135, %v4538, 0
    %4558 = vmatprep.subr.bf16.mxu0 0
    %4559 = vmatpush1.bf16.msra.mxu0 %v4551
    %4560 = vmatprep.subr.bf16.mxu0 0
    %4561 = vmatpush1.bf16.msra.mxu0 %v4552
    %4562 = vmatprep.subr.bf16.mxu0 0
    %4563 = vmatpush1.bf16.msra.mxu0 0
    %4564 = vmatprep.subr.bf16.mxu0 0
    %4565 = vmatpush1.bf16.msra.mxu0 0
    %4566 = vmatprep.subr.bf16.mxu0 0
    %4567 = vmatpush1.bf16.msra.mxu0 0
    %4568 = vmatprep.subr.bf16.mxu0 0
    %4569 = vmatpush1.bf16.msra.mxu0 0
    %4570 = vmatprep.subr.bf16.mxu0 0
    %4571 = vmatpush1.bf16.msra.mxu0 0
    %4572 = vmatprep.subr.bf16.mxu0 0
    %4573 = vmatpush1.bf16.msra.mxu0 0
    %4574 = vmatprep.subr.bf16.mxu0 0
    %4575 = vmatpush1.bf16.msra.mxu0 0
    %4576 = vmatprep.subr.bf16.mxu0 0
    %4577 = vmatpush1.bf16.msra.mxu0 0
    %4578 = vmatprep.subr.bf16.mxu0 0
    %4579 = vmatpush1.bf16.msra.mxu0 0
    %4580 = vmatprep.subr.bf16.mxu0 0
    %4581 = vmatpush1.bf16.msra.mxu0 0
    %4582 = vmatprep.subr.bf16.mxu0 0
    %4583 = vmatpush1.bf16.msra.mxu0 0
    %4584 = vmatprep.subr.bf16.mxu0 0
    %4585 = vmatpush1.bf16.msra.mxu0 0
    %4586 = vmatprep.subr.bf16.mxu0 0
    %4587 = vmatpush1.bf16.msra.mxu0 0
    %4588 = vmatprep.subr.bf16.mxu0 0
    %4589 = vmatpush1.bf16.msra.mxu0 0
    %4590 = vmatprep.mubr.bf16.mxu0 0
    %4591 = vmatmul.mubr.bf16.gmra.mrb[0].mxu0 %v4556
    %v4592 = vpop.f32.mrb[0].mxu0
    %v4593 = vadd.f32 %v4542, %v4592
    %v4594 = vpop.f32.mrb[0].mxu0
    %v4595 = vpop.f32.mrb[0].mxu0
    %v4596 = vadd.f32 %v4542, %v4595
    %v4597 = vpop.f32.mrb[0].mxu0
    %4598 = vdwg.mxu0
    %4599 = vmatprep.subr.bf16.mxu0 0
    %4600 = vmatpush1.bf16.msra.mxu0 %v4551
    %4601 = vmatprep.subr.bf16.mxu0 0
    %4602 = vmatpush1.bf16.msra.mxu0 %v4552
    %4603 = vmatprep.subr.bf16.mxu0 0
    %4604 = vmatpush1.bf16.msra.mxu0 0
    %4605 = vmatprep.subr.bf16.mxu0 0
    %4606 = vmatpush1.bf16.msra.mxu0 0
    %4607 = vmatprep.subr.bf16.mxu0 0
    %4608 = vmatpush1.bf16.msra.mxu0 0
    %4609 = vmatprep.subr.bf16.mxu0 0
    %4610 = vmatpush1.bf16.msra.mxu0 0
    %4611 = vmatprep.subr.bf16.mxu0 0
    %4612 = vmatpush1.bf16.msra.mxu0 0
    %4613 = vmatprep.subr.bf16.mxu0 0
    %4614 = vmatpush1.bf16.msra.mxu0 0
    %4615 = vmatprep.subr.bf16.mxu0 0
    %4616 = vmatpush1.bf16.msra.mxu0 0
    %4617 = vmatprep.subr.bf16.mxu0 0
    %4618 = vmatpush1.bf16.msra.mxu0 0
    %4619 = vmatprep.subr.bf16.mxu0 0
    %4620 = vmatpush1.bf16.msra.mxu0 0
    %4621 = vmatprep.subr.bf16.mxu0 0
    %4622 = vmatpush1.bf16.msra.mxu0 0
    %4623 = vmatprep.subr.bf16.mxu0 0
    %4624 = vmatpush1.bf16.msra.mxu0 0
    %4625 = vmatprep.subr.bf16.mxu0 0
    %4626 = vmatpush1.bf16.msra.mxu0 0
    %4627 = vmatprep.subr.bf16.mxu0 0
    %4628 = vmatpush1.bf16.msra.mxu0 0
    %4629 = vmatprep.subr.bf16.mxu0 0
    %4630 = vmatpush1.bf16.msra.mxu0 0
    %4631 = vmatprep.mubr.bf16.mxu0 0
    %4632 = vmatmul.mubr.bf16.gmra.mrb[0].mxu0 %v2905
    %v4633 = vpop.f32.mrb[0].mxu0
    %v4634 = vadd.f32 %v4542, %v4633
    %v4635 = vpop.f32.mrb[0].mxu0
    %v4636 = vpop.f32.mrb[0].mxu0
    %v4637 = vadd.f32 %v4542, %v4636
    %v4638 = vpop.f32.mrb[0].mxu0
    %4639 = vdwg.mxu0
    %v4640 = vpack.c.bf16 %v4596, %v4593
    %v4641 = vpack.c.bf16 %v4637, %v4634
    %4643 = vrot.lane.b32.xlu0 %v4641, 96
    %v4644 = vpop.permute.xlu0 %4643
    %v4646 = vsel %vm259, %v4640, 0
    %v4649 = vsel %vm259, %v4644, 0
    %4651 = vmatprep.subr.bf16.mxu0 0
    %4652 = vmatpush1.bf16.xpose.msra.mxu0 %v4649
    %4653 = vmatprep.subr.bf16.mxu0 0
    %4654 = vmatpush1.bf16.xpose.msra.mxu0 0
    %4655 = vmatprep.subr.bf16.mxu0 0
    %4656 = vmatpush1.bf16.xpose.msra.mxu0 0
    %4657 = vmatprep.subr.bf16.mxu0 0
    %4658 = vmatpush1.bf16.xpose.msra.mxu0 0
    %4659 = vmatprep.subr.bf16.mxu0 0
    %4660 = vmatpush1.bf16.xpose.msra.mxu0 0
    %4661 = vmatprep.subr.bf16.mxu0 0
    %4662 = vmatpush1.bf16.xpose.msra.mxu0 0
    %4663 = vmatprep.subr.bf16.mxu0 0
    %4664 = vmatpush1.bf16.xpose.msra.mxu0 0
    %4665 = vmatprep.subr.bf16.mxu0 0
    %4666 = vmatpush1.bf16.xpose.msra.mxu0 0
    %4667 = vmatprep.subr.bf16.mxu0 0
    %4668 = vmatpush1.bf16.xpose.msra.mxu0 0
    %4669 = vmatprep.subr.bf16.mxu0 0
    %4670 = vmatpush1.bf16.xpose.msra.mxu0 0
    %4671 = vmatprep.subr.bf16.mxu0 0
    %4672 = vmatpush1.bf16.xpose.msra.mxu0 0
    %4673 = vmatprep.subr.bf16.mxu0 0
    %4674 = vmatpush1.bf16.xpose.msra.mxu0 0
    %4675 = vmatprep.subr.bf16.mxu0 0
    %4676 = vmatpush1.bf16.xpose.msra.mxu0 0
    %4677 = vmatprep.subr.bf16.mxu0 0
    %4678 = vmatpush1.bf16.xpose.msra.mxu0 0
    %4679 = vmatprep.subr.bf16.mxu0 0
    %4680 = vmatpush1.bf16.xpose.msra.mxu0 0
    %4681 = vmatprep.subr.bf16.mxu0 0
    %4682 = vmatpush1.bf16.xpose.msra.mxu0 0
    %4683 = vmatprep.mubr.bf16.mxu0 0
    %4684 = vmatmul.mubr.bf16.gmra.mrb[0].mxu0 %v4646
    %v4685 = vpop.f32.mrb[0].mxu0
    %v4686 = vadd.f32 0.0, %v4685
    %v4687 = vpop.f32.mrb[0].mxu0
    %v4688 = vpop.f32.mrb[0].mxu0
    %v4689 = vadd.f32 0.0, %v4688
    %v4690 = vpop.f32.mrb[0].mxu0
    %4691 = vdwg.mxu0
    %v4692 = vmul.f32 %v4686, 0.35355338
    %v4693 = vmul.f32 %v4689, 0.35355338
    %v4694 = vadd.f32 %v4692, %v131
    %v4695 = vadd.f32 %v4693, %v132
    %v4696 = vsel %vm311, %v4694, -inf
    %4697 = vmax.xlane.f32.xlu0 %v4696
    %v4698 = vpop.xlane.xlu0 %4697
    %v4699 = vsel %vm311, %v4695, -inf
    %4700 = vmax.xlane.f32.xlu0 %v4699
    %v4701 = vpop.xlane.xlu0 %4700
    %v4702 = vsub.f32 %v4694, %v4698
    %v4703 = vsub.f32 %v4695, %v4701
    %v4704 = vmul.f32 %v4702, 1.442695
    %v4705 = vpow.pop %v4704
    %v4706 = vmul.f32 %v4703, 1.442695
    %v4707 = vpow.pop %v4706
    %v4708 = vsel %vm311, %v4705, 0.0
    %4709 = vadd.xlane.f32.xlu0 %v4708
    %v4710 = vpop.xlane.xlu0 %4709
    %v4711 = vsel %vm311, %v4707, 0.0
    %4712 = vadd.xlane.f32.xlu0 %v4711
    %v4713 = vpop.xlane.xlu0 %4712
    %v4714 = vrcp.pop %v4710
    %v4715 = vrcp.pop %v4713
    %v4716 = vmul.f32 %v4705, %v4714
    %v4717 = vmul.f32 %v4707, %v4715
    %v4718 = vpack.c.bf16 %v4717, %v4716
    %4719 = vrot.lane.b32.xlu0 %v4641, 64
    %v4720 = vpop.permute.xlu0 %4719
    %v4723 = vsel %vm311, %v4718, 0
    %4725 = vmatprep.subr.bf16.mxu0 0
    %4726 = vmatpush1.bf16.msra.mxu0 %v4720
    %4727 = vmatprep.subr.bf16.mxu0 0
    %4728 = vmatpush1.bf16.msra.mxu0 0
    %4729 = vmatprep.subr.bf16.mxu0 0
    %4730 = vmatpush1.bf16.msra.mxu0 0
    %4731 = vmatprep.subr.bf16.mxu0 0
    %4732 = vmatpush1.bf16.msra.mxu0 0
    %4733 = vmatprep.subr.bf16.mxu0 0
    %4734 = vmatpush1.bf16.msra.mxu0 0
    %4735 = vmatprep.subr.bf16.mxu0 0
    %4736 = vmatpush1.bf16.msra.mxu0 0
    %4737 = vmatprep.subr.bf16.mxu0 0
    %4738 = vmatpush1.bf16.msra.mxu0 0
    %4739 = vmatprep.subr.bf16.mxu0 0
    %4740 = vmatpush1.bf16.msra.mxu0 0
    %4741 = vmatprep.subr.bf16.mxu0 0
    %4742 = vmatpush1.bf16.msra.mxu0 0
    %4743 = vmatprep.subr.bf16.mxu0 0
    %4744 = vmatpush1.bf16.msra.mxu0 0
    %4745 = vmatprep.subr.bf16.mxu0 0
    %4746 = vmatpush1.bf16.msra.mxu0 0
    %4747 = vmatprep.subr.bf16.mxu0 0
    %4748 = vmatpush1.bf16.msra.mxu0 0
    %4749 = vmatprep.subr.bf16.mxu0 0
    %4750 = vmatpush1.bf16.msra.mxu0 0
    %4751 = vmatprep.subr.bf16.mxu0 0
    %4752 = vmatpush1.bf16.msra.mxu0 0
    %4753 = vmatprep.subr.bf16.mxu0 0
    %4754 = vmatpush1.bf16.msra.mxu0 0
    %4755 = vmatprep.subr.bf16.mxu0 0
    %4756 = vmatpush1.bf16.msra.mxu0 0
    %4757 = vmatprep.mubr.bf16.mxu0 0
    %4758 = vmatmul.mubr.bf16.gmra.mrb[0].mxu0 %v4723
    %v4759 = vpop.f32.mrb[0].mxu0
    %v4760 = vadd.f32 0.0, %v4759
    %v4761 = vpop.f32.mrb[0].mxu0
    %v4762 = vpop.f32.mrb[0].mxu0
    %v4763 = vadd.f32 0.0, %v4762
    %v4764 = vpop.f32.mrb[0].mxu0
    %4765 = vdwg.mxu0
    %4767 = vrot.lane.b32.xlu0 %v4640, 120
    %v4768 = vpop.permute.xlu0 %4767
    %4769 = vrot.lane.b32.xlu0 %v4641, 88
    %v4770 = vpop.permute.xlu0 %4769
    %v4772 = vsel %vm259, %v4768, 0
    %v4775 = vsel %vm259, %v4770, 0
    %4777 = vmatprep.subr.bf16.mxu0 0
    %4778 = vmatpush1.bf16.xpose.msra.mxu0 %v4775
    %4779 = vmatprep.subr.bf16.mxu0 0
    %4780 = vmatpush1.bf16.xpose.msra.mxu0 0
    %4781 = vmatprep.subr.bf16.mxu0 0
    %4782 = vmatpush1.bf16.xpose.msra.mxu0 0
    %4783 = vmatprep.subr.bf16.mxu0 0
    %4784 = vmatpush1.bf16.xpose.msra.mxu0 0
    %4785 = vmatprep.subr.bf16.mxu0 0
    %4786 = vmatpush1.bf16.xpose.msra.mxu0 0
    %4787 = vmatprep.subr.bf16.mxu0 0
    %4788 = vmatpush1.bf16.xpose.msra.mxu0 0
    %4789 = vmatprep.subr.bf16.mxu0 0
    %4790 = vmatpush1.bf16.xpose.msra.mxu0 0
    %4791 = vmatprep.subr.bf16.mxu0 0
    %4792 = vmatpush1.bf16.xpose.msra.mxu0 0
    %4793 = vmatprep.subr.bf16.mxu0 0
    %4794 = vmatpush1.bf16.xpose.msra.mxu0 0
    %4795 = vmatprep.subr.bf16.mxu0 0
    %4796 = vmatpush1.bf16.xpose.msra.mxu0 0
    %4797 = vmatprep.subr.bf16.mxu0 0
    %4798 = vmatpush1.bf16.xpose.msra.mxu0 0
    %4799 = vmatprep.subr.bf16.mxu0 0
    %4800 = vmatpush1.bf16.xpose.msra.mxu0 0
    %4801 = vmatprep.subr.bf16.mxu0 0
    %4802 = vmatpush1.bf16.xpose.msra.mxu0 0
    %4803 = vmatprep.subr.bf16.mxu0 0
    %4804 = vmatpush1.bf16.xpose.msra.mxu0 0
    %4805 = vmatprep.subr.bf16.mxu0 0
    %4806 = vmatpush1.bf16.xpose.msra.mxu0 0
    %4807 = vmatprep.subr.bf16.mxu0 0
    %4808 = vmatpush1.bf16.xpose.msra.mxu0 0
    %4809 = vmatprep.mubr.bf16.mxu0 0
    %4810 = vmatmul.mubr.bf16.gmra.mrb[0].mxu0 %v4772
    %v4811 = vpop.f32.mrb[0].mxu0
    %v4812 = vadd.f32 0.0, %v4811
    %v4813 = vpop.f32.mrb[0].mxu0
    %v4814 = vpop.f32.mrb[0].mxu0
    %v4815 = vadd.f32 0.0, %v4814
    %v4816 = vpop.f32.mrb[0].mxu0
    %4817 = vdwg.mxu0
    %v4818 = vmul.f32 %v4812, 0.35355338
    %v4819 = vmul.f32 %v4815, 0.35355338
    %v4820 = vadd.f32 %v4818, %v131
    %v4821 = vadd.f32 %v4819, %v132
    %v4822 = vsel %vm311, %v4820, -inf
    %4823 = vmax.xlane.f32.xlu0 %v4822
    %v4824 = vpop.xlane.xlu0 %4823
    %v4825 = vsel %vm311, %v4821, -inf
    %4826 = vmax.xlane.f32.xlu0 %v4825
    %v4827 = vpop.xlane.xlu0 %4826
    %v4828 = vsub.f32 %v4820, %v4824
    %v4829 = vsub.f32 %v4821, %v4827
    %v4830 = vmul.f32 %v4828, 1.442695
    %v4831 = vpow.pop %v4830
    %v4832 = vmul.f32 %v4829, 1.442695
    %v4833 = vpow.pop %v4832
    %v4834 = vsel %vm311, %v4831, 0.0
    %4835 = vadd.xlane.f32.xlu0 %v4834
    %v4836 = vpop.xlane.xlu0 %4835
    %v4837 = vsel %vm311, %v4833, 0.0
    %4838 = vadd.xlane.f32.xlu0 %v4837
    %v4839 = vpop.xlane.xlu0 %4838
    %v4840 = vrcp.pop %v4836
    %v4841 = vrcp.pop %v4839
    %v4842 = vmul.f32 %v4831, %v4840
    %v4843 = vmul.f32 %v4833, %v4841
    %v4844 = vpack.c.bf16 %v4843, %v4842
    %4845 = vrot.lane.b32.xlu0 %v4641, 56
    %v4846 = vpop.permute.xlu0 %4845
    %v4849 = vsel %vm311, %v4844, 0
    %4851 = vmatprep.subr.bf16.mxu0 0
    %4852 = vmatpush1.bf16.msra.mxu0 %v4846
    %4853 = vmatprep.subr.bf16.mxu0 0
    %4854 = vmatpush1.bf16.msra.mxu0 0
    %4855 = vmatprep.subr.bf16.mxu0 0
    %4856 = vmatpush1.bf16.msra.mxu0 0
    %4857 = vmatprep.subr.bf16.mxu0 0
    %4858 = vmatpush1.bf16.msra.mxu0 0
    %4859 = vmatprep.subr.bf16.mxu0 0
    %4860 = vmatpush1.bf16.msra.mxu0 0
    %4861 = vmatprep.subr.bf16.mxu0 0
    %4862 = vmatpush1.bf16.msra.mxu0 0
    %4863 = vmatprep.subr.bf16.mxu0 0
    %4864 = vmatpush1.bf16.msra.mxu0 0
    %4865 = vmatprep.subr.bf16.mxu0 0
    %4866 = vmatpush1.bf16.msra.mxu0 0
    %4867 = vmatprep.subr.bf16.mxu0 0
    %4868 = vmatpush1.bf16.msra.mxu0 0
    %4869 = vmatprep.subr.bf16.mxu0 0
    %4870 = vmatpush1.bf16.msra.mxu0 0
    %4871 = vmatprep.subr.bf16.mxu0 0
    %4872 = vmatpush1.bf16.msra.mxu0 0
    %4873 = vmatprep.subr.bf16.mxu0 0
    %4874 = vmatpush1.bf16.msra.mxu0 0
    %4875 = vmatprep.subr.bf16.mxu0 0
    %4876 = vmatpush1.bf16.msra.mxu0 0
    %4877 = vmatprep.subr.bf16.mxu0 0
    %4878 = vmatpush1.bf16.msra.mxu0 0
    %4879 = vmatprep.subr.bf16.mxu0 0
    %4880 = vmatpush1.bf16.msra.mxu0 0
    %4881 = vmatprep.subr.bf16.mxu0 0
    %4882 = vmatpush1.bf16.msra.mxu0 0
    %4883 = vmatprep.mubr.bf16.mxu0 0
    %4884 = vmatmul.mubr.bf16.gmra.mrb[0].mxu0 %v4849
    %v4885 = vpop.f32.mrb[0].mxu0
    %v4886 = vadd.f32 0.0, %v4885
    %v4887 = vpop.f32.mrb[0].mxu0
    %v4888 = vpop.f32.mrb[0].mxu0
    %v4889 = vadd.f32 0.0, %v4888
    %v4890 = vpop.f32.mrb[0].mxu0
    %4891 = vdwg.mxu0
    %4892 = vrot.lane.b32.xlu0 %v4640, 112
    %v4893 = vpop.permute.xlu0 %4892
    %4894 = vrot.lane.b32.xlu0 %v4641, 80
    %v4895 = vpop.permute.xlu0 %4894
    %v4897 = vsel %vm259, %v4893, 0
    %v4900 = vsel %vm259, %v4895, 0
    %4902 = vmatprep.subr.bf16.mxu0 0
    %4903 = vmatpush1.bf16.xpose.msra.mxu0 %v4900
    %4904 = vmatprep.subr.bf16.mxu0 0
    %4905 = vmatpush1.bf16.xpose.msra.mxu0 0
    %4906 = vmatprep.subr.bf16.mxu0 0
    %4907 = vmatpush1.bf16.xpose.msra.mxu0 0
    %4908 = vmatprep.subr.bf16.mxu0 0
    %4909 = vmatpush1.bf16.xpose.msra.mxu0 0
    %4910 = vmatprep.subr.bf16.mxu0 0
    %4911 = vmatpush1.bf16.xpose.msra.mxu0 0
    %4912 = vmatprep.subr.bf16.mxu0 0
    %4913 = vmatpush1.bf16.xpose.msra.mxu0 0
    %4914 = vmatprep.subr.bf16.mxu0 0
    %4915 = vmatpush1.bf16.xpose.msra.mxu0 0
    %4916 = vmatprep.subr.bf16.mxu0 0
    %4917 = vmatpush1.bf16.xpose.msra.mxu0 0
    %4918 = vmatprep.subr.bf16.mxu0 0
    %4919 = vmatpush1.bf16.xpose.msra.mxu0 0
    %4920 = vmatprep.subr.bf16.mxu0 0
    %4921 = vmatpush1.bf16.xpose.msra.mxu0 0
    %4922 = vmatprep.subr.bf16.mxu0 0
    %4923 = vmatpush1.bf16.xpose.msra.mxu0 0
    %4924 = vmatprep.subr.bf16.mxu0 0
    %4925 = vmatpush1.bf16.xpose.msra.mxu0 0
    %4926 = vmatprep.subr.bf16.mxu0 0
    %4927 = vmatpush1.bf16.xpose.msra.mxu0 0
    %4928 = vmatprep.subr.bf16.mxu0 0
    %4929 = vmatpush1.bf16.xpose.msra.mxu0 0
    %4930 = vmatprep.subr.bf16.mxu0 0
    %4931 = vmatpush1.bf16.xpose.msra.mxu0 0
    %4932 = vmatprep.subr.bf16.mxu0 0
    %4933 = vmatpush1.bf16.xpose.msra.mxu0 0
    %4934 = vmatprep.mubr.bf16.mxu0 0
    %4935 = vmatmul.mubr.bf16.gmra.mrb[0].mxu0 %v4897
    %v4936 = vpop.f32.mrb[0].mxu0
    %v4937 = vadd.f32 0.0, %v4936
    %v4938 = vpop.f32.mrb[0].mxu0
    %v4939 = vpop.f32.mrb[0].mxu0
    %v4940 = vadd.f32 0.0, %v4939
    %v4941 = vpop.f32.mrb[0].mxu0
    %4942 = vdwg.mxu0
    %v4943 = vmul.f32 %v4937, 0.35355338
    %v4944 = vmul.f32 %v4940, 0.35355338
    %v4945 = vadd.f32 %v4943, %v131
    %v4946 = vadd.f32 %v4944, %v132
    %v4947 = vsel %vm311, %v4945, -inf
    %4948 = vmax.xlane.f32.xlu0 %v4947
    %v4949 = vpop.xlane.xlu0 %4948
    %v4950 = vsel %vm311, %v4946, -inf
    %4951 = vmax.xlane.f32.xlu0 %v4950
    %v4952 = vpop.xlane.xlu0 %4951
    %v4953 = vsub.f32 %v4945, %v4949
    %v4954 = vsub.f32 %v4946, %v4952
    %v4955 = vmul.f32 %v4953, 1.442695
    %v4956 = vpow.pop %v4955
    %v4957 = vmul.f32 %v4954, 1.442695
    %v4958 = vpow.pop %v4957
    %v4959 = vsel %vm311, %v4956, 0.0
    %4960 = vadd.xlane.f32.xlu0 %v4959
    %v4961 = vpop.xlane.xlu0 %4960
    %v4962 = vsel %vm311, %v4958, 0.0
    %4963 = vadd.xlane.f32.xlu0 %v4962
    %v4964 = vpop.xlane.xlu0 %4963
    %v4965 = vrcp.pop %v4961
    %v4966 = vrcp.pop %v4964
    %v4967 = vmul.f32 %v4956, %v4965
    %v4968 = vmul.f32 %v4958, %v4966
    %v4969 = vpack.c.bf16 %v4968, %v4967
    %4970 = vrot.lane.b32.xlu0 %v4641, 48
    %v4971 = vpop.permute.xlu0 %4970
    %v4974 = vsel %vm311, %v4969, 0
    %4976 = vmatprep.subr.bf16.mxu0 0
    %4977 = vmatpush1.bf16.msra.mxu0 %v4971
    %4978 = vmatprep.subr.bf16.mxu0 0
    %4979 = vmatpush1.bf16.msra.mxu0 0
    %4980 = vmatprep.subr.bf16.mxu0 0
    %4981 = vmatpush1.bf16.msra.mxu0 0
    %4982 = vmatprep.subr.bf16.mxu0 0
    %4983 = vmatpush1.bf16.msra.mxu0 0
    %4984 = vmatprep.subr.bf16.mxu0 0
    %4985 = vmatpush1.bf16.msra.mxu0 0
    %4986 = vmatprep.subr.bf16.mxu0 0
    %4987 = vmatpush1.bf16.msra.mxu0 0
    %4988 = vmatprep.subr.bf16.mxu0 0
    %4989 = vmatpush1.bf16.msra.mxu0 0
    %4990 = vmatprep.subr.bf16.mxu0 0
    %4991 = vmatpush1.bf16.msra.mxu0 0
    %4992 = vmatprep.subr.bf16.mxu0 0
    %4993 = vmatpush1.bf16.msra.mxu0 0
    %4994 = vmatprep.subr.bf16.mxu0 0
    %4995 = vmatpush1.bf16.msra.mxu0 0
    %4996 = vmatprep.subr.bf16.mxu0 0
    %4997 = vmatpush1.bf16.msra.mxu0 0
    %4998 = vmatprep.subr.bf16.mxu0 0
    %4999 = vmatpush1.bf16.msra.mxu0 0
    %5000 = vmatprep.subr.bf16.mxu0 0
    %5001 = vmatpush1.bf16.msra.mxu0 0
    %5002 = vmatprep.subr.bf16.mxu0 0
    %5003 = vmatpush1.bf16.msra.mxu0 0
    %5004 = vmatprep.subr.bf16.mxu0 0
    %5005 = vmatpush1.bf16.msra.mxu0 0
    %5006 = vmatprep.subr.bf16.mxu0 0
    %5007 = vmatpush1.bf16.msra.mxu0 0
    %5008 = vmatprep.mubr.bf16.mxu0 0
    %5009 = vmatmul.mubr.bf16.gmra.mrb[0].mxu0 %v4974
    %v5010 = vpop.f32.mrb[0].mxu0
    %v5011 = vadd.f32 0.0, %v5010
    %v5012 = vpop.f32.mrb[0].mxu0
    %v5013 = vpop.f32.mrb[0].mxu0
    %v5014 = vadd.f32 0.0, %v5013
    %v5015 = vpop.f32.mrb[0].mxu0
    %5016 = vdwg.mxu0
    %5017 = vrot.lane.b32.xlu0 %v4640, 104
    %v5018 = vpop.permute.xlu0 %5017
    %5019 = vrot.lane.b32.xlu0 %v4641, 72
    %v5020 = vpop.permute.xlu0 %5019
    %v5022 = vsel %vm259, %v5018, 0
    %v5025 = vsel %vm259, %v5020, 0
    %5027 = vmatprep.subr.bf16.mxu0 0
    %5028 = vmatpush1.bf16.xpose.msra.mxu0 %v5025
    %5029 = vmatprep.subr.bf16.mxu0 0
    %5030 = vmatpush1.bf16.xpose.msra.mxu0 0
    %5031 = vmatprep.subr.bf16.mxu0 0
    %5032 = vmatpush1.bf16.xpose.msra.mxu0 0
    %5033 = vmatprep.subr.bf16.mxu0 0
    %5034 = vmatpush1.bf16.xpose.msra.mxu0 0
    %5035 = vmatprep.subr.bf16.mxu0 0
    %5036 = vmatpush1.bf16.xpose.msra.mxu0 0
    %5037 = vmatprep.subr.bf16.mxu0 0
    %5038 = vmatpush1.bf16.xpose.msra.mxu0 0
    %5039 = vmatprep.subr.bf16.mxu0 0
    %5040 = vmatpush1.bf16.xpose.msra.mxu0 0
    %5041 = vmatprep.subr.bf16.mxu0 0
    %5042 = vmatpush1.bf16.xpose.msra.mxu0 0
    %5043 = vmatprep.subr.bf16.mxu0 0
    %5044 = vmatpush1.bf16.xpose.msra.mxu0 0
    %5045 = vmatprep.subr.bf16.mxu0 0
    %5046 = vmatpush1.bf16.xpose.msra.mxu0 0
    %5047 = vmatprep.subr.bf16.mxu0 0
    %5048 = vmatpush1.bf16.xpose.msra.mxu0 0
    %5049 = vmatprep.subr.bf16.mxu0 0
    %5050 = vmatpush1.bf16.xpose.msra.mxu0 0
    %5051 = vmatprep.subr.bf16.mxu0 0
    %5052 = vmatpush1.bf16.xpose.msra.mxu0 0
    %5053 = vmatprep.subr.bf16.mxu0 0
    %5054 = vmatpush1.bf16.xpose.msra.mxu0 0
    %5055 = vmatprep.subr.bf16.mxu0 0
    %5056 = vmatpush1.bf16.xpose.msra.mxu0 0
    %5057 = vmatprep.subr.bf16.mxu0 0
    %5058 = vmatpush1.bf16.xpose.msra.mxu0 0
    %5059 = vmatprep.mubr.bf16.mxu0 0
    %5060 = vmatmul.mubr.bf16.gmra.mrb[0].mxu0 %v5022
    %v5061 = vpop.f32.mrb[0].mxu0
    %v5062 = vadd.f32 0.0, %v5061
    %v5063 = vpop.f32.mrb[0].mxu0
    %v5064 = vpop.f32.mrb[0].mxu0
    %v5065 = vadd.f32 0.0, %v5064
    %v5066 = vpop.f32.mrb[0].mxu0
    %5067 = vdwg.mxu0
    %v5068 = vmul.f32 %v5062, 0.35355338
    %v5069 = vmul.f32 %v5065, 0.35355338
    %v5070 = vadd.f32 %v5068, %v131
    %v5071 = vadd.f32 %v5069, %v132
    %v5072 = vsel %vm311, %v5070, -inf
    %5073 = vmax.xlane.f32.xlu0 %v5072
    %v5074 = vpop.xlane.xlu0 %5073
    %v5075 = vsel %vm311, %v5071, -inf
    %5076 = vmax.xlane.f32.xlu0 %v5075
    %v5077 = vpop.xlane.xlu0 %5076
    %v5078 = vsub.f32 %v5070, %v5074
    %v5079 = vsub.f32 %v5071, %v5077
    %v5080 = vmul.f32 %v5078, 1.442695
    %v5081 = vpow.pop %v5080
    %v5082 = vmul.f32 %v5079, 1.442695
    %v5083 = vpow.pop %v5082
    %v5084 = vsel %vm311, %v5081, 0.0
    %5085 = vadd.xlane.f32.xlu0 %v5084
    %v5086 = vpop.xlane.xlu0 %5085
    %v5087 = vsel %vm311, %v5083, 0.0
    %5088 = vadd.xlane.f32.xlu0 %v5087
    %v5089 = vpop.xlane.xlu0 %5088
    %v5090 = vrcp.pop %v5086
    %v5091 = vrcp.pop %v5089
    %v5092 = vmul.f32 %v5081, %v5090
    %v5093 = vmul.f32 %v5083, %v5091
    %v5094 = vpack.c.bf16 %v5093, %v5092
    %5095 = vrot.lane.b32.xlu0 %v4641, 40
    %v5096 = vpop.permute.xlu0 %5095
    %v5099 = vsel %vm311, %v5094, 0
    %5101 = vmatprep.subr.bf16.mxu0 0
    %5102 = vmatpush1.bf16.msra.mxu0 %v5096
    %5103 = vmatprep.subr.bf16.mxu0 0
    %5104 = vmatpush1.bf16.msra.mxu0 0
    %5105 = vmatprep.subr.bf16.mxu0 0
    %5106 = vmatpush1.bf16.msra.mxu0 0
    %5107 = vmatprep.subr.bf16.mxu0 0
    %5108 = vmatpush1.bf16.msra.mxu0 0
    %5109 = vmatprep.subr.bf16.mxu0 0
    %5110 = vmatpush1.bf16.msra.mxu0 0
    %5111 = vmatprep.subr.bf16.mxu0 0
    %5112 = vmatpush1.bf16.msra.mxu0 0
    %5113 = vmatprep.subr.bf16.mxu0 0
    %5114 = vmatpush1.bf16.msra.mxu0 0
    %5115 = vmatprep.subr.bf16.mxu0 0
    %5116 = vmatpush1.bf16.msra.mxu0 0
    %5117 = vmatprep.subr.bf16.mxu0 0
    %5118 = vmatpush1.bf16.msra.mxu0 0
    %5119 = vmatprep.subr.bf16.mxu0 0
    %5120 = vmatpush1.bf16.msra.mxu0 0
    %5121 = vmatprep.subr.bf16.mxu0 0
    %5122 = vmatpush1.bf16.msra.mxu0 0
    %5123 = vmatprep.subr.bf16.mxu0 0
    %5124 = vmatpush1.bf16.msra.mxu0 0
    %5125 = vmatprep.subr.bf16.mxu0 0
    %5126 = vmatpush1.bf16.msra.mxu0 0
    %5127 = vmatprep.subr.bf16.mxu0 0
    %5128 = vmatpush1.bf16.msra.mxu0 0
    %5129 = vmatprep.subr.bf16.mxu0 0
    %5130 = vmatpush1.bf16.msra.mxu0 0
    %5131 = vmatprep.subr.bf16.mxu0 0
    %5132 = vmatpush1.bf16.msra.mxu0 0
    %5133 = vmatprep.mubr.bf16.mxu0 0
    %5134 = vmatmul.mubr.bf16.gmra.mrb[0].mxu0 %v5099
    %v5135 = vpop.f32.mrb[0].mxu0
    %v5136 = vadd.f32 0.0, %v5135
    %v5137 = vpop.f32.mrb[0].mxu0
    %v5138 = vpop.f32.mrb[0].mxu0
    %v5139 = vadd.f32 0.0, %v5138
    %v5140 = vpop.f32.mrb[0].mxu0
    %5141 = vdwg.mxu0
    %5144 = vrot.lane.b32.xlu0 %v4886, 8
    %v5145 = vpop.permute.xlu0 %5144
    %5146 = vrot.lane.b32.xlu0 %v4889, 8
    %v5147 = vpop.permute.xlu0 %5146
    %5152 = vrot.lane.b32.xlu0 %v5011, 16
    %v5153 = vpop.permute.xlu0 %5152
    %5154 = vrot.lane.b32.xlu0 %v5014, 16
    %v5155 = vpop.permute.xlu0 %5154
    %5160 = vrot.lane.b32.xlu0 %v5136, 24
    %v5161 = vpop.permute.xlu0 %5160
    %5162 = vrot.lane.b32.xlu0 %v5139, 24
    %v5163 = vpop.permute.xlu0 %5162
    %v5166 = vsel %vm259, %v4760, %v5145
    %v5167 = vsel %vm259, %v4763, %v5147
    %v5168 = vsel %vm311, %v5166, %v5153
    %v5169 = vsel %vm311, %v5167, %v5155
    %v5170 = vsel %vm785, %v5168, %v5161
    %v5171 = vsel %vm785, %v5169, %v5163
    %v5172 = vpack.c.bf16 %v5171, %v5170
    %5173 = vrot.lane.b32.xlu0 %v4551, 32
    %v5174 = vpop.permute.xlu0 %5173
    %5175 = vrot.lane.b32.xlu0 %v4552, 32
    %v5176 = vpop.permute.xlu0 %5175
    %5180 = vrot.lane.b32.xlu0 %v4542, 32
    %v5181 = vpop.permute.xlu0 %5180
    %v5184 = vsel %vm135, %v5172, 0
    %5186 = vmatprep.subr.bf16.mxu0 0
    %5187 = vmatpush1.bf16.msra.mxu0 %v5174
    %5188 = vmatprep.subr.bf16.mxu0 0
    %5189 = vmatpush1.bf16.msra.mxu0 %v5176
    %5190 = vmatprep.subr.bf16.mxu0 0
    %5191 = vmatpush1.bf16.msra.mxu0 0
    %5192 = vmatprep.subr.bf16.mxu0 0
    %5193 = vmatpush1.bf16.msra.mxu0 0
    %5194 = vmatprep.subr.bf16.mxu0 0
    %5195 = vmatpush1.bf16.msra.mxu0 0
    %5196 = vmatprep.subr.bf16.mxu0 0
    %5197 = vmatpush1.bf16.msra.mxu0 0
    %5198 = vmatprep.subr.bf16.mxu0 0
    %5199 = vmatpush1.bf16.msra.mxu0 0
    %5200 = vmatprep.subr.bf16.mxu0 0
    %5201 = vmatpush1.bf16.msra.mxu0 0
    %5202 = vmatprep.subr.bf16.mxu0 0
    %5203 = vmatpush1.bf16.msra.mxu0 0
    %5204 = vmatprep.subr.bf16.mxu0 0
    %5205 = vmatpush1.bf16.msra.mxu0 0
    %5206 = vmatprep.subr.bf16.mxu0 0
    %5207 = vmatpush1.bf16.msra.mxu0 0
    %5208 = vmatprep.subr.bf16.mxu0 0
    %5209 = vmatpush1.bf16.msra.mxu0 0
    %5210 = vmatprep.subr.bf16.mxu0 0
    %5211 = vmatpush1.bf16.msra.mxu0 0
    %5212 = vmatprep.subr.bf16.mxu0 0
    %5213 = vmatpush1.bf16.msra.mxu0 0
    %5214 = vmatprep.subr.bf16.mxu0 0
    %5215 = vmatpush1.bf16.msra.mxu0 0
    %5216 = vmatprep.subr.bf16.mxu0 0
    %5217 = vmatpush1.bf16.msra.mxu0 0
    %5218 = vmatprep.mubr.bf16.mxu0 0
    %5219 = vmatmul.mubr.bf16.gmra.mrb[0].mxu0 %v5184
    %v5220 = vpop.f32.mrb[0].mxu0
    %v5221 = vadd.f32 %v5181, %v5220
    %v5222 = vpop.f32.mrb[0].mxu0
    %v5223 = vpop.f32.mrb[0].mxu0
    %v5224 = vadd.f32 %v5181, %v5223
    %v5225 = vpop.f32.mrb[0].mxu0
    %5226 = vdwg.mxu0
    %v5227 = vadd.f32 %v4477, %v5221
    %v5228 = vadd.f32 %v4478, %v5224
    %v5229 = vld [vmem:[#allocation13 + $0x20] sm:$0x1]
    %v5230 = vld [vmem:[#allocation13 + $0x21] sm:$0x1]
    %v5231 = vsel %vm135, %v5227, 0.0
    %5232 = vadd.xlane.f32.xlu0 %v5231
    %v5233 = vpop.xlane.xlu0 %5232
    %v5234 = vsel %vm135, %v5228, 0.0
    %5235 = vadd.xlane.f32.xlu0 %v5234
    %v5236 = vpop.xlane.xlu0 %5235
    %v5237 = vmul.f32 %v5233, %v142
    %v5238 = vmul.f32 %v5236, %v142
    %v5239 = vsub.f32 %v5227, %v5237
    %v5240 = vsub.f32 %v5228, %v5238
    %v5241 = vmul.f32 %v5239, %v5239
    %v5242 = vmul.f32 %v5240, %v5240
    %v5243 = vsel %vm135, %v5241, 0.0
    %5244 = vadd.xlane.f32.xlu0 %v5243
    %v5245 = vpop.xlane.xlu0 %5244
    %v5246 = vsel %vm135, %v5242, 0.0
    %5247 = vadd.xlane.f32.xlu0 %v5246
    %v5248 = vpop.xlane.xlu0 %5247
    %v5249 = vmul.f32 %v5245, 0.032258064
    %v5250 = vmul.f32 %v5248, 0.032258064
    %v5251 = vrsqrt.pop %v5249
    %v5252 = vmul.f32 %v5249, %v5251
    %vm5253 = vcmp.eq.f32.partialorder %v5249, inf
    %v5254 = vsel %vm5253, %v5249, %v5252
    %vm5255 = vcmp.eq.f32.partialorder %v5249, 0.0
    %v5256 = vand.u32 %v5249, 2147483648
    %v5257 = vsel %vm5255, %v5256, %v5254
    %v5258 = vrsqrt.pop %v5250
    %v5259 = vmul.f32 %v5250, %v5258
    %vm5260 = vcmp.eq.f32.partialorder %v5250, inf
    %v5261 = vsel %vm5260, %v5250, %v5259
    %vm5262 = vcmp.eq.f32.partialorder %v5250, 0.0
    %v5263 = vand.u32 %v5250, 2147483648
    %v5264 = vsel %vm5262, %v5263, %v5261
    %v5265 = vadd.f32 %v5257, 1e-06
    %v5266 = vadd.f32 %v5264, 1e-06
    %v5267 = vrcp.pop %v5265
    %v5268 = vrcp.pop %v5266
    %v5269 = vlaneseq
    %v5270 = vshrl.u32 %v5269, 7
    %v5271 = vsub.s32 0, %v5270
    %v5272 = vrot.slane %v5229, %v5271
    %v5273 = vmul.f32 %v5272, %v5239
    %v5274 = vmul.f32 %v5272, %v5240
    %v5275 = vmul.f32 %v5273, %v5267
    %v5276 = vmul.f32 %v5274, %v5268
    %v5277 = vlaneseq
    %v5278 = vshrl.u32 %v5277, 7
    %v5279 = vsub.s32 0, %v5278
    %v5280 = vrot.slane %v5230, %v5279
    %v5281 = vadd.f32 %v5275, %v5280
    %v5282 = vadd.f32 %v5276, %v5280
    %v5283 = vld [vmem:[#allocation11 + $0x150] sm:$0xf]
    %v5284 = vld [vmem:[#allocation11 + $0x154] sm:$0xf]
    %v5285 = vld [vmem:[#allocation11 + $0x158] sm:$0xf]
    %v5286 = vld [vmem:[#allocation11 + $0x15c] sm:$0xf]
    %v5287 = vld [vmem:[#allocation13 + $0x22] sm:$0x1]
    %v5288 = vld [vmem:[#allocation11 + $0x160] sm:$0xf]
    %v5289 = vld [vmem:[#allocation11 + $0x164] sm:$0xf]
    %v5290 = vld [vmem:[#allocation11 + $0x168] sm:$0xf]
    %v5291 = vld [vmem:[#allocation11 + $0x16c] sm:$0xf]
    %v5292 = vld [vmem:[#allocation11 + $0x170] sm:$0xf]
    %v5293 = vld [vmem:[#allocation11 + $0x174] sm:$0xf]
    %v5294 = vld [vmem:[#allocation11 + $0x178] sm:$0xf]
    %v5295 = vld [vmem:[#allocation11 + $0x17c] sm:$0xf]
    %v5296 = vld [vmem:[#allocation11 + $0x180] sm:$0xf]
    %v5297 = vld [vmem:[#allocation11 + $0x184] sm:$0xf]
    %v5298 = vld [vmem:[#allocation11 + $0x188] sm:$0xf]
    %v5299 = vld [vmem:[#allocation11 + $0x18c] sm:$0xf]
    %v5300 = vld [vmem:[#allocation11 + $0x190] sm:$0xf]
    %v5301 = vld [vmem:[#allocation11 + $0x194] sm:$0xf]
    %v5302 = vld [vmem:[#allocation11 + $0x198] sm:$0xf]
    %v5303 = vld [vmem:[#allocation11 + $0x19c] sm:$0xf]
    %v5304 = vld [vmem:[#allocation13 + $0x23] sm:$0x1]
    %v5305 = vpack.c.bf16 %v5282, %v5281
    %v5306 = vlaneseq
    %v5307 = vshrl.u32 %v5306, 7
    %v5308 = vsub.s32 0, %v5307
    %v5309 = vrot.slane %v5287, %v5308
    %v5314 = vunpack.c.l.b16 %v5283
    %v5315 = vunpack.c.l.b16 %v5284
    %v5316 = vunpack.c.l.b16 %v5285
    %v5317 = vunpack.c.l.b16 %v5286
    %v5318 = vpack.c.b16 %v5315, %v5314
    %v5319 = vpack.c.b16 %v5317, %v5316
    %v5323 = vsel %vm135, %v5305, 0
    %5325 = vmatprep.subr.bf16.mxu0 0
    %5326 = vmatpush1.bf16.msra.mxu0 %v5318
    %5327 = vmatprep.subr.bf16.mxu0 0
    %5328 = vmatpush1.bf16.msra.mxu0 %v5319
    %5329 = vmatprep.subr.bf16.mxu0 0
    %5330 = vmatpush1.bf16.msra.mxu0 0
    %5331 = vmatprep.subr.bf16.mxu0 0
    %5332 = vmatpush1.bf16.msra.mxu0 0
    %5333 = vmatprep.subr.bf16.mxu0 0
    %5334 = vmatpush1.bf16.msra.mxu0 0
    %5335 = vmatprep.subr.bf16.mxu0 0
    %5336 = vmatpush1.bf16.msra.mxu0 0
    %5337 = vmatprep.subr.bf16.mxu0 0
    %5338 = vmatpush1.bf16.msra.mxu0 0
    %5339 = vmatprep.subr.bf16.mxu0 0
    %5340 = vmatpush1.bf16.msra.mxu0 0
    %5341 = vmatprep.subr.bf16.mxu0 0
    %5342 = vmatpush1.bf16.msra.mxu0 0
    %5343 = vmatprep.subr.bf16.mxu0 0
    %5344 = vmatpush1.bf16.msra.mxu0 0
    %5345 = vmatprep.subr.bf16.mxu0 0
    %5346 = vmatpush1.bf16.msra.mxu0 0
    %5347 = vmatprep.subr.bf16.mxu0 0
    %5348 = vmatpush1.bf16.msra.mxu0 0
    %5349 = vmatprep.subr.bf16.mxu0 0
    %5350 = vmatpush1.bf16.msra.mxu0 0
    %5351 = vmatprep.subr.bf16.mxu0 0
    %5352 = vmatpush1.bf16.msra.mxu0 0
    %5353 = vmatprep.subr.bf16.mxu0 0
    %5354 = vmatpush1.bf16.msra.mxu0 0
    %5355 = vmatprep.subr.bf16.mxu0 0
    %5356 = vmatpush1.bf16.msra.mxu0 0
    %5357 = vmatprep.mubr.bf16.mxu0 0
    %5358 = vmatmul.mubr.bf16.gmra.mrb[0].mxu0 %v5323
    %v5359 = vpop.f32.mrb[0].mxu0
    %v5360 = vadd.f32 %v5309, %v5359
    %v5361 = vpop.f32.mrb[0].mxu0
    %v5362 = vpop.f32.mrb[0].mxu0
    %v5363 = vadd.f32 %v5309, %v5362
    %v5364 = vpop.f32.mrb[0].mxu0
    %5365 = vdwg.mxu0
    %v5366 = vmax.f32 %v5360, 0.0
    %v5367 = vmax.f32 %v5363, 0.0
    %v5368 = vpack.c.bf16 %v5367, %v5366
    %v5369 = vlaneseq
    %v5370 = vshrl.u32 %v5369, 7
    %v5371 = vsub.s32 0, %v5370
    %v5372 = vrot.slane %v5304, %v5371
    %v5389 = vunpack.c.l.b16 %v5288
    %v5390 = vunpack.c.l.b16 %v5289
    %v5391 = vunpack.c.l.b16 %v5290
    %v5392 = vunpack.c.l.b16 %v5291
    %v5393 = vunpack.c.l.b16 %v5292
    %v5394 = vunpack.c.l.b16 %v5293
    %v5395 = vunpack.c.l.b16 %v5294
    %v5396 = vunpack.c.l.b16 %v5295
    %v5397 = vunpack.c.l.b16 %v5296
    %v5398 = vunpack.c.l.b16 %v5297
    %v5399 = vunpack.c.l.b16 %v5298
    %v5400 = vunpack.c.l.b16 %v5299
    %v5401 = vunpack.c.l.b16 %v5300
    %v5402 = vunpack.c.l.b16 %v5301
    %v5403 = vunpack.c.l.b16 %v5302
    %v5404 = vunpack.c.l.b16 %v5303
    %v5405 = vpack.c.b16 %v5390, %v5389
    %v5406 = vpack.c.b16 %v5392, %v5391
    %v5407 = vpack.c.b16 %v5394, %v5393
    %v5408 = vpack.c.b16 %v5396, %v5395
    %v5409 = vpack.c.b16 %v5398, %v5397
    %v5410 = vpack.c.b16 %v5400, %v5399
    %v5411 = vpack.c.b16 %v5402, %v5401
    %v5412 = vpack.c.b16 %v5404, %v5403
    %5421 = vmatprep.subr.bf16.mxu0 0
    %5422 = vmatpush1.bf16.msra.mxu0 %v5405
    %5423 = vmatprep.subr.bf16.mxu0 0
    %5424 = vmatpush1.bf16.msra.mxu0 %v5406
    %5425 = vmatprep.subr.bf16.mxu0 0
    %5426 = vmatpush1.bf16.msra.mxu0 %v5407
    %5427 = vmatprep.subr.bf16.mxu0 0
    %5428 = vmatpush1.bf16.msra.mxu0 %v5408
    %5429 = vmatprep.subr.bf16.mxu0 0
    %5430 = vmatpush1.bf16.msra.mxu0 %v5409
    %5431 = vmatprep.subr.bf16.mxu0 0
    %5432 = vmatpush1.bf16.msra.mxu0 %v5410
    %5433 = vmatprep.subr.bf16.mxu0 0
    %5434 = vmatpush1.bf16.msra.mxu0 %v5411
    %5435 = vmatprep.subr.bf16.mxu0 0
    %5436 = vmatpush1.bf16.msra.mxu0 %v5412
    %5437 = vmatprep.subr.bf16.mxu0 0
    %5438 = vmatpush1.bf16.msra.mxu0 0
    %5439 = vmatprep.subr.bf16.mxu0 0
    %5440 = vmatpush1.bf16.msra.mxu0 0
    %5441 = vmatprep.subr.bf16.mxu0 0
    %5442 = vmatpush1.bf16.msra.mxu0 0
    %5443 = vmatprep.subr.bf16.mxu0 0
    %5444 = vmatpush1.bf16.msra.mxu0 0
    %5445 = vmatprep.subr.bf16.mxu0 0
    %5446 = vmatpush1.bf16.msra.mxu0 0
    %5447 = vmatprep.subr.bf16.mxu0 0
    %5448 = vmatpush1.bf16.msra.mxu0 0
    %5449 = vmatprep.subr.bf16.mxu0 0
    %5450 = vmatpush1.bf16.msra.mxu0 0
    %5451 = vmatprep.subr.bf16.mxu0 0
    %5452 = vmatpush1.bf16.msra.mxu0 0
    %5453 = vmatprep.mubr.bf16.mxu0 0
    %5454 = vmatmul.mubr.bf16.gmra.mrb[0].mxu0 %v5368
    %v5455 = vpop.f32.mrb[0].mxu0
    %v5456 = vadd.f32 %v5372, %v5455
    %v5457 = vpop.f32.mrb[0].mxu0
    %v5458 = vpop.f32.mrb[0].mxu0
    %v5459 = vadd.f32 %v5372, %v5458
    %v5460 = vpop.f32.mrb[0].mxu0
    %5461 = vdwg.mxu0
    %v5462 = vadd.f32 %v5227, %v5456
    %v5463 = vadd.f32 %v5228, %v5459
    %v5464 = vld [vmem:[#allocation13 + $0x24] sm:$0x1]
    %v5465 = vld [vmem:[#allocation13 + $0x25] sm:$0x1]
    %v5466 = vsel %vm135, %v5462, 0.0
    %5467 = vadd.xlane.f32.xlu0 %v5466
    %v5468 = vpop.xlane.xlu0 %5467
    %v5469 = vsel %vm135, %v5463, 0.0
    %5470 = vadd.xlane.f32.xlu0 %v5469
    %v5471 = vpop.xlane.xlu0 %5470
    %v5472 = vmul.f32 %v5468, %v142
    %v5473 = vmul.f32 %v5471, %v142
    %v5474 = vsub.f32 %v5462, %v5472
    %v5475 = vsub.f32 %v5463, %v5473
    %v5476 = vmul.f32 %v5474, %v5474
    %v5477 = vmul.f32 %v5475, %v5475
    %v5478 = vsel %vm135, %v5476, 0.0
    %5479 = vadd.xlane.f32.xlu0 %v5478
    %v5480 = vpop.xlane.xlu0 %5479
    %v5481 = vsel %vm135, %v5477, 0.0
    %5482 = vadd.xlane.f32.xlu0 %v5481
    %v5483 = vpop.xlane.xlu0 %5482
    %v5484 = vmul.f32 %v5480, 0.032258064
    %v5485 = vmul.f32 %v5483, 0.032258064
    %v5486 = vrsqrt.pop %v5484
    %v5487 = vmul.f32 %v5484, %v5486
    %vm5488 = vcmp.eq.f32.partialorder %v5484, inf
    %v5489 = vsel %vm5488, %v5484, %v5487
    %vm5490 = vcmp.eq.f32.partialorder %v5484, 0.0
    %v5491 = vand.u32 %v5484, 2147483648
    %v5492 = vsel %vm5490, %v5491, %v5489
    %v5493 = vrsqrt.pop %v5485
    %v5494 = vmul.f32 %v5485, %v5493
    %vm5495 = vcmp.eq.f32.partialorder %v5485, inf
    %v5496 = vsel %vm5495, %v5485, %v5494
    %vm5497 = vcmp.eq.f32.partialorder %v5485, 0.0
    %v5498 = vand.u32 %v5485, 2147483648
    %v5499 = vsel %vm5497, %v5498, %v5496
    %v5500 = vadd.f32 %v5492, 1e-06
    %v5501 = vadd.f32 %v5499, 1e-06
    %v5502 = vrcp.pop %v5500
    %v5503 = vrcp.pop %v5501
    %v5504 = vlaneseq
    %v5505 = vshrl.u32 %v5504, 7
    %v5506 = vsub.s32 0, %v5505
    %v5507 = vrot.slane %v5464, %v5506
    %v5508 = vmul.f32 %v5507, %v5474
    %v5509 = vmul.f32 %v5507, %v5475
    %v5510 = vmul.f32 %v5508, %v5502
    %v5511 = vmul.f32 %v5509, %v5503
    %v5512 = vlaneseq
    %v5513 = vshrl.u32 %v5512, 7
    %v5514 = vsub.s32 0, %v5513
    %v5515 = vrot.slane %v5465, %v5514
    %v5516 = vadd.f32 %v5510, %v5515
    %v5517 = vadd.f32 %v5511, %v5515
    %5518 = vst.msk [vmem:[#allocation14] sm:$0xff] %vm135, %v5516
    %5519 = vst.msk [vmem:[#allocation14 + $0x8] sm:$0xff] %vm135, %v5517
    // Predicated region
    $region58: #{tpu_custom_call.1} parent=1 // pred_check
      _
    $region59: #{tpu_custom_call.1} parent=1 // pred_check_branch
      %5521 = sbr.rel (0) target = $region61
    $region60: #{tpu_custom_call.1} parent=1 // pred_region
      %s5523 = ssub.s32 256, 256
      %5524 = vsyncadd [#allocation4], %s5523
      %s5525 = sshll.u32 [#allocation14], 4
      %s5526 = int_to_ptr.vmem [resolvable:$true] %s5525
      %5531 = dma.vmem_to_hbm [thread:$0]  %s5526, 256, %s7, [#allocation4], 128, 128, 8
    $region61: #{tpu_custom_call.1} parent=1 // pred_fallthru
      _
    // Predicated region
    $region62: #{tpu_custom_call.1} parent=1 // pred_check
      _
    $region63: #{tpu_custom_call.1} parent=1 // pred_check_branch
      %5533 = sbr.rel (0) target = $region65
    $region64: #{tpu_custom_call.1} parent=1 // pred_region
      %5534 = dma.done [#allocation4], 256
    $region65: #{tpu_custom_call.1} parent=1 // pred_fallthru
      _
    %5535 = vsyncpa [#allocation3], 1
    %5536 = vsyncpa [#allocation6], 1
    %5537 = vsyncpa [#allocation9], 1
    %5538 = vsyncpa [#allocation12], 1
    %5539 = vsyncpa [#allocation4], 1

</llo_original>
